<compile_context>
chip_gen: v7x
topology: tpu7x:2x2x1
jax: 0.10.0
libtpu: 0.0.40
codegen_flags: <defaults>
</compile_context>

<pallas_src>
import functools
import math

import jax
import jax.numpy as jnp
from jax.experimental import pallas as pl
from jax.experimental.pallas import tpu as pltpu

# ----------------------------- configuration (small, self-consistent) -----------------------
BS, NC = 2, 2                 # batch_size, num_choice
B = BS * NC                   # flattened batch
SEQ = 8                       # synthetic LM sequence length
VOCAB = 50                    # synthetic LM vocab
SENT_DIM = 48                 # encoder.sent_dim
D = 32                        # concept_dim = hidden_size
D_HALF = D // 2
N_NTYPE = 4
N_ETYPE = 6
N_NODE = 8
N_CONCEPT = 20
N_ATT_HEAD = 2                # pooler heads
FC_DIM = 32
K_GNN = 2                     # number of GNN layers
HEAD_COUNT = 4                # GATConvE heads
DPH = D // HEAD_COUNT         # dim_per_head
E_PER = 5                     # edges per (example, choice)
BN_EPS = 1e-5
LN_EPS = 1e-5

# Matmul operand dtype.  f32 keeps the one-hot gather/scatter matmuls exact; at production
# sizes on v6e/v7x flip to jnp.bfloat16 (accumulation stays f32 via preferred_element_type).
MM_DTYPE = jnp.float32


def fs(shape):
    """Full-array BlockSpec for a grid=(1,) pallas_call."""
    r = len(shape)
    return pl.BlockSpec(shape, lambda *_, r=r: (0,) * r)


def _dot(a, b):
    return jnp.dot(a.astype(MM_DTYPE), b.astype(MM_DTYPE), preferred_element_type=jnp.float32)


def _erf(x):
    # Abramowitz & Stegun 7.1.26 (|err| < 1.5e-7): exp/mul/add only -> clean Mosaic lowering.
    a1, a2, a3, a4, a5, p = (0.254829592, -0.284496736, 1.421413741,
                             -1.453152027, 1.061405429, 0.3275911)
    ax = jnp.abs(x)
    t = 1.0 / (1.0 + p * ax)
    poly = ((((a5 * t + a4) * t + a3) * t + a2) * t + a1) * t
    y = 1.0 - poly * jnp.exp(-ax * ax)
    return jnp.where(x >= 0.0, y, -y)


def _gelu(x):
    # repo's GELU: x * 0.5 * (1 + erf(x / sqrt(2)))
    return 0.5 * x * (1.0 + _erf(x * (1.0 / math.sqrt(2.0))))


# ----------------------------------- Pallas kernels -----------------------------------------
def _linear_kernel(x_ref, w_ref, b_ref, o_ref, *, act):
    y = _dot(x_ref[...], w_ref[...]) + b_ref[...]
    if act == "relu":
        y = jnp.maximum(y, 0.0)
    elif act == "gelu":
        y = _gelu(y)
    o_ref[...] = y


def _gnn_kernel(sv_ref, emb1_ref, nfe_ref, ein_ref, src_ref, tgt_ref, tgtr_ref,
                s2n_w_ref, s2n_b_ref, nfe_w_ref, nfe_b_ref,
                ew1_ref, eb1_ref, ew2_ref, eb2_ref,
                wkmq_ref, bkmq_ref, mw1_ref, mb1_ref, mw2_ref, mb2_ref,
                vh_w_ref, vh_b_ref, vx_w_ref, vx_b_ref,
                o_ref, h_scr, *, nb, n_node, k_gnn, inv_sqrt_dh):
    """Fused QAGNN_Message_Passing (+ svec2nvec / gnn_input assembly / Vh+Vx)."""
    # --- 1) gnn_input: node 0 per example = gelu(svec2nvec(sent)), nodes 1.. = concept emb ---
    g0 = _gelu(_dot(sv_ref[...], s2n_w_ref[...]) + s2n_b_ref[...])                  # (nb, D)
    npm1 = n_node - 1
    for b in range(nb):                                                             # static
        h_scr[b * n_node:b * n_node + 1, :] = g0[b:b + 1, :]
        h_scr[b * n_node + 1:(b + 1) * n_node, :] = emb1_ref[b * npm1:(b + 1) * npm1, :]
    H = h_scr[...]                                                                  # (NT, D)
    NT = H.shape[0]

    # --- 2) node_feature_extra via ONE block-diagonal matmul + GELU (concat is implicit) ---
    xe = _gelu(_dot(nfe_ref[...], nfe_w_ref[...]) + nfe_b_ref[...])                 # (NT, D)

    # --- 3) layer-invariant graph structure (built once, reused across layers) ---
    src = src_ref[...]                    # (E, 1) int32 edge source (incl. self loops)
    tgt = tgt_ref[...]                    # (E, 1) int32 edge target
    tgt_row = tgtr_ref[...]               # (1, E) int32
    E = src.shape[0]
    col_node = jax.lax.broadcasted_iota(jnp.int32, (E, NT), 1)
    src_mask = col_node == src                                                      # (E, NT)
    ssrc = jnp.where(src_mask, 1.0, 0.0)                                            # (E, NT)
    stgt = jnp.where(col_node == tgt, 1.0, 0.0)                                     # (E, NT)
    stgt_t = jnp.where(
        jax.lax.broadcasted_iota(jnp.int32, (NT, E), 1) == tgt_row, 1.0, 0.0)       # (NT, E)
    node_cnt = jnp.sum(ssrc, axis=0, keepdims=True)                                 # (1, NT)
    cnt_e = jnp.sum(ssrc * node_cnt, axis=1, keepdims=True)                         # (E, 1)

    # head one-hot (D, H) for per-head score reduction; (1, D) lane iota for broadcast back
    hl = jax.lax.broadcasted_iota(jnp.int32, (D, HEAD_COUNT), 0)
    hc = jax.lax.broadcasted_iota(jnp.int32, (D, HEAD_COUNT), 1)
    head_oh = jnp.where((hl >= hc * DPH) & (hl < (hc + 1) * DPH), 1.0, 0.0)         # (D, H)
    lane_row = jax.lax.broadcasted_iota(jnp.int32, (1, D), 1)

    # --- 4) edge_encoder (shared module, identical input every layer -> compute ONCE) ---
    eh = jnp.maximum(_dot(ein_ref[...], ew1_ref[...]) + eb1_ref[...], 0.0)
    ea = _dot(eh, ew2_ref[...]) + eb2_ref[...]                                      # (E, D)

    # --- 5) K GATConvE layers ---
    X = H
    for l in range(k_gnn):                                                          # static
        W = wkmq_ref[l * 5 * D:(l + 1) * 5 * D, :]                                  # (5D, 3D)
        b_kmq = bkmq_ref[l:l + 1, :]                                                # (1, 3D)
        # key|msg|query from ONE packed lane-dense weight; gather reassociated
        # (project node features once, then one-hot-gather per edge endpoint).
        proj_i = _dot(X, W[0:D]) + _dot(xe, W[D:2 * D])                             # (NT, 3D)
        proj_j = _dot(X, W[2 * D:3 * D]) + _dot(xe, W[3 * D:4 * D])                 # (NT, 3D)
        kmq = (_dot(stgt, proj_i) + _dot(ssrc, proj_j)
               + _dot(ea, W[4 * D:5 * D]) + b_kmq)                                  # (E, 3D)
        key = kmq[:, 0:D]
        msg = kmq[:, D:2 * D]
        qry = kmq[:, 2 * D:3 * D] * inv_sqrt_dh
        s_all = _dot(qry * key, head_oh)                                            # (E, H)

        alpha_exp = None
        for h in range(HEAD_COUNT):                                                 # static
            hm = jnp.where((lane_row >= h * DPH) & (lane_row < (h + 1) * DPH), 1.0, 0.0)
            s_h = s_all[:, h:h + 1]                                                 # (E, 1)
            # per-source-node segment softmax with a TRUE per-segment max (stable)
            node_max = jnp.max(jnp.where(src_mask, s_h, -1e30), axis=0, keepdims=True)
            smax_e = jnp.sum(ssrc * node_max, axis=1, keepdims=True)                # (E, 1)
            es = jnp.exp(s_h - smax_e)
            node_sum = jnp.sum(ssrc * es, axis=0, keepdims=True)                    # (1, NT)
            denom_e = jnp.sum(ssrc * node_sum, axis=1, keepdims=True)               # (E, 1)
            alpha_h = (es / denom_e) * cnt_e                                        # softmax * cnt
            contrib = alpha_h * hm                                                  # (E, D)
            alpha_exp = contrib if alpha_exp is None else alpha_exp + contrib

        out_msg = msg * alpha_exp                                                   # (E, D)
        aggr = _dot(stgt_t, out_msg)                                                # (NT, D)
        mw1 = mw1_ref[l * D:(l + 1) * D, :]
        mw2 = mw2_ref[l * D:(l + 1) * D, :]
        h1 = jnp.maximum(_dot(aggr, mw1) + mb1_ref[l:l + 1, :], 0.0)
        X = _gelu(_dot(h1, mw2) + mb2_ref[l:l + 1, :])                              # mp_helper GELU

    # --- 6) output = GELU(Vh(H) + Vx(X)) ---
    o_ref[...] = _gelu(_dot(H, vh_w_ref[...]) + vh_b_ref[...]
                       + _dot(X, vx_w_ref[...]) + vx_b_ref[...])


def _pool_fc_kernel(sv_ref, kflat_ref, z_ref, maskf_ref,
                    pq_w_ref, pq_b_ref, pkv_w_ref, pkv_b_ref,
                    fc_w1_ref, fc_b1_ref, ln_g_ref, ln_b_ref, fc_w2_ref, fc_b2_ref,
                    logit_ref, attn_ref, gv_scr, *, nb, L, n_head, d_k, inv_temp, eps):
    """MultiheadAttPoolLayer + fc MLP head (Linear->LayerNorm->GELU->Linear(1)), fused."""
    hd = n_head * d_k
    sv = sv_ref[...]                                                               # (nb, sent_dim)
    sd = sv.shape[1]
    qs = _dot(sv, pq_w_ref[...]) + pq_b_ref[...]                                   # (nb, hd)
    kv = _dot(kflat_ref[...], pkv_w_ref[...]) + pkv_b_ref[...]                     # (nb*L, 2hd)
    mflat = maskf_ref[...]                                                         # (nb*L, 1)

    hl = jax.lax.broadcasted_iota(jnp.int32, (hd, n_head), 0)
    hc = jax.lax.broadcasted_iota(jnp.int32, (hd, n_head), 1)
    head_oh = jnp.where((hl >= hc * d_k) & (hl < (hc + 1) * d_k), 1.0, 0.0)        # (hd, H)
    hlt = jax.lax.broadcasted_iota(jnp.int32, (n_head, hd), 1)
    hct = jax.lax.broadcasted_iota(jnp.int32, (n_head, hd), 0)
    head_oh_t = jnp.where((hlt >= hct * d_k) & (hlt < (hct + 1) * d_k), 1.0, 0.0)  # (H, hd)

    for b in range(nb):                                                            # static
        k_b = kv[b * L:(b + 1) * L, 0:hd]                                          # (L, hd)
        v_b = kv[b * L:(b + 1) * L, hd:2 * hd]                                     # (L, hd)
        m_b = mflat[b * L:(b + 1) * L, :]                                          # (L, 1)
        q_b = qs[b:b + 1, :]                                                       # (1, hd)
        sc = _dot(k_b * q_b, head_oh) * inv_temp                                   # (L, H)
        sc = jnp.where(m_b > 0.5, -1e30, sc)
        mx = jnp.max(sc, axis=0, keepdims=True)
        ex = jnp.exp(sc - mx)
        att = ex / jnp.sum(ex, axis=0, keepdims=True)                              # (L, H)
        attn_ref[:, b * n_head:(b + 1) * n_head] = att
        att_exp = _dot(att, head_oh_t)                                             # (L, hd)
        gv_scr[b:b + 1, :] = jnp.sum(att_exp * v_b, axis=0, keepdims=True)         # pooled

    gv = gv_scr[...]                                                               # (nb, hd)
    W1 = fc_w1_ref[...]                                                            # (2D+sd, FC)
    y = (_dot(gv, W1[0:hd]) + _dot(sv, W1[hd:hd + sd])
         + _dot(z_ref[...], W1[hd + sd:]) + fc_b1_ref[...])
    mu = jnp.mean(y, axis=-1, keepdims=True)
    var = jnp.mean((y - mu) ** 2, axis=-1, keepdims=True)
    hn = _gelu((y - mu) * jax.lax.rsqrt(var + eps) * ln_g_ref[...] + ln_b_ref[...])
    logit_ref[...] = _dot(hn, fc_w2_ref[...]) + fc_b2_ref[...]


# ----------------------------------- kernel wrappers -----------------------------------------
def _call(kernel, args, out_shape, scratch_shapes=()):
    """grid=(1,) pallas_call with full-array BlockSpecs (operands here are a few KiB).
    NOTE: for v7x at production sizes add a leading ('parallel',) batch/choice grid axis to use
    both TensorCores; at these toy shapes one step minimizes launch/DMA overhead."""
    multi = isinstance(out_shape, (tuple, list))
    out_specs = tuple(fs(o.shape) for o in out_shape) if multi else fs(out_shape.shape)
    return pl.pallas_call(
        kernel,
        out_shape=tuple(out_shape) if multi else out_shape,
        grid=(1,),
        in_specs=[fs(a.shape) for a in args],
        out_specs=out_specs,
        scratch_shapes=list(scratch_shapes),
    )(*args)


def pallas_linear(x, w, b, act=None):
    return _call(functools.partial(_linear_kernel, act=act),
                 (x, w, b.reshape(1, -1)),
                 jax.ShapeDtypeStruct((x.shape[0], w.shape[1]), jnp.float32))


# ----------------------------------- model (glue + 2 fused calls) ---------------------------
def decoder_forward(params, sent_vecs, concept_ids, node_type_ids, node_scores,
                    adj_lengths, edge_index, edge_type):
    """QAGNN.forward (eval: all dropouts = identity)."""
    NB, n_node = node_type_ids.shape
    n_total = NB * n_node

    # concept embeddings for nodes 1.. (CustomizedEmbedding, frozen)
    emb1 = params['concept_emb'][concept_ids[:, 1:] - 1].reshape(-1, D)

    # node score normalization (exactly as QAGNN.forward)
    _mask = (jnp.arange(node_scores.shape[1])[None, :] < adj_lengths[:, None]).astype(jnp.float32)
    ns = -node_scores
    ns = ns - ns[:, 0:1, :]
    ns = ns[..., 0] * _mask
    mean_norm = jnp.abs(ns).sum(axis=1) / adj_lengths.astype(jnp.float32)
    ns = ns / (mean_norm[:, None] + 1e-5)
    node_scores_n = ns[:, :, None]

    # node_feature_extra kernel input: [one_hot(node_type) | sin basis]
    T = jax.nn.one_hot(node_type_ids.reshape(-1), N_NTYPE, dtype=jnp.float32)
    js = jnp.power(1.1, jnp.arange(D_HALF, dtype=jnp.float32))[None, None, :]
    b_sin = jnp.sin(js * node_scores_n).reshape(-1, D_HALF)
    nfe_in = jnp.concatenate([T, b_sin], axis=1)                                    # (NT, 4+D/2)

    # graph structure (layer-invariant, hoisted out of the kernel's layer loop)
    node_type_flat = node_type_ids.reshape(-1)
    src0, tgt0 = edge_index[0], edge_index[1]
    loop = jnp.arange(n_total, dtype=jnp.int32)
    src = jnp.concatenate([src0.astype(jnp.int32), loop])
    tgt = jnp.concatenate([tgt0.astype(jnp.int32), loop])
    src_col, tgt_col, tgt_row = src[:, None], tgt[:, None], tgt[None, :]

    edge_vec = jax.nn.one_hot(edge_type, N_ETYPE + 1, dtype=jnp.float32)
    self_edge_vec = jnp.zeros((n_total, N_ETYPE + 1), jnp.float32).at[:, N_ETYPE].set(1.0)
    head_vec = jax.nn.one_hot(node_type_flat[src0], N_NTYPE, dtype=jnp.float32)
    tail_vec = jax.nn.one_hot(node_type_flat[tgt0], N_NTYPE, dtype=jnp.float32)
    headtail = jnp.concatenate([head_vec, tail_vec], axis=1)
    self_head = jax.nn.one_hot(node_type_flat, N_NTYPE, dtype=jnp.float32)
    self_headtail = jnp.concatenate([self_head, self_head], axis=1)
    edge_in = jnp.concatenate(
        [jnp.concatenate([edge_vec, self_edge_vec], axis=0),
         jnp.concatenate([headtail, self_headtail], axis=0)], axis=1)               # (E, 15)

    # TODO(synk): at production QAGNN sizes (n_node~200, thousands of edges) the dense (E, NT)
    # one-hots built inside _gnn_kernel would exceed v7x's 64 MiB VMEM; switch to an edge-tiled
    # grid with a VMEM accumulator, or scalar-prefetch row gather.
    gnn_flat = _call(
        functools.partial(_gnn_kernel, nb=NB, n_node=n_node, k_gnn=K_GNN,
                          inv_sqrt_dh=1.0 / math.sqrt(DPH)),
        (sent_vecs, emb1, nfe_in, edge_in, src_col, tgt_col, tgt_row,
         params['s2n_w'], params['s2n_b'].reshape(1, D),
         params['nfe_w'], params['nfe_b'].reshape(1, D),
         params['ee_w1f'], params['ee_b1f'].reshape(1, D),
         params['ee_w2'], params['ee_b2'].reshape(1, D),
         params['w_kmq_all'], params['b_kmq_all'],
         params['mlp_w1f_all'], params['mlp_b1f_all'],
         params['mlp_w2_all'], params['mlp_b2_all'],
         params['Vh_w'], params['Vh_b'].reshape(1, D),
         params['Vx_w'], params['Vx_b'].reshape(1, D)),
        jax.ShapeDtypeStruct((n_total, D), jnp.float32),
        scratch_shapes=(pltpu.VMEM((n_total, D), jnp.float32),))
    gnn_output = gnn_flat.reshape(NB, n_node, D)
    Z_vecs = gnn_output[:, 0]

    # pooler mask
    mask = (jnp.arange(node_type_ids.shape[1])[None, :] >= adj_lengths[:, None]) | (node_type_ids == 3)
    all_masked = jnp.all(mask, axis=1)
    mask = mask.at[:, 0].set(jnp.where(all_masked, False, mask[:, 0]))
    mask_flat = mask.astype(jnp.float32).reshape(-1, 1)

    d_k = D // N_ATT_HEAD
    logits, attn_cols = _call(
        functools.partial(_pool_fc_kernel, nb=NB, L=n_node, n_head=N_ATT_HEAD, d_k=d_k,
                          inv_temp=1.0 / math.sqrt(d_k), eps=LN_EPS),
        (sent_vecs, gnn_flat, Z_vecs, mask_flat,
         params['pq_w'], params['pq_b'].reshape(1, D),
         params['pkv_w'], params['pkv_b'].reshape(1, 2 * D),
         params['fc_w1'], params['fc_b1'].reshape(1, FC_DIM),
         params['fc_ln_g'].reshape(1, FC_DIM), params['fc_ln_b'].reshape(1, FC_DIM),
         params['fc_w2'], params['fc_b2'].reshape(1, 1)),
        (jax.ShapeDtypeStruct((NB, 1), jnp.float32),
         jax.ShapeDtypeStruct((n_node, NB * N_ATT_HEAD), jnp.float32)),
        scratch_shapes=(pltpu.VMEM((NB, D), jnp.float32),))

    # kernel stores attn with column index b*n_head+h; reorder to torch layout (h*NB + b, L)
    pool_attn = (attn_cols.T.reshape(NB, N_ATT_HEAD, n_node)
                 .transpose(1, 0, 2).reshape(N_ATT_HEAD * NB, n_node))
    return logits, pool_attn


def lm_qagnn_forward(params, input_ids, concept_ids, node_type_ids, node_scores,
                     adj_lengths, edge_index_list, edge_type_list):
    bs, nc = input_ids.shape[0], input_ids.shape[1]
    input_ids_f = input_ids.reshape(bs * nc, -1)
    concept_ids_f = concept_ids.reshape(bs * nc, -1)
    node_type_f = node_type_ids.reshape(bs * nc, -1)
    node_scores_f = node_scores.reshape(bs * nc, node_scores.shape[2], 1)
    adj_len_f = adj_lengths.reshape(bs * nc)

    # sum(x, []) flattening of the nested edge lists + batch_graph node-index offsets
    eidx = [e for ex in edge_index_list for e in ex]
    etyp = [t for ex in edge_type_list for t in ex]
    n_nodes = concept_ids_f.shape[1]
    eidx = [e + i * n_nodes for i, e in enumerate(eidx)]
    edge_index = jnp.concatenate(eidx, axis=1)
    edge_type = jnp.concatenate(etyp, axis=0)

    # TODO(synk): TextEncoder (pretrained HF language model) has no clean Pallas equivalent;
    # replaced with a deterministic token-embedding + mean-pool + Pallas linear stand-in.
    tok_emb = params['enc_emb'][input_ids_f]              # (B, SEQ, SENT_DIM)
    pooled = jnp.mean(tok_emb, axis=1)
    sent_vecs = pallas_linear(pooled, params['enc_w'], params['enc_b'])

    logits, attn = decoder_forward(params, sent_vecs, concept_ids_f, node_type_f,
                                   node_scores_f, adj_len_f, edge_index, edge_type)
    return logits.reshape(bs, nc), attn


# ----------------------------------- parameters ----------------------------------------------
def init_params(key):
    ks = iter(jax.random.split(key, 64))

    def w(shape, std=0.05):
        return jax.random.normal(next(ks), shape, jnp.float32) * std

    def bvec(shape):
        return jax.random.normal(next(ks), shape, jnp.float32) * 0.01

    def fold_bn(W, bias):
        # BatchNorm1d in eval mode, running_mean=0, running_var=1, gamma=1, beta=0
        scale = 1.0 / math.sqrt(1.0 + BN_EPS)
        return W * scale, bias * scale

    p = {}
    p['enc_emb'] = w((VOCAB, SENT_DIM), 0.1)
    p['enc_w'] = w((SENT_DIM, SENT_DIM)); p['enc_b'] = bvec((SENT_DIM,))
    p['concept_emb'] = w((N_CONCEPT + 2, D), 0.1)
    p['s2n_w'] = w((SENT_DIM, D)); p['s2n_b'] = bvec((D,))

    # node_type / node_score embeddings packed block-diagonally (concat becomes one matmul)
    Wnt, bnt = w((N_NTYPE, D_HALF)), bvec((D_HALF,))
    Wsc, bsc = w((D_HALF, D_HALF)), bvec((D_HALF,))
    nfe_w = jnp.zeros((N_NTYPE + D_HALF, D), jnp.float32)
    nfe_w = nfe_w.at[0:N_NTYPE, 0:D_HALF].set(Wnt)
    nfe_w = nfe_w.at[N_NTYPE:, D_HALF:].set(Wsc)
    p['nfe_w'] = nfe_w
    p['nfe_b'] = jnp.concatenate([bnt, bsc])

    ee_in = N_ETYPE + 1 + 2 * N_NTYPE
    W1, b1 = w((ee_in, D)), bvec((D,))
    p['ee_w1f'], p['ee_b1f'] = fold_bn(W1, b1)
    p['ee_w2'] = w((D, D)); p['ee_b2'] = bvec((D,))

    wkmq_l, bkmq_l, mw1_l, mb1_l, mw2_l, mb2_l = [], [], [], [], [], []
    for _ in range(K_GNN):
        wk = w((3 * D, D)); bk = bvec((D,))
        wm = w((3 * D, D)); bm = bvec((D,))
        wq = w((2 * D, D)); bq = bvec((D,))
        # Pack key|msg|query into one lane-dense block matrix (hoisted; done once at init).
        # rows: [x_i(X), x_i(extra), x_j(X), x_j(extra), edge_attr]; cols: [key | msg | query]
        W = jnp.zeros((5 * D, 3 * D), jnp.float32)
        W = W.at[0:2 * D, 0:D].set(wk[0:2 * D])
        W = W.at[4 * D:5 * D, 0:D].set(wk[2 * D:])
        W = W.at[2 * D:4 * D, D:2 * D].set(wm[0:2 * D])
        W = W.at[4 * D:5 * D, D:2 * D].set(wm[2 * D:])
        W = W.at[2 * D:4 * D, 2 * D:3 * D].set(wq)
        wkmq_l.append(W)
        bkmq_l.append(jnp.concatenate([bk, bm, bq]))
        Wm1, bm1 = fold_bn(w((D, D)), bvec((D,)))
        mw1_l.append(Wm1); mb1_l.append(bm1)
        mw2_l.append(w((D, D))); mb2_l.append(bvec((D,)))
    p['w_kmq_all'] = jnp.concatenate(wkmq_l, axis=0)          # (K*5D, 3D)
    p['b_kmq_all'] = jnp.stack(bkmq_l, axis=0)                # (K, 3D)
    p['mlp_w1f_all'] = jnp.concatenate(mw1_l, axis=0)         # (K*D, D)
    p['mlp_b1f_all'] = jnp.stack(mb1_l, axis=0)               # (K, D)
    p['mlp_w2_all'] = jnp.concatenate(mw2_l, axis=0)          # (K*D, D)
    p['mlp_b2_all'] = jnp.stack(mb2_l, axis=0)                # (K, D)

    p['Vh_w'] = w((D, D)); p['Vh_b'] = bvec((D,))
    p['Vx_w'] = w((D, D)); p['Vx_b'] = bvec((D,))
    p['pq_w'] = w((SENT_DIM, D)); p['pq_b'] = bvec((D,))
    pk_w, pk_b = w((D, D)), bvec((D,))
    pv_w, pv_b = w((D, D)), bvec((D,))
    p['pkv_w'] = jnp.concatenate([pk_w, pv_w], axis=1)        # packed K|V projection (D, 2D)
    p['pkv_b'] = jnp.concatenate([pk_b, pv_b])                # (2D,)
    fc_in = D + SENT_DIM + D
    p['fc_w1'] = w((fc_in, FC_DIM)); p['fc_b1'] = bvec((FC_DIM,))
    p['fc_ln_g'] = jnp.ones((FC_DIM,), jnp.float32)
    p['fc_ln_b'] = jnp.zeros((FC_DIM,), jnp.float32)
    p['fc_w2'] = w((FC_DIM, 1)); p['fc_b2'] = bvec((1,))
    return p


# ----------------------------------- main -----------------------------------------------------
if __name__ == "__main__":
    key = jax.random.PRNGKey(0)
    kp, kd = jax.random.split(key)
    params = init_params(kp)
    kks = jax.random.split(kd, 8)

    input_ids = jax.random.randint(kks[0], (BS, NC, SEQ), 0, VOCAB)
    concept_ids = jax.random.randint(kks[1], (BS, NC, N_NODE), 1, N_CONCEPT + 1)
    node_type_ids = jax.random.randint(kks[2], (BS, NC, N_NODE), 0, 3)
    node_type_ids = node_type_ids.at[:, :, 0].set(3)    # node 0 is the context node
    node_scores = jax.random.normal(kks[3], (BS, NC, N_NODE, 1), jnp.float32)
    adj_lengths = jax.random.randint(kks[4], (BS, NC), 3, N_NODE + 1)

    edge_index_list, edge_type_list = [], []
    cnt = 0
    for i in range(BS):
        ei_row, et_row = [], []
        for j in range(NC):
            k1, k2 = jax.random.split(jax.random.fold_in(kks[5], cnt)); cnt += 1
            ei_row.append(jax.random.randint(k1, (2, E_PER), 0, N_NODE))
            et_row.append(jax.random.randint(k2, (E_PER,), 0, N_ETYPE))
        edge_index_list.append(ei_row)
        edge_type_list.append(et_row)

    fwd = jax.jit(lm_qagnn_forward)
    logits, pool_attn = fwd(params, input_ids, concept_ids, node_type_ids,
                            node_scores, adj_lengths, edge_index_list, edge_type_list)
    jax.block_until_ready((logits, pool_attn))
    assert logits.shape == (BS, NC)
    assert pool_attn.shape == (N_ATT_HEAD * BS * NC, N_NODE)
    print("KERNEL_OK")
</pallas_src>

<mosaic_0001>
module attributes {stable_mosaic.version = 11 : i64} {
  func.func @_linear_kernel(%arg0: i32, %arg1: memref<4x48xf32, #tpu.memory_space<vmem>>, %arg2: memref<48x48xf32, #tpu.memory_space<vmem>>, %arg3: memref<1x48xf32, #tpu.memory_space<vmem>>, %arg4: memref<4x48xf32, #tpu.memory_space<vmem>>) attributes {dimension_semantics = [#tpu.dimension_semantics<arbitrary>], iteration_bounds = array<i64: 1>, scalar_prefetch = 0 : i64, scratch_operands = 0 : i64, tpu.core_type = #tpu.core_type<tc>, window_params = [{pipeline_mode = #tpu.pipeline_mode<synchronous>, transform_indices = @transform_0, window_bounds = array<i64: 4, 48>}, {pipeline_mode = #tpu.pipeline_mode<synchronous>, transform_indices = @transform_1, window_bounds = array<i64: 48, 48>}, {pipeline_mode = #tpu.pipeline_mode<synchronous>, transform_indices = @transform_2, window_bounds = array<i64: 1, 48>}, {pipeline_mode = #tpu.pipeline_mode<synchronous>, transform_indices = @transform_3, window_bounds = array<i64: 4, 48>}]} {
    %c0 = arith.constant 0 : index
    %c0_0 = arith.constant 0 : index
    %0 = vector.load %arg1[%c0, %c0_0] : memref<4x48xf32, #tpu.memory_space<vmem>>, vector<4x48xf32>
    %c0_1 = arith.constant 0 : index
    %c0_2 = arith.constant 0 : index
    %1 = vector.load %arg2[%c0_1, %c0_2] : memref<48x48xf32, #tpu.memory_space<vmem>>, vector<48x48xf32>
    %cst = arith.constant dense<0.000000e+00> : vector<4x48xf32>
    %2 = tpu.matmul %0, %1, %cst {dimension_numbers = #tpu.dot_dimension_numbers<[1], [0], [0], [1], [0, 0, 1, 1], [], []>} : vector<4x48xf32>, vector<48x48xf32>, vector<4x48xf32> -> vector<4x48xf32>
    %c0_3 = arith.constant 0 : index
    %c0_4 = arith.constant 0 : index
    %3 = vector.load %arg3[%c0_3, %c0_4] : memref<1x48xf32, #tpu.memory_space<vmem>>, vector<1x48xf32>
    %4 = vector.broadcast %3 : vector<1x48xf32> to vector<4x48xf32>
    %5 = arith.addf %2, %4 : vector<4x48xf32>
    %c0_5 = arith.constant 0 : index
    %c0_6 = arith.constant 0 : index
    %6 = vector.load %arg4[%c0_5, %c0_6] : memref<4x48xf32, #tpu.memory_space<vmem>>, vector<4x48xf32>
    tpu.vector_store %arg4[%c0_5, %c0_6], %5 {strides = array<i32>} : memref<4x48xf32, #tpu.memory_space<vmem>>, vector<4x48xf32>,
    return
  }
  func.func @transform_0(%arg0: i32) -> (i32, i32) {
    %c0_i32 = arith.constant 0 : i32
    %c0_i32_0 = arith.constant 0 : i32
    %c0_i32_1 = arith.constant 0 : i32
    return %c0_i32, %c0_i32_0 : i32, i32
  }
  func.func @transform_1(%arg0: i32) -> (i32, i32) {
    %c0_i32 = arith.constant 0 : i32
    %c0_i32_0 = arith.constant 0 : i32
    %c0_i32_1 = arith.constant 0 : i32
    return %c0_i32, %c0_i32_0 : i32, i32
  }
  func.func @transform_2(%arg0: i32) -> (i32, i32) {
    %c0_i32 = arith.constant 0 : i32
    %c0_i32_0 = arith.constant 0 : i32
    %c0_i32_1 = arith.constant 0 : i32
    return %c0_i32, %c0_i32_0 : i32, i32
  }
  func.func @transform_3(%arg0: i32) -> (i32, i32) {
    %c0_i32 = arith.constant 0 : i32
    %c0_i32_0 = arith.constant 0 : i32
    %c0_i32_1 = arith.constant 0 : i32
    return %c0_i32, %c0_i32_0 : i32, i32
  }
}

module attributes {stable_mosaic.version = 11 : i64} {
  func.func @_gnn_kernel(%arg0: i32, %arg1: memref<4x48xf32, #tpu.memory_space<vmem>>, %arg2: memref<28x32xf32, #tpu.memory_space<vmem>>, %arg3: memref<32x20xf32, #tpu.memory_space<vmem>>, %arg4: memref<52x15xf32, #tpu.memory_space<vmem>>, %arg5: memref<52x1xi32, #tpu.memory_space<vmem>>, %arg6: memref<52x1xi32, #tpu.memory_space<vmem>>, %arg7: memref<1x52xi32, #tpu.memory_space<vmem>>, %arg8: memref<48x32xf32, #tpu.memory_space<vmem>>, %arg9: memref<1x32xf32, #tpu.memory_space<vmem>>, %arg10: memref<20x32xf32, #tpu.memory_space<vmem>>, %arg11: memref<1x32xf32, #tpu.memory_space<vmem>>, %arg12: memref<15x32xf32, #tpu.memory_space<vmem>>, %arg13: memref<1x32xf32, #tpu.memory_space<vmem>>, %arg14: memref<32x32xf32, #tpu.memory_space<vmem>>, %arg15: memref<1x32xf32, #tpu.memory_space<vmem>>, %arg16: memref<320x96xf32, #tpu.memory_space<vmem>>, %arg17: memref<2x96xf32, #tpu.memory_space<vmem>>, %arg18: memref<64x32xf32, #tpu.memory_space<vmem>>, %arg19: memref<2x32xf32, #tpu.memory_space<vmem>>, %arg20: memref<64x32xf32, #tpu.memory_space<vmem>>, %arg21: memref<2x32xf32, #tpu.memory_space<vmem>>, %arg22: memref<32x32xf32, #tpu.memory_space<vmem>>, %arg23: memref<1x32xf32, #tpu.memory_space<vmem>>, %arg24: memref<32x32xf32, #tpu.memory_space<vmem>>, %arg25: memref<1x32xf32, #tpu.memory_space<vmem>>, %arg26: memref<32x32xf32, #tpu.memory_space<vmem>>, %arg27: memref<32x32xf32, #tpu.memory_space<vmem>>) attributes {dimension_semantics = [#tpu.dimension_semantics<arbitrary>], iteration_bounds = array<i64: 1>, scalar_prefetch = 0 : i64, scratch_operands = 1 : i64, tpu.core_type = #tpu.core_type<tc>, window_params = [{pipeline_mode = #tpu.pipeline_mode<synchronous>, transform_indices = @transform_0, window_bounds = array<i64: 4, 48>}, {pipeline_mode = #tpu.pipeline_mode<synchronous>, transform_indices = @transform_1, window_bounds = array<i64: 28, 32>}, {pipeline_mode = #tpu.pipeline_mode<synchronous>, transform_indices = @transform_2, window_bounds = array<i64: 32, 20>}, {pipeline_mode = #tpu.pipeline_mode<synchronous>, transform_indices = @transform_3, window_bounds = array<i64: 52, 15>}, {pipeline_mode = #tpu.pipeline_mode<synchronous>, transform_indices = @transform_4, window_bounds = array<i64: 52, 1>}, {pipeline_mode = #tpu.pipeline_mode<synchronous>, transform_indices = @transform_5, window_bounds = array<i64: 52, 1>}, {pipeline_mode = #tpu.pipeline_mode<synchronous>, transform_indices = @transform_6, window_bounds = array<i64: 1, 52>}, {pipeline_mode = #tpu.pipeline_mode<synchronous>, transform_indices = @transform_7, window_bounds = array<i64: 48, 32>}, {pipeline_mode = #tpu.pipeline_mode<synchronous>, transform_indices = @transform_8, window_bounds = array<i64: 1, 32>}, {pipeline_mode = #tpu.pipeline_mode<synchronous>, transform_indices = @transform_9, window_bounds = array<i64: 20, 32>}, {pipeline_mode = #tpu.pipeline_mode<synchronous>, transform_indices = @transform_10, window_bounds = array<i64: 1, 32>}, {pipeline_mode = #tpu.pipeline_mode<synchronous>, transform_indices = @transform_11, window_bounds = array<i64: 15, 32>}, {pipeline_mode = #tpu.pipeline_mode<synchronous>, transform_indices = @transform_12, window_bounds = array<i64: 1, 32>}, {pipeline_mode = #tpu.pipeline_mode<synchronous>, transform_indices = @transform_13, window_bounds = array<i64: 32, 32>}, {pipeline_mode = #tpu.pipeline_mode<synchronous>, transform_indices = @transform_14, window_bounds = array<i64: 1, 32>}, {pipeline_mode = #tpu.pipeline_mode<synchronous>, transform_indices = @transform_15, window_bounds = array<i64: 320, 96>}, {pipeline_mode = #tpu.pipeline_mode<synchronous>, transform_indices = @transform_16, window_bounds = array<i64: 2, 96>}, {pipeline_mode = #tpu.pipeline_mode<synchronous>, transform_indices = @transform_17, window_bounds = array<i64: 64, 32>}, {pipeline_mode = #tpu.pipeline_mode<synchronous>, transform_indices = @transform_18, window_bounds = array<i64: 2, 32>}, {pipeline_mode = #tpu.pipeline_mode<synchronous>, transform_indices = @transform_19, window_bounds = array<i64: 64, 32>}, {pipeline_mode = #tpu.pipeline_mode<synchronous>, transform_indices = @transform_20, window_bounds = array<i64: 2, 32>}, {pipeline_mode = #tpu.pipeline_mode<synchronous>, transform_indices = @transform_21, window_bounds = array<i64: 32, 32>}, {pipeline_mode = #tpu.pipeline_mode<synchronous>, transform_indices = @transform_22, window_bounds = array<i64: 1, 32>}, {pipeline_mode = #tpu.pipeline_mode<synchronous>, transform_indices = @transform_23, window_bounds = array<i64: 32, 32>}, {pipeline_mode = #tpu.pipeline_mode<synchronous>, transform_indices = @transform_24, window_bounds = array<i64: 1, 32>}, {pipeline_mode = #tpu.pipeline_mode<synchronous>, transform_indices = @transform_25, window_bounds = array<i64: 32, 32>}]} {
    %c0 = arith.constant 0 : index
    %c0_0 = arith.constant 0 : index
    %0 = vector.load %arg1[%c0, %c0_0] : memref<4x48xf32, #tpu.memory_space<vmem>>, vector<4x48xf32>
    %c0_1 = arith.constant 0 : index
    %c0_2 = arith.constant 0 : index
    %1 = vector.load %arg8[%c0_1, %c0_2] : memref<48x32xf32, #tpu.memory_space<vmem>>, vector<48x32xf32>
    %cst = arith.constant dense<0.000000e+00> : vector<4x32xf32>
    %2 = tpu.matmul %0, %1, %cst {dimension_numbers = #tpu.dot_dimension_numbers<[1], [0], [0], [1], [0, 0, 1, 1], [], []>} : vector<4x48xf32>, vector<48x32xf32>, vector<4x32xf32> -> vector<4x32xf32>
    %c0_3 = arith.constant 0 : index
    %c0_4 = arith.constant 0 : index
    %3 = vector.load %arg9[%c0_3, %c0_4] : memref<1x32xf32, #tpu.memory_space<vmem>>, vector<1x32xf32>
    %4 = vector.broadcast %3 : vector<1x32xf32> to vector<4x32xf32>
    %5 = arith.addf %2, %4 : vector<4x32xf32>
    %cst_5 = arith.constant 5.000000e-01 : f32
    %6 = vector.broadcast %cst_5 : f32 to vector<4x32xf32>
    %7 = arith.mulf %6, %5 : vector<4x32xf32>
    %cst_6 = arith.constant 0.707106769 : f32
    %8 = vector.broadcast %cst_6 : f32 to vector<4x32xf32>
    %9 = arith.mulf %5, %8 : vector<4x32xf32>
    %10 = math.absf %9 : vector<4x32xf32>
    %cst_7 = arith.constant 0.327591091 : f32
    %11 = vector.broadcast %cst_7 : f32 to vector<4x32xf32>
    %12 = arith.mulf %11, %10 : vector<4x32xf32>
    %cst_8 = arith.constant 1.000000e+00 : f32
    %13 = vector.broadcast %cst_8 : f32 to vector<4x32xf32>
    %14 = arith.addf %13, %12 : vector<4x32xf32>
    %cst_9 = arith.constant 1.000000e+00 : f32
    %15 = vector.broadcast %cst_9 : f32 to vector<4x32xf32>
    %16 = arith.divf %15, %14 : vector<4x32xf32>
    %cst_10 = arith.constant 1.06140542 : f32
    %17 = vector.broadcast %cst_10 : f32 to vector<4x32xf32>
    %18 = arith.mulf %17, %16 : vector<4x32xf32>
    %cst_11 = arith.constant -1.45315206 : f32
    %19 = vector.broadcast %cst_11 : f32 to vector<4x32xf32>
    %20 = arith.addf %18, %19 : vector<4x32xf32>
    %21 = arith.mulf %20, %16 : vector<4x32xf32>
    %cst_12 = arith.constant 1.42141378 : f32
    %22 = vector.broadcast %cst_12 : f32 to vector<4x32xf32>
    %23 = arith.addf %21, %22 : vector<4x32xf32>
    %24 = arith.mulf %23, %16 : vector<4x32xf32>
    %cst_13 = arith.constant -0.284496725 : f32
    %25 = vector.broadcast %cst_13 : f32 to vector<4x32xf32>
    %26 = arith.addf %24, %25 : vector<4x32xf32>
    %27 = arith.mulf %26, %16 : vector<4x32xf32>
    %cst_14 = arith.constant 0.254829586 : f32
    %28 = vector.broadcast %cst_14 : f32 to vector<4x32xf32>
    %29 = arith.addf %27, %28 : vector<4x32xf32>
    %30 = arith.mulf %29, %16 : vector<4x32xf32>
    %cst_15 = arith.constant 0.000000e+00 : f32
    %31 = vector.broadcast %cst_15 : f32 to vector<4x32xf32>
    %32 = arith.subf %31, %10 : vector<4x32xf32>
    %33 = arith.mulf %32, %10 : vector<4x32xf32>
    %34 = math.exp %33 : vector<4x32xf32>
    %35 = arith.mulf %30, %34 : vector<4x32xf32>
    %cst_16 = arith.constant 1.000000e+00 : f32
    %36 = vector.broadcast %cst_16 : f32 to vector<4x32xf32>
    %37 = arith.subf %36, %35 : vector<4x32xf32>
    %cst_17 = arith.constant 0.000000e+00 : f32
    %38 = vector.broadcast %cst_17 : f32 to vector<4x32xf32>
    %39 = arith.cmpf oge, %9, %38 : vector<4x32xf32>
    %cst_18 = arith.constant 0.000000e+00 : f32
    %40 = vector.broadcast %cst_18 : f32 to vector<4x32xf32>
    %41 = arith.subf %40, %37 : vector<4x32xf32>
    %42 = arith.select %39, %37, %41 : vector<4x32xi1>, vector<4x32xf32>
    %cst_19 = arith.constant 1.000000e+00 : f32
    %43 = vector.broadcast %cst_19 : f32 to vector<4x32xf32>
    %44 = arith.addf %43, %42 : vector<4x32xf32>
    %45 = arith.mulf %7, %44 : vector<4x32xf32>
    %46 = vector.extract_strided_slice %45 {offsets = [0, 0], sizes = [1, 32], strides = [1, 1]} : vector<4x32xf32> to vector<1x32xf32>
    %c0_20 = arith.constant 0 : index
    %c0_21 = arith.constant 0 : index
    %47 = vector.load %arg27[%c0_20, %c0_21] : memref<32x32xf32, #tpu.memory_space<vmem>>, vector<1x32xf32>
    tpu.vector_store %arg27[%c0_20, %c0_21], %46 {strides = array<i32>} : memref<32x32xf32, #tpu.memory_space<vmem>>, vector<1x32xf32>,
    %c0_22 = arith.constant 0 : index
    %c0_23 = arith.constant 0 : index
    %48 = vector.load %arg2[%c0_22, %c0_23] : memref<28x32xf32, #tpu.memory_space<vmem>>, vector<7x32xf32>
    %c1 = arith.constant 1 : index
    %c0_24 = arith.constant 0 : index
    %49 = vector.load %arg27[%c1, %c0_24] : memref<32x32xf32, #tpu.memory_space<vmem>>, vector<7x32xf32>
    tpu.vector_store %arg27[%c1, %c0_24], %48 {strides = array<i32>} : memref<32x32xf32, #tpu.memory_space<vmem>>, vector<7x32xf32>,
    %50 = vector.extract_strided_slice %45 {offsets = [1, 0], sizes = [1, 32], strides = [1, 1]} : vector<4x32xf32> to vector<1x32xf32>
    %c8 = arith.constant 8 : index
    %c0_25 = arith.constant 0 : index
    %51 = vector.load %arg27[%c8, %c0_25] : memref<32x32xf32, #tpu.memory_space<vmem>>, vector<1x32xf32>
    tpu.vector_store %arg27[%c8, %c0_25], %50 {strides = array<i32>} : memref<32x32xf32, #tpu.memory_space<vmem>>, vector<1x32xf32>,
    %c7 = arith.constant 7 : index
    %c0_26 = arith.constant 0 : index
    %52 = vector.load %arg2[%c7, %c0_26] : memref<28x32xf32, #tpu.memory_space<vmem>>, vector<7x32xf32>
    %c9 = arith.constant 9 : index
    %c0_27 = arith.constant 0 : index
    %53 = vector.load %arg27[%c9, %c0_27] : memref<32x32xf32, #tpu.memory_space<vmem>>, vector<7x32xf32>
    tpu.vector_store %arg27[%c9, %c0_27], %52 {strides = array<i32>} : memref<32x32xf32, #tpu.memory_space<vmem>>, vector<7x32xf32>,
    %54 = vector.extract_strided_slice %45 {offsets = [2, 0], sizes = [1, 32], strides = [1, 1]} : vector<4x32xf32> to vector<1x32xf32>
    %c16 = arith.constant 16 : index
    %c0_28 = arith.constant 0 : index
    %55 = vector.load %arg27[%c16, %c0_28] : memref<32x32xf32, #tpu.memory_space<vmem>>, vector<1x32xf32>
    tpu.vector_store %arg27[%c16, %c0_28], %54 {strides = array<i32>} : memref<32x32xf32, #tpu.memory_space<vmem>>, vector<1x32xf32>,
    %c14 = arith.constant 14 : index
    %c0_29 = arith.constant 0 : index
    %56 = vector.load %arg2[%c14, %c0_29] : memref<28x32xf32, #tpu.memory_space<vmem>>, vector<7x32xf32>
    %c17 = arith.constant 17 : index
    %c0_30 = arith.constant 0 : index
    %57 = vector.load %arg27[%c17, %c0_30] : memref<32x32xf32, #tpu.memory_space<vmem>>, vector<7x32xf32>
    tpu.vector_store %arg27[%c17, %c0_30], %56 {strides = array<i32>} : memref<32x32xf32, #tpu.memory_space<vmem>>, vector<7x32xf32>,
    %58 = vector.extract_strided_slice %45 {offsets = [3, 0], sizes = [1, 32], strides = [1, 1]} : vector<4x32xf32> to vector<1x32xf32>
    %c24 = arith.constant 24 : index
    %c0_31 = arith.constant 0 : index
    %59 = vector.load %arg27[%c24, %c0_31] : memref<32x32xf32, #tpu.memory_space<vmem>>, vector<1x32xf32>
    tpu.vector_store %arg27[%c24, %c0_31], %58 {strides = array<i32>} : memref<32x32xf32, #tpu.memory_space<vmem>>, vector<1x32xf32>,
    %c21 = arith.constant 21 : index
    %c0_32 = arith.constant 0 : index
    %60 = vector.load %arg2[%c21, %c0_32] : memref<28x32xf32, #tpu.memory_space<vmem>>, vector<7x32xf32>
    %c25 = arith.constant 25 : index
    %c0_33 = arith.constant 0 : index
    %61 = vector.load %arg27[%c25, %c0_33] : memref<32x32xf32, #tpu.memory_space<vmem>>, vector<7x32xf32>
    tpu.vector_store %arg27[%c25, %c0_33], %60 {strides = array<i32>} : memref<32x32xf32, #tpu.memory_space<vmem>>, vector<7x32xf32>,
    %c0_34 = arith.constant 0 : index
    %c0_35 = arith.constant 0 : index
    %62 = vector.load %arg27[%c0_34, %c0_35] : memref<32x32xf32, #tpu.memory_space<vmem>>, vector<32x32xf32>
    %c0_36 = arith.constant 0 : index
    %c0_37 = arith.constant 0 : index
    %63 = vector.load %arg3[%c0_36, %c0_37] : memref<32x20xf32, #tpu.memory_space<vmem>>, vector<32x20xf32>
    %c0_38 = arith.constant 0 : index
    %c0_39 = arith.constant 0 : index
    %64 = vector.load %arg10[%c0_38, %c0_39] : memref<20x32xf32, #tpu.memory_space<vmem>>, vector<20x32xf32>
    %cst_40 = arith.constant dense<0.000000e+00> : vector<32x32xf32>
    %65 = tpu.matmul %63, %64, %cst_40 {dimension_numbers = #tpu.dot_dimension_numbers<[1], [0], [0], [1], [0, 0, 1, 1], [], []>} : vector<32x20xf32>, vector<20x32xf32>, vector<32x32xf32> -> vector<32x32xf32>
    %c0_41 = arith.constant 0 : index
    %c0_42 = arith.constant 0 : index
    %66 = vector.load %arg11[%c0_41, %c0_42] : memref<1x32xf32, #tpu.memory_space<vmem>>, vector<1x32xf32>
    %67 = vector.broadcast %66 : vector<1x32xf32> to vector<32x32xf32>
    %68 = arith.addf %65, %67 : vector<32x32xf32>
    %cst_43 = arith.constant 5.000000e-01 : f32
    %69 = vector.broadcast %cst_43 : f32 to vector<32x32xf32>
    %70 = arith.mulf %69, %68 : vector<32x32xf32>
    %cst_44 = arith.constant 0.707106769 : f32
    %71 = vector.broadcast %cst_44 : f32 to vector<32x32xf32>
    %72 = arith.mulf %68, %71 : vector<32x32xf32>
    %73 = math.absf %72 : vector<32x32xf32>
    %cst_45 = arith.constant 0.327591091 : f32
    %74 = vector.broadcast %cst_45 : f32 to vector<32x32xf32>
    %75 = arith.mulf %74, %73 : vector<32x32xf32>
    %cst_46 = arith.constant 1.000000e+00 : f32
    %76 = vector.broadcast %cst_46 : f32 to vector<32x32xf32>
    %77 = arith.addf %76, %75 : vector<32x32xf32>
    %cst_47 = arith.constant 1.000000e+00 : f32
    %78 = vector.broadcast %cst_47 : f32 to vector<32x32xf32>
    %79 = arith.divf %78, %77 : vector<32x32xf32>
    %cst_48 = arith.constant 1.06140542 : f32
    %80 = vector.broadcast %cst_48 : f32 to vector<32x32xf32>
    %81 = arith.mulf %80, %79 : vector<32x32xf32>
    %cst_49 = arith.constant -1.45315206 : f32
    %82 = vector.broadcast %cst_49 : f32 to vector<32x32xf32>
    %83 = arith.addf %81, %82 : vector<32x32xf32>
    %84 = arith.mulf %83, %79 : vector<32x32xf32>
    %cst_50 = arith.constant 1.42141378 : f32
    %85 = vector.broadcast %cst_50 : f32 to vector<32x32xf32>
    %86 = arith.addf %84, %85 : vector<32x32xf32>
    %87 = arith.mulf %86, %79 : vector<32x32xf32>
    %cst_51 = arith.constant -0.284496725 : f32
    %88 = vector.broadcast %cst_51 : f32 to vector<32x32xf32>
    %89 = arith.addf %87, %88 : vector<32x32xf32>
    %90 = arith.mulf %89, %79 : vector<32x32xf32>
    %cst_52 = arith.constant 0.254829586 : f32
    %91 = vector.broadcast %cst_52 : f32 to vector<32x32xf32>
    %92 = arith.addf %90, %91 : vector<32x32xf32>
    %93 = arith.mulf %92, %79 : vector<32x32xf32>
    %cst_53 = arith.constant 0.000000e+00 : f32
    %94 = vector.broadcast %cst_53 : f32 to vector<32x32xf32>
    %95 = arith.subf %94, %73 : vector<32x32xf32>
    %96 = arith.mulf %95, %73 : vector<32x32xf32>
    %97 = math.exp %96 : vector<32x32xf32>
    %98 = arith.mulf %93, %97 : vector<32x32xf32>
    %cst_54 = arith.constant 1.000000e+00 : f32
    %99 = vector.broadcast %cst_54 : f32 to vector<32x32xf32>
    %100 = arith.subf %99, %98 : vector<32x32xf32>
    %cst_55 = arith.constant 0.000000e+00 : f32
    %101 = vector.broadcast %cst_55 : f32 to vector<32x32xf32>
    %102 = arith.cmpf oge, %72, %101 : vector<32x32xf32>
    %cst_56 = arith.constant 0.000000e+00 : f32
    %103 = vector.broadcast %cst_56 : f32 to vector<32x32xf32>
    %104 = arith.subf %103, %100 : vector<32x32xf32>
    %105 = arith.select %102, %100, %104 : vector<32x32xi1>, vector<32x32xf32>
    %cst_57 = arith.constant 1.000000e+00 : f32
    %106 = vector.broadcast %cst_57 : f32 to vector<32x32xf32>
    %107 = arith.addf %106, %105 : vector<32x32xf32>
    %108 = arith.mulf %70, %107 : vector<32x32xf32>
    %c0_58 = arith.constant 0 : index
    %c0_59 = arith.constant 0 : index
    %109 = vector.load %arg5[%c0_58, %c0_59] : memref<52x1xi32, #tpu.memory_space<vmem>>, vector<52x1xi32>
    %c0_60 = arith.constant 0 : index
    %c0_61 = arith.constant 0 : index
    %110 = vector.load %arg6[%c0_60, %c0_61] : memref<52x1xi32, #tpu.memory_space<vmem>>, vector<52x1xi32>
    %c0_62 = arith.constant 0 : index
    %c0_63 = arith.constant 0 : index
    %111 = vector.load %arg7[%c0_62, %c0_63] : memref<1x52xi32, #tpu.memory_space<vmem>>, vector<1x52xi32>
    %112 = tpu.iota {dimensions = array<i32: 1>} : vector<52x32xi32>
    %113 = vector.broadcast %109 : vector<52x1xi32> to vector<52x32xi32>
    %114 = arith.cmpi eq, %112, %113 : vector<52x32xi32>
    %cst_64 = arith.constant 1.000000e+00 : f32
    %cst_65 = arith.constant 0.000000e+00 : f32
    %115 = vector.broadcast %cst_64 : f32 to vector<52x32xf32>
    %116 = vector.broadcast %cst_65 : f32 to vector<52x32xf32>
    %117 = arith.select %114, %115, %116 : vector<52x32xi1>, vector<52x32xf32>
    %118 = vector.broadcast %110 : vector<52x1xi32> to vector<52x32xi32>
    %119 = arith.cmpi eq, %112, %118 : vector<52x32xi32>
    %cst_66 = arith.constant 1.000000e+00 : f32
    %cst_67 = arith.constant 0.000000e+00 : f32
    %120 = vector.broadcast %cst_66 : f32 to vector<52x32xf32>
    %121 = vector.broadcast %cst_67 : f32 to vector<52x32xf32>
    %122 = arith.select %119, %120, %121 : vector<52x32xi1>, vector<52x32xf32>
    %123 = tpu.iota {dimensions = array<i32: 1>} : vector<32x52xi32>
    %124 = vector.broadcast %111 : vector<1x52xi32> to vector<32x52xi32>
    %125 = arith.cmpi eq, %123, %124 : vector<32x52xi32>
    %cst_68 = arith.constant 1.000000e+00 : f32
    %cst_69 = arith.constant 0.000000e+00 : f32
    %126 = vector.broadcast %cst_68 : f32 to vector<32x52xf32>
    %127 = vector.broadcast %cst_69 : f32 to vector<32x52xf32>
    %128 = arith.select %125, %126, %127 : vector<32x52xi1>, vector<32x52xf32>
    %cst_70 = arith.constant dense<0.000000e+00> : vector<32xf32>
    %129 = vector.multi_reduction <add>, %117, %cst_70 [0] : vector<52x32xf32> to vector<32xf32>
    %130 = vector.shape_cast %129 : vector<32xf32> to vector<1x32xf32>
    %131 = vector.broadcast %130 : vector<1x32xf32> to vector<52x32xf32>
    %132 = arith.mulf %117, %131 : vector<52x32xf32>
    %cst_71 = arith.constant dense<0.000000e+00> : vector<52xf32>
    %133 = vector.multi_reduction <add>, %132, %cst_71 [1] : vector<52x32xf32> to vector<52xf32>
    %134 = vector.shape_cast %133 : vector<52xf32> to vector<52x1xf32>
    %135 = tpu.iota {dimensions = array<i32: 0>} : vector<32x4xi32>
    %136 = tpu.iota {dimensions = array<i32: 1>} : vector<32x4xi32>
    %c8_i32 = arith.constant 8 : i32
    %137 = vector.broadcast %c8_i32 : i32 to vector<32x4xi32>
    %138 = arith.muli %136, %137 : vector<32x4xi32>
    %139 = arith.cmpi sge, %135, %138 : vector<32x4xi32>
    %c1_i32 = arith.constant 1 : i32
    %140 = vector.broadcast %c1_i32 : i32 to vector<32x4xi32>
    %141 = arith.addi %136, %140 : vector<32x4xi32>
    %c8_i32_72 = arith.constant 8 : i32
    %142 = vector.broadcast %c8_i32_72 : i32 to vector<32x4xi32>
    %143 = arith.muli %141, %142 : vector<32x4xi32>
    %144 = arith.cmpi slt, %135, %143 : vector<32x4xi32>
    %145 = arith.andi %139, %144 : vector<32x4xi1>
    %cst_73 = arith.constant 1.000000e+00 : f32
    %cst_74 = arith.constant 0.000000e+00 : f32
    %146 = vector.broadcast %cst_73 : f32 to vector<32x4xf32>
    %147 = vector.broadcast %cst_74 : f32 to vector<32x4xf32>
    %148 = arith.select %145, %146, %147 : vector<32x4xi1>, vector<32x4xf32>
    %149 = tpu.iota {dimensions = array<i32: 1>} : vector<1x32xi32>
    %c0_75 = arith.constant 0 : index
    %c0_76 = arith.constant 0 : index
    %150 = vector.load %arg4[%c0_75, %c0_76] : memref<52x15xf32, #tpu.memory_space<vmem>>, vector<52x15xf32>
    %c0_77 = arith.constant 0 : index
    %c0_78 = arith.constant 0 : index
    %151 = vector.load %arg12[%c0_77, %c0_78] : memref<15x32xf32, #tpu.memory_space<vmem>>, vector<15x32xf32>
    %cst_79 = arith.constant dense<0.000000e+00> : vector<52x32xf32>
    %152 = tpu.matmul %150, %151, %cst_79 {dimension_numbers = #tpu.dot_dimension_numbers<[1], [0], [0], [1], [0, 0, 1, 1], [], []>} : vector<52x15xf32>, vector<15x32xf32>, vector<52x32xf32> -> vector<52x32xf32>
    %c0_80 = arith.constant 0 : index
    %c0_81 = arith.constant 0 : index
    %153 = vector.load %arg13[%c0_80, %c0_81] : memref<1x32xf32, #tpu.memory_space<vmem>>, vector<1x32xf32>
    %154 = vector.broadcast %153 : vector<1x32xf32> to vector<52x32xf32>
    %155 = arith.addf %152, %154 : vector<52x32xf32>
    %cst_82 = arith.constant 0.000000e+00 : f32
    %156 = vector.broadcast %cst_82 : f32 to vector<52x32xf32>
    %157 = arith.maximumf %155, %156 : vector<52x32xf32>
    %c0_83 = arith.constant 0 : index
    %c0_84 = arith.constant 0 : index
    %158 = vector.load %arg14[%c0_83, %c0_84] : memref<32x32xf32, #tpu.memory_space<vmem>>, vector<32x32xf32>
    %cst_85 = arith.constant dense<0.000000e+00> : vector<52x32xf32>
    %159 = tpu.matmul %157, %158, %cst_85 {dimension_numbers = #tpu.dot_dimension_numbers<[1], [0], [0], [1], [0, 0, 1, 1], [], []>} : vector<52x32xf32>, vector<32x32xf32>, vector<52x32xf32> -> vector<52x32xf32>
    %c0_86 = arith.constant 0 : index
    %c0_87 = arith.constant 0 : index
    %160 = vector.load %arg15[%c0_86, %c0_87] : memref<1x32xf32, #tpu.memory_space<vmem>>, vector<1x32xf32>
    %161 = vector.broadcast %160 : vector<1x32xf32> to vector<52x32xf32>
    %162 = arith.addf %159, %161 : vector<52x32xf32>
    %c0_88 = arith.constant 0 : index
    %c0_89 = arith.constant 0 : index
    %163 = vector.load %arg16[%c0_88, %c0_89] : memref<320x96xf32, #tpu.memory_space<vmem>>, vector<160x96xf32>
    %c0_90 = arith.constant 0 : index
    %c0_91 = arith.constant 0 : index
    %164 = vector.load %arg17[%c0_90, %c0_91] : memref<2x96xf32, #tpu.memory_space<vmem>>, vector<1x96xf32>
    %165 = vector.extract_strided_slice %163 {offsets = [0, 0], sizes = [32, 96], strides = [1, 1]} : vector<160x96xf32> to vector<32x96xf32>
    %cst_92 = arith.constant dense<0.000000e+00> : vector<32x96xf32>
    %166 = tpu.matmul %62, %165, %cst_92 {dimension_numbers = #tpu.dot_dimension_numbers<[1], [0], [0], [1], [0, 0, 1, 1], [], []>} : vector<32x32xf32>, vector<32x96xf32>, vector<32x96xf32> -> vector<32x96xf32>
    %167 = vector.extract_strided_slice %163 {offsets = [32, 0], sizes = [32, 96], strides = [1, 1]} : vector<160x96xf32> to vector<32x96xf32>
    %cst_93 = arith.constant dense<0.000000e+00> : vector<32x96xf32>
    %168 = tpu.matmul %108, %167, %cst_93 {dimension_numbers = #tpu.dot_dimension_numbers<[1], [0], [0], [1], [0, 0, 1, 1], [], []>} : vector<32x32xf32>, vector<32x96xf32>, vector<32x96xf32> -> vector<32x96xf32>
    %169 = arith.addf %166, %168 : vector<32x96xf32>
    %170 = vector.extract_strided_slice %163 {offsets = [64, 0], sizes = [32, 96], strides = [1, 1]} : vector<160x96xf32> to vector<32x96xf32>
    %cst_94 = arith.constant dense<0.000000e+00> : vector<32x96xf32>
    %171 = tpu.matmul %62, %170, %cst_94 {dimension_numbers = #tpu.dot_dimension_numbers<[1], [0], [0], [1], [0, 0, 1, 1], [], []>} : vector<32x32xf32>, vector<32x96xf32>, vector<32x96xf32> -> vector<32x96xf32>
    %172 = vector.extract_strided_slice %163 {offsets = [96, 0], sizes = [32, 96], strides = [1, 1]} : vector<160x96xf32> to vector<32x96xf32>
    %cst_95 = arith.constant dense<0.000000e+00> : vector<32x96xf32>
    %173 = tpu.matmul %108, %172, %cst_95 {dimension_numbers = #tpu.dot_dimension_numbers<[1], [0], [0], [1], [0, 0, 1, 1], [], []>} : vector<32x32xf32>, vector<32x96xf32>, vector<32x96xf32> -> vector<32x96xf32>
    %174 = arith.addf %171, %173 : vector<32x96xf32>
    %cst_96 = arith.constant dense<0.000000e+00> : vector<52x96xf32>
    %175 = tpu.matmul %122, %169, %cst_96 {dimension_numbers = #tpu.dot_dimension_numbers<[1], [0], [0], [1], [0, 0, 1, 1], [], []>} : vector<52x32xf32>, vector<32x96xf32>, vector<52x96xf32> -> vector<52x96xf32>
    %cst_97 = arith.constant dense<0.000000e+00> : vector<52x96xf32>
    %176 = tpu.matmul %117, %174, %cst_97 {dimension_numbers = #tpu.dot_dimension_numbers<[1], [0], [0], [1], [0, 0, 1, 1], [], []>} : vector<52x32xf32>, vector<32x96xf32>, vector<52x96xf32> -> vector<52x96xf32>
    %177 = arith.addf %175, %176 : vector<52x96xf32>
    %178 = vector.extract_strided_slice %163 {offsets = [128, 0], sizes = [32, 96], strides = [1, 1]} : vector<160x96xf32> to vector<32x96xf32>
    %cst_98 = arith.constant dense<0.000000e+00> : vector<52x96xf32>
    %179 = tpu.matmul %162, %178, %cst_98 {dimension_numbers = #tpu.dot_dimension_numbers<[1], [0], [0], [1], [0, 0, 1, 1], [], []>} : vector<52x32xf32>, vector<32x96xf32>, vector<52x96xf32> -> vector<52x96xf32>
    %180 = arith.addf %177, %179 : vector<52x96xf32>
    %181 = vector.broadcast %164 : vector<1x96xf32> to vector<52x96xf32>
    %182 = arith.addf %180, %181 : vector<52x96xf32>
    %183 = vector.extract_strided_slice %182 {offsets = [0, 0], sizes = [52, 32], strides = [1, 1]} : vector<52x96xf32> to vector<52x32xf32>
    %184 = vector.extract_strided_slice %182 {offsets = [0, 32], sizes = [52, 32], strides = [1, 1]} : vector<52x96xf32> to vector<52x32xf32>
    %185 = vector.extract_strided_slice %182 {offsets = [0, 64], sizes = [52, 32], strides = [1, 1]} : vector<52x96xf32> to vector<52x32xf32>
    %cst_99 = arith.constant 0.353553385 : f32
    %186 = vector.broadcast %cst_99 : f32 to vector<52x32xf32>
    %187 = arith.mulf %185, %186 : vector<52x32xf32>
    %188 = arith.mulf %187, %183 : vector<52x32xf32>
    %cst_100 = arith.constant dense<0.000000e+00> : vector<52x4xf32>
    %189 = tpu.matmul %188, %148, %cst_100 {dimension_numbers = #tpu.dot_dimension_numbers<[1], [0], [0], [1], [0, 0, 1, 1], [], []>} : vector<52x32xf32>, vector<32x4xf32>, vector<52x4xf32> -> vector<52x4xf32>
    %c0_i32 = arith.constant 0 : i32
    %190 = vector.broadcast %c0_i32 : i32 to vector<1x32xi32>
    %191 = arith.cmpi sge, %149, %190 : vector<1x32xi32>
    %c8_i32_101 = arith.constant 8 : i32
    %192 = vector.broadcast %c8_i32_101 : i32 to vector<1x32xi32>
    %193 = arith.cmpi slt, %149, %192 : vector<1x32xi32>
    %194 = arith.andi %191, %193 : vector<1x32xi1>
    %cst_102 = arith.constant 1.000000e+00 : f32
    %cst_103 = arith.constant 0.000000e+00 : f32
    %195 = vector.broadcast %cst_102 : f32 to vector<1x32xf32>
    %196 = vector.broadcast %cst_103 : f32 to vector<1x32xf32>
    %197 = arith.select %194, %195, %196 : vector<1x32xi1>, vector<1x32xf32>
    %198 = vector.extract_strided_slice %189 {offsets = [0, 0], sizes = [52, 1], strides = [1, 1]} : vector<52x4xf32> to vector<52x1xf32>
    %cst_104 = arith.constant -1.000000e+30 : f32
    %199 = vector.shape_cast %198 : vector<52x1xf32> to vector<52x1xf32>
    %200 = vector.broadcast %199 : vector<52x1xf32> to vector<52x32xf32>
    %201 = vector.broadcast %cst_104 : f32 to vector<52x32xf32>
    %202 = arith.select %114, %200, %201 : vector<52x32xi1>, vector<52x32xf32>
    %cst_105 = arith.constant dense<0xFF800000> : vector<32xf32>
    %203 = vector.multi_reduction <maximumf>, %202, %cst_105 [0] : vector<52x32xf32> to vector<32xf32>
    %204 = vector.shape_cast %203 : vector<32xf32> to vector<1x32xf32>
    %205 = vector.broadcast %204 : vector<1x32xf32> to vector<52x32xf32>
    %206 = arith.mulf %117, %205 : vector<52x32xf32>
    %cst_106 = arith.constant dense<0.000000e+00> : vector<52xf32>
    %207 = vector.multi_reduction <add>, %206, %cst_106 [1] : vector<52x32xf32> to vector<52xf32>
    %208 = vector.shape_cast %207 : vector<52xf32> to vector<52x1xf32>
    %209 = arith.subf %198, %208 : vector<52x1xf32>
    %210 = math.exp %209 : vector<52x1xf32>
    %211 = vector.broadcast %210 : vector<52x1xf32> to vector<52x32xf32>
    %212 = arith.mulf %117, %211 : vector<52x32xf32>
    %cst_107 = arith.constant dense<0.000000e+00> : vector<32xf32>
    %213 = vector.multi_reduction <add>, %212, %cst_107 [0] : vector<52x32xf32> to vector<32xf32>
    %214 = vector.shape_cast %213 : vector<32xf32> to vector<1x32xf32>
    %215 = vector.broadcast %214 : vector<1x32xf32> to vector<52x32xf32>
    %216 = arith.mulf %117, %215 : vector<52x32xf32>
    %cst_108 = arith.constant dense<0.000000e+00> : vector<52xf32>
    %217 = vector.multi_reduction <add>, %216, %cst_108 [1] : vector<52x32xf32> to vector<52xf32>
    %218 = vector.shape_cast %217 : vector<52xf32> to vector<52x1xf32>
    %219 = arith.divf %210, %218 : vector<52x1xf32>
    %220 = arith.mulf %219, %134 : vector<52x1xf32>
    %221 = vector.broadcast %220 : vector<52x1xf32> to vector<52x32xf32>
    %222 = vector.broadcast %197 : vector<1x32xf32> to vector<52x32xf32>
    %223 = arith.mulf %221, %222 : vector<52x32xf32>
    %c8_i32_109 = arith.constant 8 : i32
    %224 = vector.broadcast %c8_i32_109 : i32 to vector<1x32xi32>
    %225 = arith.cmpi sge, %149, %224 : vector<1x32xi32>
    %c16_i32 = arith.constant 16 : i32
    %226 = vector.broadcast %c16_i32 : i32 to vector<1x32xi32>
    %227 = arith.cmpi slt, %149, %226 : vector<1x32xi32>
    %228 = arith.andi %225, %227 : vector<1x32xi1>
    %cst_110 = arith.constant 1.000000e+00 : f32
    %cst_111 = arith.constant 0.000000e+00 : f32
    %229 = vector.broadcast %cst_110 : f32 to vector<1x32xf32>
    %230 = vector.broadcast %cst_111 : f32 to vector<1x32xf32>
    %231 = arith.select %228, %229, %230 : vector<1x32xi1>, vector<1x32xf32>
    %232 = vector.extract_strided_slice %189 {offsets = [0, 1], sizes = [52, 1], strides = [1, 1]} : vector<52x4xf32> to vector<52x1xf32>
    %cst_112 = arith.constant -1.000000e+30 : f32
    %233 = vector.shape_cast %232 : vector<52x1xf32> to vector<52x1xf32>
    %234 = vector.broadcast %233 : vector<52x1xf32> to vector<52x32xf32>
    %235 = vector.broadcast %cst_112 : f32 to vector<52x32xf32>
    %236 = arith.select %114, %234, %235 : vector<52x32xi1>, vector<52x32xf32>
    %cst_113 = arith.constant dense<0xFF800000> : vector<32xf32>
    %237 = vector.multi_reduction <maximumf>, %236, %cst_113 [0] : vector<52x32xf32> to vector<32xf32>
    %238 = vector.shape_cast %237 : vector<32xf32> to vector<1x32xf32>
    %239 = vector.broadcast %238 : vector<1x32xf32> to vector<52x32xf32>
    %240 = arith.mulf %117, %239 : vector<52x32xf32>
    %cst_114 = arith.constant dense<0.000000e+00> : vector<52xf32>
    %241 = vector.multi_reduction <add>, %240, %cst_114 [1] : vector<52x32xf32> to vector<52xf32>
    %242 = vector.shape_cast %241 : vector<52xf32> to vector<52x1xf32>
    %243 = arith.subf %232, %242 : vector<52x1xf32>
    %244 = math.exp %243 : vector<52x1xf32>
    %245 = vector.broadcast %244 : vector<52x1xf32> to vector<52x32xf32>
    %246 = arith.mulf %117, %245 : vector<52x32xf32>
    %cst_115 = arith.constant dense<0.000000e+00> : vector<32xf32>
    %247 = vector.multi_reduction <add>, %246, %cst_115 [0] : vector<52x32xf32> to vector<32xf32>
    %248 = vector.shape_cast %247 : vector<32xf32> to vector<1x32xf32>
    %249 = vector.broadcast %248 : vector<1x32xf32> to vector<52x32xf32>
    %250 = arith.mulf %117, %249 : vector<52x32xf32>
    %cst_116 = arith.constant dense<0.000000e+00> : vector<52xf32>
    %251 = vector.multi_reduction <add>, %250, %cst_116 [1] : vector<52x32xf32> to vector<52xf32>
    %252 = vector.shape_cast %251 : vector<52xf32> to vector<52x1xf32>
    %253 = arith.divf %244, %252 : vector<52x1xf32>
    %254 = arith.mulf %253, %134 : vector<52x1xf32>
    %255 = vector.broadcast %254 : vector<52x1xf32> to vector<52x32xf32>
    %256 = vector.broadcast %231 : vector<1x32xf32> to vector<52x32xf32>
    %257 = arith.mulf %255, %256 : vector<52x32xf32>
    %258 = arith.addf %223, %257 : vector<52x32xf32>
    %c16_i32_117 = arith.constant 16 : i32
    %259 = vector.broadcast %c16_i32_117 : i32 to vector<1x32xi32>
    %260 = arith.cmpi sge, %149, %259 : vector<1x32xi32>
    %c24_i32 = arith.constant 24 : i32
    %261 = vector.broadcast %c24_i32 : i32 to vector<1x32xi32>
    %262 = arith.cmpi slt, %149, %261 : vector<1x32xi32>
    %263 = arith.andi %260, %262 : vector<1x32xi1>
    %cst_118 = arith.constant 1.000000e+00 : f32
    %cst_119 = arith.constant 0.000000e+00 : f32
    %264 = vector.broadcast %cst_118 : f32 to vector<1x32xf32>
    %265 = vector.broadcast %cst_119 : f32 to vector<1x32xf32>
    %266 = arith.select %263, %264, %265 : vector<1x32xi1>, vector<1x32xf32>
    %267 = vector.extract_strided_slice %189 {offsets = [0, 2], sizes = [52, 1], strides = [1, 1]} : vector<52x4xf32> to vector<52x1xf32>
    %cst_120 = arith.constant -1.000000e+30 : f32
    %268 = vector.shape_cast %267 : vector<52x1xf32> to vector<52x1xf32>
    %269 = vector.broadcast %268 : vector<52x1xf32> to vector<52x32xf32>
    %270 = vector.broadcast %cst_120 : f32 to vector<52x32xf32>
    %271 = arith.select %114, %269, %270 : vector<52x32xi1>, vector<52x32xf32>
    %cst_121 = arith.constant dense<0xFF800000> : vector<32xf32>
    %272 = vector.multi_reduction <maximumf>, %271, %cst_121 [0] : vector<52x32xf32> to vector<32xf32>
    %273 = vector.shape_cast %272 : vector<32xf32> to vector<1x32xf32>
    %274 = vector.broadcast %273 : vector<1x32xf32> to vector<52x32xf32>
    %275 = arith.mulf %117, %274 : vector<52x32xf32>
    %cst_122 = arith.constant dense<0.000000e+00> : vector<52xf32>
    %276 = vector.multi_reduction <add>, %275, %cst_122 [1] : vector<52x32xf32> to vector<52xf32>
    %277 = vector.shape_cast %276 : vector<52xf32> to vector<52x1xf32>
    %278 = arith.subf %267, %277 : vector<52x1xf32>
    %279 = math.exp %278 : vector<52x1xf32>
    %280 = vector.broadcast %279 : vector<52x1xf32> to vector<52x32xf32>
    %281 = arith.mulf %117, %280 : vector<52x32xf32>
    %cst_123 = arith.constant dense<0.000000e+00> : vector<32xf32>
    %282 = vector.multi_reduction <add>, %281, %cst_123 [0] : vector<52x32xf32> to vector<32xf32>
    %283 = vector.shape_cast %282 : vector<32xf32> to vector<1x32xf32>
    %284 = vector.broadcast %283 : vector<1x32xf32> to vector<52x32xf32>
    %285 = arith.mulf %117, %284 : vector<52x32xf32>
    %cst_124 = arith.constant dense<0.000000e+00> : vector<52xf32>
    %286 = vector.multi_reduction <add>, %285, %cst_124 [1] : vector<52x32xf32> to vector<52xf32>
    %287 = vector.shape_cast %286 : vector<52xf32> to vector<52x1xf32>
    %288 = arith.divf %279, %287 : vector<52x1xf32>
    %289 = arith.mulf %288, %134 : vector<52x1xf32>
    %290 = vector.broadcast %289 : vector<52x1xf32> to vector<52x32xf32>
    %291 = vector.broadcast %266 : vector<1x32xf32> to vector<52x32xf32>
    %292 = arith.mulf %290, %291 : vector<52x32xf32>
    %293 = arith.addf %258, %292 : vector<52x32xf32>
    %c24_i32_125 = arith.constant 24 : i32
    %294 = vector.broadcast %c24_i32_125 : i32 to vector<1x32xi32>
    %295 = arith.cmpi sge, %149, %294 : vector<1x32xi32>
    %c32_i32 = arith.constant 32 : i32
    %296 = vector.broadcast %c32_i32 : i32 to vector<1x32xi32>
    %297 = arith.cmpi slt, %149, %296 : vector<1x32xi32>
    %298 = arith.andi %295, %297 : vector<1x32xi1>
    %cst_126 = arith.constant 1.000000e+00 : f32
    %cst_127 = arith.constant 0.000000e+00 : f32
    %299 = vector.broadcast %cst_126 : f32 to vector<1x32xf32>
    %300 = vector.broadcast %cst_127 : f32 to vector<1x32xf32>
    %301 = arith.select %298, %299, %300 : vector<1x32xi1>, vector<1x32xf32>
    %302 = vector.extract_strided_slice %189 {offsets = [0, 3], sizes = [52, 1], strides = [1, 1]} : vector<52x4xf32> to vector<52x1xf32>
    %cst_128 = arith.constant -1.000000e+30 : f32
    %303 = vector.shape_cast %302 : vector<52x1xf32> to vector<52x1xf32>
    %304 = vector.broadcast %303 : vector<52x1xf32> to vector<52x32xf32>
    %305 = vector.broadcast %cst_128 : f32 to vector<52x32xf32>
    %306 = arith.select %114, %304, %305 : vector<52x32xi1>, vector<52x32xf32>
    %cst_129 = arith.constant dense<0xFF800000> : vector<32xf32>
    %307 = vector.multi_reduction <maximumf>, %306, %cst_129 [0] : vector<52x32xf32> to vector<32xf32>
    %308 = vector.shape_cast %307 : vector<32xf32> to vector<1x32xf32>
    %309 = vector.broadcast %308 : vector<1x32xf32> to vector<52x32xf32>
    %310 = arith.mulf %117, %309 : vector<52x32xf32>
    %cst_130 = arith.constant dense<0.000000e+00> : vector<52xf32>
    %311 = vector.multi_reduction <add>, %310, %cst_130 [1] : vector<52x32xf32> to vector<52xf32>
    %312 = vector.shape_cast %311 : vector<52xf32> to vector<52x1xf32>
    %313 = arith.subf %302, %312 : vector<52x1xf32>
    %314 = math.exp %313 : vector<52x1xf32>
    %315 = vector.broadcast %314 : vector<52x1xf32> to vector<52x32xf32>
    %316 = arith.mulf %117, %315 : vector<52x32xf32>
    %cst_131 = arith.constant dense<0.000000e+00> : vector<32xf32>
    %317 = vector.multi_reduction <add>, %316, %cst_131 [0] : vector<52x32xf32> to vector<32xf32>
    %318 = vector.shape_cast %317 : vector<32xf32> to vector<1x32xf32>
    %319 = vector.broadcast %318 : vector<1x32xf32> to vector<52x32xf32>
    %320 = arith.mulf %117, %319 : vector<52x32xf32>
    %cst_132 = arith.constant dense<0.000000e+00> : vector<52xf32>
    %321 = vector.multi_reduction <add>, %320, %cst_132 [1] : vector<52x32xf32> to vector<52xf32>
    %322 = vector.shape_cast %321 : vector<52xf32> to vector<52x1xf32>
    %323 = arith.divf %314, %322 : vector<52x1xf32>
    %324 = arith.mulf %323, %134 : vector<52x1xf32>
    %325 = vector.broadcast %324 : vector<52x1xf32> to vector<52x32xf32>
    %326 = vector.broadcast %301 : vector<1x32xf32> to vector<52x32xf32>
    %327 = arith.mulf %325, %326 : vector<52x32xf32>
    %328 = arith.addf %293, %327 : vector<52x32xf32>
    %329 = arith.mulf %184, %328 : vector<52x32xf32>
    %cst_133 = arith.constant dense<0.000000e+00> : vector<32x32xf32>
    %330 = tpu.matmul %128, %329, %cst_133 {dimension_numbers = #tpu.dot_dimension_numbers<[1], [0], [0], [1], [0, 0, 1, 1], [], []>} : vector<32x52xf32>, vector<52x32xf32>, vector<32x32xf32> -> vector<32x32xf32>
    %c0_134 = arith.constant 0 : index
    %c0_135 = arith.constant 0 : index
    %331 = vector.load %arg18[%c0_134, %c0_135] : memref<64x32xf32, #tpu.memory_space<vmem>>, vector<32x32xf32>
    %c0_136 = arith.constant 0 : index
    %c0_137 = arith.constant 0 : index
    %332 = vector.load %arg20[%c0_136, %c0_137] : memref<64x32xf32, #tpu.memory_space<vmem>>, vector<32x32xf32>
    %cst_138 = arith.constant dense<0.000000e+00> : vector<32x32xf32>
    %333 = tpu.matmul %330, %331, %cst_138 {dimension_numbers = #tpu.dot_dimension_numbers<[1], [0], [0], [1], [0, 0, 1, 1], [], []>} : vector<32x32xf32>, vector<32x32xf32>, vector<32x32xf32> -> vector<32x32xf32>
    %c0_139 = arith.constant 0 : index
    %c0_140 = arith.constant 0 : index
    %334 = vector.load %arg19[%c0_139, %c0_140] : memref<2x32xf32, #tpu.memory_space<vmem>>, vector<1x32xf32>
    %335 = vector.broadcast %334 : vector<1x32xf32> to vector<32x32xf32>
    %336 = arith.addf %333, %335 : vector<32x32xf32>
    %cst_141 = arith.constant 0.000000e+00 : f32
    %337 = vector.broadcast %cst_141 : f32 to vector<32x32xf32>
    %338 = arith.maximumf %336, %337 : vector<32x32xf32>
    %cst_142 = arith.constant dense<0.000000e+00> : vector<32x32xf32>
    %339 = tpu.matmul %338, %332, %cst_142 {dimension_numbers = #tpu.dot_dimension_numbers<[1], [0], [0], [1], [0, 0, 1, 1], [], []>} : vector<32x32xf32>, vector<32x32xf32>, vector<32x32xf32> -> vector<32x32xf32>
    %c0_143 = arith.constant 0 : index
    %c0_144 = arith.constant 0 : index
    %340 = vector.load %arg21[%c0_143, %c0_144] : memref<2x32xf32, #tpu.memory_space<vmem>>, vector<1x32xf32>
    %341 = vector.broadcast %340 : vector<1x32xf32> to vector<32x32xf32>
    %342 = arith.addf %339, %341 : vector<32x32xf32>
    %cst_145 = arith.constant 5.000000e-01 : f32
    %343 = vector.broadcast %cst_145 : f32 to vector<32x32xf32>
    %344 = arith.mulf %343, %342 : vector<32x32xf32>
    %cst_146 = arith.constant 0.707106769 : f32
    %345 = vector.broadcast %cst_146 : f32 to vector<32x32xf32>
    %346 = arith.mulf %342, %345 : vector<32x32xf32>
    %347 = math.absf %346 : vector<32x32xf32>
    %cst_147 = arith.constant 0.327591091 : f32
    %348 = vector.broadcast %cst_147 : f32 to vector<32x32xf32>
    %349 = arith.mulf %348, %347 : vector<32x32xf32>
    %cst_148 = arith.constant 1.000000e+00 : f32
    %350 = vector.broadcast %cst_148 : f32 to vector<32x32xf32>
    %351 = arith.addf %350, %349 : vector<32x32xf32>
    %cst_149 = arith.constant 1.000000e+00 : f32
    %352 = vector.broadcast %cst_149 : f32 to vector<32x32xf32>
    %353 = arith.divf %352, %351 : vector<32x32xf32>
    %cst_150 = arith.constant 1.06140542 : f32
    %354 = vector.broadcast %cst_150 : f32 to vector<32x32xf32>
    %355 = arith.mulf %354, %353 : vector<32x32xf32>
    %cst_151 = arith.constant -1.45315206 : f32
    %356 = vector.broadcast %cst_151 : f32 to vector<32x32xf32>
    %357 = arith.addf %355, %356 : vector<32x32xf32>
    %358 = arith.mulf %357, %353 : vector<32x32xf32>
    %cst_152 = arith.constant 1.42141378 : f32
    %359 = vector.broadcast %cst_152 : f32 to vector<32x32xf32>
    %360 = arith.addf %358, %359 : vector<32x32xf32>
    %361 = arith.mulf %360, %353 : vector<32x32xf32>
    %cst_153 = arith.constant -0.284496725 : f32
    %362 = vector.broadcast %cst_153 : f32 to vector<32x32xf32>
    %363 = arith.addf %361, %362 : vector<32x32xf32>
    %364 = arith.mulf %363, %353 : vector<32x32xf32>
    %cst_154 = arith.constant 0.254829586 : f32
    %365 = vector.broadcast %cst_154 : f32 to vector<32x32xf32>
    %366 = arith.addf %364, %365 : vector<32x32xf32>
    %367 = arith.mulf %366, %353 : vector<32x32xf32>
    %cst_155 = arith.constant 0.000000e+00 : f32
    %368 = vector.broadcast %cst_155 : f32 to vector<32x32xf32>
    %369 = arith.subf %368, %347 : vector<32x32xf32>
    %370 = arith.mulf %369, %347 : vector<32x32xf32>
    %371 = math.exp %370 : vector<32x32xf32>
    %372 = arith.mulf %367, %371 : vector<32x32xf32>
    %cst_156 = arith.constant 1.000000e+00 : f32
    %373 = vector.broadcast %cst_156 : f32 to vector<32x32xf32>
    %374 = arith.subf %373, %372 : vector<32x32xf32>
    %cst_157 = arith.constant 0.000000e+00 : f32
    %375 = vector.broadcast %cst_157 : f32 to vector<32x32xf32>
    %376 = arith.cmpf oge, %346, %375 : vector<32x32xf32>
    %cst_158 = arith.constant 0.000000e+00 : f32
    %377 = vector.broadcast %cst_158 : f32 to vector<32x32xf32>
    %378 = arith.subf %377, %374 : vector<32x32xf32>
    %379 = arith.select %376, %374, %378 : vector<32x32xi1>, vector<32x32xf32>
    %cst_159 = arith.constant 1.000000e+00 : f32
    %380 = vector.broadcast %cst_159 : f32 to vector<32x32xf32>
    %381 = arith.addf %380, %379 : vector<32x32xf32>
    %382 = arith.mulf %344, %381 : vector<32x32xf32>
    %c160 = arith.constant 160 : index
    %c0_160 = arith.constant 0 : index
    %383 = vector.load %arg16[%c160, %c0_160] : memref<320x96xf32, #tpu.memory_space<vmem>>, vector<160x96xf32>
    %c1_161 = arith.constant 1 : index
    %c0_162 = arith.constant 0 : index
    %384 = vector.load %arg17[%c1_161, %c0_162] : memref<2x96xf32, #tpu.memory_space<vmem>>, vector<1x96xf32>
    %385 = vector.extract_strided_slice %383 {offsets = [0, 0], sizes = [32, 96], strides = [1, 1]} : vector<160x96xf32> to vector<32x96xf32>
    %cst_163 = arith.constant dense<0.000000e+00> : vector<32x96xf32>
    %386 = tpu.matmul %382, %385, %cst_163 {dimension_numbers = #tpu.dot_dimension_numbers<[1], [0], [0], [1], [0, 0, 1, 1], [], []>} : vector<32x32xf32>, vector<32x96xf32>, vector<32x96xf32> -> vector<32x96xf32>
    %387 = vector.extract_strided_slice %383 {offsets = [32, 0], sizes = [32, 96], strides = [1, 1]} : vector<160x96xf32> to vector<32x96xf32>
    %cst_164 = arith.constant dense<0.000000e+00> : vector<32x96xf32>
    %388 = tpu.matmul %108, %387, %cst_164 {dimension_numbers = #tpu.dot_dimension_numbers<[1], [0], [0], [1], [0, 0, 1, 1], [], []>} : vector<32x32xf32>, vector<32x96xf32>, vector<32x96xf32> -> vector<32x96xf32>
    %389 = arith.addf %386, %388 : vector<32x96xf32>
    %390 = vector.extract_strided_slice %383 {offsets = [64, 0], sizes = [32, 96], strides = [1, 1]} : vector<160x96xf32> to vector<32x96xf32>
    %cst_165 = arith.constant dense<0.000000e+00> : vector<32x96xf32>
    %391 = tpu.matmul %382, %390, %cst_165 {dimension_numbers = #tpu.dot_dimension_numbers<[1], [0], [0], [1], [0, 0, 1, 1], [], []>} : vector<32x32xf32>, vector<32x96xf32>, vector<32x96xf32> -> vector<32x96xf32>
    %392 = vector.extract_strided_slice %383 {offsets = [96, 0], sizes = [32, 96], strides = [1, 1]} : vector<160x96xf32> to vector<32x96xf32>
    %cst_166 = arith.constant dense<0.000000e+00> : vector<32x96xf32>
    %393 = tpu.matmul %108, %392, %cst_166 {dimension_numbers = #tpu.dot_dimension_numbers<[1], [0], [0], [1], [0, 0, 1, 1], [], []>} : vector<32x32xf32>, vector<32x96xf32>, vector<32x96xf32> -> vector<32x96xf32>
    %394 = arith.addf %391, %393 : vector<32x96xf32>
    %cst_167 = arith.constant dense<0.000000e+00> : vector<52x96xf32>
    %395 = tpu.matmul %122, %389, %cst_167 {dimension_numbers = #tpu.dot_dimension_numbers<[1], [0], [0], [1], [0, 0, 1, 1], [], []>} : vector<52x32xf32>, vector<32x96xf32>, vector<52x96xf32> -> vector<52x96xf32>
    %cst_168 = arith.constant dense<0.000000e+00> : vector<52x96xf32>
    %396 = tpu.matmul %117, %394, %cst_168 {dimension_numbers = #tpu.dot_dimension_numbers<[1], [0], [0], [1], [0, 0, 1, 1], [], []>} : vector<52x32xf32>, vector<32x96xf32>, vector<52x96xf32> -> vector<52x96xf32>
    %397 = arith.addf %395, %396 : vector<52x96xf32>
    %398 = vector.extract_strided_slice %383 {offsets = [128, 0], sizes = [32, 96], strides = [1, 1]} : vector<160x96xf32> to vector<32x96xf32>
    %cst_169 = arith.constant dense<0.000000e+00> : vector<52x96xf32>
    %399 = tpu.matmul %162, %398, %cst_169 {dimension_numbers = #tpu.dot_dimension_numbers<[1], [0], [0], [1], [0, 0, 1, 1], [], []>} : vector<52x32xf32>, vector<32x96xf32>, vector<52x96xf32> -> vector<52x96xf32>
    %400 = arith.addf %397, %399 : vector<52x96xf32>
    %401 = vector.broadcast %384 : vector<1x96xf32> to vector<52x96xf32>
    %402 = arith.addf %400, %401 : vector<52x96xf32>
    %403 = vector.extract_strided_slice %402 {offsets = [0, 0], sizes = [52, 32], strides = [1, 1]} : vector<52x96xf32> to vector<52x32xf32>
    %404 = vector.extract_strided_slice %402 {offsets = [0, 32], sizes = [52, 32], strides = [1, 1]} : vector<52x96xf32> to vector<52x32xf32>
    %405 = vector.extract_strided_slice %402 {offsets = [0, 64], sizes = [52, 32], strides = [1, 1]} : vector<52x96xf32> to vector<52x32xf32>
    %cst_170 = arith.constant 0.353553385 : f32
    %406 = vector.broadcast %cst_170 : f32 to vector<52x32xf32>
    %407 = arith.mulf %405, %406 : vector<52x32xf32>
    %408 = arith.mulf %407, %403 : vector<52x32xf32>
    %cst_171 = arith.constant dense<0.000000e+00> : vector<52x4xf32>
    %409 = tpu.matmul %408, %148, %cst_171 {dimension_numbers = #tpu.dot_dimension_numbers<[1], [0], [0], [1], [0, 0, 1, 1], [], []>} : vector<52x32xf32>, vector<32x4xf32>, vector<52x4xf32> -> vector<52x4xf32>
    %c0_i32_172 = arith.constant 0 : i32
    %410 = vector.broadcast %c0_i32_172 : i32 to vector<1x32xi32>
    %411 = arith.cmpi sge, %149, %410 : vector<1x32xi32>
    %c8_i32_173 = arith.constant 8 : i32
    %412 = vector.broadcast %c8_i32_173 : i32 to vector<1x32xi32>
    %413 = arith.cmpi slt, %149, %412 : vector<1x32xi32>
    %414 = arith.andi %411, %413 : vector<1x32xi1>
    %cst_174 = arith.constant 1.000000e+00 : f32
    %cst_175 = arith.constant 0.000000e+00 : f32
    %415 = vector.broadcast %cst_174 : f32 to vector<1x32xf32>
    %416 = vector.broadcast %cst_175 : f32 to vector<1x32xf32>
    %417 = arith.select %414, %415, %416 : vector<1x32xi1>, vector<1x32xf32>
    %418 = vector.extract_strided_slice %409 {offsets = [0, 0], sizes = [52, 1], strides = [1, 1]} : vector<52x4xf32> to vector<52x1xf32>
    %cst_176 = arith.constant -1.000000e+30 : f32
    %419 = vector.shape_cast %418 : vector<52x1xf32> to vector<52x1xf32>
    %420 = vector.broadcast %419 : vector<52x1xf32> to vector<52x32xf32>
    %421 = vector.broadcast %cst_176 : f32 to vector<52x32xf32>
    %422 = arith.select %114, %420, %421 : vector<52x32xi1>, vector<52x32xf32>
    %cst_177 = arith.constant dense<0xFF800000> : vector<32xf32>
    %423 = vector.multi_reduction <maximumf>, %422, %cst_177 [0] : vector<52x32xf32> to vector<32xf32>
    %424 = vector.shape_cast %423 : vector<32xf32> to vector<1x32xf32>
    %425 = vector.broadcast %424 : vector<1x32xf32> to vector<52x32xf32>
    %426 = arith.mulf %117, %425 : vector<52x32xf32>
    %cst_178 = arith.constant dense<0.000000e+00> : vector<52xf32>
    %427 = vector.multi_reduction <add>, %426, %cst_178 [1] : vector<52x32xf32> to vector<52xf32>
    %428 = vector.shape_cast %427 : vector<52xf32> to vector<52x1xf32>
    %429 = arith.subf %418, %428 : vector<52x1xf32>
    %430 = math.exp %429 : vector<52x1xf32>
    %431 = vector.broadcast %430 : vector<52x1xf32> to vector<52x32xf32>
    %432 = arith.mulf %117, %431 : vector<52x32xf32>
    %cst_179 = arith.constant dense<0.000000e+00> : vector<32xf32>
    %433 = vector.multi_reduction <add>, %432, %cst_179 [0] : vector<52x32xf32> to vector<32xf32>
    %434 = vector.shape_cast %433 : vector<32xf32> to vector<1x32xf32>
    %435 = vector.broadcast %434 : vector<1x32xf32> to vector<52x32xf32>
    %436 = arith.mulf %117, %435 : vector<52x32xf32>
    %cst_180 = arith.constant dense<0.000000e+00> : vector<52xf32>
    %437 = vector.multi_reduction <add>, %436, %cst_180 [1] : vector<52x32xf32> to vector<52xf32>
    %438 = vector.shape_cast %437 : vector<52xf32> to vector<52x1xf32>
    %439 = arith.divf %430, %438 : vector<52x1xf32>
    %440 = arith.mulf %439, %134 : vector<52x1xf32>
    %441 = vector.broadcast %440 : vector<52x1xf32> to vector<52x32xf32>
    %442 = vector.broadcast %417 : vector<1x32xf32> to vector<52x32xf32>
    %443 = arith.mulf %441, %442 : vector<52x32xf32>
    %c8_i32_181 = arith.constant 8 : i32
    %444 = vector.broadcast %c8_i32_181 : i32 to vector<1x32xi32>
    %445 = arith.cmpi sge, %149, %444 : vector<1x32xi32>
    %c16_i32_182 = arith.constant 16 : i32
    %446 = vector.broadcast %c16_i32_182 : i32 to vector<1x32xi32>
    %447 = arith.cmpi slt, %149, %446 : vector<1x32xi32>
    %448 = arith.andi %445, %447 : vector<1x32xi1>
    %cst_183 = arith.constant 1.000000e+00 : f32
    %cst_184 = arith.constant 0.000000e+00 : f32
    %449 = vector.broadcast %cst_183 : f32 to vector<1x32xf32>
    %450 = vector.broadcast %cst_184 : f32 to vector<1x32xf32>
    %451 = arith.select %448, %449, %450 : vector<1x32xi1>, vector<1x32xf32>
    %452 = vector.extract_strided_slice %409 {offsets = [0, 1], sizes = [52, 1], strides = [1, 1]} : vector<52x4xf32> to vector<52x1xf32>
    %cst_185 = arith.constant -1.000000e+30 : f32
    %453 = vector.shape_cast %452 : vector<52x1xf32> to vector<52x1xf32>
    %454 = vector.broadcast %453 : vector<52x1xf32> to vector<52x32xf32>
    %455 = vector.broadcast %cst_185 : f32 to vector<52x32xf32>
    %456 = arith.select %114, %454, %455 : vector<52x32xi1>, vector<52x32xf32>
    %cst_186 = arith.constant dense<0xFF800000> : vector<32xf32>
    %457 = vector.multi_reduction <maximumf>, %456, %cst_186 [0] : vector<52x32xf32> to vector<32xf32>
    %458 = vector.shape_cast %457 : vector<32xf32> to vector<1x32xf32>
    %459 = vector.broadcast %458 : vector<1x32xf32> to vector<52x32xf32>
    %460 = arith.mulf %117, %459 : vector<52x32xf32>
    %cst_187 = arith.constant dense<0.000000e+00> : vector<52xf32>
    %461 = vector.multi_reduction <add>, %460, %cst_187 [1] : vector<52x32xf32> to vector<52xf32>
    %462 = vector.shape_cast %461 : vector<52xf32> to vector<52x1xf32>
    %463 = arith.subf %452, %462 : vector<52x1xf32>
    %464 = math.exp %463 : vector<52x1xf32>
    %465 = vector.broadcast %464 : vector<52x1xf32> to vector<52x32xf32>
    %466 = arith.mulf %117, %465 : vector<52x32xf32>
    %cst_188 = arith.constant dense<0.000000e+00> : vector<32xf32>
    %467 = vector.multi_reduction <add>, %466, %cst_188 [0] : vector<52x32xf32> to vector<32xf32>
    %468 = vector.shape_cast %467 : vector<32xf32> to vector<1x32xf32>
    %469 = vector.broadcast %468 : vector<1x32xf32> to vector<52x32xf32>
    %470 = arith.mulf %117, %469 : vector<52x32xf32>
    %cst_189 = arith.constant dense<0.000000e+00> : vector<52xf32>
    %471 = vector.multi_reduction <add>, %470, %cst_189 [1] : vector<52x32xf32> to vector<52xf32>
    %472 = vector.shape_cast %471 : vector<52xf32> to vector<52x1xf32>
    %473 = arith.divf %464, %472 : vector<52x1xf32>
    %474 = arith.mulf %473, %134 : vector<52x1xf32>
    %475 = vector.broadcast %474 : vector<52x1xf32> to vector<52x32xf32>
    %476 = vector.broadcast %451 : vector<1x32xf32> to vector<52x32xf32>
    %477 = arith.mulf %475, %476 : vector<52x32xf32>
    %478 = arith.addf %443, %477 : vector<52x32xf32>
    %c16_i32_190 = arith.constant 16 : i32
    %479 = vector.broadcast %c16_i32_190 : i32 to vector<1x32xi32>
    %480 = arith.cmpi sge, %149, %479 : vector<1x32xi32>
    %c24_i32_191 = arith.constant 24 : i32
    %481 = vector.broadcast %c24_i32_191 : i32 to vector<1x32xi32>
    %482 = arith.cmpi slt, %149, %481 : vector<1x32xi32>
    %483 = arith.andi %480, %482 : vector<1x32xi1>
    %cst_192 = arith.constant 1.000000e+00 : f32
    %cst_193 = arith.constant 0.000000e+00 : f32
    %484 = vector.broadcast %cst_192 : f32 to vector<1x32xf32>
    %485 = vector.broadcast %cst_193 : f32 to vector<1x32xf32>
    %486 = arith.select %483, %484, %485 : vector<1x32xi1>, vector<1x32xf32>
    %487 = vector.extract_strided_slice %409 {offsets = [0, 2], sizes = [52, 1], strides = [1, 1]} : vector<52x4xf32> to vector<52x1xf32>
    %cst_194 = arith.constant -1.000000e+30 : f32
    %488 = vector.shape_cast %487 : vector<52x1xf32> to vector<52x1xf32>
    %489 = vector.broadcast %488 : vector<52x1xf32> to vector<52x32xf32>
    %490 = vector.broadcast %cst_194 : f32 to vector<52x32xf32>
    %491 = arith.select %114, %489, %490 : vector<52x32xi1>, vector<52x32xf32>
    %cst_195 = arith.constant dense<0xFF800000> : vector<32xf32>
    %492 = vector.multi_reduction <maximumf>, %491, %cst_195 [0] : vector<52x32xf32> to vector<32xf32>
    %493 = vector.shape_cast %492 : vector<32xf32> to vector<1x32xf32>
    %494 = vector.broadcast %493 : vector<1x32xf32> to vector<52x32xf32>
    %495 = arith.mulf %117, %494 : vector<52x32xf32>
    %cst_196 = arith.constant dense<0.000000e+00> : vector<52xf32>
    %496 = vector.multi_reduction <add>, %495, %cst_196 [1] : vector<52x32xf32> to vector<52xf32>
    %497 = vector.shape_cast %496 : vector<52xf32> to vector<52x1xf32>
    %498 = arith.subf %487, %497 : vector<52x1xf32>
    %499 = math.exp %498 : vector<52x1xf32>
    %500 = vector.broadcast %499 : vector<52x1xf32> to vector<52x32xf32>
    %501 = arith.mulf %117, %500 : vector<52x32xf32>
    %cst_197 = arith.constant dense<0.000000e+00> : vector<32xf32>
    %502 = vector.multi_reduction <add>, %501, %cst_197 [0] : vector<52x32xf32> to vector<32xf32>
    %503 = vector.shape_cast %502 : vector<32xf32> to vector<1x32xf32>
    %504 = vector.broadcast %503 : vector<1x32xf32> to vector<52x32xf32>
    %505 = arith.mulf %117, %504 : vector<52x32xf32>
    %cst_198 = arith.constant dense<0.000000e+00> : vector<52xf32>
    %506 = vector.multi_reduction <add>, %505, %cst_198 [1] : vector<52x32xf32> to vector<52xf32>
    %507 = vector.shape_cast %506 : vector<52xf32> to vector<52x1xf32>
    %508 = arith.divf %499, %507 : vector<52x1xf32>
    %509 = arith.mulf %508, %134 : vector<52x1xf32>
    %510 = vector.broadcast %509 : vector<52x1xf32> to vector<52x32xf32>
    %511 = vector.broadcast %486 : vector<1x32xf32> to vector<52x32xf32>
    %512 = arith.mulf %510, %511 : vector<52x32xf32>
    %513 = arith.addf %478, %512 : vector<52x32xf32>
    %c24_i32_199 = arith.constant 24 : i32
    %514 = vector.broadcast %c24_i32_199 : i32 to vector<1x32xi32>
    %515 = arith.cmpi sge, %149, %514 : vector<1x32xi32>
    %c32_i32_200 = arith.constant 32 : i32
    %516 = vector.broadcast %c32_i32_200 : i32 to vector<1x32xi32>
    %517 = arith.cmpi slt, %149, %516 : vector<1x32xi32>
    %518 = arith.andi %515, %517 : vector<1x32xi1>
    %cst_201 = arith.constant 1.000000e+00 : f32
    %cst_202 = arith.constant 0.000000e+00 : f32
    %519 = vector.broadcast %cst_201 : f32 to vector<1x32xf32>
    %520 = vector.broadcast %cst_202 : f32 to vector<1x32xf32>
    %521 = arith.select %518, %519, %520 : vector<1x32xi1>, vector<1x32xf32>
    %522 = vector.extract_strided_slice %409 {offsets = [0, 3], sizes = [52, 1], strides = [1, 1]} : vector<52x4xf32> to vector<52x1xf32>
    %cst_203 = arith.constant -1.000000e+30 : f32
    %523 = vector.shape_cast %522 : vector<52x1xf32> to vector<52x1xf32>
    %524 = vector.broadcast %523 : vector<52x1xf32> to vector<52x32xf32>
    %525 = vector.broadcast %cst_203 : f32 to vector<52x32xf32>
    %526 = arith.select %114, %524, %525 : vector<52x32xi1>, vector<52x32xf32>
    %cst_204 = arith.constant dense<0xFF800000> : vector<32xf32>
    %527 = vector.multi_reduction <maximumf>, %526, %cst_204 [0] : vector<52x32xf32> to vector<32xf32>
    %528 = vector.shape_cast %527 : vector<32xf32> to vector<1x32xf32>
    %529 = vector.broadcast %528 : vector<1x32xf32> to vector<52x32xf32>
    %530 = arith.mulf %117, %529 : vector<52x32xf32>
    %cst_205 = arith.constant dense<0.000000e+00> : vector<52xf32>
    %531 = vector.multi_reduction <add>, %530, %cst_205 [1] : vector<52x32xf32> to vector<52xf32>
    %532 = vector.shape_cast %531 : vector<52xf32> to vector<52x1xf32>
    %533 = arith.subf %522, %532 : vector<52x1xf32>
    %534 = math.exp %533 : vector<52x1xf32>
    %535 = vector.broadcast %534 : vector<52x1xf32> to vector<52x32xf32>
    %536 = arith.mulf %117, %535 : vector<52x32xf32>
    %cst_206 = arith.constant dense<0.000000e+00> : vector<32xf32>
    %537 = vector.multi_reduction <add>, %536, %cst_206 [0] : vector<52x32xf32> to vector<32xf32>
    %538 = vector.shape_cast %537 : vector<32xf32> to vector<1x32xf32>
    %539 = vector.broadcast %538 : vector<1x32xf32> to vector<52x32xf32>
    %540 = arith.mulf %117, %539 : vector<52x32xf32>
    %cst_207 = arith.constant dense<0.000000e+00> : vector<52xf32>
    %541 = vector.multi_reduction <add>, %540, %cst_207 [1] : vector<52x32xf32> to vector<52xf32>
    %542 = vector.shape_cast %541 : vector<52xf32> to vector<52x1xf32>
    %543 = arith.divf %534, %542 : vector<52x1xf32>
    %544 = arith.mulf %543, %134 : vector<52x1xf32>
    %545 = vector.broadcast %544 : vector<52x1xf32> to vector<52x32xf32>
    %546 = vector.broadcast %521 : vector<1x32xf32> to vector<52x32xf32>
    %547 = arith.mulf %545, %546 : vector<52x32xf32>
    %548 = arith.addf %513, %547 : vector<52x32xf32>
    %549 = arith.mulf %404, %548 : vector<52x32xf32>
    %cst_208 = arith.constant dense<0.000000e+00> : vector<32x32xf32>
    %550 = tpu.matmul %128, %549, %cst_208 {dimension_numbers = #tpu.dot_dimension_numbers<[1], [0], [0], [1], [0, 0, 1, 1], [], []>} : vector<32x52xf32>, vector<52x32xf32>, vector<32x32xf32> -> vector<32x32xf32>
    %c32 = arith.constant 32 : index
    %c0_209 = arith.constant 0 : index
    %551 = vector.load %arg18[%c32, %c0_209] : memref<64x32xf32, #tpu.memory_space<vmem>>, vector<32x32xf32>
    %c32_210 = arith.constant 32 : index
    %c0_211 = arith.constant 0 : index
    %552 = vector.load %arg20[%c32_210, %c0_211] : memref<64x32xf32, #tpu.memory_space<vmem>>, vector<32x32xf32>
    %cst_212 = arith.constant dense<0.000000e+00> : vector<32x32xf32>
    %553 = tpu.matmul %550, %551, %cst_212 {dimension_numbers = #tpu.dot_dimension_numbers<[1], [0], [0], [1], [0, 0, 1, 1], [], []>} : vector<32x32xf32>, vector<32x32xf32>, vector<32x32xf32> -> vector<32x32xf32>
    %c1_213 = arith.constant 1 : index
    %c0_214 = arith.constant 0 : index
    %554 = vector.load %arg19[%c1_213, %c0_214] : memref<2x32xf32, #tpu.memory_space<vmem>>, vector<1x32xf32>
    %555 = vector.broadcast %554 : vector<1x32xf32> to vector<32x32xf32>
    %556 = arith.addf %553, %555 : vector<32x32xf32>
    %cst_215 = arith.constant 0.000000e+00 : f32
    %557 = vector.broadcast %cst_215 : f32 to vector<32x32xf32>
    %558 = arith.maximumf %556, %557 : vector<32x32xf32>
    %cst_216 = arith.constant dense<0.000000e+00> : vector<32x32xf32>
    %559 = tpu.matmul %558, %552, %cst_216 {dimension_numbers = #tpu.dot_dimension_numbers<[1], [0], [0], [1], [0, 0, 1, 1], [], []>} : vector<32x32xf32>, vector<32x32xf32>, vector<32x32xf32> -> vector<32x32xf32>
    %c1_217 = arith.constant 1 : index
    %c0_218 = arith.constant 0 : index
    %560 = vector.load %arg21[%c1_217, %c0_218] : memref<2x32xf32, #tpu.memory_space<vmem>>, vector<1x32xf32>
    %561 = vector.broadcast %560 : vector<1x32xf32> to vector<32x32xf32>
    %562 = arith.addf %559, %561 : vector<32x32xf32>
    %cst_219 = arith.constant 5.000000e-01 : f32
    %563 = vector.broadcast %cst_219 : f32 to vector<32x32xf32>
    %564 = arith.mulf %563, %562 : vector<32x32xf32>
    %cst_220 = arith.constant 0.707106769 : f32
    %565 = vector.broadcast %cst_220 : f32 to vector<32x32xf32>
    %566 = arith.mulf %562, %565 : vector<32x32xf32>
    %567 = math.absf %566 : vector<32x32xf32>
    %cst_221 = arith.constant 0.327591091 : f32
    %568 = vector.broadcast %cst_221 : f32 to vector<32x32xf32>
    %569 = arith.mulf %568, %567 : vector<32x32xf32>
    %cst_222 = arith.constant 1.000000e+00 : f32
    %570 = vector.broadcast %cst_222 : f32 to vector<32x32xf32>
    %571 = arith.addf %570, %569 : vector<32x32xf32>
    %cst_223 = arith.constant 1.000000e+00 : f32
    %572 = vector.broadcast %cst_223 : f32 to vector<32x32xf32>
    %573 = arith.divf %572, %571 : vector<32x32xf32>
    %cst_224 = arith.constant 1.06140542 : f32
    %574 = vector.broadcast %cst_224 : f32 to vector<32x32xf32>
    %575 = arith.mulf %574, %573 : vector<32x32xf32>
    %cst_225 = arith.constant -1.45315206 : f32
    %576 = vector.broadcast %cst_225 : f32 to vector<32x32xf32>
    %577 = arith.addf %575, %576 : vector<32x32xf32>
    %578 = arith.mulf %577, %573 : vector<32x32xf32>
    %cst_226 = arith.constant 1.42141378 : f32
    %579 = vector.broadcast %cst_226 : f32 to vector<32x32xf32>
    %580 = arith.addf %578, %579 : vector<32x32xf32>
    %581 = arith.mulf %580, %573 : vector<32x32xf32>
    %cst_227 = arith.constant -0.284496725 : f32
    %582 = vector.broadcast %cst_227 : f32 to vector<32x32xf32>
    %583 = arith.addf %581, %582 : vector<32x32xf32>
    %584 = arith.mulf %583, %573 : vector<32x32xf32>
    %cst_228 = arith.constant 0.254829586 : f32
    %585 = vector.broadcast %cst_228 : f32 to vector<32x32xf32>
    %586 = arith.addf %584, %585 : vector<32x32xf32>
    %587 = arith.mulf %586, %573 : vector<32x32xf32>
    %cst_229 = arith.constant 0.000000e+00 : f32
    %588 = vector.broadcast %cst_229 : f32 to vector<32x32xf32>
    %589 = arith.subf %588, %567 : vector<32x32xf32>
    %590 = arith.mulf %589, %567 : vector<32x32xf32>
    %591 = math.exp %590 : vector<32x32xf32>
    %592 = arith.mulf %587, %591 : vector<32x32xf32>
    %cst_230 = arith.constant 1.000000e+00 : f32
    %593 = vector.broadcast %cst_230 : f32 to vector<32x32xf32>
    %594 = arith.subf %593, %592 : vector<32x32xf32>
    %cst_231 = arith.constant 0.000000e+00 : f32
    %595 = vector.broadcast %cst_231 : f32 to vector<32x32xf32>
    %596 = arith.cmpf oge, %566, %595 : vector<32x32xf32>
    %cst_232 = arith.constant 0.000000e+00 : f32
    %597 = vector.broadcast %cst_232 : f32 to vector<32x32xf32>
    %598 = arith.subf %597, %594 : vector<32x32xf32>
    %599 = arith.select %596, %594, %598 : vector<32x32xi1>, vector<32x32xf32>
    %cst_233 = arith.constant 1.000000e+00 : f32
    %600 = vector.broadcast %cst_233 : f32 to vector<32x32xf32>
    %601 = arith.addf %600, %599 : vector<32x32xf32>
    %602 = arith.mulf %564, %601 : vector<32x32xf32>
    %c0_234 = arith.constant 0 : index
    %c0_235 = arith.constant 0 : index
    %603 = vector.load %arg22[%c0_234, %c0_235] : memref<32x32xf32, #tpu.memory_space<vmem>>, vector<32x32xf32>
    %cst_236 = arith.constant dense<0.000000e+00> : vector<32x32xf32>
    %604 = tpu.matmul %62, %603, %cst_236 {dimension_numbers = #tpu.dot_dimension_numbers<[1], [0], [0], [1], [0, 0, 1, 1], [], []>} : vector<32x32xf32>, vector<32x32xf32>, vector<32x32xf32> -> vector<32x32xf32>
    %c0_237 = arith.constant 0 : index
    %c0_238 = arith.constant 0 : index
    %605 = vector.load %arg23[%c0_237, %c0_238] : memref<1x32xf32, #tpu.memory_space<vmem>>, vector<1x32xf32>
    %606 = vector.broadcast %605 : vector<1x32xf32> to vector<32x32xf32>
    %607 = arith.addf %604, %606 : vector<32x32xf32>
    %c0_239 = arith.constant 0 : index
    %c0_240 = arith.constant 0 : index
    %608 = vector.load %arg24[%c0_239, %c0_240] : memref<32x32xf32, #tpu.memory_space<vmem>>, vector<32x32xf32>
    %cst_241 = arith.constant dense<0.000000e+00> : vector<32x32xf32>
    %609 = tpu.matmul %602, %608, %cst_241 {dimension_numbers = #tpu.dot_dimension_numbers<[1], [0], [0], [1], [0, 0, 1, 1], [], []>} : vector<32x32xf32>, vector<32x32xf32>, vector<32x32xf32> -> vector<32x32xf32>
    %610 = arith.addf %607, %609 : vector<32x32xf32>
    %c0_242 = arith.constant 0 : index
    %c0_243 = arith.constant 0 : index
    %611 = vector.load %arg25[%c0_242, %c0_243] : memref<1x32xf32, #tpu.memory_space<vmem>>, vector<1x32xf32>
    %612 = vector.broadcast %611 : vector<1x32xf32> to vector<32x32xf32>
    %613 = arith.addf %610, %612 : vector<32x32xf32>
    %cst_244 = arith.constant 5.000000e-01 : f32
    %614 = vector.broadcast %cst_244 : f32 to vector<32x32xf32>
    %615 = arith.mulf %614, %613 : vector<32x32xf32>
    %cst_245 = arith.constant 0.707106769 : f32
    %616 = vector.broadcast %cst_245 : f32 to vector<32x32xf32>
    %617 = arith.mulf %613, %616 : vector<32x32xf32>
    %618 = math.absf %617 : vector<32x32xf32>
    %cst_246 = arith.constant 0.327591091 : f32
    %619 = vector.broadcast %cst_246 : f32 to vector<32x32xf32>
    %620 = arith.mulf %619, %618 : vector<32x32xf32>
    %cst_247 = arith.constant 1.000000e+00 : f32
    %621 = vector.broadcast %cst_247 : f32 to vector<32x32xf32>
    %622 = arith.addf %621, %620 : vector<32x32xf32>
    %cst_248 = arith.constant 1.000000e+00 : f32
    %623 = vector.broadcast %cst_248 : f32 to vector<32x32xf32>
    %624 = arith.divf %623, %622 : vector<32x32xf32>
    %cst_249 = arith.constant 1.06140542 : f32
    %625 = vector.broadcast %cst_249 : f32 to vector<32x32xf32>
    %626 = arith.mulf %625, %624 : vector<32x32xf32>
    %cst_250 = arith.constant -1.45315206 : f32
    %627 = vector.broadcast %cst_250 : f32 to vector<32x32xf32>
    %628 = arith.addf %626, %627 : vector<32x32xf32>
    %629 = arith.mulf %628, %624 : vector<32x32xf32>
    %cst_251 = arith.constant 1.42141378 : f32
    %630 = vector.broadcast %cst_251 : f32 to vector<32x32xf32>
    %631 = arith.addf %629, %630 : vector<32x32xf32>
    %632 = arith.mulf %631, %624 : vector<32x32xf32>
    %cst_252 = arith.constant -0.284496725 : f32
    %633 = vector.broadcast %cst_252 : f32 to vector<32x32xf32>
    %634 = arith.addf %632, %633 : vector<32x32xf32>
    %635 = arith.mulf %634, %624 : vector<32x32xf32>
    %cst_253 = arith.constant 0.254829586 : f32
    %636 = vector.broadcast %cst_253 : f32 to vector<32x32xf32>
    %637 = arith.addf %635, %636 : vector<32x32xf32>
    %638 = arith.mulf %637, %624 : vector<32x32xf32>
    %cst_254 = arith.constant 0.000000e+00 : f32
    %639 = vector.broadcast %cst_254 : f32 to vector<32x32xf32>
    %640 = arith.subf %639, %618 : vector<32x32xf32>
    %641 = arith.mulf %640, %618 : vector<32x32xf32>
    %642 = math.exp %641 : vector<32x32xf32>
    %643 = arith.mulf %638, %642 : vector<32x32xf32>
    %cst_255 = arith.constant 1.000000e+00 : f32
    %644 = vector.broadcast %cst_255 : f32 to vector<32x32xf32>
    %645 = arith.subf %644, %643 : vector<32x32xf32>
    %cst_256 = arith.constant 0.000000e+00 : f32
    %646 = vector.broadcast %cst_256 : f32 to vector<32x32xf32>
    %647 = arith.cmpf oge, %617, %646 : vector<32x32xf32>
    %cst_257 = arith.constant 0.000000e+00 : f32
    %648 = vector.broadcast %cst_257 : f32 to vector<32x32xf32>
    %649 = arith.subf %648, %645 : vector<32x32xf32>
    %650 = arith.select %647, %645, %649 : vector<32x32xi1>, vector<32x32xf32>
    %cst_258 = arith.constant 1.000000e+00 : f32
    %651 = vector.broadcast %cst_258 : f32 to vector<32x32xf32>
    %652 = arith.addf %651, %650 : vector<32x32xf32>
    %653 = arith.mulf %615, %652 : vector<32x32xf32>
    %c0_259 = arith.constant 0 : index
    %c0_260 = arith.constant 0 : index
    %654 = vector.load %arg26[%c0_259, %c0_260] : memref<32x32xf32, #tpu.memory_space<vmem>>, vector<32x32xf32>
    tpu.vector_store %arg26[%c0_259, %c0_260], %653 {strides = array<i32>} : memref<32x32xf32, #tpu.memory_space<vmem>>, vector<32x32xf32>,
    return
  }
  func.func @transform_0(%arg0: i32) -> (i32, i32) {
    %c0_i32 = arith.constant 0 : i32
    %c0_i32_0 = arith.constant 0 : i32
    %c0_i32_1 = arith.constant 0 : i32
    return %c0_i32, %c0_i32_0 : i32, i32
  }
  func.func @transform_1(%arg0: i32) -> (i32, i32) {
    %c0_i32 = arith.constant 0 : i32
    %c0_i32_0 = arith.constant 0 : i32
    %c0_i32_1 = arith.constant 0 : i32
    return %c0_i32, %c0_i32_0 : i32, i32
  }
  func.func @transform_2(%arg0: i32) -> (i32, i32) {
    %c0_i32 = arith.constant 0 : i32
    %c0_i32_0 = arith.constant 0 : i32
    %c0_i32_1 = arith.constant 0 : i32
    return %c0_i32, %c0_i32_0 : i32, i32
  }
  func.func @transform_3(%arg0: i32) -> (i32, i32) {
    %c0_i32 = arith.constant 0 : i32
    %c0_i32_0 = arith.constant 0 : i32
    %c0_i32_1 = arith.constant 0 : i32
    return %c0_i32, %c0_i32_0 : i32, i32
  }
  func.func @transform_4(%arg0: i32) -> (i32, i32) {
    %c0_i32 = arith.constant 0 : i32
    %c0_i32_0 = arith.constant 0 : i32
    %c0_i32_1 = arith.constant 0 : i32
    return %c0_i32, %c0_i32_0 : i32, i32
  }
  func.func @transform_5(%arg0: i32) -> (i32, i32) {
    %c0_i32 = arith.constant 0 : i32
    %c0_i32_0 = arith.constant 0 : i32
    %c0_i32_1 = arith.constant 0 : i32
    return %c0_i32, %c0_i32_0 : i32, i32
  }
  func.func @transform_6(%arg0: i32) -> (i32, i32) {
    %c0_i32 = arith.constant 0 : i32
    %c0_i32_0 = arith.constant 0 : i32
    %c0_i32_1 = arith.constant 0 : i32
    return %c0_i32, %c0_i32_0 : i32, i32
  }
  func.func @transform_7(%arg0: i32) -> (i32, i32) {
    %c0_i32 = arith.constant 0 : i32
    %c0_i32_0 = arith.constant 0 : i32
    %c0_i32_1 = arith.constant 0 : i32
    return %c0_i32, %c0_i32_0 : i32, i32
  }
  func.func @transform_8(%arg0: i32) -> (i32, i32) {
    %c0_i32 = arith.constant 0 : i32
    %c0_i32_0 = arith.constant 0 : i32
    %c0_i32_1 = arith.constant 0 : i32
    return %c0_i32, %c0_i32_0 : i32, i32
  }
  func.func @transform_9(%arg0: i32) -> (i32, i32) {
    %c0_i32 = arith.constant 0 : i32
    %c0_i32_0 = arith.constant 0 : i32
    %c0_i32_1 = arith.constant 0 : i32
    return %c0_i32, %c0_i32_0 : i32, i32
  }
  func.func @transform_10(%arg0: i32) -> (i32, i32) {
    %c0_i32 = arith.constant 0 : i32
    %c0_i32_0 = arith.constant 0 : i32
    %c0_i32_1 = arith.constant 0 : i32
    return %c0_i32, %c0_i32_0 : i32, i32
  }
  func.func @transform_11(%arg0: i32) -> (i32, i32) {
    %c0_i32 = arith.constant 0 : i32
    %c0_i32_0 = arith.constant 0 : i32
    %c0_i32_1 = arith.constant 0 : i32
    return %c0_i32, %c0_i32_0 : i32, i32
  }
  func.func @transform_12(%arg0: i32) -> (i32, i32) {
    %c0_i32 = arith.constant 0 : i32
    %c0_i32_0 = arith.constant 0 : i32
    %c0_i32_1 = arith.constant 0 : i32
    return %c0_i32, %c0_i32_0 : i32, i32
  }
  func.func @transform_13(%arg0: i32) -> (i32, i32) {
    %c0_i32 = arith.constant 0 : i32
    %c0_i32_0 = arith.constant 0 : i32
    %c0_i32_1 = arith.constant 0 : i32
    return %c0_i32, %c0_i32_0 : i32, i32
  }
  func.func @transform_14(%arg0: i32) -> (i32, i32) {
    %c0_i32 = arith.constant 0 : i32
    %c0_i32_0 = arith.constant 0 : i32
    %c0_i32_1 = arith.constant 0 : i32
    return %c0_i32, %c0_i32_0 : i32, i32
  }
  func.func @transform_15(%arg0: i32) -> (i32, i32) {
    %c0_i32 = arith.constant 0 : i32
    %c0_i32_0 = arith.constant 0 : i32
    %c0_i32_1 = arith.constant 0 : i32
    return %c0_i32, %c0_i32_0 : i32, i32
  }
  func.func @transform_16(%arg0: i32) -> (i32, i32) {
    %c0_i32 = arith.constant 0 : i32
    %c0_i32_0 = arith.constant 0 : i32
    %c0_i32_1 = arith.constant 0 : i32
    return %c0_i32, %c0_i32_0 : i32, i32
  }
  func.func @transform_17(%arg0: i32) -> (i32, i32) {
    %c0_i32 = arith.constant 0 : i32
    %c0_i32_0 = arith.constant 0 : i32
    %c0_i32_1 = arith.constant 0 : i32
    return %c0_i32, %c0_i32_0 : i32, i32
  }
  func.func @transform_18(%arg0: i32) -> (i32, i32) {
    %c0_i32 = arith.constant 0 : i32
    %c0_i32_0 = arith.constant 0 : i32
    %c0_i32_1 = arith.constant 0 : i32
    return %c0_i32, %c0_i32_0 : i32, i32
  }
  func.func @transform_19(%arg0: i32) -> (i32, i32) {
    %c0_i32 = arith.constant 0 : i32
    %c0_i32_0 = arith.constant 0 : i32
    %c0_i32_1 = arith.constant 0 : i32
    return %c0_i32, %c0_i32_0 : i32, i32
  }
  func.func @transform_20(%arg0: i32) -> (i32, i32) {
    %c0_i32 = arith.constant 0 : i32
    %c0_i32_0 = arith.constant 0 : i32
    %c0_i32_1 = arith.constant 0 : i32
    return %c0_i32, %c0_i32_0 : i32, i32
  }
  func.func @transform_21(%arg0: i32) -> (i32, i32) {
    %c0_i32 = arith.constant 0 : i32
    %c0_i32_0 = arith.constant 0 : i32
    %c0_i32_1 = arith.constant 0 : i32
    return %c0_i32, %c0_i32_0 : i32, i32
  }
  func.func @transform_22(%arg0: i32) -> (i32, i32) {
    %c0_i32 = arith.constant 0 : i32
    %c0_i32_0 = arith.constant 0 : i32
    %c0_i32_1 = arith.constant 0 : i32
    return %c0_i32, %c0_i32_0 : i32, i32
  }
  func.func @transform_23(%arg0: i32) -> (i32, i32) {
    %c0_i32 = arith.constant 0 : i32
    %c0_i32_0 = arith.constant 0 : i32
    %c0_i32_1 = arith.constant 0 : i32
    return %c0_i32, %c0_i32_0 : i32, i32
  }
  func.func @transform_24(%arg0: i32) -> (i32, i32) {
    %c0_i32 = arith.constant 0 : i32
    %c0_i32_0 = arith.constant 0 : i32
    %c0_i32_1 = arith.constant 0 : i32
    return %c0_i32, %c0_i32_0 : i32, i32
  }
  func.func @transform_25(%arg0: i32) -> (i32, i32) {
    %c0_i32 = arith.constant 0 : i32
    %c0_i32_0 = arith.constant 0 : i32
    %c0_i32_1 = arith.constant 0 : i32
    return %c0_i32, %c0_i32_0 : i32, i32
  }
}

module attributes {stable_mosaic.version = 11 : i64} {
  func.func @_pool_fc_kernel(%arg0: i32, %arg1: memref<4x48xf32, #tpu.memory_space<vmem>>, %arg2: memref<32x32xf32, #tpu.memory_space<vmem>>, %arg3: memref<4x32xf32, #tpu.memory_space<vmem>>, %arg4: memref<32x1xf32, #tpu.memory_space<vmem>>, %arg5: memref<48x32xf32, #tpu.memory_space<vmem>>, %arg6: memref<1x32xf32, #tpu.memory_space<vmem>>, %arg7: memref<32x64xf32, #tpu.memory_space<vmem>>, %arg8: memref<1x64xf32, #tpu.memory_space<vmem>>, %arg9: memref<112x32xf32, #tpu.memory_space<vmem>>, %arg10: memref<1x32xf32, #tpu.memory_space<vmem>>, %arg11: memref<1x32xf32, #tpu.memory_space<vmem>>, %arg12: memref<1x32xf32, #tpu.memory_space<vmem>>, %arg13: memref<32x1xf32, #tpu.memory_space<vmem>>, %arg14: memref<1x1xf32, #tpu.memory_space<vmem>>, %arg15: memref<4x1xf32, #tpu.memory_space<vmem>>, %arg16: memref<8x8xf32, #tpu.memory_space<vmem>>, %arg17: memref<4x32xf32, #tpu.memory_space<vmem>>) attributes {dimension_semantics = [#tpu.dimension_semantics<arbitrary>], iteration_bounds = array<i64: 1>, scalar_prefetch = 0 : i64, scratch_operands = 1 : i64, tpu.core_type = #tpu.core_type<tc>, window_params = [{pipeline_mode = #tpu.pipeline_mode<synchronous>, transform_indices = @transform_0, window_bounds = array<i64: 4, 48>}, {pipeline_mode = #tpu.pipeline_mode<synchronous>, transform_indices = @transform_1, window_bounds = array<i64: 32, 32>}, {pipeline_mode = #tpu.pipeline_mode<synchronous>, transform_indices = @transform_2, window_bounds = array<i64: 4, 32>}, {pipeline_mode = #tpu.pipeline_mode<synchronous>, transform_indices = @transform_3, window_bounds = array<i64: 32, 1>}, {pipeline_mode = #tpu.pipeline_mode<synchronous>, transform_indices = @transform_4, window_bounds = array<i64: 48, 32>}, {pipeline_mode = #tpu.pipeline_mode<synchronous>, transform_indices = @transform_5, window_bounds = array<i64: 1, 32>}, {pipeline_mode = #tpu.pipeline_mode<synchronous>, transform_indices = @transform_6, window_bounds = array<i64: 32, 64>}, {pipeline_mode = #tpu.pipeline_mode<synchronous>, transform_indices = @transform_7, window_bounds = array<i64: 1, 64>}, {pipeline_mode = #tpu.pipeline_mode<synchronous>, transform_indices = @transform_8, window_bounds = array<i64: 112, 32>}, {pipeline_mode = #tpu.pipeline_mode<synchronous>, transform_indices = @transform_9, window_bounds = array<i64: 1, 32>}, {pipeline_mode = #tpu.pipeline_mode<synchronous>, transform_indices = @transform_10, window_bounds = array<i64: 1, 32>}, {pipeline_mode = #tpu.pipeline_mode<synchronous>, transform_indices = @transform_11, window_bounds = array<i64: 1, 32>}, {pipeline_mode = #tpu.pipeline_mode<synchronous>, transform_indices = @transform_12, window_bounds = array<i64: 32, 1>}, {pipeline_mode = #tpu.pipeline_mode<synchronous>, transform_indices = @transform_13, window_bounds = array<i64: 1, 1>}, {pipeline_mode = #tpu.pipeline_mode<synchronous>, transform_indices = @transform_14, window_bounds = array<i64: 4, 1>}, {pipeline_mode = #tpu.pipeline_mode<synchronous>, transform_indices = @transform_15, window_bounds = array<i64: 8, 8>}]} {
    %c0 = arith.constant 0 : index
    %c0_0 = arith.constant 0 : index
    %0 = vector.load %arg1[%c0, %c0_0] : memref<4x48xf32, #tpu.memory_space<vmem>>, vector<4x48xf32>
    %c0_1 = arith.constant 0 : index
    %c0_2 = arith.constant 0 : index
    %1 = vector.load %arg5[%c0_1, %c0_2] : memref<48x32xf32, #tpu.memory_space<vmem>>, vector<48x32xf32>
    %cst = arith.constant dense<0.000000e+00> : vector<4x32xf32>
    %2 = tpu.matmul %0, %1, %cst {dimension_numbers = #tpu.dot_dimension_numbers<[1], [0], [0], [1], [0, 0, 1, 1], [], []>} : vector<4x48xf32>, vector<48x32xf32>, vector<4x32xf32> -> vector<4x32xf32>
    %c0_3 = arith.constant 0 : index
    %c0_4 = arith.constant 0 : index
    %3 = vector.load %arg6[%c0_3, %c0_4] : memref<1x32xf32, #tpu.memory_space<vmem>>, vector<1x32xf32>
    %4 = vector.broadcast %3 : vector<1x32xf32> to vector<4x32xf32>
    %5 = arith.addf %2, %4 : vector<4x32xf32>
    %c0_5 = arith.constant 0 : index
    %c0_6 = arith.constant 0 : index
    %6 = vector.load %arg2[%c0_5, %c0_6] : memref<32x32xf32, #tpu.memory_space<vmem>>, vector<32x32xf32>
    %c0_7 = arith.constant 0 : index
    %c0_8 = arith.constant 0 : index
    %7 = vector.load %arg7[%c0_7, %c0_8] : memref<32x64xf32, #tpu.memory_space<vmem>>, vector<32x64xf32>
    %cst_9 = arith.constant dense<0.000000e+00> : vector<32x64xf32>
    %8 = tpu.matmul %6, %7, %cst_9 {dimension_numbers = #tpu.dot_dimension_numbers<[1], [0], [0], [1], [0, 0, 1, 1], [], []>} : vector<32x32xf32>, vector<32x64xf32>, vector<32x64xf32> -> vector<32x64xf32>
    %c0_10 = arith.constant 0 : index
    %c0_11 = arith.constant 0 : index
    %9 = vector.load %arg8[%c0_10, %c0_11] : memref<1x64xf32, #tpu.memory_space<vmem>>, vector<1x64xf32>
    %10 = vector.broadcast %9 : vector<1x64xf32> to vector<32x64xf32>
    %11 = arith.addf %8, %10 : vector<32x64xf32>
    %c0_12 = arith.constant 0 : index
    %c0_13 = arith.constant 0 : index
    %12 = vector.load %arg4[%c0_12, %c0_13] : memref<32x1xf32, #tpu.memory_space<vmem>>, vector<32x1xf32>
    %13 = tpu.iota {dimensions = array<i32: 0>} : vector<32x2xi32>
    %14 = tpu.iota {dimensions = array<i32: 1>} : vector<32x2xi32>
    %c16_i32 = arith.constant 16 : i32
    %15 = vector.broadcast %c16_i32 : i32 to vector<32x2xi32>
    %16 = arith.muli %14, %15 : vector<32x2xi32>
    %17 = arith.cmpi sge, %13, %16 : vector<32x2xi32>
    %c1_i32 = arith.constant 1 : i32
    %18 = vector.broadcast %c1_i32 : i32 to vector<32x2xi32>
    %19 = arith.addi %14, %18 : vector<32x2xi32>
    %c16_i32_14 = arith.constant 16 : i32
    %20 = vector.broadcast %c16_i32_14 : i32 to vector<32x2xi32>
    %21 = arith.muli %19, %20 : vector<32x2xi32>
    %22 = arith.cmpi slt, %13, %21 : vector<32x2xi32>
    %23 = arith.andi %17, %22 : vector<32x2xi1>
    %cst_15 = arith.constant 1.000000e+00 : f32
    %cst_16 = arith.constant 0.000000e+00 : f32
    %24 = vector.broadcast %cst_15 : f32 to vector<32x2xf32>
    %25 = vector.broadcast %cst_16 : f32 to vector<32x2xf32>
    %26 = arith.select %23, %24, %25 : vector<32x2xi1>, vector<32x2xf32>
    %27 = tpu.iota {dimensions = array<i32: 1>} : vector<2x32xi32>
    %28 = tpu.iota {dimensions = array<i32: 0>} : vector<2x32xi32>
    %c16_i32_17 = arith.constant 16 : i32
    %29 = vector.broadcast %c16_i32_17 : i32 to vector<2x32xi32>
    %30 = arith.muli %28, %29 : vector<2x32xi32>
    %31 = arith.cmpi sge, %27, %30 : vector<2x32xi32>
    %c1_i32_18 = arith.constant 1 : i32
    %32 = vector.broadcast %c1_i32_18 : i32 to vector<2x32xi32>
    %33 = arith.addi %28, %32 : vector<2x32xi32>
    %c16_i32_19 = arith.constant 16 : i32
    %34 = vector.broadcast %c16_i32_19 : i32 to vector<2x32xi32>
    %35 = arith.muli %33, %34 : vector<2x32xi32>
    %36 = arith.cmpi slt, %27, %35 : vector<2x32xi32>
    %37 = arith.andi %31, %36 : vector<2x32xi1>
    %cst_20 = arith.constant 1.000000e+00 : f32
    %cst_21 = arith.constant 0.000000e+00 : f32
    %38 = vector.broadcast %cst_20 : f32 to vector<2x32xf32>
    %39 = vector.broadcast %cst_21 : f32 to vector<2x32xf32>
    %40 = arith.select %37, %38, %39 : vector<2x32xi1>, vector<2x32xf32>
    %41 = vector.extract_strided_slice %11 {offsets = [0, 0], sizes = [8, 32], strides = [1, 1]} : vector<32x64xf32> to vector<8x32xf32>
    %42 = vector.extract_strided_slice %11 {offsets = [0, 32], sizes = [8, 32], strides = [1, 1]} : vector<32x64xf32> to vector<8x32xf32>
    %43 = vector.extract_strided_slice %12 {offsets = [0, 0], sizes = [8, 1], strides = [1, 1]} : vector<32x1xf32> to vector<8x1xf32>
    %44 = vector.extract_strided_slice %5 {offsets = [0, 0], sizes = [1, 32], strides = [1, 1]} : vector<4x32xf32> to vector<1x32xf32>
    %45 = vector.broadcast %44 : vector<1x32xf32> to vector<8x32xf32>
    %46 = arith.mulf %41, %45 : vector<8x32xf32>
    %cst_22 = arith.constant dense<0.000000e+00> : vector<8x2xf32>
    %47 = tpu.matmul %46, %26, %cst_22 {dimension_numbers = #tpu.dot_dimension_numbers<[1], [0], [0], [1], [0, 0, 1, 1], [], []>} : vector<8x32xf32>, vector<32x2xf32>, vector<8x2xf32> -> vector<8x2xf32>
    %cst_23 = arith.constant 2.500000e-01 : f32
    %48 = vector.broadcast %cst_23 : f32 to vector<8x2xf32>
    %49 = arith.mulf %47, %48 : vector<8x2xf32>
    %cst_24 = arith.constant 5.000000e-01 : f32
    %50 = vector.broadcast %cst_24 : f32 to vector<8x1xf32>
    %51 = arith.cmpf ogt, %43, %50 : vector<8x1xf32>
    %cst_25 = arith.constant -1.000000e+30 : f32
    %52 = vector.shape_cast %51 : vector<8x1xi1> to vector<8x1xi1>
    %53 = vector.broadcast %52 : vector<8x1xi1> to vector<8x2xi1>
    %54 = vector.broadcast %cst_25 : f32 to vector<8x2xf32>
    %55 = arith.select %53, %54, %49 : vector<8x2xi1>, vector<8x2xf32>
    %cst_26 = arith.constant dense<0xFF800000> : vector<2xf32>
    %56 = vector.multi_reduction <maximumf>, %55, %cst_26 [0] : vector<8x2xf32> to vector<2xf32>
    %57 = vector.shape_cast %56 : vector<2xf32> to vector<1x2xf32>
    %58 = vector.broadcast %57 : vector<1x2xf32> to vector<8x2xf32>
    %59 = arith.subf %55, %58 : vector<8x2xf32>
    %60 = math.exp %59 : vector<8x2xf32>
    %cst_27 = arith.constant dense<0.000000e+00> : vector<2xf32>
    %61 = vector.multi_reduction <add>, %60, %cst_27 [0] : vector<8x2xf32> to vector<2xf32>
    %62 = vector.shape_cast %61 : vector<2xf32> to vector<1x2xf32>
    %63 = vector.broadcast %62 : vector<1x2xf32> to vector<8x2xf32>
    %64 = arith.divf %60, %63 : vector<8x2xf32>
    %c0_28 = arith.constant 0 : index
    %c0_29 = arith.constant 0 : index
    %65 = vector.load %arg16[%c0_28, %c0_29] : memref<8x8xf32, #tpu.memory_space<vmem>>, vector<8x2xf32>
    tpu.vector_store %arg16[%c0_28, %c0_29], %64 {strides = array<i32>} : memref<8x8xf32, #tpu.memory_space<vmem>>, vector<8x2xf32>,
    %cst_30 = arith.constant dense<0.000000e+00> : vector<8x32xf32>
    %66 = tpu.matmul %64, %40, %cst_30 {dimension_numbers = #tpu.dot_dimension_numbers<[1], [0], [0], [1], [0, 0, 1, 1], [], []>} : vector<8x2xf32>, vector<2x32xf32>, vector<8x32xf32> -> vector<8x32xf32>
    %67 = arith.mulf %66, %42 : vector<8x32xf32>
    %cst_31 = arith.constant dense<0.000000e+00> : vector<32xf32>
    %68 = vector.multi_reduction <add>, %67, %cst_31 [0] : vector<8x32xf32> to vector<32xf32>
    %69 = vector.shape_cast %68 : vector<32xf32> to vector<1x32xf32>
    %c0_32 = arith.constant 0 : index
    %c0_33 = arith.constant 0 : index
    %70 = vector.load %arg17[%c0_32, %c0_33] : memref<4x32xf32, #tpu.memory_space<vmem>>, vector<1x32xf32>
    tpu.vector_store %arg17[%c0_32, %c0_33], %69 {strides = array<i32>} : memref<4x32xf32, #tpu.memory_space<vmem>>, vector<1x32xf32>,
    %71 = vector.extract_strided_slice %11 {offsets = [8, 0], sizes = [8, 32], strides = [1, 1]} : vector<32x64xf32> to vector<8x32xf32>
    %72 = vector.extract_strided_slice %11 {offsets = [8, 32], sizes = [8, 32], strides = [1, 1]} : vector<32x64xf32> to vector<8x32xf32>
    %73 = vector.extract_strided_slice %12 {offsets = [8, 0], sizes = [8, 1], strides = [1, 1]} : vector<32x1xf32> to vector<8x1xf32>
    %74 = vector.extract_strided_slice %5 {offsets = [1, 0], sizes = [1, 32], strides = [1, 1]} : vector<4x32xf32> to vector<1x32xf32>
    %75 = vector.broadcast %74 : vector<1x32xf32> to vector<8x32xf32>
    %76 = arith.mulf %71, %75 : vector<8x32xf32>
    %cst_34 = arith.constant dense<0.000000e+00> : vector<8x2xf32>
    %77 = tpu.matmul %76, %26, %cst_34 {dimension_numbers = #tpu.dot_dimension_numbers<[1], [0], [0], [1], [0, 0, 1, 1], [], []>} : vector<8x32xf32>, vector<32x2xf32>, vector<8x2xf32> -> vector<8x2xf32>
    %cst_35 = arith.constant 2.500000e-01 : f32
    %78 = vector.broadcast %cst_35 : f32 to vector<8x2xf32>
    %79 = arith.mulf %77, %78 : vector<8x2xf32>
    %cst_36 = arith.constant 5.000000e-01 : f32
    %80 = vector.broadcast %cst_36 : f32 to vector<8x1xf32>
    %81 = arith.cmpf ogt, %73, %80 : vector<8x1xf32>
    %cst_37 = arith.constant -1.000000e+30 : f32
    %82 = vector.shape_cast %81 : vector<8x1xi1> to vector<8x1xi1>
    %83 = vector.broadcast %82 : vector<8x1xi1> to vector<8x2xi1>
    %84 = vector.broadcast %cst_37 : f32 to vector<8x2xf32>
    %85 = arith.select %83, %84, %79 : vector<8x2xi1>, vector<8x2xf32>
    %cst_38 = arith.constant dense<0xFF800000> : vector<2xf32>
    %86 = vector.multi_reduction <maximumf>, %85, %cst_38 [0] : vector<8x2xf32> to vector<2xf32>
    %87 = vector.shape_cast %86 : vector<2xf32> to vector<1x2xf32>
    %88 = vector.broadcast %87 : vector<1x2xf32> to vector<8x2xf32>
    %89 = arith.subf %85, %88 : vector<8x2xf32>
    %90 = math.exp %89 : vector<8x2xf32>
    %cst_39 = arith.constant dense<0.000000e+00> : vector<2xf32>
    %91 = vector.multi_reduction <add>, %90, %cst_39 [0] : vector<8x2xf32> to vector<2xf32>
    %92 = vector.shape_cast %91 : vector<2xf32> to vector<1x2xf32>
    %93 = vector.broadcast %92 : vector<1x2xf32> to vector<8x2xf32>
    %94 = arith.divf %90, %93 : vector<8x2xf32>
    %c0_40 = arith.constant 0 : index
    %c2 = arith.constant 2 : index
    %95 = vector.load %arg16[%c0_40, %c2] : memref<8x8xf32, #tpu.memory_space<vmem>>, vector<8x2xf32>
    tpu.vector_store %arg16[%c0_40, %c2], %94 {strides = array<i32>} : memref<8x8xf32, #tpu.memory_space<vmem>>, vector<8x2xf32>,
    %cst_41 = arith.constant dense<0.000000e+00> : vector<8x32xf32>
    %96 = tpu.matmul %94, %40, %cst_41 {dimension_numbers = #tpu.dot_dimension_numbers<[1], [0], [0], [1], [0, 0, 1, 1], [], []>} : vector<8x2xf32>, vector<2x32xf32>, vector<8x32xf32> -> vector<8x32xf32>
    %97 = arith.mulf %96, %72 : vector<8x32xf32>
    %cst_42 = arith.constant dense<0.000000e+00> : vector<32xf32>
    %98 = vector.multi_reduction <add>, %97, %cst_42 [0] : vector<8x32xf32> to vector<32xf32>
    %99 = vector.shape_cast %98 : vector<32xf32> to vector<1x32xf32>
    %c1 = arith.constant 1 : index
    %c0_43 = arith.constant 0 : index
    %100 = vector.load %arg17[%c1, %c0_43] : memref<4x32xf32, #tpu.memory_space<vmem>>, vector<1x32xf32>
    tpu.vector_store %arg17[%c1, %c0_43], %99 {strides = array<i32>} : memref<4x32xf32, #tpu.memory_space<vmem>>, vector<1x32xf32>,
    %101 = vector.extract_strided_slice %11 {offsets = [16, 0], sizes = [8, 32], strides = [1, 1]} : vector<32x64xf32> to vector<8x32xf32>
    %102 = vector.extract_strided_slice %11 {offsets = [16, 32], sizes = [8, 32], strides = [1, 1]} : vector<32x64xf32> to vector<8x32xf32>
    %103 = vector.extract_strided_slice %12 {offsets = [16, 0], sizes = [8, 1], strides = [1, 1]} : vector<32x1xf32> to vector<8x1xf32>
    %104 = vector.extract_strided_slice %5 {offsets = [2, 0], sizes = [1, 32], strides = [1, 1]} : vector<4x32xf32> to vector<1x32xf32>
    %105 = vector.broadcast %104 : vector<1x32xf32> to vector<8x32xf32>
    %106 = arith.mulf %101, %105 : vector<8x32xf32>
    %cst_44 = arith.constant dense<0.000000e+00> : vector<8x2xf32>
    %107 = tpu.matmul %106, %26, %cst_44 {dimension_numbers = #tpu.dot_dimension_numbers<[1], [0], [0], [1], [0, 0, 1, 1], [], []>} : vector<8x32xf32>, vector<32x2xf32>, vector<8x2xf32> -> vector<8x2xf32>
    %cst_45 = arith.constant 2.500000e-01 : f32
    %108 = vector.broadcast %cst_45 : f32 to vector<8x2xf32>
    %109 = arith.mulf %107, %108 : vector<8x2xf32>
    %cst_46 = arith.constant 5.000000e-01 : f32
    %110 = vector.broadcast %cst_46 : f32 to vector<8x1xf32>
    %111 = arith.cmpf ogt, %103, %110 : vector<8x1xf32>
    %cst_47 = arith.constant -1.000000e+30 : f32
    %112 = vector.shape_cast %111 : vector<8x1xi1> to vector<8x1xi1>
    %113 = vector.broadcast %112 : vector<8x1xi1> to vector<8x2xi1>
    %114 = vector.broadcast %cst_47 : f32 to vector<8x2xf32>
    %115 = arith.select %113, %114, %109 : vector<8x2xi1>, vector<8x2xf32>
    %cst_48 = arith.constant dense<0xFF800000> : vector<2xf32>
    %116 = vector.multi_reduction <maximumf>, %115, %cst_48 [0] : vector<8x2xf32> to vector<2xf32>
    %117 = vector.shape_cast %116 : vector<2xf32> to vector<1x2xf32>
    %118 = vector.broadcast %117 : vector<1x2xf32> to vector<8x2xf32>
    %119 = arith.subf %115, %118 : vector<8x2xf32>
    %120 = math.exp %119 : vector<8x2xf32>
    %cst_49 = arith.constant dense<0.000000e+00> : vector<2xf32>
    %121 = vector.multi_reduction <add>, %120, %cst_49 [0] : vector<8x2xf32> to vector<2xf32>
    %122 = vector.shape_cast %121 : vector<2xf32> to vector<1x2xf32>
    %123 = vector.broadcast %122 : vector<1x2xf32> to vector<8x2xf32>
    %124 = arith.divf %120, %123 : vector<8x2xf32>
    %c0_50 = arith.constant 0 : index
    %c4 = arith.constant 4 : index
    %125 = vector.load %arg16[%c0_50, %c4] : memref<8x8xf32, #tpu.memory_space<vmem>>, vector<8x2xf32>
    tpu.vector_store %arg16[%c0_50, %c4], %124 {strides = array<i32>} : memref<8x8xf32, #tpu.memory_space<vmem>>, vector<8x2xf32>,
    %cst_51 = arith.constant dense<0.000000e+00> : vector<8x32xf32>
    %126 = tpu.matmul %124, %40, %cst_51 {dimension_numbers = #tpu.dot_dimension_numbers<[1], [0], [0], [1], [0, 0, 1, 1], [], []>} : vector<8x2xf32>, vector<2x32xf32>, vector<8x32xf32> -> vector<8x32xf32>
    %127 = arith.mulf %126, %102 : vector<8x32xf32>
    %cst_52 = arith.constant dense<0.000000e+00> : vector<32xf32>
    %128 = vector.multi_reduction <add>, %127, %cst_52 [0] : vector<8x32xf32> to vector<32xf32>
    %129 = vector.shape_cast %128 : vector<32xf32> to vector<1x32xf32>
    %c2_53 = arith.constant 2 : index
    %c0_54 = arith.constant 0 : index
    %130 = vector.load %arg17[%c2_53, %c0_54] : memref<4x32xf32, #tpu.memory_space<vmem>>, vector<1x32xf32>
    tpu.vector_store %arg17[%c2_53, %c0_54], %129 {strides = array<i32>} : memref<4x32xf32, #tpu.memory_space<vmem>>, vector<1x32xf32>,
    %131 = vector.extract_strided_slice %11 {offsets = [24, 0], sizes = [8, 32], strides = [1, 1]} : vector<32x64xf32> to vector<8x32xf32>
    %132 = vector.extract_strided_slice %11 {offsets = [24, 32], sizes = [8, 32], strides = [1, 1]} : vector<32x64xf32> to vector<8x32xf32>
    %133 = vector.extract_strided_slice %12 {offsets = [24, 0], sizes = [8, 1], strides = [1, 1]} : vector<32x1xf32> to vector<8x1xf32>
    %134 = vector.extract_strided_slice %5 {offsets = [3, 0], sizes = [1, 32], strides = [1, 1]} : vector<4x32xf32> to vector<1x32xf32>
    %135 = vector.broadcast %134 : vector<1x32xf32> to vector<8x32xf32>
    %136 = arith.mulf %131, %135 : vector<8x32xf32>
    %cst_55 = arith.constant dense<0.000000e+00> : vector<8x2xf32>
    %137 = tpu.matmul %136, %26, %cst_55 {dimension_numbers = #tpu.dot_dimension_numbers<[1], [0], [0], [1], [0, 0, 1, 1], [], []>} : vector<8x32xf32>, vector<32x2xf32>, vector<8x2xf32> -> vector<8x2xf32>
    %cst_56 = arith.constant 2.500000e-01 : f32
    %138 = vector.broadcast %cst_56 : f32 to vector<8x2xf32>
    %139 = arith.mulf %137, %138 : vector<8x2xf32>
    %cst_57 = arith.constant 5.000000e-01 : f32
    %140 = vector.broadcast %cst_57 : f32 to vector<8x1xf32>
    %141 = arith.cmpf ogt, %133, %140 : vector<8x1xf32>
    %cst_58 = arith.constant -1.000000e+30 : f32
    %142 = vector.shape_cast %141 : vector<8x1xi1> to vector<8x1xi1>
    %143 = vector.broadcast %142 : vector<8x1xi1> to vector<8x2xi1>
    %144 = vector.broadcast %cst_58 : f32 to vector<8x2xf32>
    %145 = arith.select %143, %144, %139 : vector<8x2xi1>, vector<8x2xf32>
    %cst_59 = arith.constant dense<0xFF800000> : vector<2xf32>
    %146 = vector.multi_reduction <maximumf>, %145, %cst_59 [0] : vector<8x2xf32> to vector<2xf32>
    %147 = vector.shape_cast %146 : vector<2xf32> to vector<1x2xf32>
    %148 = vector.broadcast %147 : vector<1x2xf32> to vector<8x2xf32>
    %149 = arith.subf %145, %148 : vector<8x2xf32>
    %150 = math.exp %149 : vector<8x2xf32>
    %cst_60 = arith.constant dense<0.000000e+00> : vector<2xf32>
    %151 = vector.multi_reduction <add>, %150, %cst_60 [0] : vector<8x2xf32> to vector<2xf32>
    %152 = vector.shape_cast %151 : vector<2xf32> to vector<1x2xf32>
    %153 = vector.broadcast %152 : vector<1x2xf32> to vector<8x2xf32>
    %154 = arith.divf %150, %153 : vector<8x2xf32>
    %c0_61 = arith.constant 0 : index
    %c6 = arith.constant 6 : index
    %155 = vector.load %arg16[%c0_61, %c6] : memref<8x8xf32, #tpu.memory_space<vmem>>, vector<8x2xf32>
    tpu.vector_store %arg16[%c0_61, %c6], %154 {strides = array<i32>} : memref<8x8xf32, #tpu.memory_space<vmem>>, vector<8x2xf32>,
    %cst_62 = arith.constant dense<0.000000e+00> : vector<8x32xf32>
    %156 = tpu.matmul %154, %40, %cst_62 {dimension_numbers = #tpu.dot_dimension_numbers<[1], [0], [0], [1], [0, 0, 1, 1], [], []>} : vector<8x2xf32>, vector<2x32xf32>, vector<8x32xf32> -> vector<8x32xf32>
    %157 = arith.mulf %156, %132 : vector<8x32xf32>
    %cst_63 = arith.constant dense<0.000000e+00> : vector<32xf32>
    %158 = vector.multi_reduction <add>, %157, %cst_63 [0] : vector<8x32xf32> to vector<32xf32>
    %159 = vector.shape_cast %158 : vector<32xf32> to vector<1x32xf32>
    %c3 = arith.constant 3 : index
    %c0_64 = arith.constant 0 : index
    %160 = vector.load %arg17[%c3, %c0_64] : memref<4x32xf32, #tpu.memory_space<vmem>>, vector<1x32xf32>
    tpu.vector_store %arg17[%c3, %c0_64], %159 {strides = array<i32>} : memref<4x32xf32, #tpu.memory_space<vmem>>, vector<1x32xf32>,
    %c0_65 = arith.constant 0 : index
    %c0_66 = arith.constant 0 : index
    %161 = vector.load %arg17[%c0_65, %c0_66] : memref<4x32xf32, #tpu.memory_space<vmem>>, vector<4x32xf32>
    %c0_67 = arith.constant 0 : index
    %c0_68 = arith.constant 0 : index
    %162 = vector.load %arg9[%c0_67, %c0_68] : memref<112x32xf32, #tpu.memory_space<vmem>>, vector<112x32xf32>
    %163 = vector.extract_strided_slice %162 {offsets = [0, 0], sizes = [32, 32], strides = [1, 1]} : vector<112x32xf32> to vector<32x32xf32>
    %cst_69 = arith.constant dense<0.000000e+00> : vector<4x32xf32>
    %164 = tpu.matmul %161, %163, %cst_69 {dimension_numbers = #tpu.dot_dimension_numbers<[1], [0], [0], [1], [0, 0, 1, 1], [], []>} : vector<4x32xf32>, vector<32x32xf32>, vector<4x32xf32> -> vector<4x32xf32>
    %165 = vector.extract_strided_slice %162 {offsets = [32, 0], sizes = [48, 32], strides = [1, 1]} : vector<112x32xf32> to vector<48x32xf32>
    %cst_70 = arith.constant dense<0.000000e+00> : vector<4x32xf32>
    %166 = tpu.matmul %0, %165, %cst_70 {dimension_numbers = #tpu.dot_dimension_numbers<[1], [0], [0], [1], [0, 0, 1, 1], [], []>} : vector<4x48xf32>, vector<48x32xf32>, vector<4x32xf32> -> vector<4x32xf32>
    %167 = arith.addf %164, %166 : vector<4x32xf32>
    %c0_71 = arith.constant 0 : index
    %c0_72 = arith.constant 0 : index
    %168 = vector.load %arg3[%c0_71, %c0_72] : memref<4x32xf32, #tpu.memory_space<vmem>>, vector<4x32xf32>
    %169 = vector.extract_strided_slice %162 {offsets = [80, 0], sizes = [32, 32], strides = [1, 1]} : vector<112x32xf32> to vector<32x32xf32>
    %cst_73 = arith.constant dense<0.000000e+00> : vector<4x32xf32>
    %170 = tpu.matmul %168, %169, %cst_73 {dimension_numbers = #tpu.dot_dimension_numbers<[1], [0], [0], [1], [0, 0, 1, 1], [], []>} : vector<4x32xf32>, vector<32x32xf32>, vector<4x32xf32> -> vector<4x32xf32>
    %171 = arith.addf %167, %170 : vector<4x32xf32>
    %c0_74 = arith.constant 0 : index
    %c0_75 = arith.constant 0 : index
    %172 = vector.load %arg10[%c0_74, %c0_75] : memref<1x32xf32, #tpu.memory_space<vmem>>, vector<1x32xf32>
    %173 = vector.broadcast %172 : vector<1x32xf32> to vector<4x32xf32>
    %174 = arith.addf %171, %173 : vector<4x32xf32>
    %cst_76 = arith.constant dense<0.000000e+00> : vector<4xf32>
    %175 = vector.multi_reduction <add>, %174, %cst_76 [1] : vector<4x32xf32> to vector<4xf32>
    %176 = vector.shape_cast %175 : vector<4xf32> to vector<4x1xf32>
    %cst_77 = arith.constant 3.200000e+01 : f32
    %177 = vector.broadcast %cst_77 : f32 to vector<4x1xf32>
    %178 = arith.divf %176, %177 : vector<4x1xf32>
    %179 = vector.broadcast %178 : vector<4x1xf32> to vector<4x32xf32>
    %180 = arith.subf %174, %179 : vector<4x32xf32>
    %181 = arith.mulf %180, %180 : vector<4x32xf32>
    %cst_78 = arith.constant dense<0.000000e+00> : vector<4xf32>
    %182 = vector.multi_reduction <add>, %181, %cst_78 [1] : vector<4x32xf32> to vector<4xf32>
    %183 = vector.shape_cast %182 : vector<4xf32> to vector<4x1xf32>
    %cst_79 = arith.constant 3.200000e+01 : f32
    %184 = vector.broadcast %cst_79 : f32 to vector<4x1xf32>
    %185 = arith.divf %183, %184 : vector<4x1xf32>
    %186 = vector.broadcast %178 : vector<4x1xf32> to vector<4x32xf32>
    %187 = arith.subf %174, %186 : vector<4x32xf32>
    %cst_80 = arith.constant 9.99999974E-6 : f32
    %188 = vector.broadcast %cst_80 : f32 to vector<4x1xf32>
    %189 = arith.addf %185, %188 : vector<4x1xf32>
    %190 = math.rsqrt %189 : vector<4x1xf32>
    %191 = vector.broadcast %190 : vector<4x1xf32> to vector<4x32xf32>
    %192 = arith.mulf %187, %191 : vector<4x32xf32>
    %c0_81 = arith.constant 0 : index
    %c0_82 = arith.constant 0 : index
    %193 = vector.load %arg11[%c0_81, %c0_82] : memref<1x32xf32, #tpu.memory_space<vmem>>, vector<1x32xf32>
    %194 = vector.broadcast %193 : vector<1x32xf32> to vector<4x32xf32>
    %195 = arith.mulf %192, %194 : vector<4x32xf32>
    %c0_83 = arith.constant 0 : index
    %c0_84 = arith.constant 0 : index
    %196 = vector.load %arg12[%c0_83, %c0_84] : memref<1x32xf32, #tpu.memory_space<vmem>>, vector<1x32xf32>
    %197 = vector.broadcast %196 : vector<1x32xf32> to vector<4x32xf32>
    %198 = arith.addf %195, %197 : vector<4x32xf32>
    %cst_85 = arith.constant 5.000000e-01 : f32
    %199 = vector.broadcast %cst_85 : f32 to vector<4x32xf32>
    %200 = arith.mulf %199, %198 : vector<4x32xf32>
    %cst_86 = arith.constant 0.707106769 : f32
    %201 = vector.broadcast %cst_86 : f32 to vector<4x32xf32>
    %202 = arith.mulf %198, %201 : vector<4x32xf32>
    %203 = math.absf %202 : vector<4x32xf32>
    %cst_87 = arith.constant 0.327591091 : f32
    %204 = vector.broadcast %cst_87 : f32 to vector<4x32xf32>
    %205 = arith.mulf %204, %203 : vector<4x32xf32>
    %cst_88 = arith.constant 1.000000e+00 : f32
    %206 = vector.broadcast %cst_88 : f32 to vector<4x32xf32>
    %207 = arith.addf %206, %205 : vector<4x32xf32>
    %cst_89 = arith.constant 1.000000e+00 : f32
    %208 = vector.broadcast %cst_89 : f32 to vector<4x32xf32>
    %209 = arith.divf %208, %207 : vector<4x32xf32>
    %cst_90 = arith.constant 1.06140542 : f32
    %210 = vector.broadcast %cst_90 : f32 to vector<4x32xf32>
    %211 = arith.mulf %210, %209 : vector<4x32xf32>
    %cst_91 = arith.constant -1.45315206 : f32
    %212 = vector.broadcast %cst_91 : f32 to vector<4x32xf32>
    %213 = arith.addf %211, %212 : vector<4x32xf32>
    %214 = arith.mulf %213, %209 : vector<4x32xf32>
    %cst_92 = arith.constant 1.42141378 : f32
    %215 = vector.broadcast %cst_92 : f32 to vector<4x32xf32>
    %216 = arith.addf %214, %215 : vector<4x32xf32>
    %217 = arith.mulf %216, %209 : vector<4x32xf32>
    %cst_93 = arith.constant -0.284496725 : f32
    %218 = vector.broadcast %cst_93 : f32 to vector<4x32xf32>
    %219 = arith.addf %217, %218 : vector<4x32xf32>
    %220 = arith.mulf %219, %209 : vector<4x32xf32>
    %cst_94 = arith.constant 0.254829586 : f32
    %221 = vector.broadcast %cst_94 : f32 to vector<4x32xf32>
    %222 = arith.addf %220, %221 : vector<4x32xf32>
    %223 = arith.mulf %222, %209 : vector<4x32xf32>
    %cst_95 = arith.constant 0.000000e+00 : f32
    %224 = vector.broadcast %cst_95 : f32 to vector<4x32xf32>
    %225 = arith.subf %224, %203 : vector<4x32xf32>
    %226 = arith.mulf %225, %203 : vector<4x32xf32>
    %227 = math.exp %226 : vector<4x32xf32>
    %228 = arith.mulf %223, %227 : vector<4x32xf32>
    %cst_96 = arith.constant 1.000000e+00 : f32
    %229 = vector.broadcast %cst_96 : f32 to vector<4x32xf32>
    %230 = arith.subf %229, %228 : vector<4x32xf32>
    %cst_97 = arith.constant 0.000000e+00 : f32
    %231 = vector.broadcast %cst_97 : f32 to vector<4x32xf32>
    %232 = arith.cmpf oge, %202, %231 : vector<4x32xf32>
    %cst_98 = arith.constant 0.000000e+00 : f32
    %233 = vector.broadcast %cst_98 : f32 to vector<4x32xf32>
    %234 = arith.subf %233, %230 : vector<4x32xf32>
    %235 = arith.select %232, %230, %234 : vector<4x32xi1>, vector<4x32xf32>
    %cst_99 = arith.constant 1.000000e+00 : f32
    %236 = vector.broadcast %cst_99 : f32 to vector<4x32xf32>
    %237 = arith.addf %236, %235 : vector<4x32xf32>
    %238 = arith.mulf %200, %237 : vector<4x32xf32>
    %c0_100 = arith.constant 0 : index
    %c0_101 = arith.constant 0 : index
    %239 = vector.load %arg13[%c0_100, %c0_101] : memref<32x1xf32, #tpu.memory_space<vmem>>, vector<32x1xf32>
    %cst_102 = arith.constant dense<0.000000e+00> : vector<4x1xf32>
    %240 = tpu.matmul %238, %239, %cst_102 {dimension_numbers = #tpu.dot_dimension_numbers<[1], [0], [0], [1], [0, 0, 1, 1], [], []>} : vector<4x32xf32>, vector<32x1xf32>, vector<4x1xf32> -> vector<4x1xf32>
    %c0_103 = arith.constant 0 : index
    %c0_104 = arith.constant 0 : index
    %241 = vector.load %arg14[%c0_103, %c0_104] : memref<1x1xf32, #tpu.memory_space<vmem>>, vector<1x1xf32>
    %242 = vector.broadcast %241 : vector<1x1xf32> to vector<4x1xf32>
    %243 = arith.addf %240, %242 : vector<4x1xf32>
    %c0_105 = arith.constant 0 : index
    %c0_106 = arith.constant 0 : index
    %244 = vector.load %arg15[%c0_105, %c0_106] : memref<4x1xf32, #tpu.memory_space<vmem>>, vector<4x1xf32>
    tpu.vector_store %arg15[%c0_105, %c0_106], %243 {strides = array<i32>} : memref<4x1xf32, #tpu.memory_space<vmem>>, vector<4x1xf32>,
    return
  }
  func.func @transform_0(%arg0: i32) -> (i32, i32) {
    %c0_i32 = arith.constant 0 : i32
    %c0_i32_0 = arith.constant 0 : i32
    %c0_i32_1 = arith.constant 0 : i32
    return %c0_i32, %c0_i32_0 : i32, i32
  }
  func.func @transform_1(%arg0: i32) -> (i32, i32) {
    %c0_i32 = arith.constant 0 : i32
    %c0_i32_0 = arith.constant 0 : i32
    %c0_i32_1 = arith.constant 0 : i32
    return %c0_i32, %c0_i32_0 : i32, i32
  }
  func.func @transform_2(%arg0: i32) -> (i32, i32) {
    %c0_i32 = arith.constant 0 : i32
    %c0_i32_0 = arith.constant 0 : i32
    %c0_i32_1 = arith.constant 0 : i32
    return %c0_i32, %c0_i32_0 : i32, i32
  }
  func.func @transform_3(%arg0: i32) -> (i32, i32) {
    %c0_i32 = arith.constant 0 : i32
    %c0_i32_0 = arith.constant 0 : i32
    %c0_i32_1 = arith.constant 0 : i32
    return %c0_i32, %c0_i32_0 : i32, i32
  }
  func.func @transform_4(%arg0: i32) -> (i32, i32) {
    %c0_i32 = arith.constant 0 : i32
    %c0_i32_0 = arith.constant 0 : i32
    %c0_i32_1 = arith.constant 0 : i32
    return %c0_i32, %c0_i32_0 : i32, i32
  }
  func.func @transform_5(%arg0: i32) -> (i32, i32) {
    %c0_i32 = arith.constant 0 : i32
    %c0_i32_0 = arith.constant 0 : i32
    %c0_i32_1 = arith.constant 0 : i32
    return %c0_i32, %c0_i32_0 : i32, i32
  }
  func.func @transform_6(%arg0: i32) -> (i32, i32) {
    %c0_i32 = arith.constant 0 : i32
    %c0_i32_0 = arith.constant 0 : i32
    %c0_i32_1 = arith.constant 0 : i32
    return %c0_i32, %c0_i32_0 : i32, i32
  }
  func.func @transform_7(%arg0: i32) -> (i32, i32) {
    %c0_i32 = arith.constant 0 : i32
    %c0_i32_0 = arith.constant 0 : i32
    %c0_i32_1 = arith.constant 0 : i32
    return %c0_i32, %c0_i32_0 : i32, i32
  }
  func.func @transform_8(%arg0: i32) -> (i32, i32) {
    %c0_i32 = arith.constant 0 : i32
    %c0_i32_0 = arith.constant 0 : i32
    %c0_i32_1 = arith.constant 0 : i32
    return %c0_i32, %c0_i32_0 : i32, i32
  }
  func.func @transform_9(%arg0: i32) -> (i32, i32) {
    %c0_i32 = arith.constant 0 : i32
    %c0_i32_0 = arith.constant 0 : i32
    %c0_i32_1 = arith.constant 0 : i32
    return %c0_i32, %c0_i32_0 : i32, i32
  }
  func.func @transform_10(%arg0: i32) -> (i32, i32) {
    %c0_i32 = arith.constant 0 : i32
    %c0_i32_0 = arith.constant 0 : i32
    %c0_i32_1 = arith.constant 0 : i32
    return %c0_i32, %c0_i32_0 : i32, i32
  }
  func.func @transform_11(%arg0: i32) -> (i32, i32) {
    %c0_i32 = arith.constant 0 : i32
    %c0_i32_0 = arith.constant 0 : i32
    %c0_i32_1 = arith.constant 0 : i32
    return %c0_i32, %c0_i32_0 : i32, i32
  }
  func.func @transform_12(%arg0: i32) -> (i32, i32) {
    %c0_i32 = arith.constant 0 : i32
    %c0_i32_0 = arith.constant 0 : i32
    %c0_i32_1 = arith.constant 0 : i32
    return %c0_i32, %c0_i32_0 : i32, i32
  }
  func.func @transform_13(%arg0: i32) -> (i32, i32) {
    %c0_i32 = arith.constant 0 : i32
    %c0_i32_0 = arith.constant 0 : i32
    %c0_i32_1 = arith.constant 0 : i32
    return %c0_i32, %c0_i32_0 : i32, i32
  }
  func.func @transform_14(%arg0: i32) -> (i32, i32) {
    %c0_i32 = arith.constant 0 : i32
    %c0_i32_0 = arith.constant 0 : i32
    %c0_i32_1 = arith.constant 0 : i32
    return %c0_i32, %c0_i32_0 : i32, i32
  }
  func.func @transform_15(%arg0: i32) -> (i32, i32) {
    %c0_i32 = arith.constant 0 : i32
    %c0_i32_0 = arith.constant 0 : i32
    %c0_i32_1 = arith.constant 0 : i32
    return %c0_i32, %c0_i32_0 : i32, i32
  }
}

</mosaic_0001>

<llo_original>
// kernel: eq.1
$region0: #{eq.1}
  %s0 = inlined_call_operand.vmem [shape: s32[2,2,8], index: 0, kind: input, shape index: {}]
  %s1 = inlined_call_operand.vmem [shape: s32[32], index: 1, kind: output, shape index: {}]
  $region1: #{eq.1} parent=0
    #allocation0 [shape = 'u8[4096]{0}', space=vmem, size = 0x1000, scoped, tag = 'scoped mem for output reshape']
    #allocation1 [shape = 'u8[8192]{0}', space=vmem, size = 0x2000, scoped, tag = 'scoped mem for input reshape']
    %s3 = sshllo.u32 0, 2
    %s4 = scalar_lea.vmem %s0, 2
    %v5 = vld [vmem:[%s4] sm:%s3]
    %s6 = scalar_lea.vmem [#allocation1], 8
    %7 = vst [vmem:[%s6] sm:%s3] %v5
    %v8 = vld [vmem:[%s0] sm:%s3]
    %9 = vst [vmem:[#allocation1] sm:%s3] %v8
    %v10 = vld [vmem:[#allocation1] sm:$0x1]
    %vm11 = vcmask 64512
    %12 = vst.msk [vmem:[#allocation0] sm:$0x1] %vm11, %v10
    %s13 = scalar_lea.vmem [#allocation1], 9
    %v14 = vld [vmem:[%s13] sm:$0x1]
    %15 = vrot.lane.b32.xlu0 %v14, 24
    %v16 = vpop.permute.xlu0 %15
    %vm17 = vcmask 261312
    %18 = vst.msk [vmem:[#allocation0] sm:$0x1] %vm17, %v16
    %s19 = scalar_lea.vmem [#allocation1], 8
    %v20 = vld [vmem:[%s19] sm:$0x1]
    %21 = vrot.lane.b32.xlu0 %v20, 16
    %v22 = vpop.permute.xlu0 %21
    %vm23 = vcmask 195712
    %24 = vst.msk [vmem:[#allocation0] sm:$0x1] %vm23, %v22
    %s25 = scalar_lea.vmem [#allocation1], 1
    %v26 = vld [vmem:[%s25] sm:$0x1]
    %27 = vrot.lane.b32.xlu0 %v26, 8
    %v28 = vpop.permute.xlu0 %27
    %vm29 = vcmask 130112
    %30 = vst.msk [vmem:[#allocation0] sm:$0x1] %vm29, %v28
    %s32 = sshllo.u32 0, 1
    %v34 = vld [vmem:[#allocation0] sm:%s32]
    %s35 = sshllo.u32 0, 1
    %36 = vst [vmem:[%s1] sm:%s35] %v34

// kernel: neg.15
$region0: #{neg.15}
  #allocation0 [shape = 's32[1]{0}', space=sflag, size = 0x4, scoped, tag = 'scoped memory for neg.15']
  %s0 = inlined_call_operand.vmem [shape: f32[2,2,8,1], index: 0, kind: input, shape index: {}]
  %s1 = inlined_call_operand.vmem [shape: f32[2,2,8,1], index: 1, kind: output, shape index: {}]
  %v2 = vld [vmem:[%s0] sm:$0x1]
  %3 = xla_tuple %v2
  %4 = xla_tuple %3
  %v5 = vxor.u32 %v2, 2147483648
  %6 = xla_tuple %v5
  %7 = vst [vmem:[%s1] sm:$0x1] %v5
  %s8 = scalar_lea.vmem %s0, 2
  %v9 = vld [vmem:[%s8] sm:$0x1]
  %10 = xla_tuple %v9
  %11 = xla_tuple %10
  %v12 = vxor.u32 %v9, 2147483648
  %13 = xla_tuple %v12
  %s14 = scalar_lea.vmem %s1, 2
  %15 = vst [vmem:[%s14] sm:$0x1] %v12
  %s16 = scalar_lea.vmem %s0, 1
  %v17 = vld [vmem:[%s16] sm:$0x1]
  %18 = xla_tuple %v17
  %19 = xla_tuple %18
  %v20 = vxor.u32 %v17, 2147483648
  %21 = xla_tuple %v20
  %s22 = scalar_lea.vmem %s1, 1
  %23 = vst [vmem:[%s22] sm:$0x1] %v20
  %s24 = scalar_lea.vmem %s0, 3
  %v25 = vld [vmem:[%s24] sm:$0x1]
  %26 = xla_tuple %v25
  %27 = xla_tuple %26
  %v28 = vxor.u32 %v25, 2147483648
  %29 = xla_tuple %v28
  %s30 = scalar_lea.vmem %s1, 3
  %31 = vst [vmem:[%s30] sm:$0x1] %v28

// kernel: lm_qagnn_forward.3
$region0: #{lm_qagnn_forward.3}
  #allocation0 [shape = 'u32[]', space=smem, size = 0x4, offset = 0x4, fixed_abs, tag = 'smem constant byte address 0x4 - core index']
  #allocation1 [shape = 'u32[144,128]{1,0:T(1,128)}', space=vmem, size = 0x12000, scoped, tag = 'internal scratch']
  %s0 = inlined_call_operand.vmem [shape: f32[4,48], index: 0, kind: input, shape index: {}]
  %s1 = inlined_call_operand.vmem [shape: f32[48,48], index: 1, kind: input, shape index: {}]
  %s2 = inlined_call_operand.vmem [shape: f32[1,48], index: 2, kind: input, shape index: {}]
  %s3 = inlined_call_operand.vmem [shape: f32[4,48], index: 3, kind: output, shape index: {}]
  %s4 = sld [smem:[#allocation0]]
  $region22: #{lm_qagnn_forward.3} parent=0
    _
  %s6 = ssub.s32 1, %s4
  %s7 = scalar_select 0, %s6, %s4
  // Predicated region
  $region2: #{lm_qagnn_forward.3} parent=0 // pred_check
    _
  $region3: #{lm_qagnn_forward.3} parent=0 // pred_check_branch
    %9 = sbr.rel (0) target = $region5
  $region4: #{lm_qagnn_forward.3} parent=0 // pred_region
    _
  $region5: #{lm_qagnn_forward.3} parent=0 // pred_fallthru
    _
  // Predicated region
  $region6: #{lm_qagnn_forward.3} parent=0 // pred_check
    _
  $region7: #{lm_qagnn_forward.3} parent=0 // pred_check_branch
    %11 = sbr.rel (0) target = $region9
  $region8: #{lm_qagnn_forward.3} parent=0 // pred_region
    _
  $region9: #{lm_qagnn_forward.3} parent=0 // pred_fallthru
    _
  // Predicated region
  $region10: #{lm_qagnn_forward.3} parent=0 // pred_check
    _
  $region11: #{lm_qagnn_forward.3} parent=0 // pred_check_branch
    %13 = sbr.rel (0) target = $region13
  $region12: #{lm_qagnn_forward.3} parent=0 // pred_region
    _
  $region13: #{lm_qagnn_forward.3} parent=0 // pred_fallthru
    _
  %v14 = vld [vmem:[%s0] sm:$0xf]
  %v15 = vld [vmem:[%s1] sm:$0xff]
  %v16 = vld [vmem:[%s1 + $0x8] sm:$0xff]
  %v17 = vld [vmem:[%s1 + $0x10] sm:$0xff]
  %v18 = vld [vmem:[%s1 + $0x18] sm:$0xff]
  %v19 = vld [vmem:[%s1 + $0x20] sm:$0xff]
  %v20 = vld [vmem:[%s1 + $0x28] sm:$0xff]
  %v21 = vld [vmem:[%s2] sm:$0x1]
  %v23 = vlaneseq
  %v24 = vshrl.u32 %v23, 7
  %v25 = vsub.s32 0, %v24
  %v26 = vrot.slane %v21, %v25
  %vm28 = vcmask 392192
  %v30 = vsel %vm28, %v14, 0
  %32 = vmatprep.subr.mxu0 0.0
  %33 = vmatpush1.msra.mxu0 %v15
  %34 = vmatprep.subr.mxu0 0.0
  %35 = vmatpush1.msra.mxu0 %v16
  %36 = vmatprep.subr.mxu0 0.0
  %37 = vmatpush1.msra.mxu0 %v17
  %38 = vmatprep.subr.mxu0 0.0
  %39 = vmatpush1.msra.mxu0 %v18
  %40 = vmatprep.subr.mxu0 0.0
  %41 = vmatpush1.msra.mxu0 %v19
  %42 = vmatprep.subr.mxu0 0.0
  %43 = vmatpush1.msra.mxu0 %v20
  %44 = vmatprep.subr.mxu0 0.0
  %45 = vmatpush1.msra.mxu0 0.0
  %46 = vmatprep.subr.mxu0 0.0
  %47 = vmatpush1.msra.mxu0 0.0
  %48 = vmatprep.subr.mxu0 0.0
  %49 = vmatpush1.msra.mxu0 0.0
  %50 = vmatprep.subr.mxu0 0.0
  %51 = vmatpush1.msra.mxu0 0.0
  %52 = vmatprep.subr.mxu0 0.0
  %53 = vmatpush1.msra.mxu0 0.0
  %54 = vmatprep.subr.mxu0 0.0
  %55 = vmatpush1.msra.mxu0 0.0
  %56 = vmatprep.subr.mxu0 0.0
  %57 = vmatpush1.msra.mxu0 0.0
  %58 = vmatprep.subr.mxu0 0.0
  %59 = vmatpush1.msra.mxu0 0.0
  %60 = vmatprep.subr.mxu0 0.0
  %61 = vmatpush1.msra.mxu0 0.0
  %62 = vmatprep.subr.mxu0 0.0
  %63 = vmatpush1.msra.mxu0 0.0
  %64 = vmatprep.subr.mxu0 0.0
  %65 = vmatpush1.msra.mxu0 0.0
  %66 = vmatprep.subr.mxu0 0.0
  %67 = vmatpush1.msra.mxu0 0.0
  %68 = vmatprep.subr.mxu0 0.0
  %69 = vmatpush1.msra.mxu0 0.0
  %70 = vmatprep.subr.mxu0 0.0
  %71 = vmatpush1.msra.mxu0 0.0
  %72 = vmatprep.subr.mxu0 0.0
  %73 = vmatpush1.msra.mxu0 0.0
  %74 = vmatprep.subr.mxu0 0.0
  %75 = vmatpush1.msra.mxu0 0.0
  %76 = vmatprep.subr.mxu0 0.0
  %77 = vmatpush1.msra.mxu0 0.0
  %78 = vmatprep.subr.mxu0 0.0
  %79 = vmatpush1.msra.mxu0 0.0
  %80 = vmatprep.subr.mxu0 0.0
  %81 = vmatpush1.msra.mxu0 0.0
  %82 = vmatprep.subr.mxu0 0.0
  %83 = vmatpush1.msra.mxu0 0.0
  %84 = vmatprep.subr.mxu0 0.0
  %85 = vmatpush1.msra.mxu0 0.0
  %86 = vmatprep.subr.mxu0 0.0
  %87 = vmatpush1.msra.mxu0 0.0
  %88 = vmatprep.subr.mxu0 0.0
  %89 = vmatpush1.msra.mxu0 0.0
  %90 = vmatprep.subr.mxu0 0.0
  %91 = vmatpush1.msra.mxu0 0.0
  %92 = vmatprep.subr.mxu0 0.0
  %93 = vmatpush1.msra.mxu0 0.0
  %94 = vmatprep.subr.mxu0 0.0
  %95 = vmatpush1.msra.mxu0 0.0
  %96 = vmatprep.mubr.f32.mxu0 0.0
  %97 = vmatmul.mubr.f32.gmra.mrb[0].mxu0 %v30
  %v98 = vpop.f32.mrb[0].mxu0
  %v99 = vadd.f32 %v26, %v98
  %v100 = vpop.f32.mrb[0].mxu0
  %101 = vdwg.mxu0
  %vm102 = vcmask 388096
  %103 = vst.msk [vmem:[%s3] sm:$0xf] %vm102, %v99
  // Predicated region
  $region14: #{lm_qagnn_forward.3} parent=0 // pred_check
    _
  $region15: #{lm_qagnn_forward.3} parent=0 // pred_check_branch
    %105 = sbr.rel (0) target = $region17
  $region16: #{lm_qagnn_forward.3} parent=0 // pred_region
    _
  $region17: #{lm_qagnn_forward.3} parent=0 // pred_fallthru
    _
  // Predicated region
  $region18: #{lm_qagnn_forward.3} parent=0 // pred_check
    _
  $region19: #{lm_qagnn_forward.3} parent=0 // pred_check_branch
    %107 = sbr.rel (0) target = $region21
  $region20: #{lm_qagnn_forward.3} parent=0 // pred_region
    _
  $region21: #{lm_qagnn_forward.3} parent=0 // pred_fallthru
    _

// kernel: lm_qagnn_forward.5
$region0: #{lm_qagnn_forward.5}
  #allocation0 [shape = 'u32[]', space=smem, size = 0x4, offset = 0x4, fixed_abs, tag = 'smem constant byte address 0x4 - core index']
  #allocation1 [shape = 'u32[144,128]{1,0:T(1,128)}', space=vmem, size = 0x12000, scoped, tag = 'internal scratch']
  #allocation2 [shape = 'f32[4,32]{1,0:T(4,128)}', space=vmem, size = 0x800, scoped, tag = 'scratch operand']
  #allocation3 [shape = 'f32[1,1]{1,0:T(1,128)S(1)}', space=vmem, size = 0x200, scoped, tag = 'scoped memory for lm_qagnn_forward.5']
  %s0 = inlined_call_operand.vmem [shape: f32[4,48], index: 0, kind: input, shape index: {}]
  %s1 = inlined_call_operand.vmem [shape: f32[32,32], index: 1, kind: input, shape index: {}]
  %s2 = inlined_call_operand.vmem [shape: f32[4,32], index: 2, kind: input, shape index: {}]
  %s3 = inlined_call_operand.vmem [shape: f32[32,1], index: 3, kind: input, shape index: {}]
  %s4 = inlined_call_operand.vmem [shape: f32[48,32], index: 4, kind: input, shape index: {}]
  %s5 = inlined_call_operand.vmem [shape: f32[1,32], index: 5, kind: input, shape index: {}]
  %s6 = inlined_call_operand.vmem [shape: f32[32,64], index: 6, kind: input, shape index: {}]
  %s7 = inlined_call_operand.vmem [shape: f32[1,64], index: 7, kind: input, shape index: {}]
  %s8 = inlined_call_operand.vmem [shape: f32[112,32], index: 8, kind: input, shape index: {}]
  %s9 = inlined_call_operand.vmem [shape: f32[1,32], index: 9, kind: input, shape index: {}]
  %s10 = inlined_call_operand.vmem [shape: f32[1,32], index: 10, kind: input, shape index: {}]
  %s11 = inlined_call_operand.vmem [shape: f32[1,32], index: 11, kind: input, shape index: {}]
  %s12 = inlined_call_operand.vmem [shape: f32[32,1], index: 12, kind: input, shape index: {}]
  %s13 = inlined_call_operand.<no memory space> [shape: f32[1,1], index: 13, kind: input, shape index: {}]
  %s14 = inlined_call_operand.vmem [shape: f32[4,1], index: 14, kind: output, shape index: {0}]
  %s15 = inlined_call_operand.vmem [shape: f32[8,8], index: 15, kind: output, shape index: {1}]
  %16 = xla_tuple %s14, %s15
  %s17 = sld [smem:[#allocation0]]
  $region74: #{lm_qagnn_forward.5} parent=0
    _
  %s19 = ssub.s32 1, %s17
  %s20 = scalar_select 0, %s19, %s17
  %v21 = vstv %s13
  %22 = vst [vmem:[#allocation3] sm:$0x1] %v21
  // Predicated region
  $region2: #{lm_qagnn_forward.5} parent=0 // pred_check
    _
  $region3: #{lm_qagnn_forward.5} parent=0 // pred_check_branch
    %24 = sbr.rel (0) target = $region5
  $region4: #{lm_qagnn_forward.5} parent=0 // pred_region
    _
  $region5: #{lm_qagnn_forward.5} parent=0 // pred_fallthru
    _
  // Predicated region
  $region6: #{lm_qagnn_forward.5} parent=0 // pred_check
    _
  $region7: #{lm_qagnn_forward.5} parent=0 // pred_check_branch
    %26 = sbr.rel (0) target = $region9
  $region8: #{lm_qagnn_forward.5} parent=0 // pred_region
    _
  $region9: #{lm_qagnn_forward.5} parent=0 // pred_fallthru
    _
  // Predicated region
  $region10: #{lm_qagnn_forward.5} parent=0 // pred_check
    _
  $region11: #{lm_qagnn_forward.5} parent=0 // pred_check_branch
    %28 = sbr.rel (0) target = $region13
  $region12: #{lm_qagnn_forward.5} parent=0 // pred_region
    _
  $region13: #{lm_qagnn_forward.5} parent=0 // pred_fallthru
    _
  // Predicated region
  $region14: #{lm_qagnn_forward.5} parent=0 // pred_check
    _
  $region15: #{lm_qagnn_forward.5} parent=0 // pred_check_branch
    %30 = sbr.rel (0) target = $region17
  $region16: #{lm_qagnn_forward.5} parent=0 // pred_region
    _
  $region17: #{lm_qagnn_forward.5} parent=0 // pred_fallthru
    _
  // Predicated region
  $region18: #{lm_qagnn_forward.5} parent=0 // pred_check
    _
  $region19: #{lm_qagnn_forward.5} parent=0 // pred_check_branch
    %32 = sbr.rel (0) target = $region21
  $region20: #{lm_qagnn_forward.5} parent=0 // pred_region
    _
  $region21: #{lm_qagnn_forward.5} parent=0 // pred_fallthru
    _
  // Predicated region
  $region22: #{lm_qagnn_forward.5} parent=0 // pred_check
    _
  $region23: #{lm_qagnn_forward.5} parent=0 // pred_check_branch
    %34 = sbr.rel (0) target = $region25
  $region24: #{lm_qagnn_forward.5} parent=0 // pred_region
    _
  $region25: #{lm_qagnn_forward.5} parent=0 // pred_fallthru
    _
  // Predicated region
  $region26: #{lm_qagnn_forward.5} parent=0 // pred_check
    _
  $region27: #{lm_qagnn_forward.5} parent=0 // pred_check_branch
    %36 = sbr.rel (0) target = $region29
  $region28: #{lm_qagnn_forward.5} parent=0 // pred_region
    _
  $region29: #{lm_qagnn_forward.5} parent=0 // pred_fallthru
    _
  // Predicated region
  $region30: #{lm_qagnn_forward.5} parent=0 // pred_check
    _
  $region31: #{lm_qagnn_forward.5} parent=0 // pred_check_branch
    %38 = sbr.rel (0) target = $region33
  $region32: #{lm_qagnn_forward.5} parent=0 // pred_region
    _
  $region33: #{lm_qagnn_forward.5} parent=0 // pred_fallthru
    _
  // Predicated region
  $region34: #{lm_qagnn_forward.5} parent=0 // pred_check
    _
  $region35: #{lm_qagnn_forward.5} parent=0 // pred_check_branch
    %40 = sbr.rel (0) target = $region37
  $region36: #{lm_qagnn_forward.5} parent=0 // pred_region
    _
  $region37: #{lm_qagnn_forward.5} parent=0 // pred_fallthru
    _
  // Predicated region
  $region38: #{lm_qagnn_forward.5} parent=0 // pred_check
    _
  $region39: #{lm_qagnn_forward.5} parent=0 // pred_check_branch
    %42 = sbr.rel (0) target = $region41
  $region40: #{lm_qagnn_forward.5} parent=0 // pred_region
    _
  $region41: #{lm_qagnn_forward.5} parent=0 // pred_fallthru
    _
  // Predicated region
  $region42: #{lm_qagnn_forward.5} parent=0 // pred_check
    _
  $region43: #{lm_qagnn_forward.5} parent=0 // pred_check_branch
    %44 = sbr.rel (0) target = $region45
  $region44: #{lm_qagnn_forward.5} parent=0 // pred_region
    _
  $region45: #{lm_qagnn_forward.5} parent=0 // pred_fallthru
    _
  // Predicated region
  $region46: #{lm_qagnn_forward.5} parent=0 // pred_check
    _
  $region47: #{lm_qagnn_forward.5} parent=0 // pred_check_branch
    %46 = sbr.rel (0) target = $region49
  $region48: #{lm_qagnn_forward.5} parent=0 // pred_region
    _
  $region49: #{lm_qagnn_forward.5} parent=0 // pred_fallthru
    _
  // Predicated region
  $region50: #{lm_qagnn_forward.5} parent=0 // pred_check
    _
  $region51: #{lm_qagnn_forward.5} parent=0 // pred_check_branch
    %48 = sbr.rel (0) target = $region53
  $region52: #{lm_qagnn_forward.5} parent=0 // pred_region
    _
  $region53: #{lm_qagnn_forward.5} parent=0 // pred_fallthru
    _
  // Predicated region
  $region54: #{lm_qagnn_forward.5} parent=0 // pred_check
    _
  $region55: #{lm_qagnn_forward.5} parent=0 // pred_check_branch
    %50 = sbr.rel (0) target = $region57
  $region56: #{lm_qagnn_forward.5} parent=0 // pred_region
    _
  $region57: #{lm_qagnn_forward.5} parent=0 // pred_fallthru
    _
  %v51 = vld [vmem:[%s0] sm:$0xf]
  %v52 = vld [vmem:[%s4] sm:$0xff]
  %v53 = vld [vmem:[%s4 + $0x8] sm:$0xff]
  %v54 = vld [vmem:[%s4 + $0x10] sm:$0xff]
  %v55 = vld [vmem:[%s4 + $0x18] sm:$0xff]
  %v56 = vld [vmem:[%s4 + $0x20] sm:$0xff]
  %v57 = vld [vmem:[%s4 + $0x28] sm:$0xff]
  %v58 = vld [vmem:[%s5] sm:$0x1]
  %v60 = vlaneseq
  %v61 = vshrl.u32 %v60, 7
  %v62 = vsub.s32 0, %v61
  %v63 = vrot.slane %v58, %v62
  %vm65 = vcmask 392192
  %v67 = vsel %vm65, %v51, 0
  %69 = vmatprep.subr.mxu0 0.0
  %70 = vmatpush1.msra.mxu0 %v52
  %71 = vmatprep.subr.mxu0 0.0
  %72 = vmatpush1.msra.mxu0 %v53
  %73 = vmatprep.subr.mxu0 0.0
  %74 = vmatpush1.msra.mxu0 %v54
  %75 = vmatprep.subr.mxu0 0.0
  %76 = vmatpush1.msra.mxu0 %v55
  %77 = vmatprep.subr.mxu0 0.0
  %78 = vmatpush1.msra.mxu0 %v56
  %79 = vmatprep.subr.mxu0 0.0
  %80 = vmatpush1.msra.mxu0 %v57
  %81 = vmatprep.subr.mxu0 0.0
  %82 = vmatpush1.msra.mxu0 0.0
  %83 = vmatprep.subr.mxu0 0.0
  %84 = vmatpush1.msra.mxu0 0.0
  %85 = vmatprep.subr.mxu0 0.0
  %86 = vmatpush1.msra.mxu0 0.0
  %87 = vmatprep.subr.mxu0 0.0
  %88 = vmatpush1.msra.mxu0 0.0
  %89 = vmatprep.subr.mxu0 0.0
  %90 = vmatpush1.msra.mxu0 0.0
  %91 = vmatprep.subr.mxu0 0.0
  %92 = vmatpush1.msra.mxu0 0.0
  %93 = vmatprep.subr.mxu0 0.0
  %94 = vmatpush1.msra.mxu0 0.0
  %95 = vmatprep.subr.mxu0 0.0
  %96 = vmatpush1.msra.mxu0 0.0
  %97 = vmatprep.subr.mxu0 0.0
  %98 = vmatpush1.msra.mxu0 0.0
  %99 = vmatprep.subr.mxu0 0.0
  %100 = vmatpush1.msra.mxu0 0.0
  %101 = vmatprep.subr.mxu0 0.0
  %102 = vmatpush1.msra.mxu0 0.0
  %103 = vmatprep.subr.mxu0 0.0
  %104 = vmatpush1.msra.mxu0 0.0
  %105 = vmatprep.subr.mxu0 0.0
  %106 = vmatpush1.msra.mxu0 0.0
  %107 = vmatprep.subr.mxu0 0.0
  %108 = vmatpush1.msra.mxu0 0.0
  %109 = vmatprep.subr.mxu0 0.0
  %110 = vmatpush1.msra.mxu0 0.0
  %111 = vmatprep.subr.mxu0 0.0
  %112 = vmatpush1.msra.mxu0 0.0
  %113 = vmatprep.subr.mxu0 0.0
  %114 = vmatpush1.msra.mxu0 0.0
  %115 = vmatprep.subr.mxu0 0.0
  %116 = vmatpush1.msra.mxu0 0.0
  %117 = vmatprep.subr.mxu0 0.0
  %118 = vmatpush1.msra.mxu0 0.0
  %119 = vmatprep.subr.mxu0 0.0
  %120 = vmatpush1.msra.mxu0 0.0
  %121 = vmatprep.subr.mxu0 0.0
  %122 = vmatpush1.msra.mxu0 0.0
  %123 = vmatprep.subr.mxu0 0.0
  %124 = vmatpush1.msra.mxu0 0.0
  %125 = vmatprep.subr.mxu0 0.0
  %126 = vmatpush1.msra.mxu0 0.0
  %127 = vmatprep.subr.mxu0 0.0
  %128 = vmatpush1.msra.mxu0 0.0
  %129 = vmatprep.subr.mxu0 0.0
  %130 = vmatpush1.msra.mxu0 0.0
  %131 = vmatprep.subr.mxu0 0.0
  %132 = vmatpush1.msra.mxu0 0.0
  %133 = vmatprep.mubr.f32.mxu0 0.0
  %134 = vmatmul.mubr.f32.gmra.mrb[0].mxu0 %v67
  %v135 = vpop.f32.mrb[0].mxu0
  %v136 = vadd.f32 %v63, %v135
  %v137 = vpop.f32.mrb[0].mxu0
  %138 = vdwg.mxu0
  %v139 = vld [vmem:[%s1] sm:$0xff]
  %v140 = vld [vmem:[%s1 + $0x8] sm:$0xff]
  %v141 = vld [vmem:[%s1 + $0x10] sm:$0xff]
  %v142 = vld [vmem:[%s1 + $0x18] sm:$0xff]
  %v143 = vld [vmem:[%s6] sm:$0xff]
  %v144 = vld [vmem:[%s6 + $0x8] sm:$0xff]
  %v145 = vld [vmem:[%s6 + $0x10] sm:$0xff]
  %v146 = vld [vmem:[%s6 + $0x18] sm:$0xff]
  %v147 = vld [vmem:[%s7] sm:$0x1]
  %v149 = vlaneseq
  %v150 = vshrl.u32 %v149, 7
  %v151 = vsub.s32 0, %v150
  %v152 = vrot.slane %v147, %v151
  %vm154 = vcmask 261120
  %v156 = vsel %vm154, %v139, 0
  %v159 = vsel %vm154, %v140, 0
  %v162 = vsel %vm154, %v141, 0
  %v165 = vsel %vm154, %v142, 0
  %167 = vmatprep.subr.mxu0 0.0
  %168 = vmatpush1.msra.mxu0 %v143
  %169 = vmatprep.subr.mxu0 0.0
  %170 = vmatpush1.msra.mxu0 %v144
  %171 = vmatprep.subr.mxu0 0.0
  %172 = vmatpush1.msra.mxu0 %v145
  %173 = vmatprep.subr.mxu0 0.0
  %174 = vmatpush1.msra.mxu0 %v146
  %175 = vmatprep.subr.mxu0 0.0
  %176 = vmatpush1.msra.mxu0 0.0
  %177 = vmatprep.subr.mxu0 0.0
  %178 = vmatpush1.msra.mxu0 0.0
  %179 = vmatprep.subr.mxu0 0.0
  %180 = vmatpush1.msra.mxu0 0.0
  %181 = vmatprep.subr.mxu0 0.0
  %182 = vmatpush1.msra.mxu0 0.0
  %183 = vmatprep.subr.mxu0 0.0
  %184 = vmatpush1.msra.mxu0 0.0
  %185 = vmatprep.subr.mxu0 0.0
  %186 = vmatpush1.msra.mxu0 0.0
  %187 = vmatprep.subr.mxu0 0.0
  %188 = vmatpush1.msra.mxu0 0.0
  %189 = vmatprep.subr.mxu0 0.0
  %190 = vmatpush1.msra.mxu0 0.0
  %191 = vmatprep.subr.mxu0 0.0
  %192 = vmatpush1.msra.mxu0 0.0
  %193 = vmatprep.subr.mxu0 0.0
  %194 = vmatpush1.msra.mxu0 0.0
  %195 = vmatprep.subr.mxu0 0.0
  %196 = vmatpush1.msra.mxu0 0.0
  %197 = vmatprep.subr.mxu0 0.0
  %198 = vmatpush1.msra.mxu0 0.0
  %199 = vmatprep.subr.mxu0 0.0
  %200 = vmatpush1.msra.mxu0 0.0
  %201 = vmatprep.subr.mxu0 0.0
  %202 = vmatpush1.msra.mxu0 0.0
  %203 = vmatprep.subr.mxu0 0.0
  %204 = vmatpush1.msra.mxu0 0.0
  %205 = vmatprep.subr.mxu0 0.0
  %206 = vmatpush1.msra.mxu0 0.0
  %207 = vmatprep.subr.mxu0 0.0
  %208 = vmatpush1.msra.mxu0 0.0
  %209 = vmatprep.subr.mxu0 0.0
  %210 = vmatpush1.msra.mxu0 0.0
  %211 = vmatprep.subr.mxu0 0.0
  %212 = vmatpush1.msra.mxu0 0.0
  %213 = vmatprep.subr.mxu0 0.0
  %214 = vmatpush1.msra.mxu0 0.0
  %215 = vmatprep.subr.mxu0 0.0
  %216 = vmatpush1.msra.mxu0 0.0
  %217 = vmatprep.subr.mxu0 0.0
  %218 = vmatpush1.msra.mxu0 0.0
  %219 = vmatprep.subr.mxu0 0.0
  %220 = vmatpush1.msra.mxu0 0.0
  %221 = vmatprep.subr.mxu0 0.0
  %222 = vmatpush1.msra.mxu0 0.0
  %223 = vmatprep.subr.mxu0 0.0
  %224 = vmatpush1.msra.mxu0 0.0
  %225 = vmatprep.subr.mxu0 0.0
  %226 = vmatpush1.msra.mxu0 0.0
  %227 = vmatprep.subr.mxu0 0.0
  %228 = vmatpush1.msra.mxu0 0.0
  %229 = vmatprep.subr.mxu0 0.0
  %230 = vmatpush1.msra.mxu0 0.0
  %231 = vmatprep.mubr.f32.mxu0 0.0
  %232 = vmatmul.mubr.f32.gmra.mrb[0].mxu0 %v156
  %v233 = vpop.f32.mrb[0].mxu0
  %v234 = vadd.f32 %v152, %v233
  %v235 = vpop.f32.mrb[0].mxu0
  %236 = vmatprep.mubr.f32.mxu0 0.0
  %237 = vmatmul.mubr.f32.gmra.mrb[0].mxu0 %v159
  %v238 = vpop.f32.mrb[0].mxu0
  %v239 = vadd.f32 %v152, %v238
  %v240 = vpop.f32.mrb[0].mxu0
  %241 = vmatprep.mubr.f32.mxu0 0.0
  %242 = vmatmul.mubr.f32.gmra.mrb[0].mxu0 %v162
  %v243 = vpop.f32.mrb[0].mxu0
  %v244 = vadd.f32 %v152, %v243
  %v245 = vpop.f32.mrb[0].mxu0
  %246 = vmatprep.mubr.f32.mxu0 0.0
  %247 = vmatmul.mubr.f32.gmra.mrb[0].mxu0 %v165
  %v248 = vpop.f32.mrb[0].mxu0
  %v249 = vadd.f32 %v152, %v248
  %v250 = vpop.f32.mrb[0].mxu0
  %251 = vdwg.mxu0
  %v252 = vld [vmem:[%s3] sm:$0xff]
  %v253 = vld [vmem:[%s3 + $0x8] sm:$0xff]
  %v254 = vld [vmem:[%s3 + $0x10] sm:$0xff]
  %v255 = vld [vmem:[%s3 + $0x18] sm:$0xff]
  %v256 = vlaneseq
  %v257 = vshrl.u32 %v256, 7
  %v258 = vadd.s32 %v257, 8
  %v259 = vadd.s32 %v257, 16
  %v260 = vadd.s32 %v257, 24
  %v261 = vlaneseq
  %v262 = vand.u32 %v261, 127
  %v263 = vmul.u32 %v262, 16
  %vm264 = vcmp.ge.s32.totalorder %v257, %v263
  %vm265 = vcmp.ge.s32.totalorder %v258, %v263
  %vm266 = vcmp.ge.s32.totalorder %v259, %v263
  %vm267 = vcmp.ge.s32.totalorder %v260, %v263
  %v268 = vadd.s32 %v262, 1
  %v269 = vmul.u32 %v268, 16
  %vm270 = vcmp.lt.s32.totalorder %v257, %v269
  %vm271 = vcmp.lt.s32.totalorder %v258, %v269
  %vm272 = vcmp.lt.s32.totalorder %v259, %v269
  %vm273 = vcmp.lt.s32.totalorder %v260, %v269
  %vm274 = vmand %vm264, %vm270
  %vm275 = vmand %vm265, %vm271
  %vm276 = vmand %vm266, %vm272
  %vm277 = vmand %vm267, %vm273
  %v278 = vsel %vm274, 1.0, 0.0
  %v279 = vsel %vm275, 1.0, 0.0
  %v280 = vsel %vm276, 1.0, 0.0
  %v281 = vsel %vm277, 1.0, 0.0
  %v282 = vmul.u32 %v257, 16
  %vm283 = vcmp.ge.s32.totalorder %v262, %v282
  %v284 = vadd.s32 %v257, 1
  %v285 = vmul.u32 %v284, 16
  %vm286 = vcmp.lt.s32.totalorder %v262, %v285
  %vm287 = vmand %vm283, %vm286
  %v288 = vsel %vm287, 1.0, 0.0
  %v289 = vlaneseq
  %v290 = vshrl.u32 %v289, 7
  %v291 = vsub.s32 0, %v290
  %v292 = vrot.slane %v136, %v291
  %v293 = vmul.f32 %v234, %v292
  %v295 = vsel %vm154, %v293, 0
  %297 = vmatprep.subr.mxu0 0.0
  %298 = vmatpush1.msra.mxu0 %v278
  %299 = vmatprep.subr.mxu0 0.0
  %300 = vmatpush1.msra.mxu0 %v279
  %301 = vmatprep.subr.mxu0 0.0
  %302 = vmatpush1.msra.mxu0 %v280
  %303 = vmatprep.subr.mxu0 0.0
  %304 = vmatpush1.msra.mxu0 %v281
  %305 = vmatprep.subr.mxu0 0.0
  %306 = vmatpush1.msra.mxu0 0.0
  %307 = vmatprep.subr.mxu0 0.0
  %308 = vmatpush1.msra.mxu0 0.0
  %309 = vmatprep.subr.mxu0 0.0
  %310 = vmatpush1.msra.mxu0 0.0
  %311 = vmatprep.subr.mxu0 0.0
  %312 = vmatpush1.msra.mxu0 0.0
  %313 = vmatprep.subr.mxu0 0.0
  %314 = vmatpush1.msra.mxu0 0.0
  %315 = vmatprep.subr.mxu0 0.0
  %316 = vmatpush1.msra.mxu0 0.0
  %317 = vmatprep.subr.mxu0 0.0
  %318 = vmatpush1.msra.mxu0 0.0
  %319 = vmatprep.subr.mxu0 0.0
  %320 = vmatpush1.msra.mxu0 0.0
  %321 = vmatprep.subr.mxu0 0.0
  %322 = vmatpush1.msra.mxu0 0.0
  %323 = vmatprep.subr.mxu0 0.0
  %324 = vmatpush1.msra.mxu0 0.0
  %325 = vmatprep.subr.mxu0 0.0
  %326 = vmatpush1.msra.mxu0 0.0
  %327 = vmatprep.subr.mxu0 0.0
  %328 = vmatpush1.msra.mxu0 0.0
  %329 = vmatprep.subr.mxu0 0.0
  %330 = vmatpush1.msra.mxu0 0.0
  %331 = vmatprep.subr.mxu0 0.0
  %332 = vmatpush1.msra.mxu0 0.0
  %333 = vmatprep.subr.mxu0 0.0
  %334 = vmatpush1.msra.mxu0 0.0
  %335 = vmatprep.subr.mxu0 0.0
  %336 = vmatpush1.msra.mxu0 0.0
  %337 = vmatprep.subr.mxu0 0.0
  %338 = vmatpush1.msra.mxu0 0.0
  %339 = vmatprep.subr.mxu0 0.0
  %340 = vmatpush1.msra.mxu0 0.0
  %341 = vmatprep.subr.mxu0 0.0
  %342 = vmatpush1.msra.mxu0 0.0
  %343 = vmatprep.subr.mxu0 0.0
  %344 = vmatpush1.msra.mxu0 0.0
  %345 = vmatprep.subr.mxu0 0.0
  %346 = vmatpush1.msra.mxu0 0.0
  %347 = vmatprep.subr.mxu0 0.0
  %348 = vmatpush1.msra.mxu0 0.0
  %349 = vmatprep.subr.mxu0 0.0
  %350 = vmatpush1.msra.mxu0 0.0
  %351 = vmatprep.subr.mxu0 0.0
  %352 = vmatpush1.msra.mxu0 0.0
  %353 = vmatprep.subr.mxu0 0.0
  %354 = vmatpush1.msra.mxu0 0.0
  %355 = vmatprep.subr.mxu0 0.0
  %356 = vmatpush1.msra.mxu0 0.0
  %357 = vmatprep.subr.mxu0 0.0
  %358 = vmatpush1.msra.mxu0 0.0
  %359 = vmatprep.subr.mxu0 0.0
  %360 = vmatpush1.msra.mxu0 0.0
  %361 = vmatprep.mubr.f32.mxu0 0.0
  %362 = vmatmul.mubr.f32.gmra.mrb[0].mxu0 %v295
  %v363 = vpop.f32.mrb[0].mxu0
  %v364 = vadd.f32 0.0, %v363
  %v365 = vpop.f32.mrb[0].mxu0
  %366 = vdwg.mxu0
  %v367 = vmul.f32 %v364, 0.25
  %vm368 = vcmp.gt.f32.partialorder %v252, 0.5
  %v369 = vsel %vm368, 1, 0
  %370 = vset.pattern.permute.xlu0 0
  %371 = vperm.xlu0 %370, %v369
  %v372 = vpop.permute.xlu0 %371
  %vm373 = vcmp.eq.s32.totalorder %v372, 1
  %v374 = vsel %vm373, -1e+30, %v367
  %vm375 = vcmask 15360
  %v376 = vsel %vm375, %v374, -inf
  %v377 = vrot.slane %v376, 4
  %v378 = vmax.f32 %v376, %v377
  %v379 = vrot.slane %v378, 2
  %v380 = vmax.f32 %v378, %v379
  %v381 = vrot.slane %v380, 1
  %v382 = vmax.f32 %v380, %v381
  %v383 = vsub.f32 %v374, %v382
  %v384 = vmul.f32 %v383, 1.442695
  %v385 = vpow.pop %v384
  %v386 = vsel %vm375, %v385, 0.0
  %v387 = vrot.slane %v386, 4
  %v388 = vadd.f32 %v386, %v387
  %v389 = vrot.slane %v388, 2
  %v390 = vadd.f32 %v388, %v389
  %v391 = vrot.slane %v390, 1
  %v392 = vadd.f32 %v390, %v391
  %v393 = vrcp.pop %v392
  %v394 = vmul.f32 %v385, %v393
  %395 = vst.msk [vmem:[%s15] sm:$0xff] %vm375, %v394
  %v397 = vsel %vm375, %v394, 0
  %vm399 = vcmask 1041408
  %v401 = vsel %vm399, %v288, 0
  %403 = vmatprep.subr.mxu0 0.0
  %404 = vmatpush1.msra.mxu0 %v401
  %405 = vmatprep.subr.mxu0 0.0
  %406 = vmatpush1.msra.mxu0 0.0
  %407 = vmatprep.subr.mxu0 0.0
  %408 = vmatpush1.msra.mxu0 0.0
  %409 = vmatprep.subr.mxu0 0.0
  %410 = vmatpush1.msra.mxu0 0.0
  %411 = vmatprep.subr.mxu0 0.0
  %412 = vmatpush1.msra.mxu0 0.0
  %413 = vmatprep.subr.mxu0 0.0
  %414 = vmatpush1.msra.mxu0 0.0
  %415 = vmatprep.subr.mxu0 0.0
  %416 = vmatpush1.msra.mxu0 0.0
  %417 = vmatprep.subr.mxu0 0.0
  %418 = vmatpush1.msra.mxu0 0.0
  %419 = vmatprep.subr.mxu0 0.0
  %420 = vmatpush1.msra.mxu0 0.0
  %421 = vmatprep.subr.mxu0 0.0
  %422 = vmatpush1.msra.mxu0 0.0
  %423 = vmatprep.subr.mxu0 0.0
  %424 = vmatpush1.msra.mxu0 0.0
  %425 = vmatprep.subr.mxu0 0.0
  %426 = vmatpush1.msra.mxu0 0.0
  %427 = vmatprep.subr.mxu0 0.0
  %428 = vmatpush1.msra.mxu0 0.0
  %429 = vmatprep.subr.mxu0 0.0
  %430 = vmatpush1.msra.mxu0 0.0
  %431 = vmatprep.subr.mxu0 0.0
  %432 = vmatpush1.msra.mxu0 0.0
  %433 = vmatprep.subr.mxu0 0.0
  %434 = vmatpush1.msra.mxu0 0.0
  %435 = vmatprep.subr.mxu0 0.0
  %436 = vmatpush1.msra.mxu0 0.0
  %437 = vmatprep.subr.mxu0 0.0
  %438 = vmatpush1.msra.mxu0 0.0
  %439 = vmatprep.subr.mxu0 0.0
  %440 = vmatpush1.msra.mxu0 0.0
  %441 = vmatprep.subr.mxu0 0.0
  %442 = vmatpush1.msra.mxu0 0.0
  %443 = vmatprep.subr.mxu0 0.0
  %444 = vmatpush1.msra.mxu0 0.0
  %445 = vmatprep.subr.mxu0 0.0
  %446 = vmatpush1.msra.mxu0 0.0
  %447 = vmatprep.subr.mxu0 0.0
  %448 = vmatpush1.msra.mxu0 0.0
  %449 = vmatprep.subr.mxu0 0.0
  %450 = vmatpush1.msra.mxu0 0.0
  %451 = vmatprep.subr.mxu0 0.0
  %452 = vmatpush1.msra.mxu0 0.0
  %453 = vmatprep.subr.mxu0 0.0
  %454 = vmatpush1.msra.mxu0 0.0
  %455 = vmatprep.subr.mxu0 0.0
  %456 = vmatpush1.msra.mxu0 0.0
  %457 = vmatprep.subr.mxu0 0.0
  %458 = vmatpush1.msra.mxu0 0.0
  %459 = vmatprep.subr.mxu0 0.0
  %460 = vmatpush1.msra.mxu0 0.0
  %461 = vmatprep.subr.mxu0 0.0
  %462 = vmatpush1.msra.mxu0 0.0
  %463 = vmatprep.subr.mxu0 0.0
  %464 = vmatpush1.msra.mxu0 0.0
  %465 = vmatprep.subr.mxu0 0.0
  %466 = vmatpush1.msra.mxu0 0.0
  %467 = vmatprep.mubr.f32.mxu0 0.0
  %468 = vmatmul.mubr.f32.gmra.mrb[0].mxu0 %v397
  %v469 = vpop.f32.mrb[0].mxu0
  %v470 = vadd.f32 0.0, %v469
  %v471 = vpop.f32.mrb[0].mxu0
  %472 = vdwg.mxu0
  %474 = vrot.lane.b32.xlu0 %v234, 96
  %v475 = vpop.permute.xlu0 %474
  %v477 = vmul.f32 %v470, %v475
  %v478 = vsel %vm154, %v477, 0.0
  %v479 = vrot.slane %v478, 4
  %v480 = vadd.f32 %v478, %v479
  %v481 = vrot.slane %v480, 2
  %v482 = vadd.f32 %v480, %v481
  %v483 = vrot.slane %v482, 1
  %v484 = vadd.f32 %v482, %v483
  %vm485 = vcmask 253952
  %486 = vst.msk [vmem:[#allocation2] sm:$0x1] %vm485, %v484
  %v487 = vlaneseq
  %v488 = vshrl.u32 %v487, 7
  %v489 = vsub.s32 1, %v488
  %v490 = vrot.slane %v136, %v489
  %v491 = vmul.f32 %v239, %v490
  %v493 = vsel %vm154, %v491, 0
  %495 = vmatprep.subr.mxu0 0.0
  %496 = vmatpush1.msra.mxu0 %v278
  %497 = vmatprep.subr.mxu0 0.0
  %498 = vmatpush1.msra.mxu0 %v279
  %499 = vmatprep.subr.mxu0 0.0
  %500 = vmatpush1.msra.mxu0 %v280
  %501 = vmatprep.subr.mxu0 0.0
  %502 = vmatpush1.msra.mxu0 %v281
  %503 = vmatprep.subr.mxu0 0.0
  %504 = vmatpush1.msra.mxu0 0.0
  %505 = vmatprep.subr.mxu0 0.0
  %506 = vmatpush1.msra.mxu0 0.0
  %507 = vmatprep.subr.mxu0 0.0
  %508 = vmatpush1.msra.mxu0 0.0
  %509 = vmatprep.subr.mxu0 0.0
  %510 = vmatpush1.msra.mxu0 0.0
  %511 = vmatprep.subr.mxu0 0.0
  %512 = vmatpush1.msra.mxu0 0.0
  %513 = vmatprep.subr.mxu0 0.0
  %514 = vmatpush1.msra.mxu0 0.0
  %515 = vmatprep.subr.mxu0 0.0
  %516 = vmatpush1.msra.mxu0 0.0
  %517 = vmatprep.subr.mxu0 0.0
  %518 = vmatpush1.msra.mxu0 0.0
  %519 = vmatprep.subr.mxu0 0.0
  %520 = vmatpush1.msra.mxu0 0.0
  %521 = vmatprep.subr.mxu0 0.0
  %522 = vmatpush1.msra.mxu0 0.0
  %523 = vmatprep.subr.mxu0 0.0
  %524 = vmatpush1.msra.mxu0 0.0
  %525 = vmatprep.subr.mxu0 0.0
  %526 = vmatpush1.msra.mxu0 0.0
  %527 = vmatprep.subr.mxu0 0.0
  %528 = vmatpush1.msra.mxu0 0.0
  %529 = vmatprep.subr.mxu0 0.0
  %530 = vmatpush1.msra.mxu0 0.0
  %531 = vmatprep.subr.mxu0 0.0
  %532 = vmatpush1.msra.mxu0 0.0
  %533 = vmatprep.subr.mxu0 0.0
  %534 = vmatpush1.msra.mxu0 0.0
  %535 = vmatprep.subr.mxu0 0.0
  %536 = vmatpush1.msra.mxu0 0.0
  %537 = vmatprep.subr.mxu0 0.0
  %538 = vmatpush1.msra.mxu0 0.0
  %539 = vmatprep.subr.mxu0 0.0
  %540 = vmatpush1.msra.mxu0 0.0
  %541 = vmatprep.subr.mxu0 0.0
  %542 = vmatpush1.msra.mxu0 0.0
  %543 = vmatprep.subr.mxu0 0.0
  %544 = vmatpush1.msra.mxu0 0.0
  %545 = vmatprep.subr.mxu0 0.0
  %546 = vmatpush1.msra.mxu0 0.0
  %547 = vmatprep.subr.mxu0 0.0
  %548 = vmatpush1.msra.mxu0 0.0
  %549 = vmatprep.subr.mxu0 0.0
  %550 = vmatpush1.msra.mxu0 0.0
  %551 = vmatprep.subr.mxu0 0.0
  %552 = vmatpush1.msra.mxu0 0.0
  %553 = vmatprep.subr.mxu0 0.0
  %554 = vmatpush1.msra.mxu0 0.0
  %555 = vmatprep.subr.mxu0 0.0
  %556 = vmatpush1.msra.mxu0 0.0
  %557 = vmatprep.subr.mxu0 0.0
  %558 = vmatpush1.msra.mxu0 0.0
  %559 = vmatprep.mubr.f32.mxu0 0.0
  %560 = vmatmul.mubr.f32.gmra.mrb[0].mxu0 %v493
  %v561 = vpop.f32.mrb[0].mxu0
  %v562 = vadd.f32 0.0, %v561
  %v563 = vpop.f32.mrb[0].mxu0
  %564 = vdwg.mxu0
  %v565 = vmul.f32 %v562, 0.25
  %vm566 = vcmp.gt.f32.partialorder %v253, 0.5
  %v567 = vsel %vm566, 1, 0
  %568 = vset.pattern.permute.xlu0 0
  %569 = vperm.xlu0 %568, %v567
  %v570 = vpop.permute.xlu0 %569
  %vm571 = vcmp.eq.s32.totalorder %v570, 1
  %v572 = vsel %vm571, -1e+30, %v565
  %v573 = vsel %vm375, %v572, -inf
  %v574 = vrot.slane %v573, 4
  %v575 = vmax.f32 %v573, %v574
  %v576 = vrot.slane %v575, 2
  %v577 = vmax.f32 %v575, %v576
  %v578 = vrot.slane %v577, 1
  %v579 = vmax.f32 %v577, %v578
  %v580 = vsub.f32 %v572, %v579
  %v581 = vmul.f32 %v580, 1.442695
  %v582 = vpow.pop %v581
  %v583 = vsel %vm375, %v582, 0.0
  %v584 = vrot.slane %v583, 4
  %v585 = vadd.f32 %v583, %v584
  %v586 = vrot.slane %v585, 2
  %v587 = vadd.f32 %v585, %v586
  %v588 = vrot.slane %v587, 1
  %v589 = vadd.f32 %v587, %v588
  %v590 = vrcp.pop %v589
  %v591 = vmul.f32 %v582, %v590
  %593 = vrot.lane.b32.xlu0 %v591, 2
  %v594 = vpop.permute.xlu0 %593
  %vm596 = vcmask 31760
  %597 = vst.msk [vmem:[%s15] sm:$0xff] %vm596, %v594
  %v598 = vsel %vm375, %v591, 0
  %600 = vmatprep.subr.mxu0 0.0
  %601 = vmatpush1.msra.mxu0 %v401
  %602 = vmatprep.subr.mxu0 0.0
  %603 = vmatpush1.msra.mxu0 0.0
  %604 = vmatprep.subr.mxu0 0.0
  %605 = vmatpush1.msra.mxu0 0.0
  %606 = vmatprep.subr.mxu0 0.0
  %607 = vmatpush1.msra.mxu0 0.0
  %608 = vmatprep.subr.mxu0 0.0
  %609 = vmatpush1.msra.mxu0 0.0
  %610 = vmatprep.subr.mxu0 0.0
  %611 = vmatpush1.msra.mxu0 0.0
  %612 = vmatprep.subr.mxu0 0.0
  %613 = vmatpush1.msra.mxu0 0.0
  %614 = vmatprep.subr.mxu0 0.0
  %615 = vmatpush1.msra.mxu0 0.0
  %616 = vmatprep.subr.mxu0 0.0
  %617 = vmatpush1.msra.mxu0 0.0
  %618 = vmatprep.subr.mxu0 0.0
  %619 = vmatpush1.msra.mxu0 0.0
  %620 = vmatprep.subr.mxu0 0.0
  %621 = vmatpush1.msra.mxu0 0.0
  %622 = vmatprep.subr.mxu0 0.0
  %623 = vmatpush1.msra.mxu0 0.0
  %624 = vmatprep.subr.mxu0 0.0
  %625 = vmatpush1.msra.mxu0 0.0
  %626 = vmatprep.subr.mxu0 0.0
  %627 = vmatpush1.msra.mxu0 0.0
  %628 = vmatprep.subr.mxu0 0.0
  %629 = vmatpush1.msra.mxu0 0.0
  %630 = vmatprep.subr.mxu0 0.0
  %631 = vmatpush1.msra.mxu0 0.0
  %632 = vmatprep.subr.mxu0 0.0
  %633 = vmatpush1.msra.mxu0 0.0
  %634 = vmatprep.subr.mxu0 0.0
  %635 = vmatpush1.msra.mxu0 0.0
  %636 = vmatprep.subr.mxu0 0.0
  %637 = vmatpush1.msra.mxu0 0.0
  %638 = vmatprep.subr.mxu0 0.0
  %639 = vmatpush1.msra.mxu0 0.0
  %640 = vmatprep.subr.mxu0 0.0
  %641 = vmatpush1.msra.mxu0 0.0
  %642 = vmatprep.subr.mxu0 0.0
  %643 = vmatpush1.msra.mxu0 0.0
  %644 = vmatprep.subr.mxu0 0.0
  %645 = vmatpush1.msra.mxu0 0.0
  %646 = vmatprep.subr.mxu0 0.0
  %647 = vmatpush1.msra.mxu0 0.0
  %648 = vmatprep.subr.mxu0 0.0
  %649 = vmatpush1.msra.mxu0 0.0
  %650 = vmatprep.subr.mxu0 0.0
  %651 = vmatpush1.msra.mxu0 0.0
  %652 = vmatprep.subr.mxu0 0.0
  %653 = vmatpush1.msra.mxu0 0.0
  %654 = vmatprep.subr.mxu0 0.0
  %655 = vmatpush1.msra.mxu0 0.0
  %656 = vmatprep.subr.mxu0 0.0
  %657 = vmatpush1.msra.mxu0 0.0
  %658 = vmatprep.subr.mxu0 0.0
  %659 = vmatpush1.msra.mxu0 0.0
  %660 = vmatprep.subr.mxu0 0.0
  %661 = vmatpush1.msra.mxu0 0.0
  %662 = vmatprep.subr.mxu0 0.0
  %663 = vmatpush1.msra.mxu0 0.0
  %664 = vmatprep.mubr.f32.mxu0 0.0
  %665 = vmatmul.mubr.f32.gmra.mrb[0].mxu0 %v598
  %v666 = vpop.f32.mrb[0].mxu0
  %v667 = vadd.f32 0.0, %v666
  %v668 = vpop.f32.mrb[0].mxu0
  %669 = vdwg.mxu0
  %671 = vrot.lane.b32.xlu0 %v239, 96
  %v672 = vpop.permute.xlu0 %671
  %v674 = vmul.f32 %v667, %v672
  %v675 = vsel %vm154, %v674, 0.0
  %v676 = vrot.slane %v675, 4
  %v677 = vadd.f32 %v675, %v676
  %v678 = vrot.slane %v677, 2
  %v679 = vadd.f32 %v677, %v678
  %v680 = vrot.slane %v679, 1
  %v681 = vadd.f32 %v679, %v680
  %682 = vst.msk [vmem:[#allocation2 + $0x1] sm:$0x1] %vm485, %v681
  %v683 = vlaneseq
  %v684 = vshrl.u32 %v683, 7
  %v685 = vsub.s32 2, %v684
  %v686 = vrot.slane %v136, %v685
  %v687 = vmul.f32 %v244, %v686
  %v689 = vsel %vm154, %v687, 0
  %691 = vmatprep.subr.mxu0 0.0
  %692 = vmatpush1.msra.mxu0 %v278
  %693 = vmatprep.subr.mxu0 0.0
  %694 = vmatpush1.msra.mxu0 %v279
  %695 = vmatprep.subr.mxu0 0.0
  %696 = vmatpush1.msra.mxu0 %v280
  %697 = vmatprep.subr.mxu0 0.0
  %698 = vmatpush1.msra.mxu0 %v281
  %699 = vmatprep.subr.mxu0 0.0
  %700 = vmatpush1.msra.mxu0 0.0
  %701 = vmatprep.subr.mxu0 0.0
  %702 = vmatpush1.msra.mxu0 0.0
  %703 = vmatprep.subr.mxu0 0.0
  %704 = vmatpush1.msra.mxu0 0.0
  %705 = vmatprep.subr.mxu0 0.0
  %706 = vmatpush1.msra.mxu0 0.0
  %707 = vmatprep.subr.mxu0 0.0
  %708 = vmatpush1.msra.mxu0 0.0
  %709 = vmatprep.subr.mxu0 0.0
  %710 = vmatpush1.msra.mxu0 0.0
  %711 = vmatprep.subr.mxu0 0.0
  %712 = vmatpush1.msra.mxu0 0.0
  %713 = vmatprep.subr.mxu0 0.0
  %714 = vmatpush1.msra.mxu0 0.0
  %715 = vmatprep.subr.mxu0 0.0
  %716 = vmatpush1.msra.mxu0 0.0
  %717 = vmatprep.subr.mxu0 0.0
  %718 = vmatpush1.msra.mxu0 0.0
  %719 = vmatprep.subr.mxu0 0.0
  %720 = vmatpush1.msra.mxu0 0.0
  %721 = vmatprep.subr.mxu0 0.0
  %722 = vmatpush1.msra.mxu0 0.0
  %723 = vmatprep.subr.mxu0 0.0
  %724 = vmatpush1.msra.mxu0 0.0
  %725 = vmatprep.subr.mxu0 0.0
  %726 = vmatpush1.msra.mxu0 0.0
  %727 = vmatprep.subr.mxu0 0.0
  %728 = vmatpush1.msra.mxu0 0.0
  %729 = vmatprep.subr.mxu0 0.0
  %730 = vmatpush1.msra.mxu0 0.0
  %731 = vmatprep.subr.mxu0 0.0
  %732 = vmatpush1.msra.mxu0 0.0
  %733 = vmatprep.subr.mxu0 0.0
  %734 = vmatpush1.msra.mxu0 0.0
  %735 = vmatprep.subr.mxu0 0.0
  %736 = vmatpush1.msra.mxu0 0.0
  %737 = vmatprep.subr.mxu0 0.0
  %738 = vmatpush1.msra.mxu0 0.0
  %739 = vmatprep.subr.mxu0 0.0
  %740 = vmatpush1.msra.mxu0 0.0
  %741 = vmatprep.subr.mxu0 0.0
  %742 = vmatpush1.msra.mxu0 0.0
  %743 = vmatprep.subr.mxu0 0.0
  %744 = vmatpush1.msra.mxu0 0.0
  %745 = vmatprep.subr.mxu0 0.0
  %746 = vmatpush1.msra.mxu0 0.0
  %747 = vmatprep.subr.mxu0 0.0
  %748 = vmatpush1.msra.mxu0 0.0
  %749 = vmatprep.subr.mxu0 0.0
  %750 = vmatpush1.msra.mxu0 0.0
  %751 = vmatprep.subr.mxu0 0.0
  %752 = vmatpush1.msra.mxu0 0.0
  %753 = vmatprep.subr.mxu0 0.0
  %754 = vmatpush1.msra.mxu0 0.0
  %755 = vmatprep.mubr.f32.mxu0 0.0
  %756 = vmatmul.mubr.f32.gmra.mrb[0].mxu0 %v689
  %v757 = vpop.f32.mrb[0].mxu0
  %v758 = vadd.f32 0.0, %v757
  %v759 = vpop.f32.mrb[0].mxu0
  %760 = vdwg.mxu0
  %v761 = vmul.f32 %v758, 0.25
  %vm762 = vcmp.gt.f32.partialorder %v254, 0.5
  %v763 = vsel %vm762, 1, 0
  %764 = vset.pattern.permute.xlu0 0
  %765 = vperm.xlu0 %764, %v763
  %v766 = vpop.permute.xlu0 %765
  %vm767 = vcmp.eq.s32.totalorder %v766, 1
  %v768 = vsel %vm767, -1e+30, %v761
  %v769 = vsel %vm375, %v768, -inf
  %v770 = vrot.slane %v769, 4
  %v771 = vmax.f32 %v769, %v770
  %v772 = vrot.slane %v771, 2
  %v773 = vmax.f32 %v771, %v772
  %v774 = vrot.slane %v773, 1
  %v775 = vmax.f32 %v773, %v774
  %v776 = vsub.f32 %v768, %v775
  %v777 = vmul.f32 %v776, 1.442695
  %v778 = vpow.pop %v777
  %v779 = vsel %vm375, %v778, 0.0
  %v780 = vrot.slane %v779, 4
  %v781 = vadd.f32 %v779, %v780
  %v782 = vrot.slane %v781, 2
  %v783 = vadd.f32 %v781, %v782
  %v784 = vrot.slane %v783, 1
  %v785 = vadd.f32 %v783, %v784
  %v786 = vrcp.pop %v785
  %v787 = vmul.f32 %v778, %v786
  %789 = vrot.lane.b32.xlu0 %v787, 4
  %v790 = vpop.permute.xlu0 %789
  %vm792 = vcmask 48160
  %793 = vst.msk [vmem:[%s15] sm:$0xff] %vm792, %v790
  %v794 = vsel %vm375, %v787, 0
  %796 = vmatprep.subr.mxu0 0.0
  %797 = vmatpush1.msra.mxu0 %v401
  %798 = vmatprep.subr.mxu0 0.0
  %799 = vmatpush1.msra.mxu0 0.0
  %800 = vmatprep.subr.mxu0 0.0
  %801 = vmatpush1.msra.mxu0 0.0
  %802 = vmatprep.subr.mxu0 0.0
  %803 = vmatpush1.msra.mxu0 0.0
  %804 = vmatprep.subr.mxu0 0.0
  %805 = vmatpush1.msra.mxu0 0.0
  %806 = vmatprep.subr.mxu0 0.0
  %807 = vmatpush1.msra.mxu0 0.0
  %808 = vmatprep.subr.mxu0 0.0
  %809 = vmatpush1.msra.mxu0 0.0
  %810 = vmatprep.subr.mxu0 0.0
  %811 = vmatpush1.msra.mxu0 0.0
  %812 = vmatprep.subr.mxu0 0.0
  %813 = vmatpush1.msra.mxu0 0.0
  %814 = vmatprep.subr.mxu0 0.0
  %815 = vmatpush1.msra.mxu0 0.0
  %816 = vmatprep.subr.mxu0 0.0
  %817 = vmatpush1.msra.mxu0 0.0
  %818 = vmatprep.subr.mxu0 0.0
  %819 = vmatpush1.msra.mxu0 0.0
  %820 = vmatprep.subr.mxu0 0.0
  %821 = vmatpush1.msra.mxu0 0.0
  %822 = vmatprep.subr.mxu0 0.0
  %823 = vmatpush1.msra.mxu0 0.0
  %824 = vmatprep.subr.mxu0 0.0
  %825 = vmatpush1.msra.mxu0 0.0
  %826 = vmatprep.subr.mxu0 0.0
  %827 = vmatpush1.msra.mxu0 0.0
  %828 = vmatprep.subr.mxu0 0.0
  %829 = vmatpush1.msra.mxu0 0.0
  %830 = vmatprep.subr.mxu0 0.0
  %831 = vmatpush1.msra.mxu0 0.0
  %832 = vmatprep.subr.mxu0 0.0
  %833 = vmatpush1.msra.mxu0 0.0
  %834 = vmatprep.subr.mxu0 0.0
  %835 = vmatpush1.msra.mxu0 0.0
  %836 = vmatprep.subr.mxu0 0.0
  %837 = vmatpush1.msra.mxu0 0.0
  %838 = vmatprep.subr.mxu0 0.0
  %839 = vmatpush1.msra.mxu0 0.0
  %840 = vmatprep.subr.mxu0 0.0
  %841 = vmatpush1.msra.mxu0 0.0
  %842 = vmatprep.subr.mxu0 0.0
  %843 = vmatpush1.msra.mxu0 0.0
  %844 = vmatprep.subr.mxu0 0.0
  %845 = vmatpush1.msra.mxu0 0.0
  %846 = vmatprep.subr.mxu0 0.0
  %847 = vmatpush1.msra.mxu0 0.0
  %848 = vmatprep.subr.mxu0 0.0
  %849 = vmatpush1.msra.mxu0 0.0
  %850 = vmatprep.subr.mxu0 0.0
  %851 = vmatpush1.msra.mxu0 0.0
  %852 = vmatprep.subr.mxu0 0.0
  %853 = vmatpush1.msra.mxu0 0.0
  %854 = vmatprep.subr.mxu0 0.0
  %855 = vmatpush1.msra.mxu0 0.0
  %856 = vmatprep.subr.mxu0 0.0
  %857 = vmatpush1.msra.mxu0 0.0
  %858 = vmatprep.subr.mxu0 0.0
  %859 = vmatpush1.msra.mxu0 0.0
  %860 = vmatprep.mubr.f32.mxu0 0.0
  %861 = vmatmul.mubr.f32.gmra.mrb[0].mxu0 %v794
  %v862 = vpop.f32.mrb[0].mxu0
  %v863 = vadd.f32 0.0, %v862
  %v864 = vpop.f32.mrb[0].mxu0
  %865 = vdwg.mxu0
  %867 = vrot.lane.b32.xlu0 %v244, 96
  %v868 = vpop.permute.xlu0 %867
  %v870 = vmul.f32 %v863, %v868
  %v871 = vsel %vm154, %v870, 0.0
  %v872 = vrot.slane %v871, 4
  %v873 = vadd.f32 %v871, %v872
  %v874 = vrot.slane %v873, 2
  %v875 = vadd.f32 %v873, %v874
  %v876 = vrot.slane %v875, 1
  %v877 = vadd.f32 %v875, %v876
  %878 = vst.msk [vmem:[#allocation2 + $0x2] sm:$0x1] %vm485, %v877
  %v879 = vlaneseq
  %v880 = vshrl.u32 %v879, 7
  %v881 = vsub.s32 3, %v880
  %v882 = vrot.slane %v136, %v881
  %v883 = vmul.f32 %v249, %v882
  %v885 = vsel %vm154, %v883, 0
  %887 = vmatprep.subr.mxu0 0.0
  %888 = vmatpush1.msra.mxu0 %v278
  %889 = vmatprep.subr.mxu0 0.0
  %890 = vmatpush1.msra.mxu0 %v279
  %891 = vmatprep.subr.mxu0 0.0
  %892 = vmatpush1.msra.mxu0 %v280
  %893 = vmatprep.subr.mxu0 0.0
  %894 = vmatpush1.msra.mxu0 %v281
  %895 = vmatprep.subr.mxu0 0.0
  %896 = vmatpush1.msra.mxu0 0.0
  %897 = vmatprep.subr.mxu0 0.0
  %898 = vmatpush1.msra.mxu0 0.0
  %899 = vmatprep.subr.mxu0 0.0
  %900 = vmatpush1.msra.mxu0 0.0
  %901 = vmatprep.subr.mxu0 0.0
  %902 = vmatpush1.msra.mxu0 0.0
  %903 = vmatprep.subr.mxu0 0.0
  %904 = vmatpush1.msra.mxu0 0.0
  %905 = vmatprep.subr.mxu0 0.0
  %906 = vmatpush1.msra.mxu0 0.0
  %907 = vmatprep.subr.mxu0 0.0
  %908 = vmatpush1.msra.mxu0 0.0
  %909 = vmatprep.subr.mxu0 0.0
  %910 = vmatpush1.msra.mxu0 0.0
  %911 = vmatprep.subr.mxu0 0.0
  %912 = vmatpush1.msra.mxu0 0.0
  %913 = vmatprep.subr.mxu0 0.0
  %914 = vmatpush1.msra.mxu0 0.0
  %915 = vmatprep.subr.mxu0 0.0
  %916 = vmatpush1.msra.mxu0 0.0
  %917 = vmatprep.subr.mxu0 0.0
  %918 = vmatpush1.msra.mxu0 0.0
  %919 = vmatprep.subr.mxu0 0.0
  %920 = vmatpush1.msra.mxu0 0.0
  %921 = vmatprep.subr.mxu0 0.0
  %922 = vmatpush1.msra.mxu0 0.0
  %923 = vmatprep.subr.mxu0 0.0
  %924 = vmatpush1.msra.mxu0 0.0
  %925 = vmatprep.subr.mxu0 0.0
  %926 = vmatpush1.msra.mxu0 0.0
  %927 = vmatprep.subr.mxu0 0.0
  %928 = vmatpush1.msra.mxu0 0.0
  %929 = vmatprep.subr.mxu0 0.0
  %930 = vmatpush1.msra.mxu0 0.0
  %931 = vmatprep.subr.mxu0 0.0
  %932 = vmatpush1.msra.mxu0 0.0
  %933 = vmatprep.subr.mxu0 0.0
  %934 = vmatpush1.msra.mxu0 0.0
  %935 = vmatprep.subr.mxu0 0.0
  %936 = vmatpush1.msra.mxu0 0.0
  %937 = vmatprep.subr.mxu0 0.0
  %938 = vmatpush1.msra.mxu0 0.0
  %939 = vmatprep.subr.mxu0 0.0
  %940 = vmatpush1.msra.mxu0 0.0
  %941 = vmatprep.subr.mxu0 0.0
  %942 = vmatpush1.msra.mxu0 0.0
  %943 = vmatprep.subr.mxu0 0.0
  %944 = vmatpush1.msra.mxu0 0.0
  %945 = vmatprep.subr.mxu0 0.0
  %946 = vmatpush1.msra.mxu0 0.0
  %947 = vmatprep.subr.mxu0 0.0
  %948 = vmatpush1.msra.mxu0 0.0
  %949 = vmatprep.subr.mxu0 0.0
  %950 = vmatpush1.msra.mxu0 0.0
  %951 = vmatprep.mubr.f32.mxu0 0.0
  %952 = vmatmul.mubr.f32.gmra.mrb[0].mxu0 %v885
  %v953 = vpop.f32.mrb[0].mxu0
  %v954 = vadd.f32 0.0, %v953
  %v955 = vpop.f32.mrb[0].mxu0
  %956 = vdwg.mxu0
  %v957 = vmul.f32 %v954, 0.25
  %vm958 = vcmp.gt.f32.partialorder %v255, 0.5
  %v959 = vsel %vm958, 1, 0
  %960 = vset.pattern.permute.xlu0 0
  %961 = vperm.xlu0 %960, %v959
  %v962 = vpop.permute.xlu0 %961
  %vm963 = vcmp.eq.s32.totalorder %v962, 1
  %v964 = vsel %vm963, -1e+30, %v957
  %v965 = vsel %vm375, %v964, -inf
  %v966 = vrot.slane %v965, 4
  %v967 = vmax.f32 %v965, %v966
  %v968 = vrot.slane %v967, 2
  %v969 = vmax.f32 %v967, %v968
  %v970 = vrot.slane %v969, 1
  %v971 = vmax.f32 %v969, %v970
  %v972 = vsub.f32 %v964, %v971
  %v973 = vmul.f32 %v972, 1.442695
  %v974 = vpow.pop %v973
  %v975 = vsel %vm375, %v974, 0.0
  %v976 = vrot.slane %v975, 4
  %v977 = vadd.f32 %v975, %v976
  %v978 = vrot.slane %v977, 2
  %v979 = vadd.f32 %v977, %v978
  %v980 = vrot.slane %v979, 1
  %v981 = vadd.f32 %v979, %v980
  %v982 = vrcp.pop %v981
  %v983 = vmul.f32 %v974, %v982
  %985 = vrot.lane.b32.xlu0 %v983, 6
  %v986 = vpop.permute.xlu0 %985
  %vm988 = vcmask 64560
  %989 = vst.msk [vmem:[%s15] sm:$0xff] %vm988, %v986
  %v990 = vsel %vm375, %v983, 0
  %992 = vmatprep.subr.mxu0 0.0
  %993 = vmatpush1.msra.mxu0 %v401
  %994 = vmatprep.subr.mxu0 0.0
  %995 = vmatpush1.msra.mxu0 0.0
  %996 = vmatprep.subr.mxu0 0.0
  %997 = vmatpush1.msra.mxu0 0.0
  %998 = vmatprep.subr.mxu0 0.0
  %999 = vmatpush1.msra.mxu0 0.0
  %1000 = vmatprep.subr.mxu0 0.0
  %1001 = vmatpush1.msra.mxu0 0.0
  %1002 = vmatprep.subr.mxu0 0.0
  %1003 = vmatpush1.msra.mxu0 0.0
  %1004 = vmatprep.subr.mxu0 0.0
  %1005 = vmatpush1.msra.mxu0 0.0
  %1006 = vmatprep.subr.mxu0 0.0
  %1007 = vmatpush1.msra.mxu0 0.0
  %1008 = vmatprep.subr.mxu0 0.0
  %1009 = vmatpush1.msra.mxu0 0.0
  %1010 = vmatprep.subr.mxu0 0.0
  %1011 = vmatpush1.msra.mxu0 0.0
  %1012 = vmatprep.subr.mxu0 0.0
  %1013 = vmatpush1.msra.mxu0 0.0
  %1014 = vmatprep.subr.mxu0 0.0
  %1015 = vmatpush1.msra.mxu0 0.0
  %1016 = vmatprep.subr.mxu0 0.0
  %1017 = vmatpush1.msra.mxu0 0.0
  %1018 = vmatprep.subr.mxu0 0.0
  %1019 = vmatpush1.msra.mxu0 0.0
  %1020 = vmatprep.subr.mxu0 0.0
  %1021 = vmatpush1.msra.mxu0 0.0
  %1022 = vmatprep.subr.mxu0 0.0
  %1023 = vmatpush1.msra.mxu0 0.0
  %1024 = vmatprep.subr.mxu0 0.0
  %1025 = vmatpush1.msra.mxu0 0.0
  %1026 = vmatprep.subr.mxu0 0.0
  %1027 = vmatpush1.msra.mxu0 0.0
  %1028 = vmatprep.subr.mxu0 0.0
  %1029 = vmatpush1.msra.mxu0 0.0
  %1030 = vmatprep.subr.mxu0 0.0
  %1031 = vmatpush1.msra.mxu0 0.0
  %1032 = vmatprep.subr.mxu0 0.0
  %1033 = vmatpush1.msra.mxu0 0.0
  %1034 = vmatprep.subr.mxu0 0.0
  %1035 = vmatpush1.msra.mxu0 0.0
  %1036 = vmatprep.subr.mxu0 0.0
  %1037 = vmatpush1.msra.mxu0 0.0
  %1038 = vmatprep.subr.mxu0 0.0
  %1039 = vmatpush1.msra.mxu0 0.0
  %1040 = vmatprep.subr.mxu0 0.0
  %1041 = vmatpush1.msra.mxu0 0.0
  %1042 = vmatprep.subr.mxu0 0.0
  %1043 = vmatpush1.msra.mxu0 0.0
  %1044 = vmatprep.subr.mxu0 0.0
  %1045 = vmatpush1.msra.mxu0 0.0
  %1046 = vmatprep.subr.mxu0 0.0
  %1047 = vmatpush1.msra.mxu0 0.0
  %1048 = vmatprep.subr.mxu0 0.0
  %1049 = vmatpush1.msra.mxu0 0.0
  %1050 = vmatprep.subr.mxu0 0.0
  %1051 = vmatpush1.msra.mxu0 0.0
  %1052 = vmatprep.subr.mxu0 0.0
  %1053 = vmatpush1.msra.mxu0 0.0
  %1054 = vmatprep.subr.mxu0 0.0
  %1055 = vmatpush1.msra.mxu0 0.0
  %1056 = vmatprep.mubr.f32.mxu0 0.0
  %1057 = vmatmul.mubr.f32.gmra.mrb[0].mxu0 %v990
  %v1058 = vpop.f32.mrb[0].mxu0
  %v1059 = vadd.f32 0.0, %v1058
  %v1060 = vpop.f32.mrb[0].mxu0
  %1061 = vdwg.mxu0
  %1063 = vrot.lane.b32.xlu0 %v249, 96
  %v1064 = vpop.permute.xlu0 %1063
  %v1066 = vmul.f32 %v1059, %v1064
  %v1067 = vsel %vm154, %v1066, 0.0
  %v1068 = vrot.slane %v1067, 4
  %v1069 = vadd.f32 %v1067, %v1068
  %v1070 = vrot.slane %v1069, 2
  %v1071 = vadd.f32 %v1069, %v1070
  %v1072 = vrot.slane %v1071, 1
  %v1073 = vadd.f32 %v1071, %v1072
  %1074 = vst.msk [vmem:[#allocation2 + $0x3] sm:$0x1] %vm485, %v1073
  %v1075 = vld [vmem:[#allocation2] sm:$0xf]
  %v1076 = vld [vmem:[%s8] sm:$0xff]
  %v1077 = vld [vmem:[%s8 + $0x8] sm:$0xff]
  %v1078 = vld [vmem:[%s8 + $0x10] sm:$0xff]
  %v1079 = vld [vmem:[%s8 + $0x18] sm:$0xff]
  %v1080 = vld [vmem:[%s8 + $0x20] sm:$0xff]
  %v1081 = vld [vmem:[%s8 + $0x28] sm:$0xff]
  %v1082 = vld [vmem:[%s8 + $0x30] sm:$0xff]
  %v1083 = vld [vmem:[%s8 + $0x38] sm:$0xff]
  %v1084 = vld [vmem:[%s8 + $0x40] sm:$0xff]
  %v1085 = vld [vmem:[%s8 + $0x48] sm:$0xff]
  %v1086 = vld [vmem:[%s8 + $0x50] sm:$0xff]
  %v1087 = vld [vmem:[%s8 + $0x58] sm:$0xff]
  %v1088 = vld [vmem:[%s8 + $0x60] sm:$0xff]
  %v1089 = vld [vmem:[%s8 + $0x68] sm:$0xff]
  %1090 = vmatprep.subr.mxu0 0.0
  %1091 = vmatpush1.msra.mxu0 %v1080
  %1092 = vmatprep.subr.mxu0 0.0
  %1093 = vmatpush1.msra.mxu0 %v1081
  %1094 = vmatprep.subr.mxu0 0.0
  %1095 = vmatpush1.msra.mxu0 %v1082
  %1096 = vmatprep.subr.mxu0 0.0
  %1097 = vmatpush1.msra.mxu0 %v1083
  %1098 = vmatprep.subr.mxu0 0.0
  %1099 = vmatpush1.msra.mxu0 %v1084
  %1100 = vmatprep.subr.mxu0 0.0
  %1101 = vmatpush1.msra.mxu0 %v1085
  %1102 = vmatprep.subr.mxu0 0.0
  %1103 = vmatpush1.msra.mxu0 0.0
  %1104 = vmatprep.subr.mxu0 0.0
  %1105 = vmatpush1.msra.mxu0 0.0
  %1106 = vmatprep.subr.mxu0 0.0
  %1107 = vmatpush1.msra.mxu0 0.0
  %1108 = vmatprep.subr.mxu0 0.0
  %1109 = vmatpush1.msra.mxu0 0.0
  %1110 = vmatprep.subr.mxu0 0.0
  %1111 = vmatpush1.msra.mxu0 0.0
  %1112 = vmatprep.subr.mxu0 0.0
  %1113 = vmatpush1.msra.mxu0 0.0
  %1114 = vmatprep.subr.mxu0 0.0
  %1115 = vmatpush1.msra.mxu0 0.0
  %1116 = vmatprep.subr.mxu0 0.0
  %1117 = vmatpush1.msra.mxu0 0.0
  %1118 = vmatprep.subr.mxu0 0.0
  %1119 = vmatpush1.msra.mxu0 0.0
  %1120 = vmatprep.subr.mxu0 0.0
  %1121 = vmatpush1.msra.mxu0 0.0
  %1122 = vmatprep.subr.mxu0 0.0
  %1123 = vmatpush1.msra.mxu0 0.0
  %1124 = vmatprep.subr.mxu0 0.0
  %1125 = vmatpush1.msra.mxu0 0.0
  %1126 = vmatprep.subr.mxu0 0.0
  %1127 = vmatpush1.msra.mxu0 0.0
  %1128 = vmatprep.subr.mxu0 0.0
  %1129 = vmatpush1.msra.mxu0 0.0
  %1130 = vmatprep.subr.mxu0 0.0
  %1131 = vmatpush1.msra.mxu0 0.0
  %1132 = vmatprep.subr.mxu0 0.0
  %1133 = vmatpush1.msra.mxu0 0.0
  %1134 = vmatprep.subr.mxu0 0.0
  %1135 = vmatpush1.msra.mxu0 0.0
  %1136 = vmatprep.subr.mxu0 0.0
  %1137 = vmatpush1.msra.mxu0 0.0
  %1138 = vmatprep.subr.mxu0 0.0
  %1139 = vmatpush1.msra.mxu0 0.0
  %1140 = vmatprep.subr.mxu0 0.0
  %1141 = vmatpush1.msra.mxu0 0.0
  %1142 = vmatprep.subr.mxu0 0.0
  %1143 = vmatpush1.msra.mxu0 0.0
  %1144 = vmatprep.subr.mxu0 0.0
  %1145 = vmatpush1.msra.mxu0 0.0
  %1146 = vmatprep.subr.mxu0 0.0
  %1147 = vmatpush1.msra.mxu0 0.0
  %1148 = vmatprep.subr.mxu0 0.0
  %1149 = vmatpush1.msra.mxu0 0.0
  %1150 = vmatprep.subr.mxu0 0.0
  %1151 = vmatpush1.msra.mxu0 0.0
  %1152 = vmatprep.subr.mxu0 0.0
  %1153 = vmatpush1.msra.mxu0 0.0
  %1154 = vmatprep.mubr.f32.mxu0 0.0
  %1155 = vmatmul.mubr.f32.gmra.mrb[0].mxu0 %v67
  %v1156 = vpop.f32.mrb[0].mxu0
  %v1157 = vadd.f32 0.0, %v1156
  %v1158 = vpop.f32.mrb[0].mxu0
  %1159 = vdwg.mxu0
  %v1161 = vsel %vm154, %v1075, 0
  %1163 = vmatprep.subr.mxu0 0.0
  %1164 = vmatpush1.msra.mxu0 %v1076
  %1165 = vmatprep.subr.mxu0 0.0
  %1166 = vmatpush1.msra.mxu0 %v1077
  %1167 = vmatprep.subr.mxu0 0.0
  %1168 = vmatpush1.msra.mxu0 %v1078
  %1169 = vmatprep.subr.mxu0 0.0
  %1170 = vmatpush1.msra.mxu0 %v1079
  %1171 = vmatprep.subr.mxu0 0.0
  %1172 = vmatpush1.msra.mxu0 0.0
  %1173 = vmatprep.subr.mxu0 0.0
  %1174 = vmatpush1.msra.mxu0 0.0
  %1175 = vmatprep.subr.mxu0 0.0
  %1176 = vmatpush1.msra.mxu0 0.0
  %1177 = vmatprep.subr.mxu0 0.0
  %1178 = vmatpush1.msra.mxu0 0.0
  %1179 = vmatprep.subr.mxu0 0.0
  %1180 = vmatpush1.msra.mxu0 0.0
  %1181 = vmatprep.subr.mxu0 0.0
  %1182 = vmatpush1.msra.mxu0 0.0
  %1183 = vmatprep.subr.mxu0 0.0
  %1184 = vmatpush1.msra.mxu0 0.0
  %1185 = vmatprep.subr.mxu0 0.0
  %1186 = vmatpush1.msra.mxu0 0.0
  %1187 = vmatprep.subr.mxu0 0.0
  %1188 = vmatpush1.msra.mxu0 0.0
  %1189 = vmatprep.subr.mxu0 0.0
  %1190 = vmatpush1.msra.mxu0 0.0
  %1191 = vmatprep.subr.mxu0 0.0
  %1192 = vmatpush1.msra.mxu0 0.0
  %1193 = vmatprep.subr.mxu0 0.0
  %1194 = vmatpush1.msra.mxu0 0.0
  %1195 = vmatprep.subr.mxu0 0.0
  %1196 = vmatpush1.msra.mxu0 0.0
  %1197 = vmatprep.subr.mxu0 0.0
  %1198 = vmatpush1.msra.mxu0 0.0
  %1199 = vmatprep.subr.mxu0 0.0
  %1200 = vmatpush1.msra.mxu0 0.0
  %1201 = vmatprep.subr.mxu0 0.0
  %1202 = vmatpush1.msra.mxu0 0.0
  %1203 = vmatprep.subr.mxu0 0.0
  %1204 = vmatpush1.msra.mxu0 0.0
  %1205 = vmatprep.subr.mxu0 0.0
  %1206 = vmatpush1.msra.mxu0 0.0
  %1207 = vmatprep.subr.mxu0 0.0
  %1208 = vmatpush1.msra.mxu0 0.0
  %1209 = vmatprep.subr.mxu0 0.0
  %1210 = vmatpush1.msra.mxu0 0.0
  %1211 = vmatprep.subr.mxu0 0.0
  %1212 = vmatpush1.msra.mxu0 0.0
  %1213 = vmatprep.subr.mxu0 0.0
  %1214 = vmatpush1.msra.mxu0 0.0
  %1215 = vmatprep.subr.mxu0 0.0
  %1216 = vmatpush1.msra.mxu0 0.0
  %1217 = vmatprep.subr.mxu0 0.0
  %1218 = vmatpush1.msra.mxu0 0.0
  %1219 = vmatprep.subr.mxu0 0.0
  %1220 = vmatpush1.msra.mxu0 0.0
  %1221 = vmatprep.subr.mxu0 0.0
  %1222 = vmatpush1.msra.mxu0 0.0
  %1223 = vmatprep.subr.mxu0 0.0
  %1224 = vmatpush1.msra.mxu0 0.0
  %1225 = vmatprep.subr.mxu0 0.0
  %1226 = vmatpush1.msra.mxu0 0.0
  %1227 = vmatprep.mubr.f32.mxu0 0.0
  %1228 = vmatmul.mubr.f32.gmra.mrb[0].mxu0 %v1161
  %v1229 = vpop.f32.mrb[0].mxu0
  %v1230 = vadd.f32 %v1157, %v1229
  %v1231 = vpop.f32.mrb[0].mxu0
  %1232 = vdwg.mxu0
  %v1233 = vld [vmem:[%s2] sm:$0xf]
  %v1235 = vsel %vm154, %v1233, 0
  %1237 = vmatprep.subr.mxu0 0.0
  %1238 = vmatpush1.msra.mxu0 %v1086
  %1239 = vmatprep.subr.mxu0 0.0
  %1240 = vmatpush1.msra.mxu0 %v1087
  %1241 = vmatprep.subr.mxu0 0.0
  %1242 = vmatpush1.msra.mxu0 %v1088
  %1243 = vmatprep.subr.mxu0 0.0
  %1244 = vmatpush1.msra.mxu0 %v1089
  %1245 = vmatprep.subr.mxu0 0.0
  %1246 = vmatpush1.msra.mxu0 0.0
  %1247 = vmatprep.subr.mxu0 0.0
  %1248 = vmatpush1.msra.mxu0 0.0
  %1249 = vmatprep.subr.mxu0 0.0
  %1250 = vmatpush1.msra.mxu0 0.0
  %1251 = vmatprep.subr.mxu0 0.0
  %1252 = vmatpush1.msra.mxu0 0.0
  %1253 = vmatprep.subr.mxu0 0.0
  %1254 = vmatpush1.msra.mxu0 0.0
  %1255 = vmatprep.subr.mxu0 0.0
  %1256 = vmatpush1.msra.mxu0 0.0
  %1257 = vmatprep.subr.mxu0 0.0
  %1258 = vmatpush1.msra.mxu0 0.0
  %1259 = vmatprep.subr.mxu0 0.0
  %1260 = vmatpush1.msra.mxu0 0.0
  %1261 = vmatprep.subr.mxu0 0.0
  %1262 = vmatpush1.msra.mxu0 0.0
  %1263 = vmatprep.subr.mxu0 0.0
  %1264 = vmatpush1.msra.mxu0 0.0
  %1265 = vmatprep.subr.mxu0 0.0
  %1266 = vmatpush1.msra.mxu0 0.0
  %1267 = vmatprep.subr.mxu0 0.0
  %1268 = vmatpush1.msra.mxu0 0.0
  %1269 = vmatprep.subr.mxu0 0.0
  %1270 = vmatpush1.msra.mxu0 0.0
  %1271 = vmatprep.subr.mxu0 0.0
  %1272 = vmatpush1.msra.mxu0 0.0
  %1273 = vmatprep.subr.mxu0 0.0
  %1274 = vmatpush1.msra.mxu0 0.0
  %1275 = vmatprep.subr.mxu0 0.0
  %1276 = vmatpush1.msra.mxu0 0.0
  %1277 = vmatprep.subr.mxu0 0.0
  %1278 = vmatpush1.msra.mxu0 0.0
  %1279 = vmatprep.subr.mxu0 0.0
  %1280 = vmatpush1.msra.mxu0 0.0
  %1281 = vmatprep.subr.mxu0 0.0
  %1282 = vmatpush1.msra.mxu0 0.0
  %1283 = vmatprep.subr.mxu0 0.0
  %1284 = vmatpush1.msra.mxu0 0.0
  %1285 = vmatprep.subr.mxu0 0.0
  %1286 = vmatpush1.msra.mxu0 0.0
  %1287 = vmatprep.subr.mxu0 0.0
  %1288 = vmatpush1.msra.mxu0 0.0
  %1289 = vmatprep.subr.mxu0 0.0
  %1290 = vmatpush1.msra.mxu0 0.0
  %1291 = vmatprep.subr.mxu0 0.0
  %1292 = vmatpush1.msra.mxu0 0.0
  %1293 = vmatprep.subr.mxu0 0.0
  %1294 = vmatpush1.msra.mxu0 0.0
  %1295 = vmatprep.subr.mxu0 0.0
  %1296 = vmatpush1.msra.mxu0 0.0
  %1297 = vmatprep.subr.mxu0 0.0
  %1298 = vmatpush1.msra.mxu0 0.0
  %1299 = vmatprep.subr.mxu0 0.0
  %1300 = vmatpush1.msra.mxu0 0.0
  %1301 = vmatprep.mubr.f32.mxu0 0.0
  %1302 = vmatmul.mubr.f32.gmra.mrb[0].mxu0 %v1235
  %v1303 = vpop.f32.mrb[0].mxu0
  %v1304 = vadd.f32 0.0, %v1303
  %v1305 = vpop.f32.mrb[0].mxu0
  %1306 = vdwg.mxu0
  %v1307 = vadd.f32 %v1230, %v1304
  %v1308 = vld [vmem:[%s9] sm:$0x1]
  %v1310 = vlaneseq
  %v1311 = vshrl.u32 %v1310, 7
  %v1312 = vsub.s32 0, %v1311
  %v1313 = vrot.slane %v1308, %v1312
  %v1315 = vadd.f32 %v1307, %v1313
  %vm1316 = vcmask 257024
  %v1317 = vsel %vm1316, %v1315, 0.0
  %1318 = vadd.xlane.f32.xlu0 %v1317
  %v1319 = vpop.xlane.xlu0 %1318
  %v1320 = vrcp.pop 32.0
  %v1321 = vmul.f32 %v1319, %v1320
  %v1322 = vsub.f32 %v1315, %v1321
  %v1323 = vmul.f32 %v1322, %v1322
  %v1324 = vsel %vm1316, %v1323, 0.0
  %1325 = vadd.xlane.f32.xlu0 %v1324
  %v1326 = vpop.xlane.xlu0 %1325
  %v1327 = vmul.f32 %v1326, %v1320
  %v1328 = vadd.f32 %v1327, 1e-05
  %v1329 = vrsqrt.pop %v1328
  %v1330 = vmul.f32 %v1322, %v1329
  %v1331 = vld [vmem:[%s10] sm:$0x1]
  %v1333 = vlaneseq
  %v1334 = vshrl.u32 %v1333, 7
  %v1335 = vsub.s32 0, %v1334
  %v1336 = vrot.slane %v1331, %v1335
  %v1338 = vmul.f32 %v1330, %v1336
  %v1339 = vld [vmem:[%s11] sm:$0x1]
  %v1341 = vlaneseq
  %v1342 = vshrl.u32 %v1341, 7
  %v1343 = vsub.s32 0, %v1342
  %v1344 = vrot.slane %v1339, %v1343
  %v1346 = vadd.f32 %v1338, %v1344
  %v1347 = vmul.f32 %v1346, 0.5
  %v1348 = vmul.f32 %v1346, 0.70710677
  %v1349 = vand.u32 2147483647, %v1348
  %v1350 = vmul.f32 %v1349, 0.3275911
  %v1351 = vadd.f32 %v1350, 1.0
  %v1352 = vrcp.pop %v1351
  %v1353 = vmul.f32 1.0, %v1352
  %v1354 = vmul.f32 %v1353, 1.0614054
  %v1355 = vadd.f32 %v1354, -1.4531521
  %v1356 = vmul.f32 %v1355, %v1353
  %v1357 = vadd.f32 %v1356, 1.4214138
  %v1358 = vmul.f32 %v1357, %v1353
  %v1359 = vadd.f32 %v1358, -0.28449672
  %v1360 = vmul.f32 %v1359, %v1353
  %v1361 = vadd.f32 %v1360, 0.2548296
  %v1362 = vmul.f32 %v1361, %v1353
  %v1363 = vsub.f32 0.0, %v1349
  %v1364 = vmul.f32 %v1363, %v1349
  %v1365 = vmul.f32 %v1364, 1.442695
  %v1366 = vpow.pop %v1365
  %v1367 = vmul.f32 %v1362, %v1366
  %v1368 = vsub.f32 1.0, %v1367
  %vm1369 = vcmp.ge.f32.partialorder %v1348, 0.0
  %v1370 = vsub.f32 0.0, %v1368
  %v1371 = vsel %vm1369, %v1368, %v1370
  %v1372 = vadd.f32 %v1371, 1.0
  %v1373 = vmul.f32 %v1347, %v1372
  %v1374 = vld [vmem:[%s12] sm:$0xff]
  %v1375 = vld [vmem:[%s12 + $0x8] sm:$0xff]
  %v1376 = vld [vmem:[%s12 + $0x10] sm:$0xff]
  %v1377 = vld [vmem:[%s12 + $0x18] sm:$0xff]
  %v1378 = vld [vmem:[#allocation3] sm:$0x1]
  %v1380 = vlaneseq
  %v1381 = vshrl.u32 %v1380, 7
  %v1382 = vsub.s32 0, %v1381
  %v1383 = vrot.slane %v1378, %v1382
  %v1386 = vsel %vm154, %v1373, 0
  %1388 = vmatprep.subr.mxu0 0.0
  %1389 = vmatpush1.msra.mxu0 %v1374
  %1390 = vmatprep.subr.mxu0 0.0
  %1391 = vmatpush1.msra.mxu0 %v1375
  %1392 = vmatprep.subr.mxu0 0.0
  %1393 = vmatpush1.msra.mxu0 %v1376
  %1394 = vmatprep.subr.mxu0 0.0
  %1395 = vmatpush1.msra.mxu0 %v1377
  %1396 = vmatprep.subr.mxu0 0.0
  %1397 = vmatpush1.msra.mxu0 0.0
  %1398 = vmatprep.subr.mxu0 0.0
  %1399 = vmatpush1.msra.mxu0 0.0
  %1400 = vmatprep.subr.mxu0 0.0
  %1401 = vmatpush1.msra.mxu0 0.0
  %1402 = vmatprep.subr.mxu0 0.0
  %1403 = vmatpush1.msra.mxu0 0.0
  %1404 = vmatprep.subr.mxu0 0.0
  %1405 = vmatpush1.msra.mxu0 0.0
  %1406 = vmatprep.subr.mxu0 0.0
  %1407 = vmatpush1.msra.mxu0 0.0
  %1408 = vmatprep.subr.mxu0 0.0
  %1409 = vmatpush1.msra.mxu0 0.0
  %1410 = vmatprep.subr.mxu0 0.0
  %1411 = vmatpush1.msra.mxu0 0.0
  %1412 = vmatprep.subr.mxu0 0.0
  %1413 = vmatpush1.msra.mxu0 0.0
  %1414 = vmatprep.subr.mxu0 0.0
  %1415 = vmatpush1.msra.mxu0 0.0
  %1416 = vmatprep.subr.mxu0 0.0
  %1417 = vmatpush1.msra.mxu0 0.0
  %1418 = vmatprep.subr.mxu0 0.0
  %1419 = vmatpush1.msra.mxu0 0.0
  %1420 = vmatprep.subr.mxu0 0.0
  %1421 = vmatpush1.msra.mxu0 0.0
  %1422 = vmatprep.subr.mxu0 0.0
  %1423 = vmatpush1.msra.mxu0 0.0
  %1424 = vmatprep.subr.mxu0 0.0
  %1425 = vmatpush1.msra.mxu0 0.0
  %1426 = vmatprep.subr.mxu0 0.0
  %1427 = vmatpush1.msra.mxu0 0.0
  %1428 = vmatprep.subr.mxu0 0.0
  %1429 = vmatpush1.msra.mxu0 0.0
  %1430 = vmatprep.subr.mxu0 0.0
  %1431 = vmatpush1.msra.mxu0 0.0
  %1432 = vmatprep.subr.mxu0 0.0
  %1433 = vmatpush1.msra.mxu0 0.0
  %1434 = vmatprep.subr.mxu0 0.0
  %1435 = vmatpush1.msra.mxu0 0.0
  %1436 = vmatprep.subr.mxu0 0.0
  %1437 = vmatpush1.msra.mxu0 0.0
  %1438 = vmatprep.subr.mxu0 0.0
  %1439 = vmatpush1.msra.mxu0 0.0
  %1440 = vmatprep.subr.mxu0 0.0
  %1441 = vmatpush1.msra.mxu0 0.0
  %1442 = vmatprep.subr.mxu0 0.0
  %1443 = vmatpush1.msra.mxu0 0.0
  %1444 = vmatprep.subr.mxu0 0.0
  %1445 = vmatpush1.msra.mxu0 0.0
  %1446 = vmatprep.subr.mxu0 0.0
  %1447 = vmatpush1.msra.mxu0 0.0
  %1448 = vmatprep.subr.mxu0 0.0
  %1449 = vmatpush1.msra.mxu0 0.0
  %1450 = vmatprep.subr.mxu0 0.0
  %1451 = vmatpush1.msra.mxu0 0.0
  %1452 = vmatprep.mubr.f32.mxu0 0.0
  %1453 = vmatmul.mubr.f32.gmra.mrb[0].mxu0 %v1386
  %v1454 = vpop.f32.mrb[0].mxu0
  %v1455 = vadd.f32 %v1383, %v1454
  %v1456 = vpop.f32.mrb[0].mxu0
  %1457 = vdwg.mxu0
  %vm1458 = vcmask 3072
  %1459 = vst.msk [vmem:[%s14] sm:$0xf] %vm1458, %v1455
  // Predicated region
  $region58: #{lm_qagnn_forward.5} parent=0 // pred_check
    _
  $region59: #{lm_qagnn_forward.5} parent=0 // pred_check_branch
    %1461 = sbr.rel (0) target = $region61
  $region60: #{lm_qagnn_forward.5} parent=0 // pred_region
    _
  $region61: #{lm_qagnn_forward.5} parent=0 // pred_fallthru
    _
  // Predicated region
  $region62: #{lm_qagnn_forward.5} parent=0 // pred_check
    _
  $region63: #{lm_qagnn_forward.5} parent=0 // pred_check_branch
    %1463 = sbr.rel (0) target = $region65
  $region64: #{lm_qagnn_forward.5} parent=0 // pred_region
    _
  $region65: #{lm_qagnn_forward.5} parent=0 // pred_fallthru
    _
  // Predicated region
  $region66: #{lm_qagnn_forward.5} parent=0 // pred_check
    _
  $region67: #{lm_qagnn_forward.5} parent=0 // pred_check_branch
    %1465 = sbr.rel (0) target = $region69
  $region68: #{lm_qagnn_forward.5} parent=0 // pred_region
    _
  $region69: #{lm_qagnn_forward.5} parent=0 // pred_fallthru
    _
  // Predicated region
  $region70: #{lm_qagnn_forward.5} parent=0 // pred_check
    _
  $region71: #{lm_qagnn_forward.5} parent=0 // pred_check_branch
    %1467 = sbr.rel (0) target = $region73
  $region72: #{lm_qagnn_forward.5} parent=0 // pred_region
    _
  $region73: #{lm_qagnn_forward.5} parent=0 // pred_fallthru
    _

// kernel: lm_qagnn_forward.4
$region0: #{lm_qagnn_forward.4}
  #allocation0 [shape = 'u32[]', space=smem, size = 0x4, offset = 0x4, fixed_abs, tag = 'smem constant byte address 0x4 - core index']
  #allocation1 [shape = 'u32[144,128]{1,0:T(1,128)}', space=vmem, size = 0x12000, scoped, tag = 'internal scratch']
  #allocation2 [shape = 'f32[32,32]{1,0:T(8,128)}', space=vmem, size = 0x4000, scoped, tag = 'scratch operand']
  %s0 = inlined_call_operand.vmem [shape: f32[4,48], index: 0, kind: input, shape index: {}]
  %s1 = inlined_call_operand.vmem [shape: f32[28,32], index: 1, kind: input, shape index: {}]
  %s2 = inlined_call_operand.vmem [shape: f32[32,20], index: 2, kind: input, shape index: {}]
  %s3 = inlined_call_operand.vmem [shape: f32[52,15], index: 3, kind: input, shape index: {}]
  %s4 = inlined_call_operand.vmem [shape: s32[52,1], index: 4, kind: input, shape index: {}]
  %s5 = inlined_call_operand.vmem [shape: s32[52,1], index: 5, kind: input, shape index: {}]
  %s6 = inlined_call_operand.vmem [shape: s32[1,52], index: 6, kind: input, shape index: {}]
  %s7 = inlined_call_operand.vmem [shape: f32[48,32], index: 7, kind: input, shape index: {}]
  %s8 = inlined_call_operand.vmem [shape: f32[1,32], index: 8, kind: input, shape index: {}]
  %s9 = inlined_call_operand.vmem [shape: f32[20,32], index: 9, kind: input, shape index: {}]
  %s10 = inlined_call_operand.vmem [shape: f32[1,32], index: 10, kind: input, shape index: {}]
  %s11 = inlined_call_operand.vmem [shape: f32[15,32], index: 11, kind: input, shape index: {}]
  %s12 = inlined_call_operand.vmem [shape: f32[1,32], index: 12, kind: input, shape index: {}]
  %s13 = inlined_call_operand.vmem [shape: f32[32,32], index: 13, kind: input, shape index: {}]
  %s14 = inlined_call_operand.vmem [shape: f32[1,32], index: 14, kind: input, shape index: {}]
  %s15 = inlined_call_operand.vmem [shape: f32[320,96], index: 15, kind: input, shape index: {}]
  %s16 = inlined_call_operand.vmem [shape: f32[2,96], index: 16, kind: input, shape index: {}]
  %s17 = inlined_call_operand.vmem [shape: f32[64,32], index: 17, kind: input, shape index: {}]
  %s18 = inlined_call_operand.vmem [shape: f32[2,32], index: 18, kind: input, shape index: {}]
  %s19 = inlined_call_operand.vmem [shape: f32[64,32], index: 19, kind: input, shape index: {}]
  %s20 = inlined_call_operand.vmem [shape: f32[2,32], index: 20, kind: input, shape index: {}]
  %s21 = inlined_call_operand.vmem [shape: f32[32,32], index: 21, kind: input, shape index: {}]
  %s22 = inlined_call_operand.vmem [shape: f32[1,32], index: 22, kind: input, shape index: {}]
  %s23 = inlined_call_operand.vmem [shape: f32[32,32], index: 23, kind: input, shape index: {}]
  %s24 = inlined_call_operand.vmem [shape: f32[1,32], index: 24, kind: input, shape index: {}]
  %s25 = inlined_call_operand.vmem [shape: f32[32,32], index: 25, kind: output, shape index: {}]
  %s26 = sld [smem:[#allocation0]]
  $region110: #{lm_qagnn_forward.4} parent=0
    _
  %s28 = ssub.s32 1, %s26
  %s29 = scalar_select 0, %s28, %s26
  // Predicated region
  $region2: #{lm_qagnn_forward.4} parent=0 // pred_check
    _
  $region3: #{lm_qagnn_forward.4} parent=0 // pred_check_branch
    %31 = sbr.rel (0) target = $region5
  $region4: #{lm_qagnn_forward.4} parent=0 // pred_region
    _
  $region5: #{lm_qagnn_forward.4} parent=0 // pred_fallthru
    _
  // Predicated region
  $region6: #{lm_qagnn_forward.4} parent=0 // pred_check
    _
  $region7: #{lm_qagnn_forward.4} parent=0 // pred_check_branch
    %33 = sbr.rel (0) target = $region9
  $region8: #{lm_qagnn_forward.4} parent=0 // pred_region
    _
  $region9: #{lm_qagnn_forward.4} parent=0 // pred_fallthru
    _
  // Predicated region
  $region10: #{lm_qagnn_forward.4} parent=0 // pred_check
    _
  $region11: #{lm_qagnn_forward.4} parent=0 // pred_check_branch
    %35 = sbr.rel (0) target = $region13
  $region12: #{lm_qagnn_forward.4} parent=0 // pred_region
    _
  $region13: #{lm_qagnn_forward.4} parent=0 // pred_fallthru
    _
  // Predicated region
  $region14: #{lm_qagnn_forward.4} parent=0 // pred_check
    _
  $region15: #{lm_qagnn_forward.4} parent=0 // pred_check_branch
    %37 = sbr.rel (0) target = $region17
  $region16: #{lm_qagnn_forward.4} parent=0 // pred_region
    _
  $region17: #{lm_qagnn_forward.4} parent=0 // pred_fallthru
    _
  // Predicated region
  $region18: #{lm_qagnn_forward.4} parent=0 // pred_check
    _
  $region19: #{lm_qagnn_forward.4} parent=0 // pred_check_branch
    %39 = sbr.rel (0) target = $region21
  $region20: #{lm_qagnn_forward.4} parent=0 // pred_region
    _
  $region21: #{lm_qagnn_forward.4} parent=0 // pred_fallthru
    _
  // Predicated region
  $region22: #{lm_qagnn_forward.4} parent=0 // pred_check
    _
  $region23: #{lm_qagnn_forward.4} parent=0 // pred_check_branch
    %41 = sbr.rel (0) target = $region25
  $region24: #{lm_qagnn_forward.4} parent=0 // pred_region
    _
  $region25: #{lm_qagnn_forward.4} parent=0 // pred_fallthru
    _
  // Predicated region
  $region26: #{lm_qagnn_forward.4} parent=0 // pred_check
    _
  $region27: #{lm_qagnn_forward.4} parent=0 // pred_check_branch
    %43 = sbr.rel (0) target = $region29
  $region28: #{lm_qagnn_forward.4} parent=0 // pred_region
    _
  $region29: #{lm_qagnn_forward.4} parent=0 // pred_fallthru
    _
  // Predicated region
  $region30: #{lm_qagnn_forward.4} parent=0 // pred_check
    _
  $region31: #{lm_qagnn_forward.4} parent=0 // pred_check_branch
    %45 = sbr.rel (0) target = $region33
  $region32: #{lm_qagnn_forward.4} parent=0 // pred_region
    _
  $region33: #{lm_qagnn_forward.4} parent=0 // pred_fallthru
    _
  // Predicated region
  $region34: #{lm_qagnn_forward.4} parent=0 // pred_check
    _
  $region35: #{lm_qagnn_forward.4} parent=0 // pred_check_branch
    %47 = sbr.rel (0) target = $region37
  $region36: #{lm_qagnn_forward.4} parent=0 // pred_region
    _
  $region37: #{lm_qagnn_forward.4} parent=0 // pred_fallthru
    _
  // Predicated region
  $region38: #{lm_qagnn_forward.4} parent=0 // pred_check
    _
  $region39: #{lm_qagnn_forward.4} parent=0 // pred_check_branch
    %49 = sbr.rel (0) target = $region41
  $region40: #{lm_qagnn_forward.4} parent=0 // pred_region
    _
  $region41: #{lm_qagnn_forward.4} parent=0 // pred_fallthru
    _
  // Predicated region
  $region42: #{lm_qagnn_forward.4} parent=0 // pred_check
    _
  $region43: #{lm_qagnn_forward.4} parent=0 // pred_check_branch
    %51 = sbr.rel (0) target = $region45
  $region44: #{lm_qagnn_forward.4} parent=0 // pred_region
    _
  $region45: #{lm_qagnn_forward.4} parent=0 // pred_fallthru
    _
  // Predicated region
  $region46: #{lm_qagnn_forward.4} parent=0 // pred_check
    _
  $region47: #{lm_qagnn_forward.4} parent=0 // pred_check_branch
    %53 = sbr.rel (0) target = $region49
  $region48: #{lm_qagnn_forward.4} parent=0 // pred_region
    _
  $region49: #{lm_qagnn_forward.4} parent=0 // pred_fallthru
    _
  // Predicated region
  $region50: #{lm_qagnn_forward.4} parent=0 // pred_check
    _
  $region51: #{lm_qagnn_forward.4} parent=0 // pred_check_branch
    %55 = sbr.rel (0) target = $region53
  $region52: #{lm_qagnn_forward.4} parent=0 // pred_region
    _
  $region53: #{lm_qagnn_forward.4} parent=0 // pred_fallthru
    _
  // Predicated region
  $region54: #{lm_qagnn_forward.4} parent=0 // pred_check
    _
  $region55: #{lm_qagnn_forward.4} parent=0 // pred_check_branch
    %57 = sbr.rel (0) target = $region57
  $region56: #{lm_qagnn_forward.4} parent=0 // pred_region
    _
  $region57: #{lm_qagnn_forward.4} parent=0 // pred_fallthru
    _
  // Predicated region
  $region58: #{lm_qagnn_forward.4} parent=0 // pred_check
    _
  $region59: #{lm_qagnn_forward.4} parent=0 // pred_check_branch
    %59 = sbr.rel (0) target = $region61
  $region60: #{lm_qagnn_forward.4} parent=0 // pred_region
    _
  $region61: #{lm_qagnn_forward.4} parent=0 // pred_fallthru
    _
  // Predicated region
  $region62: #{lm_qagnn_forward.4} parent=0 // pred_check
    _
  $region63: #{lm_qagnn_forward.4} parent=0 // pred_check_branch
    %61 = sbr.rel (0) target = $region65
  $region64: #{lm_qagnn_forward.4} parent=0 // pred_region
    _
  $region65: #{lm_qagnn_forward.4} parent=0 // pred_fallthru
    _
  // Predicated region
  $region66: #{lm_qagnn_forward.4} parent=0 // pred_check
    _
  $region67: #{lm_qagnn_forward.4} parent=0 // pred_check_branch
    %63 = sbr.rel (0) target = $region69
  $region68: #{lm_qagnn_forward.4} parent=0 // pred_region
    _
  $region69: #{lm_qagnn_forward.4} parent=0 // pred_fallthru
    _
  // Predicated region
  $region70: #{lm_qagnn_forward.4} parent=0 // pred_check
    _
  $region71: #{lm_qagnn_forward.4} parent=0 // pred_check_branch
    %65 = sbr.rel (0) target = $region73
  $region72: #{lm_qagnn_forward.4} parent=0 // pred_region
    _
  $region73: #{lm_qagnn_forward.4} parent=0 // pred_fallthru
    _
  // Predicated region
  $region74: #{lm_qagnn_forward.4} parent=0 // pred_check
    _
  $region75: #{lm_qagnn_forward.4} parent=0 // pred_check_branch
    %67 = sbr.rel (0) target = $region77
  $region76: #{lm_qagnn_forward.4} parent=0 // pred_region
    _
  $region77: #{lm_qagnn_forward.4} parent=0 // pred_fallthru
    _
  // Predicated region
  $region78: #{lm_qagnn_forward.4} parent=0 // pred_check
    _
  $region79: #{lm_qagnn_forward.4} parent=0 // pred_check_branch
    %69 = sbr.rel (0) target = $region81
  $region80: #{lm_qagnn_forward.4} parent=0 // pred_region
    _
  $region81: #{lm_qagnn_forward.4} parent=0 // pred_fallthru
    _
  // Predicated region
  $region82: #{lm_qagnn_forward.4} parent=0 // pred_check
    _
  $region83: #{lm_qagnn_forward.4} parent=0 // pred_check_branch
    %71 = sbr.rel (0) target = $region85
  $region84: #{lm_qagnn_forward.4} parent=0 // pred_region
    _
  $region85: #{lm_qagnn_forward.4} parent=0 // pred_fallthru
    _
  // Predicated region
  $region86: #{lm_qagnn_forward.4} parent=0 // pred_check
    _
  $region87: #{lm_qagnn_forward.4} parent=0 // pred_check_branch
    %73 = sbr.rel (0) target = $region89
  $region88: #{lm_qagnn_forward.4} parent=0 // pred_region
    _
  $region89: #{lm_qagnn_forward.4} parent=0 // pred_fallthru
    _
  // Predicated region
  $region90: #{lm_qagnn_forward.4} parent=0 // pred_check
    _
  $region91: #{lm_qagnn_forward.4} parent=0 // pred_check_branch
    %75 = sbr.rel (0) target = $region93
  $region92: #{lm_qagnn_forward.4} parent=0 // pred_region
    _
  $region93: #{lm_qagnn_forward.4} parent=0 // pred_fallthru
    _
  // Predicated region
  $region94: #{lm_qagnn_forward.4} parent=0 // pred_check
    _
  $region95: #{lm_qagnn_forward.4} parent=0 // pred_check_branch
    %77 = sbr.rel (0) target = $region97
  $region96: #{lm_qagnn_forward.4} parent=0 // pred_region
    _
  $region97: #{lm_qagnn_forward.4} parent=0 // pred_fallthru
    _
  // Predicated region
  $region98: #{lm_qagnn_forward.4} parent=0 // pred_check
    _
  $region99: #{lm_qagnn_forward.4} parent=0 // pred_check_branch
    %79 = sbr.rel (0) target = $region101
  $region100: #{lm_qagnn_forward.4} parent=0 // pred_region
    _
  $region101: #{lm_qagnn_forward.4} parent=0 // pred_fallthru
    _
  %v80 = vld [vmem:[%s0] sm:$0xf]
  %v81 = vld [vmem:[%s7] sm:$0xff]
  %v82 = vld [vmem:[%s7 + $0x8] sm:$0xff]
  %v83 = vld [vmem:[%s7 + $0x10] sm:$0xff]
  %v84 = vld [vmem:[%s7 + $0x18] sm:$0xff]
  %v85 = vld [vmem:[%s7 + $0x20] sm:$0xff]
  %v86 = vld [vmem:[%s7 + $0x28] sm:$0xff]
  %v87 = vld [vmem:[%s8] sm:$0x1]
  %v89 = vlaneseq
  %v90 = vshrl.u32 %v89, 7
  %v91 = vsub.s32 0, %v90
  %v92 = vrot.slane %v87, %v91
  %vm94 = vcmask 392192
  %v96 = vsel %vm94, %v80, 0
  %98 = vmatprep.subr.mxu0 0.0
  %99 = vmatpush1.msra.mxu0 %v81
  %100 = vmatprep.subr.mxu0 0.0
  %101 = vmatpush1.msra.mxu0 %v82
  %102 = vmatprep.subr.mxu0 0.0
  %103 = vmatpush1.msra.mxu0 %v83
  %104 = vmatprep.subr.mxu0 0.0
  %105 = vmatpush1.msra.mxu0 %v84
  %106 = vmatprep.subr.mxu0 0.0
  %107 = vmatpush1.msra.mxu0 %v85
  %108 = vmatprep.subr.mxu0 0.0
  %109 = vmatpush1.msra.mxu0 %v86
  %110 = vmatprep.subr.mxu0 0.0
  %111 = vmatpush1.msra.mxu0 0.0
  %112 = vmatprep.subr.mxu0 0.0
  %113 = vmatpush1.msra.mxu0 0.0
  %114 = vmatprep.subr.mxu0 0.0
  %115 = vmatpush1.msra.mxu0 0.0
  %116 = vmatprep.subr.mxu0 0.0
  %117 = vmatpush1.msra.mxu0 0.0
  %118 = vmatprep.subr.mxu0 0.0
  %119 = vmatpush1.msra.mxu0 0.0
  %120 = vmatprep.subr.mxu0 0.0
  %121 = vmatpush1.msra.mxu0 0.0
  %122 = vmatprep.subr.mxu0 0.0
  %123 = vmatpush1.msra.mxu0 0.0
  %124 = vmatprep.subr.mxu0 0.0
  %125 = vmatpush1.msra.mxu0 0.0
  %126 = vmatprep.subr.mxu0 0.0
  %127 = vmatpush1.msra.mxu0 0.0
  %128 = vmatprep.subr.mxu0 0.0
  %129 = vmatpush1.msra.mxu0 0.0
  %130 = vmatprep.subr.mxu0 0.0
  %131 = vmatpush1.msra.mxu0 0.0
  %132 = vmatprep.subr.mxu0 0.0
  %133 = vmatpush1.msra.mxu0 0.0
  %134 = vmatprep.subr.mxu0 0.0
  %135 = vmatpush1.msra.mxu0 0.0
  %136 = vmatprep.subr.mxu0 0.0
  %137 = vmatpush1.msra.mxu0 0.0
  %138 = vmatprep.subr.mxu0 0.0
  %139 = vmatpush1.msra.mxu0 0.0
  %140 = vmatprep.subr.mxu0 0.0
  %141 = vmatpush1.msra.mxu0 0.0
  %142 = vmatprep.subr.mxu0 0.0
  %143 = vmatpush1.msra.mxu0 0.0
  %144 = vmatprep.subr.mxu0 0.0
  %145 = vmatpush1.msra.mxu0 0.0
  %146 = vmatprep.subr.mxu0 0.0
  %147 = vmatpush1.msra.mxu0 0.0
  %148 = vmatprep.subr.mxu0 0.0
  %149 = vmatpush1.msra.mxu0 0.0
  %150 = vmatprep.subr.mxu0 0.0
  %151 = vmatpush1.msra.mxu0 0.0
  %152 = vmatprep.subr.mxu0 0.0
  %153 = vmatpush1.msra.mxu0 0.0
  %154 = vmatprep.subr.mxu0 0.0
  %155 = vmatpush1.msra.mxu0 0.0
  %156 = vmatprep.subr.mxu0 0.0
  %157 = vmatpush1.msra.mxu0 0.0
  %158 = vmatprep.subr.mxu0 0.0
  %159 = vmatpush1.msra.mxu0 0.0
  %160 = vmatprep.subr.mxu0 0.0
  %161 = vmatpush1.msra.mxu0 0.0
  %162 = vmatprep.mubr.f32.mxu0 0.0
  %163 = vmatmul.mubr.f32.gmra.mrb[0].mxu0 %v96
  %v164 = vpop.f32.mrb[0].mxu0
  %v165 = vadd.f32 %v92, %v164
  %v166 = vpop.f32.mrb[0].mxu0
  %167 = vdwg.mxu0
  %v168 = vmul.f32 %v165, 0.5
  %v169 = vmul.f32 %v165, 0.70710677
  %v170 = vand.u32 2147483647, %v169
  %v171 = vmul.f32 %v170, 0.3275911
  %v172 = vadd.f32 %v171, 1.0
  %v173 = vrcp.pop %v172
  %v174 = vmul.f32 1.0, %v173
  %v175 = vmul.f32 %v174, 1.0614054
  %v176 = vadd.f32 %v175, -1.4531521
  %v177 = vmul.f32 %v176, %v174
  %v178 = vadd.f32 %v177, 1.4214138
  %v179 = vmul.f32 %v178, %v174
  %v180 = vadd.f32 %v179, -0.28449672
  %v181 = vmul.f32 %v180, %v174
  %v182 = vadd.f32 %v181, 0.2548296
  %v183 = vmul.f32 %v182, %v174
  %v184 = vsub.f32 0.0, %v170
  %v185 = vmul.f32 %v184, %v170
  %v186 = vmul.f32 %v185, 1.442695
  %v187 = vpow.pop %v186
  %v188 = vmul.f32 %v183, %v187
  %v189 = vsub.f32 1.0, %v188
  %vm190 = vcmp.ge.f32.partialorder %v169, 0.0
  %v191 = vsub.f32 0.0, %v189
  %v192 = vsel %vm190, %v189, %v191
  %v193 = vadd.f32 %v192, 1.0
  %v194 = vmul.f32 %v168, %v193
  %vm195 = vcmask 253952
  %196 = vst.msk [vmem:[#allocation2] sm:$0x1] %vm195, %v194
  %v197 = vld [vmem:[%s1] sm:$0x7f]
  %vm198 = vcmask 260096
  %199 = vst.msk [vmem:[#allocation2 + $0x1] sm:$0x7f] %vm198, %v197
  %vm200 = vcmask 254977
  %201 = vst.msk [vmem:[#allocation2 + $0x7] sm:$0x2] %vm200, %v194
  %v202 = vld [vmem:[%s1 + $0x7] sm:$0x7f]
  %203 = vst.msk [vmem:[#allocation2 + $0x9] sm:$0x7f] %vm198, %v202
  %vm204 = vcmask 256002
  %205 = vst.msk [vmem:[#allocation2 + $0xe] sm:$0x4] %vm204, %v194
  %v206 = vld [vmem:[%s1 + $0xe] sm:$0x7f]
  %207 = vst.msk [vmem:[#allocation2 + $0x11] sm:$0x7f] %vm198, %v206
  %vm208 = vcmask 257027
  %209 = vst.msk [vmem:[#allocation2 + $0x15] sm:$0x8] %vm208, %v194
  %v210 = vld [vmem:[%s1 + $0x15] sm:$0x7f]
  %211 = vst.msk [vmem:[#allocation2 + $0x19] sm:$0x7f] %vm198, %v210
  %v212 = vld [vmem:[#allocation2] sm:$0xff]
  %v213 = vld [vmem:[#allocation2 + $0x8] sm:$0xff]
  %v214 = vld [vmem:[#allocation2 + $0x10] sm:$0xff]
  %v215 = vld [vmem:[#allocation2 + $0x18] sm:$0xff]
  %v216 = vld [vmem:[%s2] sm:$0xff]
  %v217 = vld [vmem:[%s2 + $0x8] sm:$0xff]
  %v218 = vld [vmem:[%s2 + $0x10] sm:$0xff]
  %v219 = vld [vmem:[%s2 + $0x18] sm:$0xff]
  %v220 = vld [vmem:[%s9] sm:$0xff]
  %v221 = vld [vmem:[%s9 + $0x8] sm:$0xff]
  %v222 = vld [vmem:[%s9 + $0x10] sm:$0xf]
  %v223 = vld [vmem:[%s10] sm:$0x1]
  %v225 = vlaneseq
  %v226 = vshrl.u32 %v225, 7
  %v227 = vsub.s32 0, %v226
  %v228 = vrot.slane %v223, %v227
  %vm230 = vcmask 162816
  %v232 = vsel %vm230, %v216, 0
  %v235 = vsel %vm230, %v217, 0
  %v238 = vsel %vm230, %v218, 0
  %v241 = vsel %vm230, %v219, 0
  %vm243 = vcmask 1043456
  %v245 = vsel %vm243, %v222, 0
  %247 = vmatprep.subr.mxu0 0.0
  %248 = vmatpush1.msra.mxu0 %v220
  %249 = vmatprep.subr.mxu0 0.0
  %250 = vmatpush1.msra.mxu0 %v221
  %251 = vmatprep.subr.mxu0 0.0
  %252 = vmatpush1.msra.mxu0 %v245
  %253 = vmatprep.subr.mxu0 0.0
  %254 = vmatpush1.msra.mxu0 0.0
  %255 = vmatprep.subr.mxu0 0.0
  %256 = vmatpush1.msra.mxu0 0.0
  %257 = vmatprep.subr.mxu0 0.0
  %258 = vmatpush1.msra.mxu0 0.0
  %259 = vmatprep.subr.mxu0 0.0
  %260 = vmatpush1.msra.mxu0 0.0
  %261 = vmatprep.subr.mxu0 0.0
  %262 = vmatpush1.msra.mxu0 0.0
  %263 = vmatprep.subr.mxu0 0.0
  %264 = vmatpush1.msra.mxu0 0.0
  %265 = vmatprep.subr.mxu0 0.0
  %266 = vmatpush1.msra.mxu0 0.0
  %267 = vmatprep.subr.mxu0 0.0
  %268 = vmatpush1.msra.mxu0 0.0
  %269 = vmatprep.subr.mxu0 0.0
  %270 = vmatpush1.msra.mxu0 0.0
  %271 = vmatprep.subr.mxu0 0.0
  %272 = vmatpush1.msra.mxu0 0.0
  %273 = vmatprep.subr.mxu0 0.0
  %274 = vmatpush1.msra.mxu0 0.0
  %275 = vmatprep.subr.mxu0 0.0
  %276 = vmatpush1.msra.mxu0 0.0
  %277 = vmatprep.subr.mxu0 0.0
  %278 = vmatpush1.msra.mxu0 0.0
  %279 = vmatprep.subr.mxu0 0.0
  %280 = vmatpush1.msra.mxu0 0.0
  %281 = vmatprep.subr.mxu0 0.0
  %282 = vmatpush1.msra.mxu0 0.0
  %283 = vmatprep.subr.mxu0 0.0
  %284 = vmatpush1.msra.mxu0 0.0
  %285 = vmatprep.subr.mxu0 0.0
  %286 = vmatpush1.msra.mxu0 0.0
  %287 = vmatprep.subr.mxu0 0.0
  %288 = vmatpush1.msra.mxu0 0.0
  %289 = vmatprep.subr.mxu0 0.0
  %290 = vmatpush1.msra.mxu0 0.0
  %291 = vmatprep.subr.mxu0 0.0
  %292 = vmatpush1.msra.mxu0 0.0
  %293 = vmatprep.subr.mxu0 0.0
  %294 = vmatpush1.msra.mxu0 0.0
  %295 = vmatprep.subr.mxu0 0.0
  %296 = vmatpush1.msra.mxu0 0.0
  %297 = vmatprep.subr.mxu0 0.0
  %298 = vmatpush1.msra.mxu0 0.0
  %299 = vmatprep.subr.mxu0 0.0
  %300 = vmatpush1.msra.mxu0 0.0
  %301 = vmatprep.subr.mxu0 0.0
  %302 = vmatpush1.msra.mxu0 0.0
  %303 = vmatprep.subr.mxu0 0.0
  %304 = vmatpush1.msra.mxu0 0.0
  %305 = vmatprep.subr.mxu0 0.0
  %306 = vmatpush1.msra.mxu0 0.0
  %307 = vmatprep.subr.mxu0 0.0
  %308 = vmatpush1.msra.mxu0 0.0
  %309 = vmatprep.subr.mxu0 0.0
  %310 = vmatpush1.msra.mxu0 0.0
  %311 = vmatprep.mubr.f32.mxu0 0.0
  %312 = vmatmul.mubr.f32.gmra.mrb[0].mxu0 %v232
  %v313 = vpop.f32.mrb[0].mxu0
  %v314 = vadd.f32 %v228, %v313
  %v315 = vpop.f32.mrb[0].mxu0
  %316 = vmatprep.mubr.f32.mxu0 0.0
  %317 = vmatmul.mubr.f32.gmra.mrb[0].mxu0 %v235
  %v318 = vpop.f32.mrb[0].mxu0
  %v319 = vadd.f32 %v228, %v318
  %v320 = vpop.f32.mrb[0].mxu0
  %321 = vmatprep.mubr.f32.mxu0 0.0
  %322 = vmatmul.mubr.f32.gmra.mrb[0].mxu0 %v238
  %v323 = vpop.f32.mrb[0].mxu0
  %v324 = vadd.f32 %v228, %v323
  %v325 = vpop.f32.mrb[0].mxu0
  %326 = vmatprep.mubr.f32.mxu0 0.0
  %327 = vmatmul.mubr.f32.gmra.mrb[0].mxu0 %v241
  %v328 = vpop.f32.mrb[0].mxu0
  %v329 = vadd.f32 %v228, %v328
  %v330 = vpop.f32.mrb[0].mxu0
  %331 = vdwg.mxu0
  %v332 = vmul.f32 %v314, 0.5
  %v333 = vmul.f32 %v319, 0.5
  %v334 = vmul.f32 %v324, 0.5
  %v335 = vmul.f32 %v329, 0.5
  %v336 = vmul.f32 %v314, 0.70710677
  %v337 = vmul.f32 %v319, 0.70710677
  %v338 = vmul.f32 %v324, 0.70710677
  %v339 = vmul.f32 %v329, 0.70710677
  %v340 = vand.u32 2147483647, %v336
  %v341 = vand.u32 2147483647, %v337
  %v342 = vand.u32 2147483647, %v338
  %v343 = vand.u32 2147483647, %v339
  %v344 = vmul.f32 %v340, 0.3275911
  %v345 = vmul.f32 %v341, 0.3275911
  %v346 = vmul.f32 %v342, 0.3275911
  %v347 = vmul.f32 %v343, 0.3275911
  %v348 = vadd.f32 %v344, 1.0
  %v349 = vadd.f32 %v345, 1.0
  %v350 = vadd.f32 %v346, 1.0
  %v351 = vadd.f32 %v347, 1.0
  %v352 = vrcp.pop %v348
  %v353 = vmul.f32 1.0, %v352
  %v354 = vrcp.pop %v349
  %v355 = vmul.f32 1.0, %v354
  %v356 = vrcp.pop %v350
  %v357 = vmul.f32 1.0, %v356
  %v358 = vrcp.pop %v351
  %v359 = vmul.f32 1.0, %v358
  %v360 = vmul.f32 %v353, 1.0614054
  %v361 = vmul.f32 %v355, 1.0614054
  %v362 = vmul.f32 %v357, 1.0614054
  %v363 = vmul.f32 %v359, 1.0614054
  %v364 = vadd.f32 %v360, -1.4531521
  %v365 = vadd.f32 %v361, -1.4531521
  %v366 = vadd.f32 %v362, -1.4531521
  %v367 = vadd.f32 %v363, -1.4531521
  %v368 = vmul.f32 %v364, %v353
  %v369 = vmul.f32 %v365, %v355
  %v370 = vmul.f32 %v366, %v357
  %v371 = vmul.f32 %v367, %v359
  %v372 = vadd.f32 %v368, 1.4214138
  %v373 = vadd.f32 %v369, 1.4214138
  %v374 = vadd.f32 %v370, 1.4214138
  %v375 = vadd.f32 %v371, 1.4214138
  %v376 = vmul.f32 %v372, %v353
  %v377 = vmul.f32 %v373, %v355
  %v378 = vmul.f32 %v374, %v357
  %v379 = vmul.f32 %v375, %v359
  %v380 = vadd.f32 %v376, -0.28449672
  %v381 = vadd.f32 %v377, -0.28449672
  %v382 = vadd.f32 %v378, -0.28449672
  %v383 = vadd.f32 %v379, -0.28449672
  %v384 = vmul.f32 %v380, %v353
  %v385 = vmul.f32 %v381, %v355
  %v386 = vmul.f32 %v382, %v357
  %v387 = vmul.f32 %v383, %v359
  %v388 = vadd.f32 %v384, 0.2548296
  %v389 = vadd.f32 %v385, 0.2548296
  %v390 = vadd.f32 %v386, 0.2548296
  %v391 = vadd.f32 %v387, 0.2548296
  %v392 = vmul.f32 %v388, %v353
  %v393 = vmul.f32 %v389, %v355
  %v394 = vmul.f32 %v390, %v357
  %v395 = vmul.f32 %v391, %v359
  %v396 = vsub.f32 0.0, %v340
  %v397 = vsub.f32 0.0, %v341
  %v398 = vsub.f32 0.0, %v342
  %v399 = vsub.f32 0.0, %v343
  %v400 = vmul.f32 %v396, %v340
  %v401 = vmul.f32 %v397, %v341
  %v402 = vmul.f32 %v398, %v342
  %v403 = vmul.f32 %v399, %v343
  %v404 = vmul.f32 %v400, 1.442695
  %v405 = vpow.pop %v404
  %v406 = vmul.f32 %v401, 1.442695
  %v407 = vpow.pop %v406
  %v408 = vmul.f32 %v402, 1.442695
  %v409 = vpow.pop %v408
  %v410 = vmul.f32 %v403, 1.442695
  %v411 = vpow.pop %v410
  %v412 = vmul.f32 %v392, %v405
  %v413 = vmul.f32 %v393, %v407
  %v414 = vmul.f32 %v394, %v409
  %v415 = vmul.f32 %v395, %v411
  %v416 = vsub.f32 1.0, %v412
  %v417 = vsub.f32 1.0, %v413
  %v418 = vsub.f32 1.0, %v414
  %v419 = vsub.f32 1.0, %v415
  %vm420 = vcmp.ge.f32.partialorder %v336, 0.0
  %vm421 = vcmp.ge.f32.partialorder %v337, 0.0
  %vm422 = vcmp.ge.f32.partialorder %v338, 0.0
  %vm423 = vcmp.ge.f32.partialorder %v339, 0.0
  %v424 = vsub.f32 0.0, %v416
  %v425 = vsub.f32 0.0, %v417
  %v426 = vsub.f32 0.0, %v418
  %v427 = vsub.f32 0.0, %v419
  %v428 = vsel %vm420, %v416, %v424
  %v429 = vsel %vm421, %v417, %v425
  %v430 = vsel %vm422, %v418, %v426
  %v431 = vsel %vm423, %v419, %v427
  %v432 = vadd.f32 %v428, 1.0
  %v433 = vadd.f32 %v429, 1.0
  %v434 = vadd.f32 %v430, 1.0
  %v435 = vadd.f32 %v431, 1.0
  %v436 = vmul.f32 %v332, %v432
  %v437 = vmul.f32 %v333, %v433
  %v438 = vmul.f32 %v334, %v434
  %v439 = vmul.f32 %v335, %v435
  %v440 = vld [vmem:[%s4] sm:$0xff]
  %v441 = vld [vmem:[%s4 + $0x8] sm:$0xff]
  %v442 = vld [vmem:[%s4 + $0x10] sm:$0xff]
  %v443 = vld [vmem:[%s4 + $0x18] sm:$0xff]
  %v444 = vld [vmem:[%s4 + $0x20] sm:$0xff]
  %v445 = vld [vmem:[%s4 + $0x28] sm:$0xff]
  %v446 = vld [vmem:[%s4 + $0x30] sm:$0xf]
  %v447 = vld [vmem:[%s5] sm:$0xff]
  %v448 = vld [vmem:[%s5 + $0x8] sm:$0xff]
  %v449 = vld [vmem:[%s5 + $0x10] sm:$0xff]
  %v450 = vld [vmem:[%s5 + $0x18] sm:$0xff]
  %v451 = vld [vmem:[%s5 + $0x20] sm:$0xff]
  %v452 = vld [vmem:[%s5 + $0x28] sm:$0xff]
  %v453 = vld [vmem:[%s5 + $0x30] sm:$0xf]
  %v454 = vld [vmem:[%s6] sm:$0x1]
  %v455 = vlaneseq
  %v456 = vand.u32 %v455, 127
  %457 = vset.pattern.permute.xlu0 0
  %458 = vperm.xlu0 %457, %v440
  %v459 = vpop.permute.xlu0 %458
  %460 = vset.pattern.permute.xlu0 0
  %461 = vperm.xlu0 %460, %v441
  %v462 = vpop.permute.xlu0 %461
  %463 = vset.pattern.permute.xlu0 0
  %464 = vperm.xlu0 %463, %v442
  %v465 = vpop.permute.xlu0 %464
  %466 = vset.pattern.permute.xlu0 0
  %467 = vperm.xlu0 %466, %v443
  %v468 = vpop.permute.xlu0 %467
  %469 = vset.pattern.permute.xlu0 0
  %470 = vperm.xlu0 %469, %v444
  %v471 = vpop.permute.xlu0 %470
  %472 = vset.pattern.permute.xlu0 0
  %473 = vperm.xlu0 %472, %v445
  %v474 = vpop.permute.xlu0 %473
  %475 = vset.pattern.permute.xlu0 0
  %476 = vperm.xlu0 %475, %v446
  %v477 = vpop.permute.xlu0 %476
  %vm478 = vcmp.eq.s32.totalorder %v456, %v459
  %vm479 = vcmp.eq.s32.totalorder %v456, %v462
  %vm480 = vcmp.eq.s32.totalorder %v456, %v465
  %vm481 = vcmp.eq.s32.totalorder %v456, %v468
  %vm482 = vcmp.eq.s32.totalorder %v456, %v471
  %vm483 = vcmp.eq.s32.totalorder %v456, %v474
  %vm484 = vcmp.eq.s32.totalorder %v456, %v477
  %v485 = vsel %vm478, 1.0, 0.0
  %v486 = vsel %vm479, 1.0, 0.0
  %v487 = vsel %vm480, 1.0, 0.0
  %v488 = vsel %vm481, 1.0, 0.0
  %v489 = vsel %vm482, 1.0, 0.0
  %v490 = vsel %vm483, 1.0, 0.0
  %v491 = vsel %vm484, 1.0, 0.0
  %492 = vset.pattern.permute.xlu0 0
  %493 = vperm.xlu0 %492, %v447
  %v494 = vpop.permute.xlu0 %493
  %495 = vset.pattern.permute.xlu0 0
  %496 = vperm.xlu0 %495, %v448
  %v497 = vpop.permute.xlu0 %496
  %498 = vset.pattern.permute.xlu0 0
  %499 = vperm.xlu0 %498, %v449
  %v500 = vpop.permute.xlu0 %499
  %501 = vset.pattern.permute.xlu0 0
  %502 = vperm.xlu0 %501, %v450
  %v503 = vpop.permute.xlu0 %502
  %504 = vset.pattern.permute.xlu0 0
  %505 = vperm.xlu0 %504, %v451
  %v506 = vpop.permute.xlu0 %505
  %507 = vset.pattern.permute.xlu0 0
  %508 = vperm.xlu0 %507, %v452
  %v509 = vpop.permute.xlu0 %508
  %510 = vset.pattern.permute.xlu0 0
  %511 = vperm.xlu0 %510, %v453
  %v512 = vpop.permute.xlu0 %511
  %vm513 = vcmp.eq.s32.totalorder %v456, %v494
  %vm514 = vcmp.eq.s32.totalorder %v456, %v497
  %vm515 = vcmp.eq.s32.totalorder %v456, %v500
  %vm516 = vcmp.eq.s32.totalorder %v456, %v503
  %vm517 = vcmp.eq.s32.totalorder %v456, %v506
  %vm518 = vcmp.eq.s32.totalorder %v456, %v509
  %vm519 = vcmp.eq.s32.totalorder %v456, %v512
  %v520 = vsel %vm513, 1.0, 0.0
  %v521 = vsel %vm514, 1.0, 0.0
  %v522 = vsel %vm515, 1.0, 0.0
  %v523 = vsel %vm516, 1.0, 0.0
  %v524 = vsel %vm517, 1.0, 0.0
  %v525 = vsel %vm518, 1.0, 0.0
  %v526 = vsel %vm519, 1.0, 0.0
  %v527 = vlaneseq
  %v528 = vshrl.u32 %v527, 7
  %v529 = vsub.s32 0, %v528
  %v530 = vrot.slane %v454, %v529
  %vm531 = vcmp.eq.s32.totalorder %v456, %v530
  %v532 = vsel %vm531, 1.0, 0.0
  %vm533 = vcmask 261120
  %v534 = vsel %vm533, %v485, 0.0
  %v535 = vsel %vm533, %v486, 0.0
  %v536 = vadd.f32 %v534, %v535
  %v537 = vsel %vm533, %v487, 0.0
  %v538 = vadd.f32 %v536, %v537
  %v539 = vsel %vm533, %v488, 0.0
  %v540 = vadd.f32 %v538, %v539
  %v541 = vsel %vm533, %v489, 0.0
  %v542 = vadd.f32 %v540, %v541
  %v543 = vsel %vm533, %v490, 0.0
  %v544 = vadd.f32 %v542, %v543
  %vm545 = vcmask 257024
  %v546 = vsel %vm545, %v491, 0.0
  %v547 = vadd.f32 %v544, %v546
  %v548 = vrot.slane %v547, 4
  %v549 = vadd.f32 %v547, %v548
  %v550 = vrot.slane %v549, 2
  %v551 = vadd.f32 %v549, %v550
  %v552 = vrot.slane %v551, 1
  %v553 = vadd.f32 %v551, %v552
  %v554 = vmul.f32 %v485, %v553
  %v555 = vmul.f32 %v486, %v553
  %v556 = vmul.f32 %v487, %v553
  %v557 = vmul.f32 %v488, %v553
  %v558 = vmul.f32 %v489, %v553
  %v559 = vmul.f32 %v490, %v553
  %v560 = vmul.f32 %v491, %v553
  %v561 = vsel %vm533, %v554, 0.0
  %562 = vadd.xlane.f32.xlu0 %v561
  %v563 = vpop.xlane.xlu0 %562
  %v564 = vsel %vm533, %v555, 0.0
  %565 = vadd.xlane.f32.xlu0 %v564
  %v566 = vpop.xlane.xlu0 %565
  %v567 = vsel %vm533, %v556, 0.0
  %568 = vadd.xlane.f32.xlu0 %v567
  %v569 = vpop.xlane.xlu0 %568
  %v570 = vsel %vm533, %v557, 0.0
  %571 = vadd.xlane.f32.xlu0 %v570
  %v572 = vpop.xlane.xlu0 %571
  %v573 = vsel %vm533, %v558, 0.0
  %574 = vadd.xlane.f32.xlu0 %v573
  %v575 = vpop.xlane.xlu0 %574
  %v576 = vsel %vm533, %v559, 0.0
  %577 = vadd.xlane.f32.xlu0 %v576
  %v578 = vpop.xlane.xlu0 %577
  %v579 = vsel %vm545, %v560, 0.0
  %580 = vadd.xlane.f32.xlu0 %v579
  %v581 = vpop.xlane.xlu0 %580
  %v582 = vlaneseq
  %v583 = vshrl.u32 %v582, 7
  %v584 = vadd.s32 %v583, 8
  %v585 = vadd.s32 %v583, 16
  %v586 = vadd.s32 %v583, 24
  %v587 = vmul.u32 %v456, 8
  %vm588 = vcmp.ge.s32.totalorder %v583, %v587
  %vm589 = vcmp.ge.s32.totalorder %v584, %v587
  %vm590 = vcmp.ge.s32.totalorder %v585, %v587
  %vm591 = vcmp.ge.s32.totalorder %v586, %v587
  %v592 = vadd.s32 %v456, 1
  %v593 = vmul.u32 %v592, 8
  %vm594 = vcmp.lt.s32.totalorder %v583, %v593
  %vm595 = vcmp.lt.s32.totalorder %v584, %v593
  %vm596 = vcmp.lt.s32.totalorder %v585, %v593
  %vm597 = vcmp.lt.s32.totalorder %v586, %v593
  %vm598 = vmand %vm588, %vm594
  %vm599 = vmand %vm589, %vm595
  %vm600 = vmand %vm590, %vm596
  %vm601 = vmand %vm591, %vm597
  %v602 = vsel %vm598, 1.0, 0.0
  %v603 = vsel %vm599, 1.0, 0.0
  %v604 = vsel %vm600, 1.0, 0.0
  %v605 = vsel %vm601, 1.0, 0.0
  %v606 = vld [vmem:[%s3] sm:$0xff]
  %v607 = vld [vmem:[%s3 + $0x8] sm:$0xff]
  %v608 = vld [vmem:[%s3 + $0x10] sm:$0xff]
  %v609 = vld [vmem:[%s3 + $0x18] sm:$0xff]
  %v610 = vld [vmem:[%s3 + $0x20] sm:$0xff]
  %v611 = vld [vmem:[%s3 + $0x28] sm:$0xff]
  %v612 = vld [vmem:[%s3 + $0x30] sm:$0xf]
  %v613 = vld [vmem:[%s11] sm:$0xff]
  %v614 = vld [vmem:[%s11 + $0x8] sm:$0x7f]
  %v615 = vld [vmem:[%s12] sm:$0x1]
  %v617 = vlaneseq
  %v618 = vshrl.u32 %v617, 7
  %v619 = vsub.s32 0, %v618
  %v620 = vrot.slane %v615, %v619
  %vm622 = vcmask 121856
  %v624 = vsel %vm622, %v606, 0
  %v627 = vsel %vm622, %v607, 0
  %v630 = vsel %vm622, %v608, 0
  %v633 = vsel %vm622, %v609, 0
  %v636 = vsel %vm622, %v610, 0
  %v639 = vsel %vm622, %v611, 0
  %v642 = vsel %vm622, %v612, 0
  %vm644 = vcmask 1046528
  %v646 = vsel %vm644, %v614, 0
  %648 = vmatprep.subr.mxu0 0.0
  %649 = vmatpush1.msra.mxu0 %v613
  %650 = vmatprep.subr.mxu0 0.0
  %651 = vmatpush1.msra.mxu0 %v646
  %652 = vmatprep.subr.mxu0 0.0
  %653 = vmatpush1.msra.mxu0 0.0
  %654 = vmatprep.subr.mxu0 0.0
  %655 = vmatpush1.msra.mxu0 0.0
  %656 = vmatprep.subr.mxu0 0.0
  %657 = vmatpush1.msra.mxu0 0.0
  %658 = vmatprep.subr.mxu0 0.0
  %659 = vmatpush1.msra.mxu0 0.0
  %660 = vmatprep.subr.mxu0 0.0
  %661 = vmatpush1.msra.mxu0 0.0
  %662 = vmatprep.subr.mxu0 0.0
  %663 = vmatpush1.msra.mxu0 0.0
  %664 = vmatprep.subr.mxu0 0.0
  %665 = vmatpush1.msra.mxu0 0.0
  %666 = vmatprep.subr.mxu0 0.0
  %667 = vmatpush1.msra.mxu0 0.0
  %668 = vmatprep.subr.mxu0 0.0
  %669 = vmatpush1.msra.mxu0 0.0
  %670 = vmatprep.subr.mxu0 0.0
  %671 = vmatpush1.msra.mxu0 0.0
  %672 = vmatprep.subr.mxu0 0.0
  %673 = vmatpush1.msra.mxu0 0.0
  %674 = vmatprep.subr.mxu0 0.0
  %675 = vmatpush1.msra.mxu0 0.0
  %676 = vmatprep.subr.mxu0 0.0
  %677 = vmatpush1.msra.mxu0 0.0
  %678 = vmatprep.subr.mxu0 0.0
  %679 = vmatpush1.msra.mxu0 0.0
  %680 = vmatprep.subr.mxu0 0.0
  %681 = vmatpush1.msra.mxu0 0.0
  %682 = vmatprep.subr.mxu0 0.0
  %683 = vmatpush1.msra.mxu0 0.0
  %684 = vmatprep.subr.mxu0 0.0
  %685 = vmatpush1.msra.mxu0 0.0
  %686 = vmatprep.subr.mxu0 0.0
  %687 = vmatpush1.msra.mxu0 0.0
  %688 = vmatprep.subr.mxu0 0.0
  %689 = vmatpush1.msra.mxu0 0.0
  %690 = vmatprep.subr.mxu0 0.0
  %691 = vmatpush1.msra.mxu0 0.0
  %692 = vmatprep.subr.mxu0 0.0
  %693 = vmatpush1.msra.mxu0 0.0
  %694 = vmatprep.subr.mxu0 0.0
  %695 = vmatpush1.msra.mxu0 0.0
  %696 = vmatprep.subr.mxu0 0.0
  %697 = vmatpush1.msra.mxu0 0.0
  %698 = vmatprep.subr.mxu0 0.0
  %699 = vmatpush1.msra.mxu0 0.0
  %700 = vmatprep.subr.mxu0 0.0
  %701 = vmatpush1.msra.mxu0 0.0
  %702 = vmatprep.subr.mxu0 0.0
  %703 = vmatpush1.msra.mxu0 0.0
  %704 = vmatprep.subr.mxu0 0.0
  %705 = vmatpush1.msra.mxu0 0.0
  %706 = vmatprep.subr.mxu0 0.0
  %707 = vmatpush1.msra.mxu0 0.0
  %708 = vmatprep.subr.mxu0 0.0
  %709 = vmatpush1.msra.mxu0 0.0
  %710 = vmatprep.subr.mxu0 0.0
  %711 = vmatpush1.msra.mxu0 0.0
  %712 = vmatprep.mubr.f32.mxu0 0.0
  %713 = vmatmul.mubr.f32.gmra.mrb[0].mxu0 %v624
  %v714 = vpop.f32.mrb[0].mxu0
  %v715 = vadd.f32 %v620, %v714
  %v716 = vpop.f32.mrb[0].mxu0
  %717 = vmatprep.mubr.f32.mxu0 0.0
  %718 = vmatmul.mubr.f32.gmra.mrb[0].mxu0 %v627
  %v719 = vpop.f32.mrb[0].mxu0
  %v720 = vadd.f32 %v620, %v719
  %v721 = vpop.f32.mrb[0].mxu0
  %722 = vmatprep.mubr.f32.mxu0 0.0
  %723 = vmatmul.mubr.f32.gmra.mrb[0].mxu0 %v630
  %v724 = vpop.f32.mrb[0].mxu0
  %v725 = vadd.f32 %v620, %v724
  %v726 = vpop.f32.mrb[0].mxu0
  %727 = vmatprep.mubr.f32.mxu0 0.0
  %728 = vmatmul.mubr.f32.gmra.mrb[0].mxu0 %v633
  %v729 = vpop.f32.mrb[0].mxu0
  %v730 = vadd.f32 %v620, %v729
  %v731 = vpop.f32.mrb[0].mxu0
  %732 = vmatprep.mubr.f32.mxu0 0.0
  %733 = vmatmul.mubr.f32.gmra.mrb[0].mxu0 %v636
  %v734 = vpop.f32.mrb[0].mxu0
  %v735 = vadd.f32 %v620, %v734
  %v736 = vpop.f32.mrb[0].mxu0
  %737 = vmatprep.mubr.f32.mxu0 0.0
  %738 = vmatmul.mubr.f32.gmra.mrb[0].mxu0 %v639
  %v739 = vpop.f32.mrb[0].mxu0
  %v740 = vadd.f32 %v620, %v739
  %v741 = vpop.f32.mrb[0].mxu0
  %742 = vmatprep.mubr.f32.mxu0 0.0
  %743 = vmatmul.mubr.f32.gmra.mrb[0].mxu0 %v642
  %v744 = vpop.f32.mrb[0].mxu0
  %v745 = vadd.f32 %v620, %v744
  %v746 = vpop.f32.mrb[0].mxu0
  %747 = vdwg.mxu0
  %v748 = vmax.f32 %v715, 0.0
  %v749 = vmax.f32 %v720, 0.0
  %v750 = vmax.f32 %v725, 0.0
  %v751 = vmax.f32 %v730, 0.0
  %v752 = vmax.f32 %v735, 0.0
  %v753 = vmax.f32 %v740, 0.0
  %v754 = vmax.f32 %v745, 0.0
  %v755 = vld [vmem:[%s13] sm:$0xff]
  %v756 = vld [vmem:[%s13 + $0x8] sm:$0xff]
  %v757 = vld [vmem:[%s13 + $0x10] sm:$0xff]
  %v758 = vld [vmem:[%s13 + $0x18] sm:$0xff]
  %v759 = vld [vmem:[%s14] sm:$0x1]
  %v761 = vlaneseq
  %v762 = vshrl.u32 %v761, 7
  %v763 = vsub.s32 0, %v762
  %v764 = vrot.slane %v759, %v763
  %v767 = vsel %vm533, %v748, 0
  %v770 = vsel %vm533, %v749, 0
  %v773 = vsel %vm533, %v750, 0
  %v776 = vsel %vm533, %v751, 0
  %v779 = vsel %vm533, %v752, 0
  %v782 = vsel %vm533, %v753, 0
  %v785 = vsel %vm533, %v754, 0
  %787 = vmatprep.subr.mxu0 0.0
  %788 = vmatpush1.msra.mxu0 %v755
  %789 = vmatprep.subr.mxu0 0.0
  %790 = vmatpush1.msra.mxu0 %v756
  %791 = vmatprep.subr.mxu0 0.0
  %792 = vmatpush1.msra.mxu0 %v757
  %793 = vmatprep.subr.mxu0 0.0
  %794 = vmatpush1.msra.mxu0 %v758
  %795 = vmatprep.subr.mxu0 0.0
  %796 = vmatpush1.msra.mxu0 0.0
  %797 = vmatprep.subr.mxu0 0.0
  %798 = vmatpush1.msra.mxu0 0.0
  %799 = vmatprep.subr.mxu0 0.0
  %800 = vmatpush1.msra.mxu0 0.0
  %801 = vmatprep.subr.mxu0 0.0
  %802 = vmatpush1.msra.mxu0 0.0
  %803 = vmatprep.subr.mxu0 0.0
  %804 = vmatpush1.msra.mxu0 0.0
  %805 = vmatprep.subr.mxu0 0.0
  %806 = vmatpush1.msra.mxu0 0.0
  %807 = vmatprep.subr.mxu0 0.0
  %808 = vmatpush1.msra.mxu0 0.0
  %809 = vmatprep.subr.mxu0 0.0
  %810 = vmatpush1.msra.mxu0 0.0
  %811 = vmatprep.subr.mxu0 0.0
  %812 = vmatpush1.msra.mxu0 0.0
  %813 = vmatprep.subr.mxu0 0.0
  %814 = vmatpush1.msra.mxu0 0.0
  %815 = vmatprep.subr.mxu0 0.0
  %816 = vmatpush1.msra.mxu0 0.0
  %817 = vmatprep.subr.mxu0 0.0
  %818 = vmatpush1.msra.mxu0 0.0
  %819 = vmatprep.subr.mxu0 0.0
  %820 = vmatpush1.msra.mxu0 0.0
  %821 = vmatprep.subr.mxu0 0.0
  %822 = vmatpush1.msra.mxu0 0.0
  %823 = vmatprep.subr.mxu0 0.0
  %824 = vmatpush1.msra.mxu0 0.0
  %825 = vmatprep.subr.mxu0 0.0
  %826 = vmatpush1.msra.mxu0 0.0
  %827 = vmatprep.subr.mxu0 0.0
  %828 = vmatpush1.msra.mxu0 0.0
  %829 = vmatprep.subr.mxu0 0.0
  %830 = vmatpush1.msra.mxu0 0.0
  %831 = vmatprep.subr.mxu0 0.0
  %832 = vmatpush1.msra.mxu0 0.0
  %833 = vmatprep.subr.mxu0 0.0
  %834 = vmatpush1.msra.mxu0 0.0
  %835 = vmatprep.subr.mxu0 0.0
  %836 = vmatpush1.msra.mxu0 0.0
  %837 = vmatprep.subr.mxu0 0.0
  %838 = vmatpush1.msra.mxu0 0.0
  %839 = vmatprep.subr.mxu0 0.0
  %840 = vmatpush1.msra.mxu0 0.0
  %841 = vmatprep.subr.mxu0 0.0
  %842 = vmatpush1.msra.mxu0 0.0
  %843 = vmatprep.subr.mxu0 0.0
  %844 = vmatpush1.msra.mxu0 0.0
  %845 = vmatprep.subr.mxu0 0.0
  %846 = vmatpush1.msra.mxu0 0.0
  %847 = vmatprep.subr.mxu0 0.0
  %848 = vmatpush1.msra.mxu0 0.0
  %849 = vmatprep.subr.mxu0 0.0
  %850 = vmatpush1.msra.mxu0 0.0
  %851 = vmatprep.mubr.f32.mxu0 0.0
  %852 = vmatmul.mubr.f32.gmra.mrb[0].mxu0 %v767
  %v853 = vpop.f32.mrb[0].mxu0
  %v854 = vadd.f32 %v764, %v853
  %v855 = vpop.f32.mrb[0].mxu0
  %856 = vmatprep.mubr.f32.mxu0 0.0
  %857 = vmatmul.mubr.f32.gmra.mrb[0].mxu0 %v770
  %v858 = vpop.f32.mrb[0].mxu0
  %v859 = vadd.f32 %v764, %v858
  %v860 = vpop.f32.mrb[0].mxu0
  %861 = vmatprep.mubr.f32.mxu0 0.0
  %862 = vmatmul.mubr.f32.gmra.mrb[0].mxu0 %v773
  %v863 = vpop.f32.mrb[0].mxu0
  %v864 = vadd.f32 %v764, %v863
  %v865 = vpop.f32.mrb[0].mxu0
  %866 = vmatprep.mubr.f32.mxu0 0.0
  %867 = vmatmul.mubr.f32.gmra.mrb[0].mxu0 %v776
  %v868 = vpop.f32.mrb[0].mxu0
  %v869 = vadd.f32 %v764, %v868
  %v870 = vpop.f32.mrb[0].mxu0
  %871 = vmatprep.mubr.f32.mxu0 0.0
  %872 = vmatmul.mubr.f32.gmra.mrb[0].mxu0 %v779
  %v873 = vpop.f32.mrb[0].mxu0
  %v874 = vadd.f32 %v764, %v873
  %v875 = vpop.f32.mrb[0].mxu0
  %876 = vmatprep.mubr.f32.mxu0 0.0
  %877 = vmatmul.mubr.f32.gmra.mrb[0].mxu0 %v782
  %v878 = vpop.f32.mrb[0].mxu0
  %v879 = vadd.f32 %v764, %v878
  %v880 = vpop.f32.mrb[0].mxu0
  %881 = vmatprep.mubr.f32.mxu0 0.0
  %882 = vmatmul.mubr.f32.gmra.mrb[0].mxu0 %v785
  %v883 = vpop.f32.mrb[0].mxu0
  %v884 = vadd.f32 %v764, %v883
  %v885 = vpop.f32.mrb[0].mxu0
  %886 = vdwg.mxu0
  %v887 = vld [vmem:[%s15] sm:$0xff]
  %v888 = vld [vmem:[%s15 + $0x8] sm:$0xff]
  %v889 = vld [vmem:[%s15 + $0x10] sm:$0xff]
  %v890 = vld [vmem:[%s15 + $0x18] sm:$0xff]
  %v891 = vld [vmem:[%s15 + $0x20] sm:$0xff]
  %v892 = vld [vmem:[%s15 + $0x28] sm:$0xff]
  %v893 = vld [vmem:[%s15 + $0x30] sm:$0xff]
  %v894 = vld [vmem:[%s15 + $0x38] sm:$0xff]
  %v895 = vld [vmem:[%s15 + $0x40] sm:$0xff]
  %v896 = vld [vmem:[%s15 + $0x48] sm:$0xff]
  %v897 = vld [vmem:[%s15 + $0x50] sm:$0xff]
  %v898 = vld [vmem:[%s15 + $0x58] sm:$0xff]
  %v899 = vld [vmem:[%s15 + $0x60] sm:$0xff]
  %v900 = vld [vmem:[%s15 + $0x68] sm:$0xff]
  %v901 = vld [vmem:[%s15 + $0x70] sm:$0xff]
  %v902 = vld [vmem:[%s15 + $0x78] sm:$0xff]
  %v903 = vld [vmem:[%s15 + $0x80] sm:$0xff]
  %v904 = vld [vmem:[%s15 + $0x88] sm:$0xff]
  %v905 = vld [vmem:[%s15 + $0x90] sm:$0xff]
  %v906 = vld [vmem:[%s15 + $0x98] sm:$0xff]
  %v907 = vld [vmem:[%s16] sm:$0x1]
  %v909 = vsel %vm533, %v436, 0
  %v912 = vsel %vm533, %v437, 0
  %v915 = vsel %vm533, %v438, 0
  %v918 = vsel %vm533, %v439, 0
  %920 = vmatprep.subr.mxu0 0.0
  %921 = vmatpush1.msra.mxu0 %v891
  %922 = vmatprep.subr.mxu0 0.0
  %923 = vmatpush1.msra.mxu0 %v892
  %924 = vmatprep.subr.mxu0 0.0
  %925 = vmatpush1.msra.mxu0 %v893
  %926 = vmatprep.subr.mxu0 0.0
  %927 = vmatpush1.msra.mxu0 %v894
  %928 = vmatprep.subr.mxu0 0.0
  %929 = vmatpush1.msra.mxu0 0.0
  %930 = vmatprep.subr.mxu0 0.0
  %931 = vmatpush1.msra.mxu0 0.0
  %932 = vmatprep.subr.mxu0 0.0
  %933 = vmatpush1.msra.mxu0 0.0
  %934 = vmatprep.subr.mxu0 0.0
  %935 = vmatpush1.msra.mxu0 0.0
  %936 = vmatprep.subr.mxu0 0.0
  %937 = vmatpush1.msra.mxu0 0.0
  %938 = vmatprep.subr.mxu0 0.0
  %939 = vmatpush1.msra.mxu0 0.0
  %940 = vmatprep.subr.mxu0 0.0
  %941 = vmatpush1.msra.mxu0 0.0
  %942 = vmatprep.subr.mxu0 0.0
  %943 = vmatpush1.msra.mxu0 0.0
  %944 = vmatprep.subr.mxu0 0.0
  %945 = vmatpush1.msra.mxu0 0.0
  %946 = vmatprep.subr.mxu0 0.0
  %947 = vmatpush1.msra.mxu0 0.0
  %948 = vmatprep.subr.mxu0 0.0
  %949 = vmatpush1.msra.mxu0 0.0
  %950 = vmatprep.subr.mxu0 0.0
  %951 = vmatpush1.msra.mxu0 0.0
  %952 = vmatprep.subr.mxu0 0.0
  %953 = vmatpush1.msra.mxu0 0.0
  %954 = vmatprep.subr.mxu0 0.0
  %955 = vmatpush1.msra.mxu0 0.0
  %956 = vmatprep.subr.mxu0 0.0
  %957 = vmatpush1.msra.mxu0 0.0
  %958 = vmatprep.subr.mxu0 0.0
  %959 = vmatpush1.msra.mxu0 0.0
  %960 = vmatprep.subr.mxu0 0.0
  %961 = vmatpush1.msra.mxu0 0.0
  %962 = vmatprep.subr.mxu0 0.0
  %963 = vmatpush1.msra.mxu0 0.0
  %964 = vmatprep.subr.mxu0 0.0
  %965 = vmatpush1.msra.mxu0 0.0
  %966 = vmatprep.subr.mxu0 0.0
  %967 = vmatpush1.msra.mxu0 0.0
  %968 = vmatprep.subr.mxu0 0.0
  %969 = vmatpush1.msra.mxu0 0.0
  %970 = vmatprep.subr.mxu0 0.0
  %971 = vmatpush1.msra.mxu0 0.0
  %972 = vmatprep.subr.mxu0 0.0
  %973 = vmatpush1.msra.mxu0 0.0
  %974 = vmatprep.subr.mxu0 0.0
  %975 = vmatpush1.msra.mxu0 0.0
  %976 = vmatprep.subr.mxu0 0.0
  %977 = vmatpush1.msra.mxu0 0.0
  %978 = vmatprep.subr.mxu0 0.0
  %979 = vmatpush1.msra.mxu0 0.0
  %980 = vmatprep.subr.mxu0 0.0
  %981 = vmatpush1.msra.mxu0 0.0
  %982 = vmatprep.subr.mxu0 0.0
  %983 = vmatpush1.msra.mxu0 0.0
  %984 = vmatprep.mubr.f32.mxu0 0.0
  %985 = vmatmul.mubr.f32.gmra.mrb[0].mxu0 %v909
  %v986 = vpop.f32.mrb[0].mxu0
  %v987 = vadd.f32 0.0, %v986
  %v988 = vpop.f32.mrb[0].mxu0
  %989 = vmatprep.mubr.f32.mxu0 0.0
  %990 = vmatmul.mubr.f32.gmra.mrb[0].mxu0 %v912
  %v991 = vpop.f32.mrb[0].mxu0
  %v992 = vadd.f32 0.0, %v991
  %v993 = vpop.f32.mrb[0].mxu0
  %994 = vmatprep.mubr.f32.mxu0 0.0
  %995 = vmatmul.mubr.f32.gmra.mrb[0].mxu0 %v915
  %v996 = vpop.f32.mrb[0].mxu0
  %v997 = vadd.f32 0.0, %v996
  %v998 = vpop.f32.mrb[0].mxu0
  %999 = vmatprep.mubr.f32.mxu0 0.0
  %1000 = vmatmul.mubr.f32.gmra.mrb[0].mxu0 %v918
  %v1001 = vpop.f32.mrb[0].mxu0
  %v1002 = vadd.f32 0.0, %v1001
  %v1003 = vpop.f32.mrb[0].mxu0
  %1004 = vdwg.mxu0
  %v1006 = vsel %vm533, %v212, 0
  %v1009 = vsel %vm533, %v213, 0
  %v1012 = vsel %vm533, %v214, 0
  %v1015 = vsel %vm533, %v215, 0
  %1017 = vmatprep.subr.mxu0 0.0
  %1018 = vmatpush1.msra.mxu0 %v887
  %1019 = vmatprep.subr.mxu0 0.0
  %1020 = vmatpush1.msra.mxu0 %v888
  %1021 = vmatprep.subr.mxu0 0.0
  %1022 = vmatpush1.msra.mxu0 %v889
  %1023 = vmatprep.subr.mxu0 0.0
  %1024 = vmatpush1.msra.mxu0 %v890
  %1025 = vmatprep.subr.mxu0 0.0
  %1026 = vmatpush1.msra.mxu0 0.0
  %1027 = vmatprep.subr.mxu0 0.0
  %1028 = vmatpush1.msra.mxu0 0.0
  %1029 = vmatprep.subr.mxu0 0.0
  %1030 = vmatpush1.msra.mxu0 0.0
  %1031 = vmatprep.subr.mxu0 0.0
  %1032 = vmatpush1.msra.mxu0 0.0
  %1033 = vmatprep.subr.mxu0 0.0
  %1034 = vmatpush1.msra.mxu0 0.0
  %1035 = vmatprep.subr.mxu0 0.0
  %1036 = vmatpush1.msra.mxu0 0.0
  %1037 = vmatprep.subr.mxu0 0.0
  %1038 = vmatpush1.msra.mxu0 0.0
  %1039 = vmatprep.subr.mxu0 0.0
  %1040 = vmatpush1.msra.mxu0 0.0
  %1041 = vmatprep.subr.mxu0 0.0
  %1042 = vmatpush1.msra.mxu0 0.0
  %1043 = vmatprep.subr.mxu0 0.0
  %1044 = vmatpush1.msra.mxu0 0.0
  %1045 = vmatprep.subr.mxu0 0.0
  %1046 = vmatpush1.msra.mxu0 0.0
  %1047 = vmatprep.subr.mxu0 0.0
  %1048 = vmatpush1.msra.mxu0 0.0
  %1049 = vmatprep.subr.mxu0 0.0
  %1050 = vmatpush1.msra.mxu0 0.0
  %1051 = vmatprep.subr.mxu0 0.0
  %1052 = vmatpush1.msra.mxu0 0.0
  %1053 = vmatprep.subr.mxu0 0.0
  %1054 = vmatpush1.msra.mxu0 0.0
  %1055 = vmatprep.subr.mxu0 0.0
  %1056 = vmatpush1.msra.mxu0 0.0
  %1057 = vmatprep.subr.mxu0 0.0
  %1058 = vmatpush1.msra.mxu0 0.0
  %1059 = vmatprep.subr.mxu0 0.0
  %1060 = vmatpush1.msra.mxu0 0.0
  %1061 = vmatprep.subr.mxu0 0.0
  %1062 = vmatpush1.msra.mxu0 0.0
  %1063 = vmatprep.subr.mxu0 0.0
  %1064 = vmatpush1.msra.mxu0 0.0
  %1065 = vmatprep.subr.mxu0 0.0
  %1066 = vmatpush1.msra.mxu0 0.0
  %1067 = vmatprep.subr.mxu0 0.0
  %1068 = vmatpush1.msra.mxu0 0.0
  %1069 = vmatprep.subr.mxu0 0.0
  %1070 = vmatpush1.msra.mxu0 0.0
  %1071 = vmatprep.subr.mxu0 0.0
  %1072 = vmatpush1.msra.mxu0 0.0
  %1073 = vmatprep.subr.mxu0 0.0
  %1074 = vmatpush1.msra.mxu0 0.0
  %1075 = vmatprep.subr.mxu0 0.0
  %1076 = vmatpush1.msra.mxu0 0.0
  %1077 = vmatprep.subr.mxu0 0.0
  %1078 = vmatpush1.msra.mxu0 0.0
  %1079 = vmatprep.subr.mxu0 0.0
  %1080 = vmatpush1.msra.mxu0 0.0
  %1081 = vmatprep.mubr.f32.mxu0 0.0
  %1082 = vmatmul.mubr.f32.gmra.mrb[0].mxu0 %v1006
  %v1083 = vpop.f32.mrb[0].mxu0
  %v1084 = vadd.f32 %v987, %v1083
  %v1085 = vpop.f32.mrb[0].mxu0
  %1086 = vmatprep.mubr.f32.mxu0 0.0
  %1087 = vmatmul.mubr.f32.gmra.mrb[0].mxu0 %v1009
  %v1088 = vpop.f32.mrb[0].mxu0
  %v1089 = vadd.f32 %v992, %v1088
  %v1090 = vpop.f32.mrb[0].mxu0
  %1091 = vmatprep.mubr.f32.mxu0 0.0
  %1092 = vmatmul.mubr.f32.gmra.mrb[0].mxu0 %v1012
  %v1093 = vpop.f32.mrb[0].mxu0
  %v1094 = vadd.f32 %v997, %v1093
  %v1095 = vpop.f32.mrb[0].mxu0
  %1096 = vmatprep.mubr.f32.mxu0 0.0
  %1097 = vmatmul.mubr.f32.gmra.mrb[0].mxu0 %v1015
  %v1098 = vpop.f32.mrb[0].mxu0
  %v1099 = vadd.f32 %v1002, %v1098
  %v1100 = vpop.f32.mrb[0].mxu0
  %1101 = vdwg.mxu0
  %1102 = vmatprep.subr.mxu0 0.0
  %1103 = vmatpush1.msra.mxu0 %v899
  %1104 = vmatprep.subr.mxu0 0.0
  %1105 = vmatpush1.msra.mxu0 %v900
  %1106 = vmatprep.subr.mxu0 0.0
  %1107 = vmatpush1.msra.mxu0 %v901
  %1108 = vmatprep.subr.mxu0 0.0
  %1109 = vmatpush1.msra.mxu0 %v902
  %1110 = vmatprep.subr.mxu0 0.0
  %1111 = vmatpush1.msra.mxu0 0.0
  %1112 = vmatprep.subr.mxu0 0.0
  %1113 = vmatpush1.msra.mxu0 0.0
  %1114 = vmatprep.subr.mxu0 0.0
  %1115 = vmatpush1.msra.mxu0 0.0
  %1116 = vmatprep.subr.mxu0 0.0
  %1117 = vmatpush1.msra.mxu0 0.0
  %1118 = vmatprep.subr.mxu0 0.0
  %1119 = vmatpush1.msra.mxu0 0.0
  %1120 = vmatprep.subr.mxu0 0.0
  %1121 = vmatpush1.msra.mxu0 0.0
  %1122 = vmatprep.subr.mxu0 0.0
  %1123 = vmatpush1.msra.mxu0 0.0
  %1124 = vmatprep.subr.mxu0 0.0
  %1125 = vmatpush1.msra.mxu0 0.0
  %1126 = vmatprep.subr.mxu0 0.0
  %1127 = vmatpush1.msra.mxu0 0.0
  %1128 = vmatprep.subr.mxu0 0.0
  %1129 = vmatpush1.msra.mxu0 0.0
  %1130 = vmatprep.subr.mxu0 0.0
  %1131 = vmatpush1.msra.mxu0 0.0
  %1132 = vmatprep.subr.mxu0 0.0
  %1133 = vmatpush1.msra.mxu0 0.0
  %1134 = vmatprep.subr.mxu0 0.0
  %1135 = vmatpush1.msra.mxu0 0.0
  %1136 = vmatprep.subr.mxu0 0.0
  %1137 = vmatpush1.msra.mxu0 0.0
  %1138 = vmatprep.subr.mxu0 0.0
  %1139 = vmatpush1.msra.mxu0 0.0
  %1140 = vmatprep.subr.mxu0 0.0
  %1141 = vmatpush1.msra.mxu0 0.0
  %1142 = vmatprep.subr.mxu0 0.0
  %1143 = vmatpush1.msra.mxu0 0.0
  %1144 = vmatprep.subr.mxu0 0.0
  %1145 = vmatpush1.msra.mxu0 0.0
  %1146 = vmatprep.subr.mxu0 0.0
  %1147 = vmatpush1.msra.mxu0 0.0
  %1148 = vmatprep.subr.mxu0 0.0
  %1149 = vmatpush1.msra.mxu0 0.0
  %1150 = vmatprep.subr.mxu0 0.0
  %1151 = vmatpush1.msra.mxu0 0.0
  %1152 = vmatprep.subr.mxu0 0.0
  %1153 = vmatpush1.msra.mxu0 0.0
  %1154 = vmatprep.subr.mxu0 0.0
  %1155 = vmatpush1.msra.mxu0 0.0
  %1156 = vmatprep.subr.mxu0 0.0
  %1157 = vmatpush1.msra.mxu0 0.0
  %1158 = vmatprep.subr.mxu0 0.0
  %1159 = vmatpush1.msra.mxu0 0.0
  %1160 = vmatprep.subr.mxu0 0.0
  %1161 = vmatpush1.msra.mxu0 0.0
  %1162 = vmatprep.subr.mxu0 0.0
  %1163 = vmatpush1.msra.mxu0 0.0
  %1164 = vmatprep.subr.mxu0 0.0
  %1165 = vmatpush1.msra.mxu0 0.0
  %1166 = vmatprep.mubr.f32.mxu0 0.0
  %1167 = vmatmul.mubr.f32.gmra.mrb[0].mxu0 %v909
  %v1168 = vpop.f32.mrb[0].mxu0
  %v1169 = vadd.f32 0.0, %v1168
  %v1170 = vpop.f32.mrb[0].mxu0
  %1171 = vmatprep.mubr.f32.mxu0 0.0
  %1172 = vmatmul.mubr.f32.gmra.mrb[0].mxu0 %v912
  %v1173 = vpop.f32.mrb[0].mxu0
  %v1174 = vadd.f32 0.0, %v1173
  %v1175 = vpop.f32.mrb[0].mxu0
  %1176 = vmatprep.mubr.f32.mxu0 0.0
  %1177 = vmatmul.mubr.f32.gmra.mrb[0].mxu0 %v915
  %v1178 = vpop.f32.mrb[0].mxu0
  %v1179 = vadd.f32 0.0, %v1178
  %v1180 = vpop.f32.mrb[0].mxu0
  %1181 = vmatprep.mubr.f32.mxu0 0.0
  %1182 = vmatmul.mubr.f32.gmra.mrb[0].mxu0 %v918
  %v1183 = vpop.f32.mrb[0].mxu0
  %v1184 = vadd.f32 0.0, %v1183
  %v1185 = vpop.f32.mrb[0].mxu0
  %1186 = vdwg.mxu0
  %1187 = vmatprep.subr.mxu0 0.0
  %1188 = vmatpush1.msra.mxu0 %v895
  %1189 = vmatprep.subr.mxu0 0.0
  %1190 = vmatpush1.msra.mxu0 %v896
  %1191 = vmatprep.subr.mxu0 0.0
  %1192 = vmatpush1.msra.mxu0 %v897
  %1193 = vmatprep.subr.mxu0 0.0
  %1194 = vmatpush1.msra.mxu0 %v898
  %1195 = vmatprep.subr.mxu0 0.0
  %1196 = vmatpush1.msra.mxu0 0.0
  %1197 = vmatprep.subr.mxu0 0.0
  %1198 = vmatpush1.msra.mxu0 0.0
  %1199 = vmatprep.subr.mxu0 0.0
  %1200 = vmatpush1.msra.mxu0 0.0
  %1201 = vmatprep.subr.mxu0 0.0
  %1202 = vmatpush1.msra.mxu0 0.0
  %1203 = vmatprep.subr.mxu0 0.0
  %1204 = vmatpush1.msra.mxu0 0.0
  %1205 = vmatprep.subr.mxu0 0.0
  %1206 = vmatpush1.msra.mxu0 0.0
  %1207 = vmatprep.subr.mxu0 0.0
  %1208 = vmatpush1.msra.mxu0 0.0
  %1209 = vmatprep.subr.mxu0 0.0
  %1210 = vmatpush1.msra.mxu0 0.0
  %1211 = vmatprep.subr.mxu0 0.0
  %1212 = vmatpush1.msra.mxu0 0.0
  %1213 = vmatprep.subr.mxu0 0.0
  %1214 = vmatpush1.msra.mxu0 0.0
  %1215 = vmatprep.subr.mxu0 0.0
  %1216 = vmatpush1.msra.mxu0 0.0
  %1217 = vmatprep.subr.mxu0 0.0
  %1218 = vmatpush1.msra.mxu0 0.0
  %1219 = vmatprep.subr.mxu0 0.0
  %1220 = vmatpush1.msra.mxu0 0.0
  %1221 = vmatprep.subr.mxu0 0.0
  %1222 = vmatpush1.msra.mxu0 0.0
  %1223 = vmatprep.subr.mxu0 0.0
  %1224 = vmatpush1.msra.mxu0 0.0
  %1225 = vmatprep.subr.mxu0 0.0
  %1226 = vmatpush1.msra.mxu0 0.0
  %1227 = vmatprep.subr.mxu0 0.0
  %1228 = vmatpush1.msra.mxu0 0.0
  %1229 = vmatprep.subr.mxu0 0.0
  %1230 = vmatpush1.msra.mxu0 0.0
  %1231 = vmatprep.subr.mxu0 0.0
  %1232 = vmatpush1.msra.mxu0 0.0
  %1233 = vmatprep.subr.mxu0 0.0
  %1234 = vmatpush1.msra.mxu0 0.0
  %1235 = vmatprep.subr.mxu0 0.0
  %1236 = vmatpush1.msra.mxu0 0.0
  %1237 = vmatprep.subr.mxu0 0.0
  %1238 = vmatpush1.msra.mxu0 0.0
  %1239 = vmatprep.subr.mxu0 0.0
  %1240 = vmatpush1.msra.mxu0 0.0
  %1241 = vmatprep.subr.mxu0 0.0
  %1242 = vmatpush1.msra.mxu0 0.0
  %1243 = vmatprep.subr.mxu0 0.0
  %1244 = vmatpush1.msra.mxu0 0.0
  %1245 = vmatprep.subr.mxu0 0.0
  %1246 = vmatpush1.msra.mxu0 0.0
  %1247 = vmatprep.subr.mxu0 0.0
  %1248 = vmatpush1.msra.mxu0 0.0
  %1249 = vmatprep.subr.mxu0 0.0
  %1250 = vmatpush1.msra.mxu0 0.0
  %1251 = vmatprep.mubr.f32.mxu0 0.0
  %1252 = vmatmul.mubr.f32.gmra.mrb[0].mxu0 %v1006
  %v1253 = vpop.f32.mrb[0].mxu0
  %v1254 = vadd.f32 %v1169, %v1253
  %v1255 = vpop.f32.mrb[0].mxu0
  %1256 = vmatprep.mubr.f32.mxu0 0.0
  %1257 = vmatmul.mubr.f32.gmra.mrb[0].mxu0 %v1009
  %v1258 = vpop.f32.mrb[0].mxu0
  %v1259 = vadd.f32 %v1174, %v1258
  %v1260 = vpop.f32.mrb[0].mxu0
  %1261 = vmatprep.mubr.f32.mxu0 0.0
  %1262 = vmatmul.mubr.f32.gmra.mrb[0].mxu0 %v1012
  %v1263 = vpop.f32.mrb[0].mxu0
  %v1264 = vadd.f32 %v1179, %v1263
  %v1265 = vpop.f32.mrb[0].mxu0
  %1266 = vmatprep.mubr.f32.mxu0 0.0
  %1267 = vmatmul.mubr.f32.gmra.mrb[0].mxu0 %v1015
  %v1268 = vpop.f32.mrb[0].mxu0
  %v1269 = vadd.f32 %v1184, %v1268
  %v1270 = vpop.f32.mrb[0].mxu0
  %1271 = vdwg.mxu0
  %v1273 = vsel %vm533, %v485, 0
  %v1276 = vsel %vm533, %v486, 0
  %v1279 = vsel %vm533, %v487, 0
  %v1282 = vsel %vm533, %v488, 0
  %v1285 = vsel %vm533, %v489, 0
  %v1288 = vsel %vm533, %v490, 0
  %v1291 = vsel %vm533, %v491, 0
  %1293 = vmatprep.subr.mxu0 0.0
  %1294 = vmatpush1.msra.mxu0 %v1254
  %1295 = vmatprep.subr.mxu0 0.0
  %1296 = vmatpush1.msra.mxu0 %v1259
  %1297 = vmatprep.subr.mxu0 0.0
  %1298 = vmatpush1.msra.mxu0 %v1264
  %1299 = vmatprep.subr.mxu0 0.0
  %1300 = vmatpush1.msra.mxu0 %v1269
  %1301 = vmatprep.subr.mxu0 0.0
  %1302 = vmatpush1.msra.mxu0 0.0
  %1303 = vmatprep.subr.mxu0 0.0
  %1304 = vmatpush1.msra.mxu0 0.0
  %1305 = vmatprep.subr.mxu0 0.0
  %1306 = vmatpush1.msra.mxu0 0.0
  %1307 = vmatprep.subr.mxu0 0.0
  %1308 = vmatpush1.msra.mxu0 0.0
  %1309 = vmatprep.subr.mxu0 0.0
  %1310 = vmatpush1.msra.mxu0 0.0
  %1311 = vmatprep.subr.mxu0 0.0
  %1312 = vmatpush1.msra.mxu0 0.0
  %1313 = vmatprep.subr.mxu0 0.0
  %1314 = vmatpush1.msra.mxu0 0.0
  %1315 = vmatprep.subr.mxu0 0.0
  %1316 = vmatpush1.msra.mxu0 0.0
  %1317 = vmatprep.subr.mxu0 0.0
  %1318 = vmatpush1.msra.mxu0 0.0
  %1319 = vmatprep.subr.mxu0 0.0
  %1320 = vmatpush1.msra.mxu0 0.0
  %1321 = vmatprep.subr.mxu0 0.0
  %1322 = vmatpush1.msra.mxu0 0.0
  %1323 = vmatprep.subr.mxu0 0.0
  %1324 = vmatpush1.msra.mxu0 0.0
  %1325 = vmatprep.subr.mxu0 0.0
  %1326 = vmatpush1.msra.mxu0 0.0
  %1327 = vmatprep.subr.mxu0 0.0
  %1328 = vmatpush1.msra.mxu0 0.0
  %1329 = vmatprep.subr.mxu0 0.0
  %1330 = vmatpush1.msra.mxu0 0.0
  %1331 = vmatprep.subr.mxu0 0.0
  %1332 = vmatpush1.msra.mxu0 0.0
  %1333 = vmatprep.subr.mxu0 0.0
  %1334 = vmatpush1.msra.mxu0 0.0
  %1335 = vmatprep.subr.mxu0 0.0
  %1336 = vmatpush1.msra.mxu0 0.0
  %1337 = vmatprep.subr.mxu0 0.0
  %1338 = vmatpush1.msra.mxu0 0.0
  %1339 = vmatprep.subr.mxu0 0.0
  %1340 = vmatpush1.msra.mxu0 0.0
  %1341 = vmatprep.subr.mxu0 0.0
  %1342 = vmatpush1.msra.mxu0 0.0
  %1343 = vmatprep.subr.mxu0 0.0
  %1344 = vmatpush1.msra.mxu0 0.0
  %1345 = vmatprep.subr.mxu0 0.0
  %1346 = vmatpush1.msra.mxu0 0.0
  %1347 = vmatprep.subr.mxu0 0.0
  %1348 = vmatpush1.msra.mxu0 0.0
  %1349 = vmatprep.subr.mxu0 0.0
  %1350 = vmatpush1.msra.mxu0 0.0
  %1351 = vmatprep.subr.mxu0 0.0
  %1352 = vmatpush1.msra.mxu0 0.0
  %1353 = vmatprep.subr.mxu0 0.0
  %1354 = vmatpush1.msra.mxu0 0.0
  %1355 = vmatprep.subr.mxu0 0.0
  %1356 = vmatpush1.msra.mxu0 0.0
  %1357 = vmatprep.mubr.f32.mxu0 0.0
  %1358 = vmatmul.mubr.f32.gmra.mrb[0].mxu0 %v1273
  %v1359 = vpop.f32.mrb[0].mxu0
  %v1360 = vadd.f32 0.0, %v1359
  %v1361 = vpop.f32.mrb[0].mxu0
  %1362 = vmatprep.mubr.f32.mxu0 0.0
  %1363 = vmatmul.mubr.f32.gmra.mrb[0].mxu0 %v1276
  %v1364 = vpop.f32.mrb[0].mxu0
  %v1365 = vadd.f32 0.0, %v1364
  %v1366 = vpop.f32.mrb[0].mxu0
  %1367 = vmatprep.mubr.f32.mxu0 0.0
  %1368 = vmatmul.mubr.f32.gmra.mrb[0].mxu0 %v1279
  %v1369 = vpop.f32.mrb[0].mxu0
  %v1370 = vadd.f32 0.0, %v1369
  %v1371 = vpop.f32.mrb[0].mxu0
  %1372 = vmatprep.mubr.f32.mxu0 0.0
  %1373 = vmatmul.mubr.f32.gmra.mrb[0].mxu0 %v1282
  %v1374 = vpop.f32.mrb[0].mxu0
  %v1375 = vadd.f32 0.0, %v1374
  %v1376 = vpop.f32.mrb[0].mxu0
  %1377 = vmatprep.mubr.f32.mxu0 0.0
  %1378 = vmatmul.mubr.f32.gmra.mrb[0].mxu0 %v1285
  %v1379 = vpop.f32.mrb[0].mxu0
  %v1380 = vadd.f32 0.0, %v1379
  %v1381 = vpop.f32.mrb[0].mxu0
  %1382 = vmatprep.mubr.f32.mxu0 0.0
  %1383 = vmatmul.mubr.f32.gmra.mrb[0].mxu0 %v1288
  %v1384 = vpop.f32.mrb[0].mxu0
  %v1385 = vadd.f32 0.0, %v1384
  %v1386 = vpop.f32.mrb[0].mxu0
  %1387 = vmatprep.mubr.f32.mxu0 0.0
  %1388 = vmatmul.mubr.f32.gmra.mrb[0].mxu0 %v1291
  %v1389 = vpop.f32.mrb[0].mxu0
  %v1390 = vadd.f32 0.0, %v1389
  %v1391 = vpop.f32.mrb[0].mxu0
  %1392 = vdwg.mxu0
  %v1394 = vsel %vm533, %v520, 0
  %v1397 = vsel %vm533, %v521, 0
  %v1400 = vsel %vm533, %v522, 0
  %v1403 = vsel %vm533, %v523, 0
  %v1406 = vsel %vm533, %v524, 0
  %v1409 = vsel %vm533, %v525, 0
  %v1412 = vsel %vm533, %v526, 0
  %1414 = vmatprep.subr.mxu0 0.0
  %1415 = vmatpush1.msra.mxu0 %v1084
  %1416 = vmatprep.subr.mxu0 0.0
  %1417 = vmatpush1.msra.mxu0 %v1089
  %1418 = vmatprep.subr.mxu0 0.0
  %1419 = vmatpush1.msra.mxu0 %v1094
  %1420 = vmatprep.subr.mxu0 0.0
  %1421 = vmatpush1.msra.mxu0 %v1099
  %1422 = vmatprep.subr.mxu0 0.0
  %1423 = vmatpush1.msra.mxu0 0.0
  %1424 = vmatprep.subr.mxu0 0.0
  %1425 = vmatpush1.msra.mxu0 0.0
  %1426 = vmatprep.subr.mxu0 0.0
  %1427 = vmatpush1.msra.mxu0 0.0
  %1428 = vmatprep.subr.mxu0 0.0
  %1429 = vmatpush1.msra.mxu0 0.0
  %1430 = vmatprep.subr.mxu0 0.0
  %1431 = vmatpush1.msra.mxu0 0.0
  %1432 = vmatprep.subr.mxu0 0.0
  %1433 = vmatpush1.msra.mxu0 0.0
  %1434 = vmatprep.subr.mxu0 0.0
  %1435 = vmatpush1.msra.mxu0 0.0
  %1436 = vmatprep.subr.mxu0 0.0
  %1437 = vmatpush1.msra.mxu0 0.0
  %1438 = vmatprep.subr.mxu0 0.0
  %1439 = vmatpush1.msra.mxu0 0.0
  %1440 = vmatprep.subr.mxu0 0.0
  %1441 = vmatpush1.msra.mxu0 0.0
  %1442 = vmatprep.subr.mxu0 0.0
  %1443 = vmatpush1.msra.mxu0 0.0
  %1444 = vmatprep.subr.mxu0 0.0
  %1445 = vmatpush1.msra.mxu0 0.0
  %1446 = vmatprep.subr.mxu0 0.0
  %1447 = vmatpush1.msra.mxu0 0.0
  %1448 = vmatprep.subr.mxu0 0.0
  %1449 = vmatpush1.msra.mxu0 0.0
  %1450 = vmatprep.subr.mxu0 0.0
  %1451 = vmatpush1.msra.mxu0 0.0
  %1452 = vmatprep.subr.mxu0 0.0
  %1453 = vmatpush1.msra.mxu0 0.0
  %1454 = vmatprep.subr.mxu0 0.0
  %1455 = vmatpush1.msra.mxu0 0.0
  %1456 = vmatprep.subr.mxu0 0.0
  %1457 = vmatpush1.msra.mxu0 0.0
  %1458 = vmatprep.subr.mxu0 0.0
  %1459 = vmatpush1.msra.mxu0 0.0
  %1460 = vmatprep.subr.mxu0 0.0
  %1461 = vmatpush1.msra.mxu0 0.0
  %1462 = vmatprep.subr.mxu0 0.0
  %1463 = vmatpush1.msra.mxu0 0.0
  %1464 = vmatprep.subr.mxu0 0.0
  %1465 = vmatpush1.msra.mxu0 0.0
  %1466 = vmatprep.subr.mxu0 0.0
  %1467 = vmatpush1.msra.mxu0 0.0
  %1468 = vmatprep.subr.mxu0 0.0
  %1469 = vmatpush1.msra.mxu0 0.0
  %1470 = vmatprep.subr.mxu0 0.0
  %1471 = vmatpush1.msra.mxu0 0.0
  %1472 = vmatprep.subr.mxu0 0.0
  %1473 = vmatpush1.msra.mxu0 0.0
  %1474 = vmatprep.subr.mxu0 0.0
  %1475 = vmatpush1.msra.mxu0 0.0
  %1476 = vmatprep.subr.mxu0 0.0
  %1477 = vmatpush1.msra.mxu0 0.0
  %1478 = vmatprep.mubr.f32.mxu0 0.0
  %1479 = vmatmul.mubr.f32.gmra.mrb[0].mxu0 %v1394
  %v1480 = vpop.f32.mrb[0].mxu0
  %v1481 = vadd.f32 %v1360, %v1480
  %v1482 = vpop.f32.mrb[0].mxu0
  %1483 = vmatprep.mubr.f32.mxu0 0.0
  %1484 = vmatmul.mubr.f32.gmra.mrb[0].mxu0 %v1397
  %v1485 = vpop.f32.mrb[0].mxu0
  %v1486 = vadd.f32 %v1365, %v1485
  %v1487 = vpop.f32.mrb[0].mxu0
  %1488 = vmatprep.mubr.f32.mxu0 0.0
  %1489 = vmatmul.mubr.f32.gmra.mrb[0].mxu0 %v1400
  %v1490 = vpop.f32.mrb[0].mxu0
  %v1491 = vadd.f32 %v1370, %v1490
  %v1492 = vpop.f32.mrb[0].mxu0
  %1493 = vmatprep.mubr.f32.mxu0 0.0
  %1494 = vmatmul.mubr.f32.gmra.mrb[0].mxu0 %v1403
  %v1495 = vpop.f32.mrb[0].mxu0
  %v1496 = vadd.f32 %v1375, %v1495
  %v1497 = vpop.f32.mrb[0].mxu0
  %1498 = vmatprep.mubr.f32.mxu0 0.0
  %1499 = vmatmul.mubr.f32.gmra.mrb[0].mxu0 %v1406
  %v1500 = vpop.f32.mrb[0].mxu0
  %v1501 = vadd.f32 %v1380, %v1500
  %v1502 = vpop.f32.mrb[0].mxu0
  %1503 = vmatprep.mubr.f32.mxu0 0.0
  %1504 = vmatmul.mubr.f32.gmra.mrb[0].mxu0 %v1409
  %v1505 = vpop.f32.mrb[0].mxu0
  %v1506 = vadd.f32 %v1385, %v1505
  %v1507 = vpop.f32.mrb[0].mxu0
  %1508 = vmatprep.mubr.f32.mxu0 0.0
  %1509 = vmatmul.mubr.f32.gmra.mrb[0].mxu0 %v1412
  %v1510 = vpop.f32.mrb[0].mxu0
  %v1511 = vadd.f32 %v1390, %v1510
  %v1512 = vpop.f32.mrb[0].mxu0
  %1513 = vdwg.mxu0
  %v1515 = vsel %vm533, %v854, 0
  %v1518 = vsel %vm533, %v859, 0
  %v1521 = vsel %vm533, %v864, 0
  %v1524 = vsel %vm533, %v869, 0
  %v1527 = vsel %vm533, %v874, 0
  %v1530 = vsel %vm533, %v879, 0
  %v1533 = vsel %vm533, %v884, 0
  %1535 = vmatprep.subr.mxu0 0.0
  %1536 = vmatpush1.msra.mxu0 %v903
  %1537 = vmatprep.subr.mxu0 0.0
  %1538 = vmatpush1.msra.mxu0 %v904
  %1539 = vmatprep.subr.mxu0 0.0
  %1540 = vmatpush1.msra.mxu0 %v905
  %1541 = vmatprep.subr.mxu0 0.0
  %1542 = vmatpush1.msra.mxu0 %v906
  %1543 = vmatprep.subr.mxu0 0.0
  %1544 = vmatpush1.msra.mxu0 0.0
  %1545 = vmatprep.subr.mxu0 0.0
  %1546 = vmatpush1.msra.mxu0 0.0
  %1547 = vmatprep.subr.mxu0 0.0
  %1548 = vmatpush1.msra.mxu0 0.0
  %1549 = vmatprep.subr.mxu0 0.0
  %1550 = vmatpush1.msra.mxu0 0.0
  %1551 = vmatprep.subr.mxu0 0.0
  %1552 = vmatpush1.msra.mxu0 0.0
  %1553 = vmatprep.subr.mxu0 0.0
  %1554 = vmatpush1.msra.mxu0 0.0
  %1555 = vmatprep.subr.mxu0 0.0
  %1556 = vmatpush1.msra.mxu0 0.0
  %1557 = vmatprep.subr.mxu0 0.0
  %1558 = vmatpush1.msra.mxu0 0.0
  %1559 = vmatprep.subr.mxu0 0.0
  %1560 = vmatpush1.msra.mxu0 0.0
  %1561 = vmatprep.subr.mxu0 0.0
  %1562 = vmatpush1.msra.mxu0 0.0
  %1563 = vmatprep.subr.mxu0 0.0
  %1564 = vmatpush1.msra.mxu0 0.0
  %1565 = vmatprep.subr.mxu0 0.0
  %1566 = vmatpush1.msra.mxu0 0.0
  %1567 = vmatprep.subr.mxu0 0.0
  %1568 = vmatpush1.msra.mxu0 0.0
  %1569 = vmatprep.subr.mxu0 0.0
  %1570 = vmatpush1.msra.mxu0 0.0
  %1571 = vmatprep.subr.mxu0 0.0
  %1572 = vmatpush1.msra.mxu0 0.0
  %1573 = vmatprep.subr.mxu0 0.0
  %1574 = vmatpush1.msra.mxu0 0.0
  %1575 = vmatprep.subr.mxu0 0.0
  %1576 = vmatpush1.msra.mxu0 0.0
  %1577 = vmatprep.subr.mxu0 0.0
  %1578 = vmatpush1.msra.mxu0 0.0
  %1579 = vmatprep.subr.mxu0 0.0
  %1580 = vmatpush1.msra.mxu0 0.0
  %1581 = vmatprep.subr.mxu0 0.0
  %1582 = vmatpush1.msra.mxu0 0.0
  %1583 = vmatprep.subr.mxu0 0.0
  %1584 = vmatpush1.msra.mxu0 0.0
  %1585 = vmatprep.subr.mxu0 0.0
  %1586 = vmatpush1.msra.mxu0 0.0
  %1587 = vmatprep.subr.mxu0 0.0
  %1588 = vmatpush1.msra.mxu0 0.0
  %1589 = vmatprep.subr.mxu0 0.0
  %1590 = vmatpush1.msra.mxu0 0.0
  %1591 = vmatprep.subr.mxu0 0.0
  %1592 = vmatpush1.msra.mxu0 0.0
  %1593 = vmatprep.subr.mxu0 0.0
  %1594 = vmatpush1.msra.mxu0 0.0
  %1595 = vmatprep.subr.mxu0 0.0
  %1596 = vmatpush1.msra.mxu0 0.0
  %1597 = vmatprep.subr.mxu0 0.0
  %1598 = vmatpush1.msra.mxu0 0.0
  %1599 = vmatprep.mubr.f32.mxu0 0.0
  %1600 = vmatmul.mubr.f32.gmra.mrb[0].mxu0 %v1515
  %v1601 = vpop.f32.mrb[0].mxu0
  %v1602 = vadd.f32 0.0, %v1601
  %v1603 = vpop.f32.mrb[0].mxu0
  %1604 = vmatprep.mubr.f32.mxu0 0.0
  %1605 = vmatmul.mubr.f32.gmra.mrb[0].mxu0 %v1518
  %v1606 = vpop.f32.mrb[0].mxu0
  %v1607 = vadd.f32 0.0, %v1606
  %v1608 = vpop.f32.mrb[0].mxu0
  %1609 = vmatprep.mubr.f32.mxu0 0.0
  %1610 = vmatmul.mubr.f32.gmra.mrb[0].mxu0 %v1521
  %v1611 = vpop.f32.mrb[0].mxu0
  %v1612 = vadd.f32 0.0, %v1611
  %v1613 = vpop.f32.mrb[0].mxu0
  %1614 = vmatprep.mubr.f32.mxu0 0.0
  %1615 = vmatmul.mubr.f32.gmra.mrb[0].mxu0 %v1524
  %v1616 = vpop.f32.mrb[0].mxu0
  %v1617 = vadd.f32 0.0, %v1616
  %v1618 = vpop.f32.mrb[0].mxu0
  %1619 = vmatprep.mubr.f32.mxu0 0.0
  %1620 = vmatmul.mubr.f32.gmra.mrb[0].mxu0 %v1527
  %v1621 = vpop.f32.mrb[0].mxu0
  %v1622 = vadd.f32 0.0, %v1621
  %v1623 = vpop.f32.mrb[0].mxu0
  %1624 = vmatprep.mubr.f32.mxu0 0.0
  %1625 = vmatmul.mubr.f32.gmra.mrb[0].mxu0 %v1530
  %v1626 = vpop.f32.mrb[0].mxu0
  %v1627 = vadd.f32 0.0, %v1626
  %v1628 = vpop.f32.mrb[0].mxu0
  %1629 = vmatprep.mubr.f32.mxu0 0.0
  %1630 = vmatmul.mubr.f32.gmra.mrb[0].mxu0 %v1533
  %v1631 = vpop.f32.mrb[0].mxu0
  %v1632 = vadd.f32 0.0, %v1631
  %v1633 = vpop.f32.mrb[0].mxu0
  %1634 = vdwg.mxu0
  %v1635 = vadd.f32 %v1481, %v1602
  %v1636 = vadd.f32 %v1486, %v1607
  %v1637 = vadd.f32 %v1491, %v1612
  %v1638 = vadd.f32 %v1496, %v1617
  %v1639 = vadd.f32 %v1501, %v1622
  %v1640 = vadd.f32 %v1506, %v1627
  %v1641 = vadd.f32 %v1511, %v1632
  %v1642 = vlaneseq
  %v1643 = vshrl.u32 %v1642, 7
  %v1644 = vsub.s32 0, %v1643
  %v1645 = vrot.slane %v907, %v1644
  %v1646 = vadd.f32 %v1635, %v1645
  %v1647 = vadd.f32 %v1636, %v1645
  %v1648 = vadd.f32 %v1637, %v1645
  %v1649 = vadd.f32 %v1638, %v1645
  %v1650 = vadd.f32 %v1639, %v1645
  %v1651 = vadd.f32 %v1640, %v1645
  %v1652 = vadd.f32 %v1641, %v1645
  %v1653 = vmul.f32 %v1646, 0.35355338
  %v1654 = vmul.f32 %v1647, 0.35355338
  %v1655 = vmul.f32 %v1648, 0.35355338
  %v1656 = vmul.f32 %v1649, 0.35355338
  %v1657 = vmul.f32 %v1650, 0.35355338
  %v1658 = vmul.f32 %v1651, 0.35355338
  %v1659 = vmul.f32 %v1652, 0.35355338
  %1667 = vrot.lane.b32.xlu0 %v1646, 64
  %v1668 = vpop.permute.xlu0 %1667
  %1669 = vrot.lane.b32.xlu0 %v1647, 64
  %v1670 = vpop.permute.xlu0 %1669
  %1671 = vrot.lane.b32.xlu0 %v1648, 64
  %v1672 = vpop.permute.xlu0 %1671
  %1673 = vrot.lane.b32.xlu0 %v1649, 64
  %v1674 = vpop.permute.xlu0 %1673
  %1675 = vrot.lane.b32.xlu0 %v1650, 64
  %v1676 = vpop.permute.xlu0 %1675
  %1677 = vrot.lane.b32.xlu0 %v1651, 64
  %v1678 = vpop.permute.xlu0 %1677
  %1679 = vrot.lane.b32.xlu0 %v1652, 64
  %v1680 = vpop.permute.xlu0 %1679
  %v1688 = vmul.f32 %v1653, %v1668
  %v1689 = vmul.f32 %v1654, %v1670
  %v1690 = vmul.f32 %v1655, %v1672
  %v1691 = vmul.f32 %v1656, %v1674
  %v1692 = vmul.f32 %v1657, %v1676
  %v1693 = vmul.f32 %v1658, %v1678
  %v1694 = vmul.f32 %v1659, %v1680
  %1702 = vrot.lane.b32.xlu0 %v1688, 64
  %v1703 = vpop.permute.xlu0 %1702
  %1704 = vrot.lane.b32.xlu0 %v1689, 64
  %v1705 = vpop.permute.xlu0 %1704
  %1706 = vrot.lane.b32.xlu0 %v1690, 64
  %v1707 = vpop.permute.xlu0 %1706
  %1708 = vrot.lane.b32.xlu0 %v1691, 64
  %v1709 = vpop.permute.xlu0 %1708
  %1710 = vrot.lane.b32.xlu0 %v1692, 64
  %v1711 = vpop.permute.xlu0 %1710
  %1712 = vrot.lane.b32.xlu0 %v1693, 64
  %v1713 = vpop.permute.xlu0 %1712
  %1714 = vrot.lane.b32.xlu0 %v1694, 64
  %v1715 = vpop.permute.xlu0 %1714
  %v1716 = vsel %vm533, %v1703, 0
  %v1718 = vsel %vm533, %v1705, 0
  %v1720 = vsel %vm533, %v1707, 0
  %v1722 = vsel %vm533, %v1709, 0
  %v1724 = vsel %vm533, %v1711, 0
  %v1726 = vsel %vm533, %v1713, 0
  %v1728 = vsel %vm533, %v1715, 0
  %1730 = vmatprep.subr.mxu0 0.0
  %1731 = vmatpush1.msra.mxu0 %v602
  %1732 = vmatprep.subr.mxu0 0.0
  %1733 = vmatpush1.msra.mxu0 %v603
  %1734 = vmatprep.subr.mxu0 0.0
  %1735 = vmatpush1.msra.mxu0 %v604
  %1736 = vmatprep.subr.mxu0 0.0
  %1737 = vmatpush1.msra.mxu0 %v605
  %1738 = vmatprep.subr.mxu0 0.0
  %1739 = vmatpush1.msra.mxu0 0.0
  %1740 = vmatprep.subr.mxu0 0.0
  %1741 = vmatpush1.msra.mxu0 0.0
  %1742 = vmatprep.subr.mxu0 0.0
  %1743 = vmatpush1.msra.mxu0 0.0
  %1744 = vmatprep.subr.mxu0 0.0
  %1745 = vmatpush1.msra.mxu0 0.0
  %1746 = vmatprep.subr.mxu0 0.0
  %1747 = vmatpush1.msra.mxu0 0.0
  %1748 = vmatprep.subr.mxu0 0.0
  %1749 = vmatpush1.msra.mxu0 0.0
  %1750 = vmatprep.subr.mxu0 0.0
  %1751 = vmatpush1.msra.mxu0 0.0
  %1752 = vmatprep.subr.mxu0 0.0
  %1753 = vmatpush1.msra.mxu0 0.0
  %1754 = vmatprep.subr.mxu0 0.0
  %1755 = vmatpush1.msra.mxu0 0.0
  %1756 = vmatprep.subr.mxu0 0.0
  %1757 = vmatpush1.msra.mxu0 0.0
  %1758 = vmatprep.subr.mxu0 0.0
  %1759 = vmatpush1.msra.mxu0 0.0
  %1760 = vmatprep.subr.mxu0 0.0
  %1761 = vmatpush1.msra.mxu0 0.0
  %1762 = vmatprep.subr.mxu0 0.0
  %1763 = vmatpush1.msra.mxu0 0.0
  %1764 = vmatprep.subr.mxu0 0.0
  %1765 = vmatpush1.msra.mxu0 0.0
  %1766 = vmatprep.subr.mxu0 0.0
  %1767 = vmatpush1.msra.mxu0 0.0
  %1768 = vmatprep.subr.mxu0 0.0
  %1769 = vmatpush1.msra.mxu0 0.0
  %1770 = vmatprep.subr.mxu0 0.0
  %1771 = vmatpush1.msra.mxu0 0.0
  %1772 = vmatprep.subr.mxu0 0.0
  %1773 = vmatpush1.msra.mxu0 0.0
  %1774 = vmatprep.subr.mxu0 0.0
  %1775 = vmatpush1.msra.mxu0 0.0
  %1776 = vmatprep.subr.mxu0 0.0
  %1777 = vmatpush1.msra.mxu0 0.0
  %1778 = vmatprep.subr.mxu0 0.0
  %1779 = vmatpush1.msra.mxu0 0.0
  %1780 = vmatprep.subr.mxu0 0.0
  %1781 = vmatpush1.msra.mxu0 0.0
  %1782 = vmatprep.subr.mxu0 0.0
  %1783 = vmatpush1.msra.mxu0 0.0
  %1784 = vmatprep.subr.mxu0 0.0
  %1785 = vmatpush1.msra.mxu0 0.0
  %1786 = vmatprep.subr.mxu0 0.0
  %1787 = vmatpush1.msra.mxu0 0.0
  %1788 = vmatprep.subr.mxu0 0.0
  %1789 = vmatpush1.msra.mxu0 0.0
  %1790 = vmatprep.subr.mxu0 0.0
  %1791 = vmatpush1.msra.mxu0 0.0
  %1792 = vmatprep.subr.mxu0 0.0
  %1793 = vmatpush1.msra.mxu0 0.0
  %1794 = vmatprep.mubr.f32.mxu0 0.0
  %1795 = vmatmul.mubr.f32.gmra.mrb[0].mxu0 %v1716
  %v1796 = vpop.f32.mrb[0].mxu0
  %v1797 = vadd.f32 0.0, %v1796
  %v1798 = vpop.f32.mrb[0].mxu0
  %1799 = vmatprep.mubr.f32.mxu0 0.0
  %1800 = vmatmul.mubr.f32.gmra.mrb[0].mxu0 %v1718
  %v1801 = vpop.f32.mrb[0].mxu0
  %v1802 = vadd.f32 0.0, %v1801
  %v1803 = vpop.f32.mrb[0].mxu0
  %1804 = vmatprep.mubr.f32.mxu0 0.0
  %1805 = vmatmul.mubr.f32.gmra.mrb[0].mxu0 %v1720
  %v1806 = vpop.f32.mrb[0].mxu0
  %v1807 = vadd.f32 0.0, %v1806
  %v1808 = vpop.f32.mrb[0].mxu0
  %1809 = vmatprep.mubr.f32.mxu0 0.0
  %1810 = vmatmul.mubr.f32.gmra.mrb[0].mxu0 %v1722
  %v1811 = vpop.f32.mrb[0].mxu0
  %v1812 = vadd.f32 0.0, %v1811
  %v1813 = vpop.f32.mrb[0].mxu0
  %1814 = vmatprep.mubr.f32.mxu0 0.0
  %1815 = vmatmul.mubr.f32.gmra.mrb[0].mxu0 %v1724
  %v1816 = vpop.f32.mrb[0].mxu0
  %v1817 = vadd.f32 0.0, %v1816
  %v1818 = vpop.f32.mrb[0].mxu0
  %1819 = vmatprep.mubr.f32.mxu0 0.0
  %1820 = vmatmul.mubr.f32.gmra.mrb[0].mxu0 %v1726
  %v1821 = vpop.f32.mrb[0].mxu0
  %v1822 = vadd.f32 0.0, %v1821
  %v1823 = vpop.f32.mrb[0].mxu0
  %1824 = vmatprep.mubr.f32.mxu0 0.0
  %1825 = vmatmul.mubr.f32.gmra.mrb[0].mxu0 %v1728
  %v1826 = vpop.f32.mrb[0].mxu0
  %v1827 = vadd.f32 0.0, %v1826
  %v1828 = vpop.f32.mrb[0].mxu0
  %1829 = vdwg.mxu0
  %vm1830 = vcmp.ge.s32.totalorder %v456, 0
  %vm1831 = vcmp.lt.s32.totalorder %v456, 8
  %vm1832 = vmand %vm1830, %vm1831
  %v1833 = vsel %vm1832, 1.0, 0.0
  %1835 = vset.pattern.permute.xlu0 0
  %1836 = vperm.xlu0 %1835, %v1797
  %v1837 = vpop.permute.xlu0 %1836
  %1840 = vset.pattern.permute.xlu0 0
  %1841 = vperm.xlu0 %1840, %v1802
  %v1842 = vpop.permute.xlu0 %1841
  %1845 = vset.pattern.permute.xlu0 0
  %1846 = vperm.xlu0 %1845, %v1807
  %v1847 = vpop.permute.xlu0 %1846
  %1850 = vset.pattern.permute.xlu0 0
  %1851 = vperm.xlu0 %1850, %v1812
  %v1852 = vpop.permute.xlu0 %1851
  %1855 = vset.pattern.permute.xlu0 0
  %1856 = vperm.xlu0 %1855, %v1817
  %v1857 = vpop.permute.xlu0 %1856
  %1860 = vset.pattern.permute.xlu0 0
  %1861 = vperm.xlu0 %1860, %v1822
  %v1862 = vpop.permute.xlu0 %1861
  %1865 = vset.pattern.permute.xlu0 0
  %1866 = vperm.xlu0 %1865, %v1827
  %v1867 = vpop.permute.xlu0 %1866
  %v1869 = vsel %vm478, %v1837, -1e+30
  %v1870 = vsel %vm479, %v1842, -1e+30
  %v1871 = vsel %vm480, %v1847, -1e+30
  %v1872 = vsel %vm481, %v1852, -1e+30
  %v1873 = vsel %vm482, %v1857, -1e+30
  %v1874 = vsel %vm483, %v1862, -1e+30
  %v1875 = vsel %vm484, %v1867, -1e+30
  %v1876 = vsel %vm533, %v1869, -inf
  %v1877 = vsel %vm533, %v1870, -inf
  %v1878 = vsel %vm533, %v1871, -inf
  %v1879 = vsel %vm533, %v1872, -inf
  %v1880 = vsel %vm533, %v1873, -inf
  %v1881 = vmax.f32 %v1876, %v1880
  %v1882 = vsel %vm533, %v1874, -inf
  %v1883 = vmax.f32 %v1877, %v1882
  %v1884 = vsel %vm545, %v1875, -inf
  %v1885 = vmax.f32 %v1878, %v1884
  %v1886 = vmax.f32 %v1881, %v1883
  %v1887 = vmax.f32 %v1885, %v1879
  %v1888 = vmax.f32 %v1886, %v1887
  %v1889 = vrot.slane %v1888, 4
  %v1890 = vmax.f32 %v1888, %v1889
  %v1891 = vrot.slane %v1890, 2
  %v1892 = vmax.f32 %v1890, %v1891
  %v1893 = vrot.slane %v1892, 1
  %v1894 = vmax.f32 %v1892, %v1893
  %v1895 = vmul.f32 %v485, %v1894
  %v1896 = vmul.f32 %v486, %v1894
  %v1897 = vmul.f32 %v487, %v1894
  %v1898 = vmul.f32 %v488, %v1894
  %v1899 = vmul.f32 %v489, %v1894
  %v1900 = vmul.f32 %v490, %v1894
  %v1901 = vmul.f32 %v491, %v1894
  %v1902 = vsel %vm533, %v1895, 0.0
  %1903 = vadd.xlane.f32.xlu0 %v1902
  %v1904 = vpop.xlane.xlu0 %1903
  %v1905 = vsel %vm533, %v1896, 0.0
  %1906 = vadd.xlane.f32.xlu0 %v1905
  %v1907 = vpop.xlane.xlu0 %1906
  %v1908 = vsel %vm533, %v1897, 0.0
  %1909 = vadd.xlane.f32.xlu0 %v1908
  %v1910 = vpop.xlane.xlu0 %1909
  %v1911 = vsel %vm533, %v1898, 0.0
  %1912 = vadd.xlane.f32.xlu0 %v1911
  %v1913 = vpop.xlane.xlu0 %1912
  %v1914 = vsel %vm533, %v1899, 0.0
  %1915 = vadd.xlane.f32.xlu0 %v1914
  %v1916 = vpop.xlane.xlu0 %1915
  %v1917 = vsel %vm533, %v1900, 0.0
  %1918 = vadd.xlane.f32.xlu0 %v1917
  %v1919 = vpop.xlane.xlu0 %1918
  %v1920 = vsel %vm545, %v1901, 0.0
  %1921 = vadd.xlane.f32.xlu0 %v1920
  %v1922 = vpop.xlane.xlu0 %1921
  %v1923 = vsub.f32 %v1797, %v1904
  %v1924 = vsub.f32 %v1802, %v1907
  %v1925 = vsub.f32 %v1807, %v1910
  %v1926 = vsub.f32 %v1812, %v1913
  %v1927 = vsub.f32 %v1817, %v1916
  %v1928 = vsub.f32 %v1822, %v1919
  %v1929 = vsub.f32 %v1827, %v1922
  %v1930 = vmul.f32 %v1923, 1.442695
  %v1931 = vpow.pop %v1930
  %v1932 = vmul.f32 %v1924, 1.442695
  %v1933 = vpow.pop %v1932
  %v1934 = vmul.f32 %v1925, 1.442695
  %v1935 = vpow.pop %v1934
  %v1936 = vmul.f32 %v1926, 1.442695
  %v1937 = vpow.pop %v1936
  %v1938 = vmul.f32 %v1927, 1.442695
  %v1939 = vpow.pop %v1938
  %v1940 = vmul.f32 %v1928, 1.442695
  %v1941 = vpow.pop %v1940
  %v1942 = vmul.f32 %v1929, 1.442695
  %v1943 = vpow.pop %v1942
  %1945 = vset.pattern.permute.xlu0 0
  %1946 = vperm.xlu0 %1945, %v1931
  %v1947 = vpop.permute.xlu0 %1946
  %1950 = vset.pattern.permute.xlu0 0
  %1951 = vperm.xlu0 %1950, %v1933
  %v1952 = vpop.permute.xlu0 %1951
  %1955 = vset.pattern.permute.xlu0 0
  %1956 = vperm.xlu0 %1955, %v1935
  %v1957 = vpop.permute.xlu0 %1956
  %1960 = vset.pattern.permute.xlu0 0
  %1961 = vperm.xlu0 %1960, %v1937
  %v1962 = vpop.permute.xlu0 %1961
  %1965 = vset.pattern.permute.xlu0 0
  %1966 = vperm.xlu0 %1965, %v1939
  %v1967 = vpop.permute.xlu0 %1966
  %1970 = vset.pattern.permute.xlu0 0
  %1971 = vperm.xlu0 %1970, %v1941
  %v1972 = vpop.permute.xlu0 %1971
  %1975 = vset.pattern.permute.xlu0 0
  %1976 = vperm.xlu0 %1975, %v1943
  %v1977 = vpop.permute.xlu0 %1976
  %v1979 = vmul.f32 %v485, %v1947
  %v1980 = vmul.f32 %v486, %v1952
  %v1981 = vmul.f32 %v487, %v1957
  %v1982 = vmul.f32 %v488, %v1962
  %v1983 = vmul.f32 %v489, %v1967
  %v1984 = vmul.f32 %v490, %v1972
  %v1985 = vmul.f32 %v491, %v1977
  %v1986 = vsel %vm533, %v1979, 0.0
  %v1987 = vsel %vm533, %v1980, 0.0
  %v1988 = vadd.f32 %v1986, %v1987
  %v1989 = vsel %vm533, %v1981, 0.0
  %v1990 = vadd.f32 %v1988, %v1989
  %v1991 = vsel %vm533, %v1982, 0.0
  %v1992 = vadd.f32 %v1990, %v1991
  %v1993 = vsel %vm533, %v1983, 0.0
  %v1994 = vadd.f32 %v1992, %v1993
  %v1995 = vsel %vm533, %v1984, 0.0
  %v1996 = vadd.f32 %v1994, %v1995
  %v1997 = vsel %vm545, %v1985, 0.0
  %v1998 = vadd.f32 %v1996, %v1997
  %v1999 = vrot.slane %v1998, 4
  %v2000 = vadd.f32 %v1998, %v1999
  %v2001 = vrot.slane %v2000, 2
  %v2002 = vadd.f32 %v2000, %v2001
  %v2003 = vrot.slane %v2002, 1
  %v2004 = vadd.f32 %v2002, %v2003
  %v2005 = vmul.f32 %v485, %v2004
  %v2006 = vmul.f32 %v486, %v2004
  %v2007 = vmul.f32 %v487, %v2004
  %v2008 = vmul.f32 %v488, %v2004
  %v2009 = vmul.f32 %v489, %v2004
  %v2010 = vmul.f32 %v490, %v2004
  %v2011 = vmul.f32 %v491, %v2004
  %v2012 = vsel %vm533, %v2005, 0.0
  %2013 = vadd.xlane.f32.xlu0 %v2012
  %v2014 = vpop.xlane.xlu0 %2013
  %v2015 = vsel %vm533, %v2006, 0.0
  %2016 = vadd.xlane.f32.xlu0 %v2015
  %v2017 = vpop.xlane.xlu0 %2016
  %v2018 = vsel %vm533, %v2007, 0.0
  %2019 = vadd.xlane.f32.xlu0 %v2018
  %v2020 = vpop.xlane.xlu0 %2019
  %v2021 = vsel %vm533, %v2008, 0.0
  %2022 = vadd.xlane.f32.xlu0 %v2021
  %v2023 = vpop.xlane.xlu0 %2022
  %v2024 = vsel %vm533, %v2009, 0.0
  %2025 = vadd.xlane.f32.xlu0 %v2024
  %v2026 = vpop.xlane.xlu0 %2025
  %v2027 = vsel %vm533, %v2010, 0.0
  %2028 = vadd.xlane.f32.xlu0 %v2027
  %v2029 = vpop.xlane.xlu0 %2028
  %v2030 = vsel %vm545, %v2011, 0.0
  %2031 = vadd.xlane.f32.xlu0 %v2030
  %v2032 = vpop.xlane.xlu0 %2031
  %v2033 = vrcp.pop %v2014
  %v2034 = vmul.f32 %v1931, %v2033
  %v2035 = vrcp.pop %v2017
  %v2036 = vmul.f32 %v1933, %v2035
  %v2037 = vrcp.pop %v2020
  %v2038 = vmul.f32 %v1935, %v2037
  %v2039 = vrcp.pop %v2023
  %v2040 = vmul.f32 %v1937, %v2039
  %v2041 = vrcp.pop %v2026
  %v2042 = vmul.f32 %v1939, %v2041
  %v2043 = vrcp.pop %v2029
  %v2044 = vmul.f32 %v1941, %v2043
  %v2045 = vrcp.pop %v2032
  %v2046 = vmul.f32 %v1943, %v2045
  %v2047 = vmul.f32 %v2034, %v563
  %v2048 = vmul.f32 %v2036, %v566
  %v2049 = vmul.f32 %v2038, %v569
  %v2050 = vmul.f32 %v2040, %v572
  %v2051 = vmul.f32 %v2042, %v575
  %v2052 = vmul.f32 %v2044, %v578
  %v2053 = vmul.f32 %v2046, %v581
  %2055 = vset.pattern.permute.xlu0 0
  %2056 = vperm.xlu0 %2055, %v2047
  %v2057 = vpop.permute.xlu0 %2056
  %2060 = vset.pattern.permute.xlu0 0
  %2061 = vperm.xlu0 %2060, %v2048
  %v2062 = vpop.permute.xlu0 %2061
  %2065 = vset.pattern.permute.xlu0 0
  %2066 = vperm.xlu0 %2065, %v2049
  %v2067 = vpop.permute.xlu0 %2066
  %2070 = vset.pattern.permute.xlu0 0
  %2071 = vperm.xlu0 %2070, %v2050
  %v2072 = vpop.permute.xlu0 %2071
  %2075 = vset.pattern.permute.xlu0 0
  %2076 = vperm.xlu0 %2075, %v2051
  %v2077 = vpop.permute.xlu0 %2076
  %2080 = vset.pattern.permute.xlu0 0
  %2081 = vperm.xlu0 %2080, %v2052
  %v2082 = vpop.permute.xlu0 %2081
  %2085 = vset.pattern.permute.xlu0 0
  %2086 = vperm.xlu0 %2085, %v2053
  %v2087 = vpop.permute.xlu0 %2086
  %v2089 = vmul.f32 %v2057, %v1833
  %v2090 = vmul.f32 %v2062, %v1833
  %v2091 = vmul.f32 %v2067, %v1833
  %v2092 = vmul.f32 %v2072, %v1833
  %v2093 = vmul.f32 %v2077, %v1833
  %v2094 = vmul.f32 %v2082, %v1833
  %v2095 = vmul.f32 %v2087, %v1833
  %vm2096 = vcmp.ge.s32.totalorder %v456, 8
  %vm2097 = vcmp.lt.s32.totalorder %v456, 16
  %vm2098 = vmand %vm2096, %vm2097
  %v2099 = vsel %vm2098, 1.0, 0.0
  %2100 = vset.pattern.permute.xlu0 1
  %2101 = vperm.xlu0 %2100, %v1797
  %v2102 = vpop.permute.xlu0 %2101
  %2104 = vset.pattern.permute.xlu0 1
  %2105 = vperm.xlu0 %2104, %v1802
  %v2106 = vpop.permute.xlu0 %2105
  %2108 = vset.pattern.permute.xlu0 1
  %2109 = vperm.xlu0 %2108, %v1807
  %v2110 = vpop.permute.xlu0 %2109
  %2112 = vset.pattern.permute.xlu0 1
  %2113 = vperm.xlu0 %2112, %v1812
  %v2114 = vpop.permute.xlu0 %2113
  %2116 = vset.pattern.permute.xlu0 1
  %2117 = vperm.xlu0 %2116, %v1817
  %v2118 = vpop.permute.xlu0 %2117
  %2120 = vset.pattern.permute.xlu0 1
  %2121 = vperm.xlu0 %2120, %v1822
  %v2122 = vpop.permute.xlu0 %2121
  %2124 = vset.pattern.permute.xlu0 1
  %2125 = vperm.xlu0 %2124, %v1827
  %v2126 = vpop.permute.xlu0 %2125
  %v2128 = vsel %vm478, %v2102, -1e+30
  %v2129 = vsel %vm479, %v2106, -1e+30
  %v2130 = vsel %vm480, %v2110, -1e+30
  %v2131 = vsel %vm481, %v2114, -1e+30
  %v2132 = vsel %vm482, %v2118, -1e+30
  %v2133 = vsel %vm483, %v2122, -1e+30
  %v2134 = vsel %vm484, %v2126, -1e+30
  %v2135 = vsel %vm533, %v2128, -inf
  %v2136 = vsel %vm533, %v2129, -inf
  %v2137 = vsel %vm533, %v2130, -inf
  %v2138 = vsel %vm533, %v2131, -inf
  %v2139 = vsel %vm533, %v2132, -inf
  %v2140 = vmax.f32 %v2135, %v2139
  %v2141 = vsel %vm533, %v2133, -inf
  %v2142 = vmax.f32 %v2136, %v2141
  %v2143 = vsel %vm545, %v2134, -inf
  %v2144 = vmax.f32 %v2137, %v2143
  %v2145 = vmax.f32 %v2140, %v2142
  %v2146 = vmax.f32 %v2144, %v2138
  %v2147 = vmax.f32 %v2145, %v2146
  %v2148 = vrot.slane %v2147, 4
  %v2149 = vmax.f32 %v2147, %v2148
  %v2150 = vrot.slane %v2149, 2
  %v2151 = vmax.f32 %v2149, %v2150
  %v2152 = vrot.slane %v2151, 1
  %v2153 = vmax.f32 %v2151, %v2152
  %v2154 = vmul.f32 %v485, %v2153
  %v2155 = vmul.f32 %v486, %v2153
  %v2156 = vmul.f32 %v487, %v2153
  %v2157 = vmul.f32 %v488, %v2153
  %v2158 = vmul.f32 %v489, %v2153
  %v2159 = vmul.f32 %v490, %v2153
  %v2160 = vmul.f32 %v491, %v2153
  %v2161 = vsel %vm533, %v2154, 0.0
  %2162 = vadd.xlane.f32.xlu0 %v2161
  %v2163 = vpop.xlane.xlu0 %2162
  %v2164 = vsel %vm533, %v2155, 0.0
  %2165 = vadd.xlane.f32.xlu0 %v2164
  %v2166 = vpop.xlane.xlu0 %2165
  %v2167 = vsel %vm533, %v2156, 0.0
  %2168 = vadd.xlane.f32.xlu0 %v2167
  %v2169 = vpop.xlane.xlu0 %2168
  %v2170 = vsel %vm533, %v2157, 0.0
  %2171 = vadd.xlane.f32.xlu0 %v2170
  %v2172 = vpop.xlane.xlu0 %2171
  %v2173 = vsel %vm533, %v2158, 0.0
  %2174 = vadd.xlane.f32.xlu0 %v2173
  %v2175 = vpop.xlane.xlu0 %2174
  %v2176 = vsel %vm533, %v2159, 0.0
  %2177 = vadd.xlane.f32.xlu0 %v2176
  %v2178 = vpop.xlane.xlu0 %2177
  %v2179 = vsel %vm545, %v2160, 0.0
  %2180 = vadd.xlane.f32.xlu0 %v2179
  %v2181 = vpop.xlane.xlu0 %2180
  %v2182 = vsub.f32 %v1797, %v2163
  %v2183 = vsub.f32 %v1802, %v2166
  %v2184 = vsub.f32 %v1807, %v2169
  %v2185 = vsub.f32 %v1812, %v2172
  %v2186 = vsub.f32 %v1817, %v2175
  %v2187 = vsub.f32 %v1822, %v2178
  %v2188 = vsub.f32 %v1827, %v2181
  %v2189 = vmul.f32 %v2182, 1.442695
  %v2190 = vpow.pop %v2189
  %v2191 = vmul.f32 %v2183, 1.442695
  %v2192 = vpow.pop %v2191
  %v2193 = vmul.f32 %v2184, 1.442695
  %v2194 = vpow.pop %v2193
  %v2195 = vmul.f32 %v2185, 1.442695
  %v2196 = vpow.pop %v2195
  %v2197 = vmul.f32 %v2186, 1.442695
  %v2198 = vpow.pop %v2197
  %v2199 = vmul.f32 %v2187, 1.442695
  %v2200 = vpow.pop %v2199
  %v2201 = vmul.f32 %v2188, 1.442695
  %v2202 = vpow.pop %v2201
  %2204 = vset.pattern.permute.xlu0 1
  %2205 = vperm.xlu0 %2204, %v2190
  %v2206 = vpop.permute.xlu0 %2205
  %2209 = vset.pattern.permute.xlu0 1
  %2210 = vperm.xlu0 %2209, %v2192
  %v2211 = vpop.permute.xlu0 %2210
  %2214 = vset.pattern.permute.xlu0 1
  %2215 = vperm.xlu0 %2214, %v2194
  %v2216 = vpop.permute.xlu0 %2215
  %2219 = vset.pattern.permute.xlu0 1
  %2220 = vperm.xlu0 %2219, %v2196
  %v2221 = vpop.permute.xlu0 %2220
  %2224 = vset.pattern.permute.xlu0 1
  %2225 = vperm.xlu0 %2224, %v2198
  %v2226 = vpop.permute.xlu0 %2225
  %2229 = vset.pattern.permute.xlu0 1
  %2230 = vperm.xlu0 %2229, %v2200
  %v2231 = vpop.permute.xlu0 %2230
  %2234 = vset.pattern.permute.xlu0 1
  %2235 = vperm.xlu0 %2234, %v2202
  %v2236 = vpop.permute.xlu0 %2235
  %v2238 = vmul.f32 %v485, %v2206
  %v2239 = vmul.f32 %v486, %v2211
  %v2240 = vmul.f32 %v487, %v2216
  %v2241 = vmul.f32 %v488, %v2221
  %v2242 = vmul.f32 %v489, %v2226
  %v2243 = vmul.f32 %v490, %v2231
  %v2244 = vmul.f32 %v491, %v2236
  %v2245 = vsel %vm533, %v2238, 0.0
  %v2246 = vsel %vm533, %v2239, 0.0
  %v2247 = vadd.f32 %v2245, %v2246
  %v2248 = vsel %vm533, %v2240, 0.0
  %v2249 = vadd.f32 %v2247, %v2248
  %v2250 = vsel %vm533, %v2241, 0.0
  %v2251 = vadd.f32 %v2249, %v2250
  %v2252 = vsel %vm533, %v2242, 0.0
  %v2253 = vadd.f32 %v2251, %v2252
  %v2254 = vsel %vm533, %v2243, 0.0
  %v2255 = vadd.f32 %v2253, %v2254
  %v2256 = vsel %vm545, %v2244, 0.0
  %v2257 = vadd.f32 %v2255, %v2256
  %v2258 = vrot.slane %v2257, 4
  %v2259 = vadd.f32 %v2257, %v2258
  %v2260 = vrot.slane %v2259, 2
  %v2261 = vadd.f32 %v2259, %v2260
  %v2262 = vrot.slane %v2261, 1
  %v2263 = vadd.f32 %v2261, %v2262
  %v2264 = vmul.f32 %v485, %v2263
  %v2265 = vmul.f32 %v486, %v2263
  %v2266 = vmul.f32 %v487, %v2263
  %v2267 = vmul.f32 %v488, %v2263
  %v2268 = vmul.f32 %v489, %v2263
  %v2269 = vmul.f32 %v490, %v2263
  %v2270 = vmul.f32 %v491, %v2263
  %v2271 = vsel %vm533, %v2264, 0.0
  %2272 = vadd.xlane.f32.xlu0 %v2271
  %v2273 = vpop.xlane.xlu0 %2272
  %v2274 = vsel %vm533, %v2265, 0.0
  %2275 = vadd.xlane.f32.xlu0 %v2274
  %v2276 = vpop.xlane.xlu0 %2275
  %v2277 = vsel %vm533, %v2266, 0.0
  %2278 = vadd.xlane.f32.xlu0 %v2277
  %v2279 = vpop.xlane.xlu0 %2278
  %v2280 = vsel %vm533, %v2267, 0.0
  %2281 = vadd.xlane.f32.xlu0 %v2280
  %v2282 = vpop.xlane.xlu0 %2281
  %v2283 = vsel %vm533, %v2268, 0.0
  %2284 = vadd.xlane.f32.xlu0 %v2283
  %v2285 = vpop.xlane.xlu0 %2284
  %v2286 = vsel %vm533, %v2269, 0.0
  %2287 = vadd.xlane.f32.xlu0 %v2286
  %v2288 = vpop.xlane.xlu0 %2287
  %v2289 = vsel %vm545, %v2270, 0.0
  %2290 = vadd.xlane.f32.xlu0 %v2289
  %v2291 = vpop.xlane.xlu0 %2290
  %v2292 = vrcp.pop %v2273
  %v2293 = vmul.f32 %v2190, %v2292
  %v2294 = vrcp.pop %v2276
  %v2295 = vmul.f32 %v2192, %v2294
  %v2296 = vrcp.pop %v2279
  %v2297 = vmul.f32 %v2194, %v2296
  %v2298 = vrcp.pop %v2282
  %v2299 = vmul.f32 %v2196, %v2298
  %v2300 = vrcp.pop %v2285
  %v2301 = vmul.f32 %v2198, %v2300
  %v2302 = vrcp.pop %v2288
  %v2303 = vmul.f32 %v2200, %v2302
  %v2304 = vrcp.pop %v2291
  %v2305 = vmul.f32 %v2202, %v2304
  %v2306 = vmul.f32 %v2293, %v563
  %v2307 = vmul.f32 %v2295, %v566
  %v2308 = vmul.f32 %v2297, %v569
  %v2309 = vmul.f32 %v2299, %v572
  %v2310 = vmul.f32 %v2301, %v575
  %v2311 = vmul.f32 %v2303, %v578
  %v2312 = vmul.f32 %v2305, %v581
  %2314 = vset.pattern.permute.xlu0 1
  %2315 = vperm.xlu0 %2314, %v2306
  %v2316 = vpop.permute.xlu0 %2315
  %2319 = vset.pattern.permute.xlu0 1
  %2320 = vperm.xlu0 %2319, %v2307
  %v2321 = vpop.permute.xlu0 %2320
  %2324 = vset.pattern.permute.xlu0 1
  %2325 = vperm.xlu0 %2324, %v2308
  %v2326 = vpop.permute.xlu0 %2325
  %2329 = vset.pattern.permute.xlu0 1
  %2330 = vperm.xlu0 %2329, %v2309
  %v2331 = vpop.permute.xlu0 %2330
  %2334 = vset.pattern.permute.xlu0 1
  %2335 = vperm.xlu0 %2334, %v2310
  %v2336 = vpop.permute.xlu0 %2335
  %2339 = vset.pattern.permute.xlu0 1
  %2340 = vperm.xlu0 %2339, %v2311
  %v2341 = vpop.permute.xlu0 %2340
  %2344 = vset.pattern.permute.xlu0 1
  %2345 = vperm.xlu0 %2344, %v2312
  %v2346 = vpop.permute.xlu0 %2345
  %v2348 = vmul.f32 %v2316, %v2099
  %v2349 = vmul.f32 %v2321, %v2099
  %v2350 = vmul.f32 %v2326, %v2099
  %v2351 = vmul.f32 %v2331, %v2099
  %v2352 = vmul.f32 %v2336, %v2099
  %v2353 = vmul.f32 %v2341, %v2099
  %v2354 = vmul.f32 %v2346, %v2099
  %v2355 = vadd.f32 %v2089, %v2348
  %v2356 = vadd.f32 %v2090, %v2349
  %v2357 = vadd.f32 %v2091, %v2350
  %v2358 = vadd.f32 %v2092, %v2351
  %v2359 = vadd.f32 %v2093, %v2352
  %v2360 = vadd.f32 %v2094, %v2353
  %v2361 = vadd.f32 %v2095, %v2354
  %vm2362 = vcmp.ge.s32.totalorder %v456, 16
  %vm2363 = vcmp.lt.s32.totalorder %v456, 24
  %vm2364 = vmand %vm2362, %vm2363
  %v2365 = vsel %vm2364, 1.0, 0.0
  %2366 = vset.pattern.permute.xlu0 2
  %2367 = vperm.xlu0 %2366, %v1797
  %v2368 = vpop.permute.xlu0 %2367
  %2370 = vset.pattern.permute.xlu0 2
  %2371 = vperm.xlu0 %2370, %v1802
  %v2372 = vpop.permute.xlu0 %2371
  %2374 = vset.pattern.permute.xlu0 2
  %2375 = vperm.xlu0 %2374, %v1807
  %v2376 = vpop.permute.xlu0 %2375
  %2378 = vset.pattern.permute.xlu0 2
  %2379 = vperm.xlu0 %2378, %v1812
  %v2380 = vpop.permute.xlu0 %2379
  %2382 = vset.pattern.permute.xlu0 2
  %2383 = vperm.xlu0 %2382, %v1817
  %v2384 = vpop.permute.xlu0 %2383
  %2386 = vset.pattern.permute.xlu0 2
  %2387 = vperm.xlu0 %2386, %v1822
  %v2388 = vpop.permute.xlu0 %2387
  %2390 = vset.pattern.permute.xlu0 2
  %2391 = vperm.xlu0 %2390, %v1827
  %v2392 = vpop.permute.xlu0 %2391
  %v2394 = vsel %vm478, %v2368, -1e+30
  %v2395 = vsel %vm479, %v2372, -1e+30
  %v2396 = vsel %vm480, %v2376, -1e+30
  %v2397 = vsel %vm481, %v2380, -1e+30
  %v2398 = vsel %vm482, %v2384, -1e+30
  %v2399 = vsel %vm483, %v2388, -1e+30
  %v2400 = vsel %vm484, %v2392, -1e+30
  %v2401 = vsel %vm533, %v2394, -inf
  %v2402 = vsel %vm533, %v2395, -inf
  %v2403 = vsel %vm533, %v2396, -inf
  %v2404 = vsel %vm533, %v2397, -inf
  %v2405 = vsel %vm533, %v2398, -inf
  %v2406 = vmax.f32 %v2401, %v2405
  %v2407 = vsel %vm533, %v2399, -inf
  %v2408 = vmax.f32 %v2402, %v2407
  %v2409 = vsel %vm545, %v2400, -inf
  %v2410 = vmax.f32 %v2403, %v2409
  %v2411 = vmax.f32 %v2406, %v2408
  %v2412 = vmax.f32 %v2410, %v2404
  %v2413 = vmax.f32 %v2411, %v2412
  %v2414 = vrot.slane %v2413, 4
  %v2415 = vmax.f32 %v2413, %v2414
  %v2416 = vrot.slane %v2415, 2
  %v2417 = vmax.f32 %v2415, %v2416
  %v2418 = vrot.slane %v2417, 1
  %v2419 = vmax.f32 %v2417, %v2418
  %v2420 = vmul.f32 %v485, %v2419
  %v2421 = vmul.f32 %v486, %v2419
  %v2422 = vmul.f32 %v487, %v2419
  %v2423 = vmul.f32 %v488, %v2419
  %v2424 = vmul.f32 %v489, %v2419
  %v2425 = vmul.f32 %v490, %v2419
  %v2426 = vmul.f32 %v491, %v2419
  %v2427 = vsel %vm533, %v2420, 0.0
  %2428 = vadd.xlane.f32.xlu0 %v2427
  %v2429 = vpop.xlane.xlu0 %2428
  %v2430 = vsel %vm533, %v2421, 0.0
  %2431 = vadd.xlane.f32.xlu0 %v2430
  %v2432 = vpop.xlane.xlu0 %2431
  %v2433 = vsel %vm533, %v2422, 0.0
  %2434 = vadd.xlane.f32.xlu0 %v2433
  %v2435 = vpop.xlane.xlu0 %2434
  %v2436 = vsel %vm533, %v2423, 0.0
  %2437 = vadd.xlane.f32.xlu0 %v2436
  %v2438 = vpop.xlane.xlu0 %2437
  %v2439 = vsel %vm533, %v2424, 0.0
  %2440 = vadd.xlane.f32.xlu0 %v2439
  %v2441 = vpop.xlane.xlu0 %2440
  %v2442 = vsel %vm533, %v2425, 0.0
  %2443 = vadd.xlane.f32.xlu0 %v2442
  %v2444 = vpop.xlane.xlu0 %2443
  %v2445 = vsel %vm545, %v2426, 0.0
  %2446 = vadd.xlane.f32.xlu0 %v2445
  %v2447 = vpop.xlane.xlu0 %2446
  %v2448 = vsub.f32 %v1797, %v2429
  %v2449 = vsub.f32 %v1802, %v2432
  %v2450 = vsub.f32 %v1807, %v2435
  %v2451 = vsub.f32 %v1812, %v2438
  %v2452 = vsub.f32 %v1817, %v2441
  %v2453 = vsub.f32 %v1822, %v2444
  %v2454 = vsub.f32 %v1827, %v2447
  %v2455 = vmul.f32 %v2448, 1.442695
  %v2456 = vpow.pop %v2455
  %v2457 = vmul.f32 %v2449, 1.442695
  %v2458 = vpow.pop %v2457
  %v2459 = vmul.f32 %v2450, 1.442695
  %v2460 = vpow.pop %v2459
  %v2461 = vmul.f32 %v2451, 1.442695
  %v2462 = vpow.pop %v2461
  %v2463 = vmul.f32 %v2452, 1.442695
  %v2464 = vpow.pop %v2463
  %v2465 = vmul.f32 %v2453, 1.442695
  %v2466 = vpow.pop %v2465
  %v2467 = vmul.f32 %v2454, 1.442695
  %v2468 = vpow.pop %v2467
  %2470 = vset.pattern.permute.xlu0 2
  %2471 = vperm.xlu0 %2470, %v2456
  %v2472 = vpop.permute.xlu0 %2471
  %2475 = vset.pattern.permute.xlu0 2
  %2476 = vperm.xlu0 %2475, %v2458
  %v2477 = vpop.permute.xlu0 %2476
  %2480 = vset.pattern.permute.xlu0 2
  %2481 = vperm.xlu0 %2480, %v2460
  %v2482 = vpop.permute.xlu0 %2481
  %2485 = vset.pattern.permute.xlu0 2
  %2486 = vperm.xlu0 %2485, %v2462
  %v2487 = vpop.permute.xlu0 %2486
  %2490 = vset.pattern.permute.xlu0 2
  %2491 = vperm.xlu0 %2490, %v2464
  %v2492 = vpop.permute.xlu0 %2491
  %2495 = vset.pattern.permute.xlu0 2
  %2496 = vperm.xlu0 %2495, %v2466
  %v2497 = vpop.permute.xlu0 %2496
  %2500 = vset.pattern.permute.xlu0 2
  %2501 = vperm.xlu0 %2500, %v2468
  %v2502 = vpop.permute.xlu0 %2501
  %v2504 = vmul.f32 %v485, %v2472
  %v2505 = vmul.f32 %v486, %v2477
  %v2506 = vmul.f32 %v487, %v2482
  %v2507 = vmul.f32 %v488, %v2487
  %v2508 = vmul.f32 %v489, %v2492
  %v2509 = vmul.f32 %v490, %v2497
  %v2510 = vmul.f32 %v491, %v2502
  %v2511 = vsel %vm533, %v2504, 0.0
  %v2512 = vsel %vm533, %v2505, 0.0
  %v2513 = vadd.f32 %v2511, %v2512
  %v2514 = vsel %vm533, %v2506, 0.0
  %v2515 = vadd.f32 %v2513, %v2514
  %v2516 = vsel %vm533, %v2507, 0.0
  %v2517 = vadd.f32 %v2515, %v2516
  %v2518 = vsel %vm533, %v2508, 0.0
  %v2519 = vadd.f32 %v2517, %v2518
  %v2520 = vsel %vm533, %v2509, 0.0
  %v2521 = vadd.f32 %v2519, %v2520
  %v2522 = vsel %vm545, %v2510, 0.0
  %v2523 = vadd.f32 %v2521, %v2522
  %v2524 = vrot.slane %v2523, 4
  %v2525 = vadd.f32 %v2523, %v2524
  %v2526 = vrot.slane %v2525, 2
  %v2527 = vadd.f32 %v2525, %v2526
  %v2528 = vrot.slane %v2527, 1
  %v2529 = vadd.f32 %v2527, %v2528
  %v2530 = vmul.f32 %v485, %v2529
  %v2531 = vmul.f32 %v486, %v2529
  %v2532 = vmul.f32 %v487, %v2529
  %v2533 = vmul.f32 %v488, %v2529
  %v2534 = vmul.f32 %v489, %v2529
  %v2535 = vmul.f32 %v490, %v2529
  %v2536 = vmul.f32 %v491, %v2529
  %v2537 = vsel %vm533, %v2530, 0.0
  %2538 = vadd.xlane.f32.xlu0 %v2537
  %v2539 = vpop.xlane.xlu0 %2538
  %v2540 = vsel %vm533, %v2531, 0.0
  %2541 = vadd.xlane.f32.xlu0 %v2540
  %v2542 = vpop.xlane.xlu0 %2541
  %v2543 = vsel %vm533, %v2532, 0.0
  %2544 = vadd.xlane.f32.xlu0 %v2543
  %v2545 = vpop.xlane.xlu0 %2544
  %v2546 = vsel %vm533, %v2533, 0.0
  %2547 = vadd.xlane.f32.xlu0 %v2546
  %v2548 = vpop.xlane.xlu0 %2547
  %v2549 = vsel %vm533, %v2534, 0.0
  %2550 = vadd.xlane.f32.xlu0 %v2549
  %v2551 = vpop.xlane.xlu0 %2550
  %v2552 = vsel %vm533, %v2535, 0.0
  %2553 = vadd.xlane.f32.xlu0 %v2552
  %v2554 = vpop.xlane.xlu0 %2553
  %v2555 = vsel %vm545, %v2536, 0.0
  %2556 = vadd.xlane.f32.xlu0 %v2555
  %v2557 = vpop.xlane.xlu0 %2556
  %v2558 = vrcp.pop %v2539
  %v2559 = vmul.f32 %v2456, %v2558
  %v2560 = vrcp.pop %v2542
  %v2561 = vmul.f32 %v2458, %v2560
  %v2562 = vrcp.pop %v2545
  %v2563 = vmul.f32 %v2460, %v2562
  %v2564 = vrcp.pop %v2548
  %v2565 = vmul.f32 %v2462, %v2564
  %v2566 = vrcp.pop %v2551
  %v2567 = vmul.f32 %v2464, %v2566
  %v2568 = vrcp.pop %v2554
  %v2569 = vmul.f32 %v2466, %v2568
  %v2570 = vrcp.pop %v2557
  %v2571 = vmul.f32 %v2468, %v2570
  %v2572 = vmul.f32 %v2559, %v563
  %v2573 = vmul.f32 %v2561, %v566
  %v2574 = vmul.f32 %v2563, %v569
  %v2575 = vmul.f32 %v2565, %v572
  %v2576 = vmul.f32 %v2567, %v575
  %v2577 = vmul.f32 %v2569, %v578
  %v2578 = vmul.f32 %v2571, %v581
  %2580 = vset.pattern.permute.xlu0 2
  %2581 = vperm.xlu0 %2580, %v2572
  %v2582 = vpop.permute.xlu0 %2581
  %2585 = vset.pattern.permute.xlu0 2
  %2586 = vperm.xlu0 %2585, %v2573
  %v2587 = vpop.permute.xlu0 %2586
  %2590 = vset.pattern.permute.xlu0 2
  %2591 = vperm.xlu0 %2590, %v2574
  %v2592 = vpop.permute.xlu0 %2591
  %2595 = vset.pattern.permute.xlu0 2
  %2596 = vperm.xlu0 %2595, %v2575
  %v2597 = vpop.permute.xlu0 %2596
  %2600 = vset.pattern.permute.xlu0 2
  %2601 = vperm.xlu0 %2600, %v2576
  %v2602 = vpop.permute.xlu0 %2601
  %2605 = vset.pattern.permute.xlu0 2
  %2606 = vperm.xlu0 %2605, %v2577
  %v2607 = vpop.permute.xlu0 %2606
  %2610 = vset.pattern.permute.xlu0 2
  %2611 = vperm.xlu0 %2610, %v2578
  %v2612 = vpop.permute.xlu0 %2611
  %v2614 = vmul.f32 %v2582, %v2365
  %v2615 = vmul.f32 %v2587, %v2365
  %v2616 = vmul.f32 %v2592, %v2365
  %v2617 = vmul.f32 %v2597, %v2365
  %v2618 = vmul.f32 %v2602, %v2365
  %v2619 = vmul.f32 %v2607, %v2365
  %v2620 = vmul.f32 %v2612, %v2365
  %v2621 = vadd.f32 %v2355, %v2614
  %v2622 = vadd.f32 %v2356, %v2615
  %v2623 = vadd.f32 %v2357, %v2616
  %v2624 = vadd.f32 %v2358, %v2617
  %v2625 = vadd.f32 %v2359, %v2618
  %v2626 = vadd.f32 %v2360, %v2619
  %v2627 = vadd.f32 %v2361, %v2620
  %vm2628 = vcmp.ge.s32.totalorder %v456, 24
  %vm2629 = vcmp.lt.s32.totalorder %v456, 32
  %vm2630 = vmand %vm2628, %vm2629
  %v2631 = vsel %vm2630, 1.0, 0.0
  %2632 = vset.pattern.permute.xlu0 3
  %2633 = vperm.xlu0 %2632, %v1797
  %v2634 = vpop.permute.xlu0 %2633
  %2636 = vset.pattern.permute.xlu0 3
  %2637 = vperm.xlu0 %2636, %v1802
  %v2638 = vpop.permute.xlu0 %2637
  %2640 = vset.pattern.permute.xlu0 3
  %2641 = vperm.xlu0 %2640, %v1807
  %v2642 = vpop.permute.xlu0 %2641
  %2644 = vset.pattern.permute.xlu0 3
  %2645 = vperm.xlu0 %2644, %v1812
  %v2646 = vpop.permute.xlu0 %2645
  %2648 = vset.pattern.permute.xlu0 3
  %2649 = vperm.xlu0 %2648, %v1817
  %v2650 = vpop.permute.xlu0 %2649
  %2652 = vset.pattern.permute.xlu0 3
  %2653 = vperm.xlu0 %2652, %v1822
  %v2654 = vpop.permute.xlu0 %2653
  %2656 = vset.pattern.permute.xlu0 3
  %2657 = vperm.xlu0 %2656, %v1827
  %v2658 = vpop.permute.xlu0 %2657
  %v2660 = vsel %vm478, %v2634, -1e+30
  %v2661 = vsel %vm479, %v2638, -1e+30
  %v2662 = vsel %vm480, %v2642, -1e+30
  %v2663 = vsel %vm481, %v2646, -1e+30
  %v2664 = vsel %vm482, %v2650, -1e+30
  %v2665 = vsel %vm483, %v2654, -1e+30
  %v2666 = vsel %vm484, %v2658, -1e+30
  %v2667 = vsel %vm533, %v2660, -inf
  %v2668 = vsel %vm533, %v2661, -inf
  %v2669 = vsel %vm533, %v2662, -inf
  %v2670 = vsel %vm533, %v2663, -inf
  %v2671 = vsel %vm533, %v2664, -inf
  %v2672 = vmax.f32 %v2667, %v2671
  %v2673 = vsel %vm533, %v2665, -inf
  %v2674 = vmax.f32 %v2668, %v2673
  %v2675 = vsel %vm545, %v2666, -inf
  %v2676 = vmax.f32 %v2669, %v2675
  %v2677 = vmax.f32 %v2672, %v2674
  %v2678 = vmax.f32 %v2676, %v2670
  %v2679 = vmax.f32 %v2677, %v2678
  %v2680 = vrot.slane %v2679, 4
  %v2681 = vmax.f32 %v2679, %v2680
  %v2682 = vrot.slane %v2681, 2
  %v2683 = vmax.f32 %v2681, %v2682
  %v2684 = vrot.slane %v2683, 1
  %v2685 = vmax.f32 %v2683, %v2684
  %v2686 = vmul.f32 %v485, %v2685
  %v2687 = vmul.f32 %v486, %v2685
  %v2688 = vmul.f32 %v487, %v2685
  %v2689 = vmul.f32 %v488, %v2685
  %v2690 = vmul.f32 %v489, %v2685
  %v2691 = vmul.f32 %v490, %v2685
  %v2692 = vmul.f32 %v491, %v2685
  %v2693 = vsel %vm533, %v2686, 0.0
  %2694 = vadd.xlane.f32.xlu0 %v2693
  %v2695 = vpop.xlane.xlu0 %2694
  %v2696 = vsel %vm533, %v2687, 0.0
  %2697 = vadd.xlane.f32.xlu0 %v2696
  %v2698 = vpop.xlane.xlu0 %2697
  %v2699 = vsel %vm533, %v2688, 0.0
  %2700 = vadd.xlane.f32.xlu0 %v2699
  %v2701 = vpop.xlane.xlu0 %2700
  %v2702 = vsel %vm533, %v2689, 0.0
  %2703 = vadd.xlane.f32.xlu0 %v2702
  %v2704 = vpop.xlane.xlu0 %2703
  %v2705 = vsel %vm533, %v2690, 0.0
  %2706 = vadd.xlane.f32.xlu0 %v2705
  %v2707 = vpop.xlane.xlu0 %2706
  %v2708 = vsel %vm533, %v2691, 0.0
  %2709 = vadd.xlane.f32.xlu0 %v2708
  %v2710 = vpop.xlane.xlu0 %2709
  %v2711 = vsel %vm545, %v2692, 0.0
  %2712 = vadd.xlane.f32.xlu0 %v2711
  %v2713 = vpop.xlane.xlu0 %2712
  %v2714 = vsub.f32 %v1797, %v2695
  %v2715 = vsub.f32 %v1802, %v2698
  %v2716 = vsub.f32 %v1807, %v2701
  %v2717 = vsub.f32 %v1812, %v2704
  %v2718 = vsub.f32 %v1817, %v2707
  %v2719 = vsub.f32 %v1822, %v2710
  %v2720 = vsub.f32 %v1827, %v2713
  %v2721 = vmul.f32 %v2714, 1.442695
  %v2722 = vpow.pop %v2721
  %v2723 = vmul.f32 %v2715, 1.442695
  %v2724 = vpow.pop %v2723
  %v2725 = vmul.f32 %v2716, 1.442695
  %v2726 = vpow.pop %v2725
  %v2727 = vmul.f32 %v2717, 1.442695
  %v2728 = vpow.pop %v2727
  %v2729 = vmul.f32 %v2718, 1.442695
  %v2730 = vpow.pop %v2729
  %v2731 = vmul.f32 %v2719, 1.442695
  %v2732 = vpow.pop %v2731
  %v2733 = vmul.f32 %v2720, 1.442695
  %v2734 = vpow.pop %v2733
  %2736 = vset.pattern.permute.xlu0 3
  %2737 = vperm.xlu0 %2736, %v2722
  %v2738 = vpop.permute.xlu0 %2737
  %2741 = vset.pattern.permute.xlu0 3
  %2742 = vperm.xlu0 %2741, %v2724
  %v2743 = vpop.permute.xlu0 %2742
  %2746 = vset.pattern.permute.xlu0 3
  %2747 = vperm.xlu0 %2746, %v2726
  %v2748 = vpop.permute.xlu0 %2747
  %2751 = vset.pattern.permute.xlu0 3
  %2752 = vperm.xlu0 %2751, %v2728
  %v2753 = vpop.permute.xlu0 %2752
  %2756 = vset.pattern.permute.xlu0 3
  %2757 = vperm.xlu0 %2756, %v2730
  %v2758 = vpop.permute.xlu0 %2757
  %2761 = vset.pattern.permute.xlu0 3
  %2762 = vperm.xlu0 %2761, %v2732
  %v2763 = vpop.permute.xlu0 %2762
  %2766 = vset.pattern.permute.xlu0 3
  %2767 = vperm.xlu0 %2766, %v2734
  %v2768 = vpop.permute.xlu0 %2767
  %v2770 = vmul.f32 %v485, %v2738
  %v2771 = vmul.f32 %v486, %v2743
  %v2772 = vmul.f32 %v487, %v2748
  %v2773 = vmul.f32 %v488, %v2753
  %v2774 = vmul.f32 %v489, %v2758
  %v2775 = vmul.f32 %v490, %v2763
  %v2776 = vmul.f32 %v491, %v2768
  %v2777 = vsel %vm533, %v2770, 0.0
  %v2778 = vsel %vm533, %v2771, 0.0
  %v2779 = vadd.f32 %v2777, %v2778
  %v2780 = vsel %vm533, %v2772, 0.0
  %v2781 = vadd.f32 %v2779, %v2780
  %v2782 = vsel %vm533, %v2773, 0.0
  %v2783 = vadd.f32 %v2781, %v2782
  %v2784 = vsel %vm533, %v2774, 0.0
  %v2785 = vadd.f32 %v2783, %v2784
  %v2786 = vsel %vm533, %v2775, 0.0
  %v2787 = vadd.f32 %v2785, %v2786
  %v2788 = vsel %vm545, %v2776, 0.0
  %v2789 = vadd.f32 %v2787, %v2788
  %v2790 = vrot.slane %v2789, 4
  %v2791 = vadd.f32 %v2789, %v2790
  %v2792 = vrot.slane %v2791, 2
  %v2793 = vadd.f32 %v2791, %v2792
  %v2794 = vrot.slane %v2793, 1
  %v2795 = vadd.f32 %v2793, %v2794
  %v2796 = vmul.f32 %v485, %v2795
  %v2797 = vmul.f32 %v486, %v2795
  %v2798 = vmul.f32 %v487, %v2795
  %v2799 = vmul.f32 %v488, %v2795
  %v2800 = vmul.f32 %v489, %v2795
  %v2801 = vmul.f32 %v490, %v2795
  %v2802 = vmul.f32 %v491, %v2795
  %v2803 = vsel %vm533, %v2796, 0.0
  %2804 = vadd.xlane.f32.xlu0 %v2803
  %v2805 = vpop.xlane.xlu0 %2804
  %v2806 = vsel %vm533, %v2797, 0.0
  %2807 = vadd.xlane.f32.xlu0 %v2806
  %v2808 = vpop.xlane.xlu0 %2807
  %v2809 = vsel %vm533, %v2798, 0.0
  %2810 = vadd.xlane.f32.xlu0 %v2809
  %v2811 = vpop.xlane.xlu0 %2810
  %v2812 = vsel %vm533, %v2799, 0.0
  %2813 = vadd.xlane.f32.xlu0 %v2812
  %v2814 = vpop.xlane.xlu0 %2813
  %v2815 = vsel %vm533, %v2800, 0.0
  %2816 = vadd.xlane.f32.xlu0 %v2815
  %v2817 = vpop.xlane.xlu0 %2816
  %v2818 = vsel %vm533, %v2801, 0.0
  %2819 = vadd.xlane.f32.xlu0 %v2818
  %v2820 = vpop.xlane.xlu0 %2819
  %v2821 = vsel %vm545, %v2802, 0.0
  %2822 = vadd.xlane.f32.xlu0 %v2821
  %v2823 = vpop.xlane.xlu0 %2822
  %v2824 = vrcp.pop %v2805
  %v2825 = vmul.f32 %v2722, %v2824
  %v2826 = vrcp.pop %v2808
  %v2827 = vmul.f32 %v2724, %v2826
  %v2828 = vrcp.pop %v2811
  %v2829 = vmul.f32 %v2726, %v2828
  %v2830 = vrcp.pop %v2814
  %v2831 = vmul.f32 %v2728, %v2830
  %v2832 = vrcp.pop %v2817
  %v2833 = vmul.f32 %v2730, %v2832
  %v2834 = vrcp.pop %v2820
  %v2835 = vmul.f32 %v2732, %v2834
  %v2836 = vrcp.pop %v2823
  %v2837 = vmul.f32 %v2734, %v2836
  %v2838 = vmul.f32 %v2825, %v563
  %v2839 = vmul.f32 %v2827, %v566
  %v2840 = vmul.f32 %v2829, %v569
  %v2841 = vmul.f32 %v2831, %v572
  %v2842 = vmul.f32 %v2833, %v575
  %v2843 = vmul.f32 %v2835, %v578
  %v2844 = vmul.f32 %v2837, %v581
  %2846 = vset.pattern.permute.xlu0 3
  %2847 = vperm.xlu0 %2846, %v2838
  %v2848 = vpop.permute.xlu0 %2847
  %2851 = vset.pattern.permute.xlu0 3
  %2852 = vperm.xlu0 %2851, %v2839
  %v2853 = vpop.permute.xlu0 %2852
  %2856 = vset.pattern.permute.xlu0 3
  %2857 = vperm.xlu0 %2856, %v2840
  %v2858 = vpop.permute.xlu0 %2857
  %2861 = vset.pattern.permute.xlu0 3
  %2862 = vperm.xlu0 %2861, %v2841
  %v2863 = vpop.permute.xlu0 %2862
  %2866 = vset.pattern.permute.xlu0 3
  %2867 = vperm.xlu0 %2866, %v2842
  %v2868 = vpop.permute.xlu0 %2867
  %2871 = vset.pattern.permute.xlu0 3
  %2872 = vperm.xlu0 %2871, %v2843
  %v2873 = vpop.permute.xlu0 %2872
  %2876 = vset.pattern.permute.xlu0 3
  %2877 = vperm.xlu0 %2876, %v2844
  %v2878 = vpop.permute.xlu0 %2877
  %v2880 = vmul.f32 %v2848, %v2631
  %v2881 = vmul.f32 %v2853, %v2631
  %v2882 = vmul.f32 %v2858, %v2631
  %v2883 = vmul.f32 %v2863, %v2631
  %v2884 = vmul.f32 %v2868, %v2631
  %v2885 = vmul.f32 %v2873, %v2631
  %v2886 = vmul.f32 %v2878, %v2631
  %v2887 = vadd.f32 %v2621, %v2880
  %v2888 = vadd.f32 %v2622, %v2881
  %v2889 = vadd.f32 %v2623, %v2882
  %v2890 = vadd.f32 %v2624, %v2883
  %v2891 = vadd.f32 %v2625, %v2884
  %v2892 = vadd.f32 %v2626, %v2885
  %v2893 = vadd.f32 %v2627, %v2886
  %2901 = vrot.lane.b32.xlu0 %v2887, 32
  %v2902 = vpop.permute.xlu0 %2901
  %2903 = vrot.lane.b32.xlu0 %v2888, 32
  %v2904 = vpop.permute.xlu0 %2903
  %2905 = vrot.lane.b32.xlu0 %v2889, 32
  %v2906 = vpop.permute.xlu0 %2905
  %2907 = vrot.lane.b32.xlu0 %v2890, 32
  %v2908 = vpop.permute.xlu0 %2907
  %2909 = vrot.lane.b32.xlu0 %v2891, 32
  %v2910 = vpop.permute.xlu0 %2909
  %2911 = vrot.lane.b32.xlu0 %v2892, 32
  %v2912 = vpop.permute.xlu0 %2911
  %2913 = vrot.lane.b32.xlu0 %v2893, 32
  %v2914 = vpop.permute.xlu0 %2913
  %v2922 = vmul.f32 %v1646, %v2902
  %v2923 = vmul.f32 %v1647, %v2904
  %v2924 = vmul.f32 %v1648, %v2906
  %v2925 = vmul.f32 %v1649, %v2908
  %v2926 = vmul.f32 %v1650, %v2910
  %v2927 = vmul.f32 %v1651, %v2912
  %v2928 = vmul.f32 %v1652, %v2914
  %2937 = vrot.lane.b32.xlu0 %v2922, 96
  %v2938 = vpop.permute.xlu0 %2937
  %2939 = vrot.lane.b32.xlu0 %v2923, 96
  %v2940 = vpop.permute.xlu0 %2939
  %2941 = vrot.lane.b32.xlu0 %v2924, 96
  %v2942 = vpop.permute.xlu0 %2941
  %2943 = vrot.lane.b32.xlu0 %v2925, 96
  %v2944 = vpop.permute.xlu0 %2943
  %2945 = vrot.lane.b32.xlu0 %v2926, 96
  %v2946 = vpop.permute.xlu0 %2945
  %2947 = vrot.lane.b32.xlu0 %v2927, 96
  %v2948 = vpop.permute.xlu0 %2947
  %2949 = vrot.lane.b32.xlu0 %v2928, 96
  %v2950 = vpop.permute.xlu0 %2949
  %vm2957 = vcmask 424960
  %v2958 = vsel %vm2957, %v532, 0
  %v2960 = vsel %vm243, %v2950, 0
  %2962 = vmatprep.subr.mxu0 0.0
  %2963 = vmatpush1.msra.mxu0 %v2938
  %2964 = vmatprep.subr.mxu0 0.0
  %2965 = vmatpush1.msra.mxu0 %v2940
  %2966 = vmatprep.subr.mxu0 0.0
  %2967 = vmatpush1.msra.mxu0 %v2942
  %2968 = vmatprep.subr.mxu0 0.0
  %2969 = vmatpush1.msra.mxu0 %v2944
  %2970 = vmatprep.subr.mxu0 0.0
  %2971 = vmatpush1.msra.mxu0 %v2946
  %2972 = vmatprep.subr.mxu0 0.0
  %2973 = vmatpush1.msra.mxu0 %v2948
  %2974 = vmatprep.subr.mxu0 0.0
  %2975 = vmatpush1.msra.mxu0 %v2960
  %2976 = vmatprep.subr.mxu0 0.0
  %2977 = vmatpush1.msra.mxu0 0.0
  %2978 = vmatprep.subr.mxu0 0.0
  %2979 = vmatpush1.msra.mxu0 0.0
  %2980 = vmatprep.subr.mxu0 0.0
  %2981 = vmatpush1.msra.mxu0 0.0
  %2982 = vmatprep.subr.mxu0 0.0
  %2983 = vmatpush1.msra.mxu0 0.0
  %2984 = vmatprep.subr.mxu0 0.0
  %2985 = vmatpush1.msra.mxu0 0.0
  %2986 = vmatprep.subr.mxu0 0.0
  %2987 = vmatpush1.msra.mxu0 0.0
  %2988 = vmatprep.subr.mxu0 0.0
  %2989 = vmatpush1.msra.mxu0 0.0
  %2990 = vmatprep.subr.mxu0 0.0
  %2991 = vmatpush1.msra.mxu0 0.0
  %2992 = vmatprep.subr.mxu0 0.0
  %2993 = vmatpush1.msra.mxu0 0.0
  %2994 = vmatprep.subr.mxu0 0.0
  %2995 = vmatpush1.msra.mxu0 0.0
  %2996 = vmatprep.subr.mxu0 0.0
  %2997 = vmatpush1.msra.mxu0 0.0
  %2998 = vmatprep.subr.mxu0 0.0
  %2999 = vmatpush1.msra.mxu0 0.0
  %3000 = vmatprep.subr.mxu0 0.0
  %3001 = vmatpush1.msra.mxu0 0.0
  %3002 = vmatprep.subr.mxu0 0.0
  %3003 = vmatpush1.msra.mxu0 0.0
  %3004 = vmatprep.subr.mxu0 0.0
  %3005 = vmatpush1.msra.mxu0 0.0
  %3006 = vmatprep.subr.mxu0 0.0
  %3007 = vmatpush1.msra.mxu0 0.0
  %3008 = vmatprep.subr.mxu0 0.0
  %3009 = vmatpush1.msra.mxu0 0.0
  %3010 = vmatprep.subr.mxu0 0.0
  %3011 = vmatpush1.msra.mxu0 0.0
  %3012 = vmatprep.subr.mxu0 0.0
  %3013 = vmatpush1.msra.mxu0 0.0
  %3014 = vmatprep.subr.mxu0 0.0
  %3015 = vmatpush1.msra.mxu0 0.0
  %3016 = vmatprep.subr.mxu0 0.0
  %3017 = vmatpush1.msra.mxu0 0.0
  %3018 = vmatprep.subr.mxu0 0.0
  %3019 = vmatpush1.msra.mxu0 0.0
  %3020 = vmatprep.subr.mxu0 0.0
  %3021 = vmatpush1.msra.mxu0 0.0
  %3022 = vmatprep.subr.mxu0 0.0
  %3023 = vmatpush1.msra.mxu0 0.0
  %3024 = vmatprep.subr.mxu0 0.0
  %3025 = vmatpush1.msra.mxu0 0.0
  %3026 = vmatprep.mubr.f32.mxu0 0.0
  %3027 = vmatmul.mubr.f32.gmra.mrb[0].mxu0 %v2958
  %v3028 = vpop.f32.mrb[0].mxu0
  %v3029 = vadd.f32 0.0, %v3028
  %v3030 = vpop.f32.mrb[0].mxu0
  %3031 = vmatprep.mubr.f32.mxu0 0.0
  %3032 = vmatmul.mubr.f32.gmra.mrb[0].mxu0 %v2958
  %v3033 = vpop.f32.mrb[0].mxu0
  %v3034 = vadd.f32 0.0, %v3033
  %v3035 = vpop.f32.mrb[0].mxu0
  %3036 = vmatprep.mubr.f32.mxu0 0.0
  %3037 = vmatmul.mubr.f32.gmra.mrb[0].mxu0 %v2958
  %v3038 = vpop.f32.mrb[0].mxu0
  %v3039 = vadd.f32 0.0, %v3038
  %v3040 = vpop.f32.mrb[0].mxu0
  %3041 = vmatprep.mubr.f32.mxu0 0.0
  %3042 = vmatmul.mubr.f32.gmra.mrb[0].mxu0 %v2958
  %v3043 = vpop.f32.mrb[0].mxu0
  %v3044 = vadd.f32 0.0, %v3043
  %v3045 = vpop.f32.mrb[0].mxu0
  %3046 = vdwg.mxu0
  %v3047 = vld [vmem:[%s17] sm:$0xff]
  %v3048 = vld [vmem:[%s17 + $0x8] sm:$0xff]
  %v3049 = vld [vmem:[%s17 + $0x10] sm:$0xff]
  %v3050 = vld [vmem:[%s17 + $0x18] sm:$0xff]
  %v3051 = vld [vmem:[%s19] sm:$0xff]
  %v3052 = vld [vmem:[%s19 + $0x8] sm:$0xff]
  %v3053 = vld [vmem:[%s19 + $0x10] sm:$0xff]
  %v3054 = vld [vmem:[%s19 + $0x18] sm:$0xff]
  %v3055 = vld [vmem:[%s18] sm:$0x1]
  %v3056 = vlaneseq
  %v3057 = vshrl.u32 %v3056, 7
  %v3058 = vsub.s32 0, %v3057
  %v3059 = vrot.slane %v3055, %v3058
  %v3061 = vsel %vm533, %v3029, 0
  %v3064 = vsel %vm533, %v3034, 0
  %v3067 = vsel %vm533, %v3039, 0
  %v3070 = vsel %vm533, %v3044, 0
  %3072 = vmatprep.subr.mxu0 0.0
  %3073 = vmatpush1.msra.mxu0 %v3047
  %3074 = vmatprep.subr.mxu0 0.0
  %3075 = vmatpush1.msra.mxu0 %v3048
  %3076 = vmatprep.subr.mxu0 0.0
  %3077 = vmatpush1.msra.mxu0 %v3049
  %3078 = vmatprep.subr.mxu0 0.0
  %3079 = vmatpush1.msra.mxu0 %v3050
  %3080 = vmatprep.subr.mxu0 0.0
  %3081 = vmatpush1.msra.mxu0 0.0
  %3082 = vmatprep.subr.mxu0 0.0
  %3083 = vmatpush1.msra.mxu0 0.0
  %3084 = vmatprep.subr.mxu0 0.0
  %3085 = vmatpush1.msra.mxu0 0.0
  %3086 = vmatprep.subr.mxu0 0.0
  %3087 = vmatpush1.msra.mxu0 0.0
  %3088 = vmatprep.subr.mxu0 0.0
  %3089 = vmatpush1.msra.mxu0 0.0
  %3090 = vmatprep.subr.mxu0 0.0
  %3091 = vmatpush1.msra.mxu0 0.0
  %3092 = vmatprep.subr.mxu0 0.0
  %3093 = vmatpush1.msra.mxu0 0.0
  %3094 = vmatprep.subr.mxu0 0.0
  %3095 = vmatpush1.msra.mxu0 0.0
  %3096 = vmatprep.subr.mxu0 0.0
  %3097 = vmatpush1.msra.mxu0 0.0
  %3098 = vmatprep.subr.mxu0 0.0
  %3099 = vmatpush1.msra.mxu0 0.0
  %3100 = vmatprep.subr.mxu0 0.0
  %3101 = vmatpush1.msra.mxu0 0.0
  %3102 = vmatprep.subr.mxu0 0.0
  %3103 = vmatpush1.msra.mxu0 0.0
  %3104 = vmatprep.subr.mxu0 0.0
  %3105 = vmatpush1.msra.mxu0 0.0
  %3106 = vmatprep.subr.mxu0 0.0
  %3107 = vmatpush1.msra.mxu0 0.0
  %3108 = vmatprep.subr.mxu0 0.0
  %3109 = vmatpush1.msra.mxu0 0.0
  %3110 = vmatprep.subr.mxu0 0.0
  %3111 = vmatpush1.msra.mxu0 0.0
  %3112 = vmatprep.subr.mxu0 0.0
  %3113 = vmatpush1.msra.mxu0 0.0
  %3114 = vmatprep.subr.mxu0 0.0
  %3115 = vmatpush1.msra.mxu0 0.0
  %3116 = vmatprep.subr.mxu0 0.0
  %3117 = vmatpush1.msra.mxu0 0.0
  %3118 = vmatprep.subr.mxu0 0.0
  %3119 = vmatpush1.msra.mxu0 0.0
  %3120 = vmatprep.subr.mxu0 0.0
  %3121 = vmatpush1.msra.mxu0 0.0
  %3122 = vmatprep.subr.mxu0 0.0
  %3123 = vmatpush1.msra.mxu0 0.0
  %3124 = vmatprep.subr.mxu0 0.0
  %3125 = vmatpush1.msra.mxu0 0.0
  %3126 = vmatprep.subr.mxu0 0.0
  %3127 = vmatpush1.msra.mxu0 0.0
  %3128 = vmatprep.subr.mxu0 0.0
  %3129 = vmatpush1.msra.mxu0 0.0
  %3130 = vmatprep.subr.mxu0 0.0
  %3131 = vmatpush1.msra.mxu0 0.0
  %3132 = vmatprep.subr.mxu0 0.0
  %3133 = vmatpush1.msra.mxu0 0.0
  %3134 = vmatprep.subr.mxu0 0.0
  %3135 = vmatpush1.msra.mxu0 0.0
  %3136 = vmatprep.mubr.f32.mxu0 0.0
  %3137 = vmatmul.mubr.f32.gmra.mrb[0].mxu0 %v3061
  %v3138 = vpop.f32.mrb[0].mxu0
  %v3139 = vadd.f32 %v3059, %v3138
  %v3140 = vpop.f32.mrb[0].mxu0
  %3141 = vmatprep.mubr.f32.mxu0 0.0
  %3142 = vmatmul.mubr.f32.gmra.mrb[0].mxu0 %v3064
  %v3143 = vpop.f32.mrb[0].mxu0
  %v3144 = vadd.f32 %v3059, %v3143
  %v3145 = vpop.f32.mrb[0].mxu0
  %3146 = vmatprep.mubr.f32.mxu0 0.0
  %3147 = vmatmul.mubr.f32.gmra.mrb[0].mxu0 %v3067
  %v3148 = vpop.f32.mrb[0].mxu0
  %v3149 = vadd.f32 %v3059, %v3148
  %v3150 = vpop.f32.mrb[0].mxu0
  %3151 = vmatprep.mubr.f32.mxu0 0.0
  %3152 = vmatmul.mubr.f32.gmra.mrb[0].mxu0 %v3070
  %v3153 = vpop.f32.mrb[0].mxu0
  %v3154 = vadd.f32 %v3059, %v3153
  %v3155 = vpop.f32.mrb[0].mxu0
  %3156 = vdwg.mxu0
  %v3157 = vmax.f32 %v3139, 0.0
  %v3158 = vmax.f32 %v3144, 0.0
  %v3159 = vmax.f32 %v3149, 0.0
  %v3160 = vmax.f32 %v3154, 0.0
  %v3161 = vld [vmem:[%s20] sm:$0x1]
  %v3162 = vlaneseq
  %v3163 = vshrl.u32 %v3162, 7
  %v3164 = vsub.s32 0, %v3163
  %v3165 = vrot.slane %v3161, %v3164
  %v3167 = vsel %vm533, %v3157, 0
  %v3170 = vsel %vm533, %v3158, 0
  %v3173 = vsel %vm533, %v3159, 0
  %v3176 = vsel %vm533, %v3160, 0
  %3178 = vmatprep.subr.mxu0 0.0
  %3179 = vmatpush1.msra.mxu0 %v3051
  %3180 = vmatprep.subr.mxu0 0.0
  %3181 = vmatpush1.msra.mxu0 %v3052
  %3182 = vmatprep.subr.mxu0 0.0
  %3183 = vmatpush1.msra.mxu0 %v3053
  %3184 = vmatprep.subr.mxu0 0.0
  %3185 = vmatpush1.msra.mxu0 %v3054
  %3186 = vmatprep.subr.mxu0 0.0
  %3187 = vmatpush1.msra.mxu0 0.0
  %3188 = vmatprep.subr.mxu0 0.0
  %3189 = vmatpush1.msra.mxu0 0.0
  %3190 = vmatprep.subr.mxu0 0.0
  %3191 = vmatpush1.msra.mxu0 0.0
  %3192 = vmatprep.subr.mxu0 0.0
  %3193 = vmatpush1.msra.mxu0 0.0
  %3194 = vmatprep.subr.mxu0 0.0
  %3195 = vmatpush1.msra.mxu0 0.0
  %3196 = vmatprep.subr.mxu0 0.0
  %3197 = vmatpush1.msra.mxu0 0.0
  %3198 = vmatprep.subr.mxu0 0.0
  %3199 = vmatpush1.msra.mxu0 0.0
  %3200 = vmatprep.subr.mxu0 0.0
  %3201 = vmatpush1.msra.mxu0 0.0
  %3202 = vmatprep.subr.mxu0 0.0
  %3203 = vmatpush1.msra.mxu0 0.0
  %3204 = vmatprep.subr.mxu0 0.0
  %3205 = vmatpush1.msra.mxu0 0.0
  %3206 = vmatprep.subr.mxu0 0.0
  %3207 = vmatpush1.msra.mxu0 0.0
  %3208 = vmatprep.subr.mxu0 0.0
  %3209 = vmatpush1.msra.mxu0 0.0
  %3210 = vmatprep.subr.mxu0 0.0
  %3211 = vmatpush1.msra.mxu0 0.0
  %3212 = vmatprep.subr.mxu0 0.0
  %3213 = vmatpush1.msra.mxu0 0.0
  %3214 = vmatprep.subr.mxu0 0.0
  %3215 = vmatpush1.msra.mxu0 0.0
  %3216 = vmatprep.subr.mxu0 0.0
  %3217 = vmatpush1.msra.mxu0 0.0
  %3218 = vmatprep.subr.mxu0 0.0
  %3219 = vmatpush1.msra.mxu0 0.0
  %3220 = vmatprep.subr.mxu0 0.0
  %3221 = vmatpush1.msra.mxu0 0.0
  %3222 = vmatprep.subr.mxu0 0.0
  %3223 = vmatpush1.msra.mxu0 0.0
  %3224 = vmatprep.subr.mxu0 0.0
  %3225 = vmatpush1.msra.mxu0 0.0
  %3226 = vmatprep.subr.mxu0 0.0
  %3227 = vmatpush1.msra.mxu0 0.0
  %3228 = vmatprep.subr.mxu0 0.0
  %3229 = vmatpush1.msra.mxu0 0.0
  %3230 = vmatprep.subr.mxu0 0.0
  %3231 = vmatpush1.msra.mxu0 0.0
  %3232 = vmatprep.subr.mxu0 0.0
  %3233 = vmatpush1.msra.mxu0 0.0
  %3234 = vmatprep.subr.mxu0 0.0
  %3235 = vmatpush1.msra.mxu0 0.0
  %3236 = vmatprep.subr.mxu0 0.0
  %3237 = vmatpush1.msra.mxu0 0.0
  %3238 = vmatprep.subr.mxu0 0.0
  %3239 = vmatpush1.msra.mxu0 0.0
  %3240 = vmatprep.subr.mxu0 0.0
  %3241 = vmatpush1.msra.mxu0 0.0
  %3242 = vmatprep.mubr.f32.mxu0 0.0
  %3243 = vmatmul.mubr.f32.gmra.mrb[0].mxu0 %v3167
  %v3244 = vpop.f32.mrb[0].mxu0
  %v3245 = vadd.f32 %v3165, %v3244
  %v3246 = vpop.f32.mrb[0].mxu0
  %3247 = vmatprep.mubr.f32.mxu0 0.0
  %3248 = vmatmul.mubr.f32.gmra.mrb[0].mxu0 %v3170
  %v3249 = vpop.f32.mrb[0].mxu0
  %v3250 = vadd.f32 %v3165, %v3249
  %v3251 = vpop.f32.mrb[0].mxu0
  %3252 = vmatprep.mubr.f32.mxu0 0.0
  %3253 = vmatmul.mubr.f32.gmra.mrb[0].mxu0 %v3173
  %v3254 = vpop.f32.mrb[0].mxu0
  %v3255 = vadd.f32 %v3165, %v3254
  %v3256 = vpop.f32.mrb[0].mxu0
  %3257 = vmatprep.mubr.f32.mxu0 0.0
  %3258 = vmatmul.mubr.f32.gmra.mrb[0].mxu0 %v3176
  %v3259 = vpop.f32.mrb[0].mxu0
  %v3260 = vadd.f32 %v3165, %v3259
  %v3261 = vpop.f32.mrb[0].mxu0
  %3262 = vdwg.mxu0
  %v3263 = vmul.f32 %v3245, 0.5
  %v3264 = vmul.f32 %v3250, 0.5
  %v3265 = vmul.f32 %v3255, 0.5
  %v3266 = vmul.f32 %v3260, 0.5
  %v3267 = vmul.f32 %v3245, 0.70710677
  %v3268 = vmul.f32 %v3250, 0.70710677
  %v3269 = vmul.f32 %v3255, 0.70710677
  %v3270 = vmul.f32 %v3260, 0.70710677
  %v3271 = vand.u32 2147483647, %v3267
  %v3272 = vand.u32 2147483647, %v3268
  %v3273 = vand.u32 2147483647, %v3269
  %v3274 = vand.u32 2147483647, %v3270
  %v3275 = vmul.f32 %v3271, 0.3275911
  %v3276 = vmul.f32 %v3272, 0.3275911
  %v3277 = vmul.f32 %v3273, 0.3275911
  %v3278 = vmul.f32 %v3274, 0.3275911
  %v3279 = vadd.f32 %v3275, 1.0
  %v3280 = vadd.f32 %v3276, 1.0
  %v3281 = vadd.f32 %v3277, 1.0
  %v3282 = vadd.f32 %v3278, 1.0
  %v3283 = vrcp.pop %v3279
  %v3284 = vmul.f32 1.0, %v3283
  %v3285 = vrcp.pop %v3280
  %v3286 = vmul.f32 1.0, %v3285
  %v3287 = vrcp.pop %v3281
  %v3288 = vmul.f32 1.0, %v3287
  %v3289 = vrcp.pop %v3282
  %v3290 = vmul.f32 1.0, %v3289
  %v3291 = vmul.f32 %v3284, 1.0614054
  %v3292 = vmul.f32 %v3286, 1.0614054
  %v3293 = vmul.f32 %v3288, 1.0614054
  %v3294 = vmul.f32 %v3290, 1.0614054
  %v3295 = vadd.f32 %v3291, -1.4531521
  %v3296 = vadd.f32 %v3292, -1.4531521
  %v3297 = vadd.f32 %v3293, -1.4531521
  %v3298 = vadd.f32 %v3294, -1.4531521
  %v3299 = vmul.f32 %v3295, %v3284
  %v3300 = vmul.f32 %v3296, %v3286
  %v3301 = vmul.f32 %v3297, %v3288
  %v3302 = vmul.f32 %v3298, %v3290
  %v3303 = vadd.f32 %v3299, 1.4214138
  %v3304 = vadd.f32 %v3300, 1.4214138
  %v3305 = vadd.f32 %v3301, 1.4214138
  %v3306 = vadd.f32 %v3302, 1.4214138
  %v3307 = vmul.f32 %v3303, %v3284
  %v3308 = vmul.f32 %v3304, %v3286
  %v3309 = vmul.f32 %v3305, %v3288
  %v3310 = vmul.f32 %v3306, %v3290
  %v3311 = vadd.f32 %v3307, -0.28449672
  %v3312 = vadd.f32 %v3308, -0.28449672
  %v3313 = vadd.f32 %v3309, -0.28449672
  %v3314 = vadd.f32 %v3310, -0.28449672
  %v3315 = vmul.f32 %v3311, %v3284
  %v3316 = vmul.f32 %v3312, %v3286
  %v3317 = vmul.f32 %v3313, %v3288
  %v3318 = vmul.f32 %v3314, %v3290
  %v3319 = vadd.f32 %v3315, 0.2548296
  %v3320 = vadd.f32 %v3316, 0.2548296
  %v3321 = vadd.f32 %v3317, 0.2548296
  %v3322 = vadd.f32 %v3318, 0.2548296
  %v3323 = vmul.f32 %v3319, %v3284
  %v3324 = vmul.f32 %v3320, %v3286
  %v3325 = vmul.f32 %v3321, %v3288
  %v3326 = vmul.f32 %v3322, %v3290
  %v3327 = vsub.f32 0.0, %v3271
  %v3328 = vsub.f32 0.0, %v3272
  %v3329 = vsub.f32 0.0, %v3273
  %v3330 = vsub.f32 0.0, %v3274
  %v3331 = vmul.f32 %v3327, %v3271
  %v3332 = vmul.f32 %v3328, %v3272
  %v3333 = vmul.f32 %v3329, %v3273
  %v3334 = vmul.f32 %v3330, %v3274
  %v3335 = vmul.f32 %v3331, 1.442695
  %v3336 = vpow.pop %v3335
  %v3337 = vmul.f32 %v3332, 1.442695
  %v3338 = vpow.pop %v3337
  %v3339 = vmul.f32 %v3333, 1.442695
  %v3340 = vpow.pop %v3339
  %v3341 = vmul.f32 %v3334, 1.442695
  %v3342 = vpow.pop %v3341
  %v3343 = vmul.f32 %v3323, %v3336
  %v3344 = vmul.f32 %v3324, %v3338
  %v3345 = vmul.f32 %v3325, %v3340
  %v3346 = vmul.f32 %v3326, %v3342
  %v3347 = vsub.f32 1.0, %v3343
  %v3348 = vsub.f32 1.0, %v3344
  %v3349 = vsub.f32 1.0, %v3345
  %v3350 = vsub.f32 1.0, %v3346
  %vm3351 = vcmp.ge.f32.partialorder %v3267, 0.0
  %vm3352 = vcmp.ge.f32.partialorder %v3268, 0.0
  %vm3353 = vcmp.ge.f32.partialorder %v3269, 0.0
  %vm3354 = vcmp.ge.f32.partialorder %v3270, 0.0
  %v3355 = vsub.f32 0.0, %v3347
  %v3356 = vsub.f32 0.0, %v3348
  %v3357 = vsub.f32 0.0, %v3349
  %v3358 = vsub.f32 0.0, %v3350
  %v3359 = vsel %vm3351, %v3347, %v3355
  %v3360 = vsel %vm3352, %v3348, %v3356
  %v3361 = vsel %vm3353, %v3349, %v3357
  %v3362 = vsel %vm3354, %v3350, %v3358
  %v3363 = vadd.f32 %v3359, 1.0
  %v3364 = vadd.f32 %v3360, 1.0
  %v3365 = vadd.f32 %v3361, 1.0
  %v3366 = vadd.f32 %v3362, 1.0
  %v3367 = vmul.f32 %v3263, %v3363
  %v3368 = vmul.f32 %v3264, %v3364
  %v3369 = vmul.f32 %v3265, %v3365
  %v3370 = vmul.f32 %v3266, %v3366
  %v3371 = vld [vmem:[%s15 + $0xa0] sm:$0xff]
  %v3372 = vld [vmem:[%s15 + $0xa8] sm:$0xff]
  %v3373 = vld [vmem:[%s15 + $0xb0] sm:$0xff]
  %v3374 = vld [vmem:[%s15 + $0xb8] sm:$0xff]
  %v3375 = vld [vmem:[%s15 + $0xc0] sm:$0xff]
  %v3376 = vld [vmem:[%s15 + $0xc8] sm:$0xff]
  %v3377 = vld [vmem:[%s15 + $0xd0] sm:$0xff]
  %v3378 = vld [vmem:[%s15 + $0xd8] sm:$0xff]
  %v3379 = vld [vmem:[%s15 + $0xe0] sm:$0xff]
  %v3380 = vld [vmem:[%s15 + $0xe8] sm:$0xff]
  %v3381 = vld [vmem:[%s15 + $0xf0] sm:$0xff]
  %v3382 = vld [vmem:[%s15 + $0xf8] sm:$0xff]
  %v3383 = vld [vmem:[%s15 + $0x100] sm:$0xff]
  %v3384 = vld [vmem:[%s15 + $0x108] sm:$0xff]
  %v3385 = vld [vmem:[%s15 + $0x110] sm:$0xff]
  %v3386 = vld [vmem:[%s15 + $0x118] sm:$0xff]
  %v3387 = vld [vmem:[%s15 + $0x120] sm:$0xff]
  %v3388 = vld [vmem:[%s15 + $0x128] sm:$0xff]
  %v3389 = vld [vmem:[%s15 + $0x130] sm:$0xff]
  %v3390 = vld [vmem:[%s15 + $0x138] sm:$0xff]
  %v3391 = vld [vmem:[%s16 + $0x1] sm:$0x1]
  %3392 = vmatprep.subr.mxu0 0.0
  %3393 = vmatpush1.msra.mxu0 %v3375
  %3394 = vmatprep.subr.mxu0 0.0
  %3395 = vmatpush1.msra.mxu0 %v3376
  %3396 = vmatprep.subr.mxu0 0.0
  %3397 = vmatpush1.msra.mxu0 %v3377
  %3398 = vmatprep.subr.mxu0 0.0
  %3399 = vmatpush1.msra.mxu0 %v3378
  %3400 = vmatprep.subr.mxu0 0.0
  %3401 = vmatpush1.msra.mxu0 0.0
  %3402 = vmatprep.subr.mxu0 0.0
  %3403 = vmatpush1.msra.mxu0 0.0
  %3404 = vmatprep.subr.mxu0 0.0
  %3405 = vmatpush1.msra.mxu0 0.0
  %3406 = vmatprep.subr.mxu0 0.0
  %3407 = vmatpush1.msra.mxu0 0.0
  %3408 = vmatprep.subr.mxu0 0.0
  %3409 = vmatpush1.msra.mxu0 0.0
  %3410 = vmatprep.subr.mxu0 0.0
  %3411 = vmatpush1.msra.mxu0 0.0
  %3412 = vmatprep.subr.mxu0 0.0
  %3413 = vmatpush1.msra.mxu0 0.0
  %3414 = vmatprep.subr.mxu0 0.0
  %3415 = vmatpush1.msra.mxu0 0.0
  %3416 = vmatprep.subr.mxu0 0.0
  %3417 = vmatpush1.msra.mxu0 0.0
  %3418 = vmatprep.subr.mxu0 0.0
  %3419 = vmatpush1.msra.mxu0 0.0
  %3420 = vmatprep.subr.mxu0 0.0
  %3421 = vmatpush1.msra.mxu0 0.0
  %3422 = vmatprep.subr.mxu0 0.0
  %3423 = vmatpush1.msra.mxu0 0.0
  %3424 = vmatprep.subr.mxu0 0.0
  %3425 = vmatpush1.msra.mxu0 0.0
  %3426 = vmatprep.subr.mxu0 0.0
  %3427 = vmatpush1.msra.mxu0 0.0
  %3428 = vmatprep.subr.mxu0 0.0
  %3429 = vmatpush1.msra.mxu0 0.0
  %3430 = vmatprep.subr.mxu0 0.0
  %3431 = vmatpush1.msra.mxu0 0.0
  %3432 = vmatprep.subr.mxu0 0.0
  %3433 = vmatpush1.msra.mxu0 0.0
  %3434 = vmatprep.subr.mxu0 0.0
  %3435 = vmatpush1.msra.mxu0 0.0
  %3436 = vmatprep.subr.mxu0 0.0
  %3437 = vmatpush1.msra.mxu0 0.0
  %3438 = vmatprep.subr.mxu0 0.0
  %3439 = vmatpush1.msra.mxu0 0.0
  %3440 = vmatprep.subr.mxu0 0.0
  %3441 = vmatpush1.msra.mxu0 0.0
  %3442 = vmatprep.subr.mxu0 0.0
  %3443 = vmatpush1.msra.mxu0 0.0
  %3444 = vmatprep.subr.mxu0 0.0
  %3445 = vmatpush1.msra.mxu0 0.0
  %3446 = vmatprep.subr.mxu0 0.0
  %3447 = vmatpush1.msra.mxu0 0.0
  %3448 = vmatprep.subr.mxu0 0.0
  %3449 = vmatpush1.msra.mxu0 0.0
  %3450 = vmatprep.subr.mxu0 0.0
  %3451 = vmatpush1.msra.mxu0 0.0
  %3452 = vmatprep.subr.mxu0 0.0
  %3453 = vmatpush1.msra.mxu0 0.0
  %3454 = vmatprep.subr.mxu0 0.0
  %3455 = vmatpush1.msra.mxu0 0.0
  %3456 = vmatprep.mubr.f32.mxu0 0.0
  %3457 = vmatmul.mubr.f32.gmra.mrb[0].mxu0 %v909
  %v3458 = vpop.f32.mrb[0].mxu0
  %v3459 = vadd.f32 0.0, %v3458
  %v3460 = vpop.f32.mrb[0].mxu0
  %3461 = vmatprep.mubr.f32.mxu0 0.0
  %3462 = vmatmul.mubr.f32.gmra.mrb[0].mxu0 %v912
  %v3463 = vpop.f32.mrb[0].mxu0
  %v3464 = vadd.f32 0.0, %v3463
  %v3465 = vpop.f32.mrb[0].mxu0
  %3466 = vmatprep.mubr.f32.mxu0 0.0
  %3467 = vmatmul.mubr.f32.gmra.mrb[0].mxu0 %v915
  %v3468 = vpop.f32.mrb[0].mxu0
  %v3469 = vadd.f32 0.0, %v3468
  %v3470 = vpop.f32.mrb[0].mxu0
  %3471 = vmatprep.mubr.f32.mxu0 0.0
  %3472 = vmatmul.mubr.f32.gmra.mrb[0].mxu0 %v918
  %v3473 = vpop.f32.mrb[0].mxu0
  %v3474 = vadd.f32 0.0, %v3473
  %v3475 = vpop.f32.mrb[0].mxu0
  %3476 = vdwg.mxu0
  %v3478 = vsel %vm533, %v3367, 0
  %v3481 = vsel %vm533, %v3368, 0
  %v3484 = vsel %vm533, %v3369, 0
  %v3487 = vsel %vm533, %v3370, 0
  %3489 = vmatprep.subr.mxu0 0.0
  %3490 = vmatpush1.msra.mxu0 %v3371
  %3491 = vmatprep.subr.mxu0 0.0
  %3492 = vmatpush1.msra.mxu0 %v3372
  %3493 = vmatprep.subr.mxu0 0.0
  %3494 = vmatpush1.msra.mxu0 %v3373
  %3495 = vmatprep.subr.mxu0 0.0
  %3496 = vmatpush1.msra.mxu0 %v3374
  %3497 = vmatprep.subr.mxu0 0.0
  %3498 = vmatpush1.msra.mxu0 0.0
  %3499 = vmatprep.subr.mxu0 0.0
  %3500 = vmatpush1.msra.mxu0 0.0
  %3501 = vmatprep.subr.mxu0 0.0
  %3502 = vmatpush1.msra.mxu0 0.0
  %3503 = vmatprep.subr.mxu0 0.0
  %3504 = vmatpush1.msra.mxu0 0.0
  %3505 = vmatprep.subr.mxu0 0.0
  %3506 = vmatpush1.msra.mxu0 0.0
  %3507 = vmatprep.subr.mxu0 0.0
  %3508 = vmatpush1.msra.mxu0 0.0
  %3509 = vmatprep.subr.mxu0 0.0
  %3510 = vmatpush1.msra.mxu0 0.0
  %3511 = vmatprep.subr.mxu0 0.0
  %3512 = vmatpush1.msra.mxu0 0.0
  %3513 = vmatprep.subr.mxu0 0.0
  %3514 = vmatpush1.msra.mxu0 0.0
  %3515 = vmatprep.subr.mxu0 0.0
  %3516 = vmatpush1.msra.mxu0 0.0
  %3517 = vmatprep.subr.mxu0 0.0
  %3518 = vmatpush1.msra.mxu0 0.0
  %3519 = vmatprep.subr.mxu0 0.0
  %3520 = vmatpush1.msra.mxu0 0.0
  %3521 = vmatprep.subr.mxu0 0.0
  %3522 = vmatpush1.msra.mxu0 0.0
  %3523 = vmatprep.subr.mxu0 0.0
  %3524 = vmatpush1.msra.mxu0 0.0
  %3525 = vmatprep.subr.mxu0 0.0
  %3526 = vmatpush1.msra.mxu0 0.0
  %3527 = vmatprep.subr.mxu0 0.0
  %3528 = vmatpush1.msra.mxu0 0.0
  %3529 = vmatprep.subr.mxu0 0.0
  %3530 = vmatpush1.msra.mxu0 0.0
  %3531 = vmatprep.subr.mxu0 0.0
  %3532 = vmatpush1.msra.mxu0 0.0
  %3533 = vmatprep.subr.mxu0 0.0
  %3534 = vmatpush1.msra.mxu0 0.0
  %3535 = vmatprep.subr.mxu0 0.0
  %3536 = vmatpush1.msra.mxu0 0.0
  %3537 = vmatprep.subr.mxu0 0.0
  %3538 = vmatpush1.msra.mxu0 0.0
  %3539 = vmatprep.subr.mxu0 0.0
  %3540 = vmatpush1.msra.mxu0 0.0
  %3541 = vmatprep.subr.mxu0 0.0
  %3542 = vmatpush1.msra.mxu0 0.0
  %3543 = vmatprep.subr.mxu0 0.0
  %3544 = vmatpush1.msra.mxu0 0.0
  %3545 = vmatprep.subr.mxu0 0.0
  %3546 = vmatpush1.msra.mxu0 0.0
  %3547 = vmatprep.subr.mxu0 0.0
  %3548 = vmatpush1.msra.mxu0 0.0
  %3549 = vmatprep.subr.mxu0 0.0
  %3550 = vmatpush1.msra.mxu0 0.0
  %3551 = vmatprep.subr.mxu0 0.0
  %3552 = vmatpush1.msra.mxu0 0.0
  %3553 = vmatprep.mubr.f32.mxu0 0.0
  %3554 = vmatmul.mubr.f32.gmra.mrb[0].mxu0 %v3478
  %v3555 = vpop.f32.mrb[0].mxu0
  %v3556 = vadd.f32 %v3459, %v3555
  %v3557 = vpop.f32.mrb[0].mxu0
  %3558 = vmatprep.mubr.f32.mxu0 0.0
  %3559 = vmatmul.mubr.f32.gmra.mrb[0].mxu0 %v3481
  %v3560 = vpop.f32.mrb[0].mxu0
  %v3561 = vadd.f32 %v3464, %v3560
  %v3562 = vpop.f32.mrb[0].mxu0
  %3563 = vmatprep.mubr.f32.mxu0 0.0
  %3564 = vmatmul.mubr.f32.gmra.mrb[0].mxu0 %v3484
  %v3565 = vpop.f32.mrb[0].mxu0
  %v3566 = vadd.f32 %v3469, %v3565
  %v3567 = vpop.f32.mrb[0].mxu0
  %3568 = vmatprep.mubr.f32.mxu0 0.0
  %3569 = vmatmul.mubr.f32.gmra.mrb[0].mxu0 %v3487
  %v3570 = vpop.f32.mrb[0].mxu0
  %v3571 = vadd.f32 %v3474, %v3570
  %v3572 = vpop.f32.mrb[0].mxu0
  %3573 = vdwg.mxu0
  %3574 = vmatprep.subr.mxu0 0.0
  %3575 = vmatpush1.msra.mxu0 %v3383
  %3576 = vmatprep.subr.mxu0 0.0
  %3577 = vmatpush1.msra.mxu0 %v3384
  %3578 = vmatprep.subr.mxu0 0.0
  %3579 = vmatpush1.msra.mxu0 %v3385
  %3580 = vmatprep.subr.mxu0 0.0
  %3581 = vmatpush1.msra.mxu0 %v3386
  %3582 = vmatprep.subr.mxu0 0.0
  %3583 = vmatpush1.msra.mxu0 0.0
  %3584 = vmatprep.subr.mxu0 0.0
  %3585 = vmatpush1.msra.mxu0 0.0
  %3586 = vmatprep.subr.mxu0 0.0
  %3587 = vmatpush1.msra.mxu0 0.0
  %3588 = vmatprep.subr.mxu0 0.0
  %3589 = vmatpush1.msra.mxu0 0.0
  %3590 = vmatprep.subr.mxu0 0.0
  %3591 = vmatpush1.msra.mxu0 0.0
  %3592 = vmatprep.subr.mxu0 0.0
  %3593 = vmatpush1.msra.mxu0 0.0
  %3594 = vmatprep.subr.mxu0 0.0
  %3595 = vmatpush1.msra.mxu0 0.0
  %3596 = vmatprep.subr.mxu0 0.0
  %3597 = vmatpush1.msra.mxu0 0.0
  %3598 = vmatprep.subr.mxu0 0.0
  %3599 = vmatpush1.msra.mxu0 0.0
  %3600 = vmatprep.subr.mxu0 0.0
  %3601 = vmatpush1.msra.mxu0 0.0
  %3602 = vmatprep.subr.mxu0 0.0
  %3603 = vmatpush1.msra.mxu0 0.0
  %3604 = vmatprep.subr.mxu0 0.0
  %3605 = vmatpush1.msra.mxu0 0.0
  %3606 = vmatprep.subr.mxu0 0.0
  %3607 = vmatpush1.msra.mxu0 0.0
  %3608 = vmatprep.subr.mxu0 0.0
  %3609 = vmatpush1.msra.mxu0 0.0
  %3610 = vmatprep.subr.mxu0 0.0
  %3611 = vmatpush1.msra.mxu0 0.0
  %3612 = vmatprep.subr.mxu0 0.0
  %3613 = vmatpush1.msra.mxu0 0.0
  %3614 = vmatprep.subr.mxu0 0.0
  %3615 = vmatpush1.msra.mxu0 0.0
  %3616 = vmatprep.subr.mxu0 0.0
  %3617 = vmatpush1.msra.mxu0 0.0
  %3618 = vmatprep.subr.mxu0 0.0
  %3619 = vmatpush1.msra.mxu0 0.0
  %3620 = vmatprep.subr.mxu0 0.0
  %3621 = vmatpush1.msra.mxu0 0.0
  %3622 = vmatprep.subr.mxu0 0.0
  %3623 = vmatpush1.msra.mxu0 0.0
  %3624 = vmatprep.subr.mxu0 0.0
  %3625 = vmatpush1.msra.mxu0 0.0
  %3626 = vmatprep.subr.mxu0 0.0
  %3627 = vmatpush1.msra.mxu0 0.0
  %3628 = vmatprep.subr.mxu0 0.0
  %3629 = vmatpush1.msra.mxu0 0.0
  %3630 = vmatprep.subr.mxu0 0.0
  %3631 = vmatpush1.msra.mxu0 0.0
  %3632 = vmatprep.subr.mxu0 0.0
  %3633 = vmatpush1.msra.mxu0 0.0
  %3634 = vmatprep.subr.mxu0 0.0
  %3635 = vmatpush1.msra.mxu0 0.0
  %3636 = vmatprep.subr.mxu0 0.0
  %3637 = vmatpush1.msra.mxu0 0.0
  %3638 = vmatprep.mubr.f32.mxu0 0.0
  %3639 = vmatmul.mubr.f32.gmra.mrb[0].mxu0 %v909
  %v3640 = vpop.f32.mrb[0].mxu0
  %v3641 = vadd.f32 0.0, %v3640
  %v3642 = vpop.f32.mrb[0].mxu0
  %3643 = vmatprep.mubr.f32.mxu0 0.0
  %3644 = vmatmul.mubr.f32.gmra.mrb[0].mxu0 %v912
  %v3645 = vpop.f32.mrb[0].mxu0
  %v3646 = vadd.f32 0.0, %v3645
  %v3647 = vpop.f32.mrb[0].mxu0
  %3648 = vmatprep.mubr.f32.mxu0 0.0
  %3649 = vmatmul.mubr.f32.gmra.mrb[0].mxu0 %v915
  %v3650 = vpop.f32.mrb[0].mxu0
  %v3651 = vadd.f32 0.0, %v3650
  %v3652 = vpop.f32.mrb[0].mxu0
  %3653 = vmatprep.mubr.f32.mxu0 0.0
  %3654 = vmatmul.mubr.f32.gmra.mrb[0].mxu0 %v918
  %v3655 = vpop.f32.mrb[0].mxu0
  %v3656 = vadd.f32 0.0, %v3655
  %v3657 = vpop.f32.mrb[0].mxu0
  %3658 = vdwg.mxu0
  %3659 = vmatprep.subr.mxu0 0.0
  %3660 = vmatpush1.msra.mxu0 %v3379
  %3661 = vmatprep.subr.mxu0 0.0
  %3662 = vmatpush1.msra.mxu0 %v3380
  %3663 = vmatprep.subr.mxu0 0.0
  %3664 = vmatpush1.msra.mxu0 %v3381
  %3665 = vmatprep.subr.mxu0 0.0
  %3666 = vmatpush1.msra.mxu0 %v3382
  %3667 = vmatprep.subr.mxu0 0.0
  %3668 = vmatpush1.msra.mxu0 0.0
  %3669 = vmatprep.subr.mxu0 0.0
  %3670 = vmatpush1.msra.mxu0 0.0
  %3671 = vmatprep.subr.mxu0 0.0
  %3672 = vmatpush1.msra.mxu0 0.0
  %3673 = vmatprep.subr.mxu0 0.0
  %3674 = vmatpush1.msra.mxu0 0.0
  %3675 = vmatprep.subr.mxu0 0.0
  %3676 = vmatpush1.msra.mxu0 0.0
  %3677 = vmatprep.subr.mxu0 0.0
  %3678 = vmatpush1.msra.mxu0 0.0
  %3679 = vmatprep.subr.mxu0 0.0
  %3680 = vmatpush1.msra.mxu0 0.0
  %3681 = vmatprep.subr.mxu0 0.0
  %3682 = vmatpush1.msra.mxu0 0.0
  %3683 = vmatprep.subr.mxu0 0.0
  %3684 = vmatpush1.msra.mxu0 0.0
  %3685 = vmatprep.subr.mxu0 0.0
  %3686 = vmatpush1.msra.mxu0 0.0
  %3687 = vmatprep.subr.mxu0 0.0
  %3688 = vmatpush1.msra.mxu0 0.0
  %3689 = vmatprep.subr.mxu0 0.0
  %3690 = vmatpush1.msra.mxu0 0.0
  %3691 = vmatprep.subr.mxu0 0.0
  %3692 = vmatpush1.msra.mxu0 0.0
  %3693 = vmatprep.subr.mxu0 0.0
  %3694 = vmatpush1.msra.mxu0 0.0
  %3695 = vmatprep.subr.mxu0 0.0
  %3696 = vmatpush1.msra.mxu0 0.0
  %3697 = vmatprep.subr.mxu0 0.0
  %3698 = vmatpush1.msra.mxu0 0.0
  %3699 = vmatprep.subr.mxu0 0.0
  %3700 = vmatpush1.msra.mxu0 0.0
  %3701 = vmatprep.subr.mxu0 0.0
  %3702 = vmatpush1.msra.mxu0 0.0
  %3703 = vmatprep.subr.mxu0 0.0
  %3704 = vmatpush1.msra.mxu0 0.0
  %3705 = vmatprep.subr.mxu0 0.0
  %3706 = vmatpush1.msra.mxu0 0.0
  %3707 = vmatprep.subr.mxu0 0.0
  %3708 = vmatpush1.msra.mxu0 0.0
  %3709 = vmatprep.subr.mxu0 0.0
  %3710 = vmatpush1.msra.mxu0 0.0
  %3711 = vmatprep.subr.mxu0 0.0
  %3712 = vmatpush1.msra.mxu0 0.0
  %3713 = vmatprep.subr.mxu0 0.0
  %3714 = vmatpush1.msra.mxu0 0.0
  %3715 = vmatprep.subr.mxu0 0.0
  %3716 = vmatpush1.msra.mxu0 0.0
  %3717 = vmatprep.subr.mxu0 0.0
  %3718 = vmatpush1.msra.mxu0 0.0
  %3719 = vmatprep.subr.mxu0 0.0
  %3720 = vmatpush1.msra.mxu0 0.0
  %3721 = vmatprep.subr.mxu0 0.0
  %3722 = vmatpush1.msra.mxu0 0.0
  %3723 = vmatprep.mubr.f32.mxu0 0.0
  %3724 = vmatmul.mubr.f32.gmra.mrb[0].mxu0 %v3478
  %v3725 = vpop.f32.mrb[0].mxu0
  %v3726 = vadd.f32 %v3641, %v3725
  %v3727 = vpop.f32.mrb[0].mxu0
  %3728 = vmatprep.mubr.f32.mxu0 0.0
  %3729 = vmatmul.mubr.f32.gmra.mrb[0].mxu0 %v3481
  %v3730 = vpop.f32.mrb[0].mxu0
  %v3731 = vadd.f32 %v3646, %v3730
  %v3732 = vpop.f32.mrb[0].mxu0
  %3733 = vmatprep.mubr.f32.mxu0 0.0
  %3734 = vmatmul.mubr.f32.gmra.mrb[0].mxu0 %v3484
  %v3735 = vpop.f32.mrb[0].mxu0
  %v3736 = vadd.f32 %v3651, %v3735
  %v3737 = vpop.f32.mrb[0].mxu0
  %3738 = vmatprep.mubr.f32.mxu0 0.0
  %3739 = vmatmul.mubr.f32.gmra.mrb[0].mxu0 %v3487
  %v3740 = vpop.f32.mrb[0].mxu0
  %v3741 = vadd.f32 %v3656, %v3740
  %v3742 = vpop.f32.mrb[0].mxu0
  %3743 = vdwg.mxu0
  %3744 = vmatprep.subr.mxu0 0.0
  %3745 = vmatpush1.msra.mxu0 %v3726
  %3746 = vmatprep.subr.mxu0 0.0
  %3747 = vmatpush1.msra.mxu0 %v3731
  %3748 = vmatprep.subr.mxu0 0.0
  %3749 = vmatpush1.msra.mxu0 %v3736
  %3750 = vmatprep.subr.mxu0 0.0
  %3751 = vmatpush1.msra.mxu0 %v3741
  %3752 = vmatprep.subr.mxu0 0.0
  %3753 = vmatpush1.msra.mxu0 0.0
  %3754 = vmatprep.subr.mxu0 0.0
  %3755 = vmatpush1.msra.mxu0 0.0
  %3756 = vmatprep.subr.mxu0 0.0
  %3757 = vmatpush1.msra.mxu0 0.0
  %3758 = vmatprep.subr.mxu0 0.0
  %3759 = vmatpush1.msra.mxu0 0.0
  %3760 = vmatprep.subr.mxu0 0.0
  %3761 = vmatpush1.msra.mxu0 0.0
  %3762 = vmatprep.subr.mxu0 0.0
  %3763 = vmatpush1.msra.mxu0 0.0
  %3764 = vmatprep.subr.mxu0 0.0
  %3765 = vmatpush1.msra.mxu0 0.0
  %3766 = vmatprep.subr.mxu0 0.0
  %3767 = vmatpush1.msra.mxu0 0.0
  %3768 = vmatprep.subr.mxu0 0.0
  %3769 = vmatpush1.msra.mxu0 0.0
  %3770 = vmatprep.subr.mxu0 0.0
  %3771 = vmatpush1.msra.mxu0 0.0
  %3772 = vmatprep.subr.mxu0 0.0
  %3773 = vmatpush1.msra.mxu0 0.0
  %3774 = vmatprep.subr.mxu0 0.0
  %3775 = vmatpush1.msra.mxu0 0.0
  %3776 = vmatprep.subr.mxu0 0.0
  %3777 = vmatpush1.msra.mxu0 0.0
  %3778 = vmatprep.subr.mxu0 0.0
  %3779 = vmatpush1.msra.mxu0 0.0
  %3780 = vmatprep.subr.mxu0 0.0
  %3781 = vmatpush1.msra.mxu0 0.0
  %3782 = vmatprep.subr.mxu0 0.0
  %3783 = vmatpush1.msra.mxu0 0.0
  %3784 = vmatprep.subr.mxu0 0.0
  %3785 = vmatpush1.msra.mxu0 0.0
  %3786 = vmatprep.subr.mxu0 0.0
  %3787 = vmatpush1.msra.mxu0 0.0
  %3788 = vmatprep.subr.mxu0 0.0
  %3789 = vmatpush1.msra.mxu0 0.0
  %3790 = vmatprep.subr.mxu0 0.0
  %3791 = vmatpush1.msra.mxu0 0.0
  %3792 = vmatprep.subr.mxu0 0.0
  %3793 = vmatpush1.msra.mxu0 0.0
  %3794 = vmatprep.subr.mxu0 0.0
  %3795 = vmatpush1.msra.mxu0 0.0
  %3796 = vmatprep.subr.mxu0 0.0
  %3797 = vmatpush1.msra.mxu0 0.0
  %3798 = vmatprep.subr.mxu0 0.0
  %3799 = vmatpush1.msra.mxu0 0.0
  %3800 = vmatprep.subr.mxu0 0.0
  %3801 = vmatpush1.msra.mxu0 0.0
  %3802 = vmatprep.subr.mxu0 0.0
  %3803 = vmatpush1.msra.mxu0 0.0
  %3804 = vmatprep.subr.mxu0 0.0
  %3805 = vmatpush1.msra.mxu0 0.0
  %3806 = vmatprep.subr.mxu0 0.0
  %3807 = vmatpush1.msra.mxu0 0.0
  %3808 = vmatprep.mubr.f32.mxu0 0.0
  %3809 = vmatmul.mubr.f32.gmra.mrb[0].mxu0 %v1273
  %v3810 = vpop.f32.mrb[0].mxu0
  %v3811 = vadd.f32 0.0, %v3810
  %v3812 = vpop.f32.mrb[0].mxu0
  %3813 = vmatprep.mubr.f32.mxu0 0.0
  %3814 = vmatmul.mubr.f32.gmra.mrb[0].mxu0 %v1276
  %v3815 = vpop.f32.mrb[0].mxu0
  %v3816 = vadd.f32 0.0, %v3815
  %v3817 = vpop.f32.mrb[0].mxu0
  %3818 = vmatprep.mubr.f32.mxu0 0.0
  %3819 = vmatmul.mubr.f32.gmra.mrb[0].mxu0 %v1279
  %v3820 = vpop.f32.mrb[0].mxu0
  %v3821 = vadd.f32 0.0, %v3820
  %v3822 = vpop.f32.mrb[0].mxu0
  %3823 = vmatprep.mubr.f32.mxu0 0.0
  %3824 = vmatmul.mubr.f32.gmra.mrb[0].mxu0 %v1282
  %v3825 = vpop.f32.mrb[0].mxu0
  %v3826 = vadd.f32 0.0, %v3825
  %v3827 = vpop.f32.mrb[0].mxu0
  %3828 = vmatprep.mubr.f32.mxu0 0.0
  %3829 = vmatmul.mubr.f32.gmra.mrb[0].mxu0 %v1285
  %v3830 = vpop.f32.mrb[0].mxu0
  %v3831 = vadd.f32 0.0, %v3830
  %v3832 = vpop.f32.mrb[0].mxu0
  %3833 = vmatprep.mubr.f32.mxu0 0.0
  %3834 = vmatmul.mubr.f32.gmra.mrb[0].mxu0 %v1288
  %v3835 = vpop.f32.mrb[0].mxu0
  %v3836 = vadd.f32 0.0, %v3835
  %v3837 = vpop.f32.mrb[0].mxu0
  %3838 = vmatprep.mubr.f32.mxu0 0.0
  %3839 = vmatmul.mubr.f32.gmra.mrb[0].mxu0 %v1291
  %v3840 = vpop.f32.mrb[0].mxu0
  %v3841 = vadd.f32 0.0, %v3840
  %v3842 = vpop.f32.mrb[0].mxu0
  %3843 = vdwg.mxu0
  %3844 = vmatprep.subr.mxu0 0.0
  %3845 = vmatpush1.msra.mxu0 %v3556
  %3846 = vmatprep.subr.mxu0 0.0
  %3847 = vmatpush1.msra.mxu0 %v3561
  %3848 = vmatprep.subr.mxu0 0.0
  %3849 = vmatpush1.msra.mxu0 %v3566
  %3850 = vmatprep.subr.mxu0 0.0
  %3851 = vmatpush1.msra.mxu0 %v3571
  %3852 = vmatprep.subr.mxu0 0.0
  %3853 = vmatpush1.msra.mxu0 0.0
  %3854 = vmatprep.subr.mxu0 0.0
  %3855 = vmatpush1.msra.mxu0 0.0
  %3856 = vmatprep.subr.mxu0 0.0
  %3857 = vmatpush1.msra.mxu0 0.0
  %3858 = vmatprep.subr.mxu0 0.0
  %3859 = vmatpush1.msra.mxu0 0.0
  %3860 = vmatprep.subr.mxu0 0.0
  %3861 = vmatpush1.msra.mxu0 0.0
  %3862 = vmatprep.subr.mxu0 0.0
  %3863 = vmatpush1.msra.mxu0 0.0
  %3864 = vmatprep.subr.mxu0 0.0
  %3865 = vmatpush1.msra.mxu0 0.0
  %3866 = vmatprep.subr.mxu0 0.0
  %3867 = vmatpush1.msra.mxu0 0.0
  %3868 = vmatprep.subr.mxu0 0.0
  %3869 = vmatpush1.msra.mxu0 0.0
  %3870 = vmatprep.subr.mxu0 0.0
  %3871 = vmatpush1.msra.mxu0 0.0
  %3872 = vmatprep.subr.mxu0 0.0
  %3873 = vmatpush1.msra.mxu0 0.0
  %3874 = vmatprep.subr.mxu0 0.0
  %3875 = vmatpush1.msra.mxu0 0.0
  %3876 = vmatprep.subr.mxu0 0.0
  %3877 = vmatpush1.msra.mxu0 0.0
  %3878 = vmatprep.subr.mxu0 0.0
  %3879 = vmatpush1.msra.mxu0 0.0
  %3880 = vmatprep.subr.mxu0 0.0
  %3881 = vmatpush1.msra.mxu0 0.0
  %3882 = vmatprep.subr.mxu0 0.0
  %3883 = vmatpush1.msra.mxu0 0.0
  %3884 = vmatprep.subr.mxu0 0.0
  %3885 = vmatpush1.msra.mxu0 0.0
  %3886 = vmatprep.subr.mxu0 0.0
  %3887 = vmatpush1.msra.mxu0 0.0
  %3888 = vmatprep.subr.mxu0 0.0
  %3889 = vmatpush1.msra.mxu0 0.0
  %3890 = vmatprep.subr.mxu0 0.0
  %3891 = vmatpush1.msra.mxu0 0.0
  %3892 = vmatprep.subr.mxu0 0.0
  %3893 = vmatpush1.msra.mxu0 0.0
  %3894 = vmatprep.subr.mxu0 0.0
  %3895 = vmatpush1.msra.mxu0 0.0
  %3896 = vmatprep.subr.mxu0 0.0
  %3897 = vmatpush1.msra.mxu0 0.0
  %3898 = vmatprep.subr.mxu0 0.0
  %3899 = vmatpush1.msra.mxu0 0.0
  %3900 = vmatprep.subr.mxu0 0.0
  %3901 = vmatpush1.msra.mxu0 0.0
  %3902 = vmatprep.subr.mxu0 0.0
  %3903 = vmatpush1.msra.mxu0 0.0
  %3904 = vmatprep.subr.mxu0 0.0
  %3905 = vmatpush1.msra.mxu0 0.0
  %3906 = vmatprep.subr.mxu0 0.0
  %3907 = vmatpush1.msra.mxu0 0.0
  %3908 = vmatprep.mubr.f32.mxu0 0.0
  %3909 = vmatmul.mubr.f32.gmra.mrb[0].mxu0 %v1394
  %v3910 = vpop.f32.mrb[0].mxu0
  %v3911 = vadd.f32 %v3811, %v3910
  %v3912 = vpop.f32.mrb[0].mxu0
  %3913 = vmatprep.mubr.f32.mxu0 0.0
  %3914 = vmatmul.mubr.f32.gmra.mrb[0].mxu0 %v1397
  %v3915 = vpop.f32.mrb[0].mxu0
  %v3916 = vadd.f32 %v3816, %v3915
  %v3917 = vpop.f32.mrb[0].mxu0
  %3918 = vmatprep.mubr.f32.mxu0 0.0
  %3919 = vmatmul.mubr.f32.gmra.mrb[0].mxu0 %v1400
  %v3920 = vpop.f32.mrb[0].mxu0
  %v3921 = vadd.f32 %v3821, %v3920
  %v3922 = vpop.f32.mrb[0].mxu0
  %3923 = vmatprep.mubr.f32.mxu0 0.0
  %3924 = vmatmul.mubr.f32.gmra.mrb[0].mxu0 %v1403
  %v3925 = vpop.f32.mrb[0].mxu0
  %v3926 = vadd.f32 %v3826, %v3925
  %v3927 = vpop.f32.mrb[0].mxu0
  %3928 = vmatprep.mubr.f32.mxu0 0.0
  %3929 = vmatmul.mubr.f32.gmra.mrb[0].mxu0 %v1406
  %v3930 = vpop.f32.mrb[0].mxu0
  %v3931 = vadd.f32 %v3831, %v3930
  %v3932 = vpop.f32.mrb[0].mxu0
  %3933 = vmatprep.mubr.f32.mxu0 0.0
  %3934 = vmatmul.mubr.f32.gmra.mrb[0].mxu0 %v1409
  %v3935 = vpop.f32.mrb[0].mxu0
  %v3936 = vadd.f32 %v3836, %v3935
  %v3937 = vpop.f32.mrb[0].mxu0
  %3938 = vmatprep.mubr.f32.mxu0 0.0
  %3939 = vmatmul.mubr.f32.gmra.mrb[0].mxu0 %v1412
  %v3940 = vpop.f32.mrb[0].mxu0
  %v3941 = vadd.f32 %v3841, %v3940
  %v3942 = vpop.f32.mrb[0].mxu0
  %3943 = vdwg.mxu0
  %3944 = vmatprep.subr.mxu0 0.0
  %3945 = vmatpush1.msra.mxu0 %v3387
  %3946 = vmatprep.subr.mxu0 0.0
  %3947 = vmatpush1.msra.mxu0 %v3388
  %3948 = vmatprep.subr.mxu0 0.0
  %3949 = vmatpush1.msra.mxu0 %v3389
  %3950 = vmatprep.subr.mxu0 0.0
  %3951 = vmatpush1.msra.mxu0 %v3390
  %3952 = vmatprep.subr.mxu0 0.0
  %3953 = vmatpush1.msra.mxu0 0.0
  %3954 = vmatprep.subr.mxu0 0.0
  %3955 = vmatpush1.msra.mxu0 0.0
  %3956 = vmatprep.subr.mxu0 0.0
  %3957 = vmatpush1.msra.mxu0 0.0
  %3958 = vmatprep.subr.mxu0 0.0
  %3959 = vmatpush1.msra.mxu0 0.0
  %3960 = vmatprep.subr.mxu0 0.0
  %3961 = vmatpush1.msra.mxu0 0.0
  %3962 = vmatprep.subr.mxu0 0.0
  %3963 = vmatpush1.msra.mxu0 0.0
  %3964 = vmatprep.subr.mxu0 0.0
  %3965 = vmatpush1.msra.mxu0 0.0
  %3966 = vmatprep.subr.mxu0 0.0
  %3967 = vmatpush1.msra.mxu0 0.0
  %3968 = vmatprep.subr.mxu0 0.0
  %3969 = vmatpush1.msra.mxu0 0.0
  %3970 = vmatprep.subr.mxu0 0.0
  %3971 = vmatpush1.msra.mxu0 0.0
  %3972 = vmatprep.subr.mxu0 0.0
  %3973 = vmatpush1.msra.mxu0 0.0
  %3974 = vmatprep.subr.mxu0 0.0
  %3975 = vmatpush1.msra.mxu0 0.0
  %3976 = vmatprep.subr.mxu0 0.0
  %3977 = vmatpush1.msra.mxu0 0.0
  %3978 = vmatprep.subr.mxu0 0.0
  %3979 = vmatpush1.msra.mxu0 0.0
  %3980 = vmatprep.subr.mxu0 0.0
  %3981 = vmatpush1.msra.mxu0 0.0
  %3982 = vmatprep.subr.mxu0 0.0
  %3983 = vmatpush1.msra.mxu0 0.0
  %3984 = vmatprep.subr.mxu0 0.0
  %3985 = vmatpush1.msra.mxu0 0.0
  %3986 = vmatprep.subr.mxu0 0.0
  %3987 = vmatpush1.msra.mxu0 0.0
  %3988 = vmatprep.subr.mxu0 0.0
  %3989 = vmatpush1.msra.mxu0 0.0
  %3990 = vmatprep.subr.mxu0 0.0
  %3991 = vmatpush1.msra.mxu0 0.0
  %3992 = vmatprep.subr.mxu0 0.0
  %3993 = vmatpush1.msra.mxu0 0.0
  %3994 = vmatprep.subr.mxu0 0.0
  %3995 = vmatpush1.msra.mxu0 0.0
  %3996 = vmatprep.subr.mxu0 0.0
  %3997 = vmatpush1.msra.mxu0 0.0
  %3998 = vmatprep.subr.mxu0 0.0
  %3999 = vmatpush1.msra.mxu0 0.0
  %4000 = vmatprep.subr.mxu0 0.0
  %4001 = vmatpush1.msra.mxu0 0.0
  %4002 = vmatprep.subr.mxu0 0.0
  %4003 = vmatpush1.msra.mxu0 0.0
  %4004 = vmatprep.subr.mxu0 0.0
  %4005 = vmatpush1.msra.mxu0 0.0
  %4006 = vmatprep.subr.mxu0 0.0
  %4007 = vmatpush1.msra.mxu0 0.0
  %4008 = vmatprep.mubr.f32.mxu0 0.0
  %4009 = vmatmul.mubr.f32.gmra.mrb[0].mxu0 %v1515
  %v4010 = vpop.f32.mrb[0].mxu0
  %v4011 = vadd.f32 0.0, %v4010
  %v4012 = vpop.f32.mrb[0].mxu0
  %4013 = vmatprep.mubr.f32.mxu0 0.0
  %4014 = vmatmul.mubr.f32.gmra.mrb[0].mxu0 %v1518
  %v4015 = vpop.f32.mrb[0].mxu0
  %v4016 = vadd.f32 0.0, %v4015
  %v4017 = vpop.f32.mrb[0].mxu0
  %4018 = vmatprep.mubr.f32.mxu0 0.0
  %4019 = vmatmul.mubr.f32.gmra.mrb[0].mxu0 %v1521
  %v4020 = vpop.f32.mrb[0].mxu0
  %v4021 = vadd.f32 0.0, %v4020
  %v4022 = vpop.f32.mrb[0].mxu0
  %4023 = vmatprep.mubr.f32.mxu0 0.0
  %4024 = vmatmul.mubr.f32.gmra.mrb[0].mxu0 %v1524
  %v4025 = vpop.f32.mrb[0].mxu0
  %v4026 = vadd.f32 0.0, %v4025
  %v4027 = vpop.f32.mrb[0].mxu0
  %4028 = vmatprep.mubr.f32.mxu0 0.0
  %4029 = vmatmul.mubr.f32.gmra.mrb[0].mxu0 %v1527
  %v4030 = vpop.f32.mrb[0].mxu0
  %v4031 = vadd.f32 0.0, %v4030
  %v4032 = vpop.f32.mrb[0].mxu0
  %4033 = vmatprep.mubr.f32.mxu0 0.0
  %4034 = vmatmul.mubr.f32.gmra.mrb[0].mxu0 %v1530
  %v4035 = vpop.f32.mrb[0].mxu0
  %v4036 = vadd.f32 0.0, %v4035
  %v4037 = vpop.f32.mrb[0].mxu0
  %4038 = vmatprep.mubr.f32.mxu0 0.0
  %4039 = vmatmul.mubr.f32.gmra.mrb[0].mxu0 %v1533
  %v4040 = vpop.f32.mrb[0].mxu0
  %v4041 = vadd.f32 0.0, %v4040
  %v4042 = vpop.f32.mrb[0].mxu0
  %4043 = vdwg.mxu0
  %v4044 = vadd.f32 %v3911, %v4011
  %v4045 = vadd.f32 %v3916, %v4016
  %v4046 = vadd.f32 %v3921, %v4021
  %v4047 = vadd.f32 %v3926, %v4026
  %v4048 = vadd.f32 %v3931, %v4031
  %v4049 = vadd.f32 %v3936, %v4036
  %v4050 = vadd.f32 %v3941, %v4041
  %v4051 = vlaneseq
  %v4052 = vshrl.u32 %v4051, 7
  %v4053 = vsub.s32 0, %v4052
  %v4054 = vrot.slane %v3391, %v4053
  %v4055 = vadd.f32 %v4044, %v4054
  %v4056 = vadd.f32 %v4045, %v4054
  %v4057 = vadd.f32 %v4046, %v4054
  %v4058 = vadd.f32 %v4047, %v4054
  %v4059 = vadd.f32 %v4048, %v4054
  %v4060 = vadd.f32 %v4049, %v4054
  %v4061 = vadd.f32 %v4050, %v4054
  %v4062 = vmul.f32 %v4055, 0.35355338
  %v4063 = vmul.f32 %v4056, 0.35355338
  %v4064 = vmul.f32 %v4057, 0.35355338
  %v4065 = vmul.f32 %v4058, 0.35355338
  %v4066 = vmul.f32 %v4059, 0.35355338
  %v4067 = vmul.f32 %v4060, 0.35355338
  %v4068 = vmul.f32 %v4061, 0.35355338
  %4076 = vrot.lane.b32.xlu0 %v4055, 64
  %v4077 = vpop.permute.xlu0 %4076
  %4078 = vrot.lane.b32.xlu0 %v4056, 64
  %v4079 = vpop.permute.xlu0 %4078
  %4080 = vrot.lane.b32.xlu0 %v4057, 64
  %v4081 = vpop.permute.xlu0 %4080
  %4082 = vrot.lane.b32.xlu0 %v4058, 64
  %v4083 = vpop.permute.xlu0 %4082
  %4084 = vrot.lane.b32.xlu0 %v4059, 64
  %v4085 = vpop.permute.xlu0 %4084
  %4086 = vrot.lane.b32.xlu0 %v4060, 64
  %v4087 = vpop.permute.xlu0 %4086
  %4088 = vrot.lane.b32.xlu0 %v4061, 64
  %v4089 = vpop.permute.xlu0 %4088
  %v4097 = vmul.f32 %v4062, %v4077
  %v4098 = vmul.f32 %v4063, %v4079
  %v4099 = vmul.f32 %v4064, %v4081
  %v4100 = vmul.f32 %v4065, %v4083
  %v4101 = vmul.f32 %v4066, %v4085
  %v4102 = vmul.f32 %v4067, %v4087
  %v4103 = vmul.f32 %v4068, %v4089
  %4111 = vrot.lane.b32.xlu0 %v4097, 64
  %v4112 = vpop.permute.xlu0 %4111
  %4113 = vrot.lane.b32.xlu0 %v4098, 64
  %v4114 = vpop.permute.xlu0 %4113
  %4115 = vrot.lane.b32.xlu0 %v4099, 64
  %v4116 = vpop.permute.xlu0 %4115
  %4117 = vrot.lane.b32.xlu0 %v4100, 64
  %v4118 = vpop.permute.xlu0 %4117
  %4119 = vrot.lane.b32.xlu0 %v4101, 64
  %v4120 = vpop.permute.xlu0 %4119
  %4121 = vrot.lane.b32.xlu0 %v4102, 64
  %v4122 = vpop.permute.xlu0 %4121
  %4123 = vrot.lane.b32.xlu0 %v4103, 64
  %v4124 = vpop.permute.xlu0 %4123
  %v4125 = vsel %vm533, %v4112, 0
  %v4127 = vsel %vm533, %v4114, 0
  %v4129 = vsel %vm533, %v4116, 0
  %v4131 = vsel %vm533, %v4118, 0
  %v4133 = vsel %vm533, %v4120, 0
  %v4135 = vsel %vm533, %v4122, 0
  %v4137 = vsel %vm533, %v4124, 0
  %4139 = vmatprep.subr.mxu0 0.0
  %4140 = vmatpush1.msra.mxu0 %v602
  %4141 = vmatprep.subr.mxu0 0.0
  %4142 = vmatpush1.msra.mxu0 %v603
  %4143 = vmatprep.subr.mxu0 0.0
  %4144 = vmatpush1.msra.mxu0 %v604
  %4145 = vmatprep.subr.mxu0 0.0
  %4146 = vmatpush1.msra.mxu0 %v605
  %4147 = vmatprep.subr.mxu0 0.0
  %4148 = vmatpush1.msra.mxu0 0.0
  %4149 = vmatprep.subr.mxu0 0.0
  %4150 = vmatpush1.msra.mxu0 0.0
  %4151 = vmatprep.subr.mxu0 0.0
  %4152 = vmatpush1.msra.mxu0 0.0
  %4153 = vmatprep.subr.mxu0 0.0
  %4154 = vmatpush1.msra.mxu0 0.0
  %4155 = vmatprep.subr.mxu0 0.0
  %4156 = vmatpush1.msra.mxu0 0.0
  %4157 = vmatprep.subr.mxu0 0.0
  %4158 = vmatpush1.msra.mxu0 0.0
  %4159 = vmatprep.subr.mxu0 0.0
  %4160 = vmatpush1.msra.mxu0 0.0
  %4161 = vmatprep.subr.mxu0 0.0
  %4162 = vmatpush1.msra.mxu0 0.0
  %4163 = vmatprep.subr.mxu0 0.0
  %4164 = vmatpush1.msra.mxu0 0.0
  %4165 = vmatprep.subr.mxu0 0.0
  %4166 = vmatpush1.msra.mxu0 0.0
  %4167 = vmatprep.subr.mxu0 0.0
  %4168 = vmatpush1.msra.mxu0 0.0
  %4169 = vmatprep.subr.mxu0 0.0
  %4170 = vmatpush1.msra.mxu0 0.0
  %4171 = vmatprep.subr.mxu0 0.0
  %4172 = vmatpush1.msra.mxu0 0.0
  %4173 = vmatprep.subr.mxu0 0.0
  %4174 = vmatpush1.msra.mxu0 0.0
  %4175 = vmatprep.subr.mxu0 0.0
  %4176 = vmatpush1.msra.mxu0 0.0
  %4177 = vmatprep.subr.mxu0 0.0
  %4178 = vmatpush1.msra.mxu0 0.0
  %4179 = vmatprep.subr.mxu0 0.0
  %4180 = vmatpush1.msra.mxu0 0.0
  %4181 = vmatprep.subr.mxu0 0.0
  %4182 = vmatpush1.msra.mxu0 0.0
  %4183 = vmatprep.subr.mxu0 0.0
  %4184 = vmatpush1.msra.mxu0 0.0
  %4185 = vmatprep.subr.mxu0 0.0
  %4186 = vmatpush1.msra.mxu0 0.0
  %4187 = vmatprep.subr.mxu0 0.0
  %4188 = vmatpush1.msra.mxu0 0.0
  %4189 = vmatprep.subr.mxu0 0.0
  %4190 = vmatpush1.msra.mxu0 0.0
  %4191 = vmatprep.subr.mxu0 0.0
  %4192 = vmatpush1.msra.mxu0 0.0
  %4193 = vmatprep.subr.mxu0 0.0
  %4194 = vmatpush1.msra.mxu0 0.0
  %4195 = vmatprep.subr.mxu0 0.0
  %4196 = vmatpush1.msra.mxu0 0.0
  %4197 = vmatprep.subr.mxu0 0.0
  %4198 = vmatpush1.msra.mxu0 0.0
  %4199 = vmatprep.subr.mxu0 0.0
  %4200 = vmatpush1.msra.mxu0 0.0
  %4201 = vmatprep.subr.mxu0 0.0
  %4202 = vmatpush1.msra.mxu0 0.0
  %4203 = vmatprep.mubr.f32.mxu0 0.0
  %4204 = vmatmul.mubr.f32.gmra.mrb[0].mxu0 %v4125
  %v4205 = vpop.f32.mrb[0].mxu0
  %v4206 = vadd.f32 0.0, %v4205
  %v4207 = vpop.f32.mrb[0].mxu0
  %4208 = vmatprep.mubr.f32.mxu0 0.0
  %4209 = vmatmul.mubr.f32.gmra.mrb[0].mxu0 %v4127
  %v4210 = vpop.f32.mrb[0].mxu0
  %v4211 = vadd.f32 0.0, %v4210
  %v4212 = vpop.f32.mrb[0].mxu0
  %4213 = vmatprep.mubr.f32.mxu0 0.0
  %4214 = vmatmul.mubr.f32.gmra.mrb[0].mxu0 %v4129
  %v4215 = vpop.f32.mrb[0].mxu0
  %v4216 = vadd.f32 0.0, %v4215
  %v4217 = vpop.f32.mrb[0].mxu0
  %4218 = vmatprep.mubr.f32.mxu0 0.0
  %4219 = vmatmul.mubr.f32.gmra.mrb[0].mxu0 %v4131
  %v4220 = vpop.f32.mrb[0].mxu0
  %v4221 = vadd.f32 0.0, %v4220
  %v4222 = vpop.f32.mrb[0].mxu0
  %4223 = vmatprep.mubr.f32.mxu0 0.0
  %4224 = vmatmul.mubr.f32.gmra.mrb[0].mxu0 %v4133
  %v4225 = vpop.f32.mrb[0].mxu0
  %v4226 = vadd.f32 0.0, %v4225
  %v4227 = vpop.f32.mrb[0].mxu0
  %4228 = vmatprep.mubr.f32.mxu0 0.0
  %4229 = vmatmul.mubr.f32.gmra.mrb[0].mxu0 %v4135
  %v4230 = vpop.f32.mrb[0].mxu0
  %v4231 = vadd.f32 0.0, %v4230
  %v4232 = vpop.f32.mrb[0].mxu0
  %4233 = vmatprep.mubr.f32.mxu0 0.0
  %4234 = vmatmul.mubr.f32.gmra.mrb[0].mxu0 %v4137
  %v4235 = vpop.f32.mrb[0].mxu0
  %v4236 = vadd.f32 0.0, %v4235
  %v4237 = vpop.f32.mrb[0].mxu0
  %4238 = vdwg.mxu0
  %4240 = vset.pattern.permute.xlu0 0
  %4241 = vperm.xlu0 %4240, %v4206
  %v4242 = vpop.permute.xlu0 %4241
  %4245 = vset.pattern.permute.xlu0 0
  %4246 = vperm.xlu0 %4245, %v4211
  %v4247 = vpop.permute.xlu0 %4246
  %4250 = vset.pattern.permute.xlu0 0
  %4251 = vperm.xlu0 %4250, %v4216
  %v4252 = vpop.permute.xlu0 %4251
  %4255 = vset.pattern.permute.xlu0 0
  %4256 = vperm.xlu0 %4255, %v4221
  %v4257 = vpop.permute.xlu0 %4256
  %4260 = vset.pattern.permute.xlu0 0
  %4261 = vperm.xlu0 %4260, %v4226
  %v4262 = vpop.permute.xlu0 %4261
  %4265 = vset.pattern.permute.xlu0 0
  %4266 = vperm.xlu0 %4265, %v4231
  %v4267 = vpop.permute.xlu0 %4266
  %4270 = vset.pattern.permute.xlu0 0
  %4271 = vperm.xlu0 %4270, %v4236
  %v4272 = vpop.permute.xlu0 %4271
  %v4274 = vsel %vm478, %v4242, -1e+30
  %v4275 = vsel %vm479, %v4247, -1e+30
  %v4276 = vsel %vm480, %v4252, -1e+30
  %v4277 = vsel %vm481, %v4257, -1e+30
  %v4278 = vsel %vm482, %v4262, -1e+30
  %v4279 = vsel %vm483, %v4267, -1e+30
  %v4280 = vsel %vm484, %v4272, -1e+30
  %v4281 = vsel %vm533, %v4274, -inf
  %v4282 = vsel %vm533, %v4275, -inf
  %v4283 = vsel %vm533, %v4276, -inf
  %v4284 = vsel %vm533, %v4277, -inf
  %v4285 = vsel %vm533, %v4278, -inf
  %v4286 = vmax.f32 %v4281, %v4285
  %v4287 = vsel %vm533, %v4279, -inf
  %v4288 = vmax.f32 %v4282, %v4287
  %v4289 = vsel %vm545, %v4280, -inf
  %v4290 = vmax.f32 %v4283, %v4289
  %v4291 = vmax.f32 %v4286, %v4288
  %v4292 = vmax.f32 %v4290, %v4284
  %v4293 = vmax.f32 %v4291, %v4292
  %v4294 = vrot.slane %v4293, 4
  %v4295 = vmax.f32 %v4293, %v4294
  %v4296 = vrot.slane %v4295, 2
  %v4297 = vmax.f32 %v4295, %v4296
  %v4298 = vrot.slane %v4297, 1
  %v4299 = vmax.f32 %v4297, %v4298
  %v4300 = vmul.f32 %v485, %v4299
  %v4301 = vmul.f32 %v486, %v4299
  %v4302 = vmul.f32 %v487, %v4299
  %v4303 = vmul.f32 %v488, %v4299
  %v4304 = vmul.f32 %v489, %v4299
  %v4305 = vmul.f32 %v490, %v4299
  %v4306 = vmul.f32 %v491, %v4299
  %v4307 = vsel %vm533, %v4300, 0.0
  %4308 = vadd.xlane.f32.xlu0 %v4307
  %v4309 = vpop.xlane.xlu0 %4308
  %v4310 = vsel %vm533, %v4301, 0.0
  %4311 = vadd.xlane.f32.xlu0 %v4310
  %v4312 = vpop.xlane.xlu0 %4311
  %v4313 = vsel %vm533, %v4302, 0.0
  %4314 = vadd.xlane.f32.xlu0 %v4313
  %v4315 = vpop.xlane.xlu0 %4314
  %v4316 = vsel %vm533, %v4303, 0.0
  %4317 = vadd.xlane.f32.xlu0 %v4316
  %v4318 = vpop.xlane.xlu0 %4317
  %v4319 = vsel %vm533, %v4304, 0.0
  %4320 = vadd.xlane.f32.xlu0 %v4319
  %v4321 = vpop.xlane.xlu0 %4320
  %v4322 = vsel %vm533, %v4305, 0.0
  %4323 = vadd.xlane.f32.xlu0 %v4322
  %v4324 = vpop.xlane.xlu0 %4323
  %v4325 = vsel %vm545, %v4306, 0.0
  %4326 = vadd.xlane.f32.xlu0 %v4325
  %v4327 = vpop.xlane.xlu0 %4326
  %v4328 = vsub.f32 %v4206, %v4309
  %v4329 = vsub.f32 %v4211, %v4312
  %v4330 = vsub.f32 %v4216, %v4315
  %v4331 = vsub.f32 %v4221, %v4318
  %v4332 = vsub.f32 %v4226, %v4321
  %v4333 = vsub.f32 %v4231, %v4324
  %v4334 = vsub.f32 %v4236, %v4327
  %v4335 = vmul.f32 %v4328, 1.442695
  %v4336 = vpow.pop %v4335
  %v4337 = vmul.f32 %v4329, 1.442695
  %v4338 = vpow.pop %v4337
  %v4339 = vmul.f32 %v4330, 1.442695
  %v4340 = vpow.pop %v4339
  %v4341 = vmul.f32 %v4331, 1.442695
  %v4342 = vpow.pop %v4341
  %v4343 = vmul.f32 %v4332, 1.442695
  %v4344 = vpow.pop %v4343
  %v4345 = vmul.f32 %v4333, 1.442695
  %v4346 = vpow.pop %v4345
  %v4347 = vmul.f32 %v4334, 1.442695
  %v4348 = vpow.pop %v4347
  %4350 = vset.pattern.permute.xlu0 0
  %4351 = vperm.xlu0 %4350, %v4336
  %v4352 = vpop.permute.xlu0 %4351
  %4355 = vset.pattern.permute.xlu0 0
  %4356 = vperm.xlu0 %4355, %v4338
  %v4357 = vpop.permute.xlu0 %4356
  %4360 = vset.pattern.permute.xlu0 0
  %4361 = vperm.xlu0 %4360, %v4340
  %v4362 = vpop.permute.xlu0 %4361
  %4365 = vset.pattern.permute.xlu0 0
  %4366 = vperm.xlu0 %4365, %v4342
  %v4367 = vpop.permute.xlu0 %4366
  %4370 = vset.pattern.permute.xlu0 0
  %4371 = vperm.xlu0 %4370, %v4344
  %v4372 = vpop.permute.xlu0 %4371
  %4375 = vset.pattern.permute.xlu0 0
  %4376 = vperm.xlu0 %4375, %v4346
  %v4377 = vpop.permute.xlu0 %4376
  %4380 = vset.pattern.permute.xlu0 0
  %4381 = vperm.xlu0 %4380, %v4348
  %v4382 = vpop.permute.xlu0 %4381
  %v4384 = vmul.f32 %v485, %v4352
  %v4385 = vmul.f32 %v486, %v4357
  %v4386 = vmul.f32 %v487, %v4362
  %v4387 = vmul.f32 %v488, %v4367
  %v4388 = vmul.f32 %v489, %v4372
  %v4389 = vmul.f32 %v490, %v4377
  %v4390 = vmul.f32 %v491, %v4382
  %v4391 = vsel %vm533, %v4384, 0.0
  %v4392 = vsel %vm533, %v4385, 0.0
  %v4393 = vadd.f32 %v4391, %v4392
  %v4394 = vsel %vm533, %v4386, 0.0
  %v4395 = vadd.f32 %v4393, %v4394
  %v4396 = vsel %vm533, %v4387, 0.0
  %v4397 = vadd.f32 %v4395, %v4396
  %v4398 = vsel %vm533, %v4388, 0.0
  %v4399 = vadd.f32 %v4397, %v4398
  %v4400 = vsel %vm533, %v4389, 0.0
  %v4401 = vadd.f32 %v4399, %v4400
  %v4402 = vsel %vm545, %v4390, 0.0
  %v4403 = vadd.f32 %v4401, %v4402
  %v4404 = vrot.slane %v4403, 4
  %v4405 = vadd.f32 %v4403, %v4404
  %v4406 = vrot.slane %v4405, 2
  %v4407 = vadd.f32 %v4405, %v4406
  %v4408 = vrot.slane %v4407, 1
  %v4409 = vadd.f32 %v4407, %v4408
  %v4410 = vmul.f32 %v485, %v4409
  %v4411 = vmul.f32 %v486, %v4409
  %v4412 = vmul.f32 %v487, %v4409
  %v4413 = vmul.f32 %v488, %v4409
  %v4414 = vmul.f32 %v489, %v4409
  %v4415 = vmul.f32 %v490, %v4409
  %v4416 = vmul.f32 %v491, %v4409
  %v4417 = vsel %vm533, %v4410, 0.0
  %4418 = vadd.xlane.f32.xlu0 %v4417
  %v4419 = vpop.xlane.xlu0 %4418
  %v4420 = vsel %vm533, %v4411, 0.0
  %4421 = vadd.xlane.f32.xlu0 %v4420
  %v4422 = vpop.xlane.xlu0 %4421
  %v4423 = vsel %vm533, %v4412, 0.0
  %4424 = vadd.xlane.f32.xlu0 %v4423
  %v4425 = vpop.xlane.xlu0 %4424
  %v4426 = vsel %vm533, %v4413, 0.0
  %4427 = vadd.xlane.f32.xlu0 %v4426
  %v4428 = vpop.xlane.xlu0 %4427
  %v4429 = vsel %vm533, %v4414, 0.0
  %4430 = vadd.xlane.f32.xlu0 %v4429
  %v4431 = vpop.xlane.xlu0 %4430
  %v4432 = vsel %vm533, %v4415, 0.0
  %4433 = vadd.xlane.f32.xlu0 %v4432
  %v4434 = vpop.xlane.xlu0 %4433
  %v4435 = vsel %vm545, %v4416, 0.0
  %4436 = vadd.xlane.f32.xlu0 %v4435
  %v4437 = vpop.xlane.xlu0 %4436
  %v4438 = vrcp.pop %v4419
  %v4439 = vmul.f32 %v4336, %v4438
  %v4440 = vrcp.pop %v4422
  %v4441 = vmul.f32 %v4338, %v4440
  %v4442 = vrcp.pop %v4425
  %v4443 = vmul.f32 %v4340, %v4442
  %v4444 = vrcp.pop %v4428
  %v4445 = vmul.f32 %v4342, %v4444
  %v4446 = vrcp.pop %v4431
  %v4447 = vmul.f32 %v4344, %v4446
  %v4448 = vrcp.pop %v4434
  %v4449 = vmul.f32 %v4346, %v4448
  %v4450 = vrcp.pop %v4437
  %v4451 = vmul.f32 %v4348, %v4450
  %v4452 = vmul.f32 %v4439, %v563
  %v4453 = vmul.f32 %v4441, %v566
  %v4454 = vmul.f32 %v4443, %v569
  %v4455 = vmul.f32 %v4445, %v572
  %v4456 = vmul.f32 %v4447, %v575
  %v4457 = vmul.f32 %v4449, %v578
  %v4458 = vmul.f32 %v4451, %v581
  %4460 = vset.pattern.permute.xlu0 0
  %4461 = vperm.xlu0 %4460, %v4452
  %v4462 = vpop.permute.xlu0 %4461
  %4465 = vset.pattern.permute.xlu0 0
  %4466 = vperm.xlu0 %4465, %v4453
  %v4467 = vpop.permute.xlu0 %4466
  %4470 = vset.pattern.permute.xlu0 0
  %4471 = vperm.xlu0 %4470, %v4454
  %v4472 = vpop.permute.xlu0 %4471
  %4475 = vset.pattern.permute.xlu0 0
  %4476 = vperm.xlu0 %4475, %v4455
  %v4477 = vpop.permute.xlu0 %4476
  %4480 = vset.pattern.permute.xlu0 0
  %4481 = vperm.xlu0 %4480, %v4456
  %v4482 = vpop.permute.xlu0 %4481
  %4485 = vset.pattern.permute.xlu0 0
  %4486 = vperm.xlu0 %4485, %v4457
  %v4487 = vpop.permute.xlu0 %4486
  %4490 = vset.pattern.permute.xlu0 0
  %4491 = vperm.xlu0 %4490, %v4458
  %v4492 = vpop.permute.xlu0 %4491
  %v4494 = vmul.f32 %v4462, %v1833
  %v4495 = vmul.f32 %v4467, %v1833
  %v4496 = vmul.f32 %v4472, %v1833
  %v4497 = vmul.f32 %v4477, %v1833
  %v4498 = vmul.f32 %v4482, %v1833
  %v4499 = vmul.f32 %v4487, %v1833
  %v4500 = vmul.f32 %v4492, %v1833
  %4501 = vset.pattern.permute.xlu0 1
  %4502 = vperm.xlu0 %4501, %v4206
  %v4503 = vpop.permute.xlu0 %4502
  %4505 = vset.pattern.permute.xlu0 1
  %4506 = vperm.xlu0 %4505, %v4211
  %v4507 = vpop.permute.xlu0 %4506
  %4509 = vset.pattern.permute.xlu0 1
  %4510 = vperm.xlu0 %4509, %v4216
  %v4511 = vpop.permute.xlu0 %4510
  %4513 = vset.pattern.permute.xlu0 1
  %4514 = vperm.xlu0 %4513, %v4221
  %v4515 = vpop.permute.xlu0 %4514
  %4517 = vset.pattern.permute.xlu0 1
  %4518 = vperm.xlu0 %4517, %v4226
  %v4519 = vpop.permute.xlu0 %4518
  %4521 = vset.pattern.permute.xlu0 1
  %4522 = vperm.xlu0 %4521, %v4231
  %v4523 = vpop.permute.xlu0 %4522
  %4525 = vset.pattern.permute.xlu0 1
  %4526 = vperm.xlu0 %4525, %v4236
  %v4527 = vpop.permute.xlu0 %4526
  %v4529 = vsel %vm478, %v4503, -1e+30
  %v4530 = vsel %vm479, %v4507, -1e+30
  %v4531 = vsel %vm480, %v4511, -1e+30
  %v4532 = vsel %vm481, %v4515, -1e+30
  %v4533 = vsel %vm482, %v4519, -1e+30
  %v4534 = vsel %vm483, %v4523, -1e+30
  %v4535 = vsel %vm484, %v4527, -1e+30
  %v4536 = vsel %vm533, %v4529, -inf
  %v4537 = vsel %vm533, %v4530, -inf
  %v4538 = vsel %vm533, %v4531, -inf
  %v4539 = vsel %vm533, %v4532, -inf
  %v4540 = vsel %vm533, %v4533, -inf
  %v4541 = vmax.f32 %v4536, %v4540
  %v4542 = vsel %vm533, %v4534, -inf
  %v4543 = vmax.f32 %v4537, %v4542
  %v4544 = vsel %vm545, %v4535, -inf
  %v4545 = vmax.f32 %v4538, %v4544
  %v4546 = vmax.f32 %v4541, %v4543
  %v4547 = vmax.f32 %v4545, %v4539
  %v4548 = vmax.f32 %v4546, %v4547
  %v4549 = vrot.slane %v4548, 4
  %v4550 = vmax.f32 %v4548, %v4549
  %v4551 = vrot.slane %v4550, 2
  %v4552 = vmax.f32 %v4550, %v4551
  %v4553 = vrot.slane %v4552, 1
  %v4554 = vmax.f32 %v4552, %v4553
  %v4555 = vmul.f32 %v485, %v4554
  %v4556 = vmul.f32 %v486, %v4554
  %v4557 = vmul.f32 %v487, %v4554
  %v4558 = vmul.f32 %v488, %v4554
  %v4559 = vmul.f32 %v489, %v4554
  %v4560 = vmul.f32 %v490, %v4554
  %v4561 = vmul.f32 %v491, %v4554
  %v4562 = vsel %vm533, %v4555, 0.0
  %4563 = vadd.xlane.f32.xlu0 %v4562
  %v4564 = vpop.xlane.xlu0 %4563
  %v4565 = vsel %vm533, %v4556, 0.0
  %4566 = vadd.xlane.f32.xlu0 %v4565
  %v4567 = vpop.xlane.xlu0 %4566
  %v4568 = vsel %vm533, %v4557, 0.0
  %4569 = vadd.xlane.f32.xlu0 %v4568
  %v4570 = vpop.xlane.xlu0 %4569
  %v4571 = vsel %vm533, %v4558, 0.0
  %4572 = vadd.xlane.f32.xlu0 %v4571
  %v4573 = vpop.xlane.xlu0 %4572
  %v4574 = vsel %vm533, %v4559, 0.0
  %4575 = vadd.xlane.f32.xlu0 %v4574
  %v4576 = vpop.xlane.xlu0 %4575
  %v4577 = vsel %vm533, %v4560, 0.0
  %4578 = vadd.xlane.f32.xlu0 %v4577
  %v4579 = vpop.xlane.xlu0 %4578
  %v4580 = vsel %vm545, %v4561, 0.0
  %4581 = vadd.xlane.f32.xlu0 %v4580
  %v4582 = vpop.xlane.xlu0 %4581
  %v4583 = vsub.f32 %v4206, %v4564
  %v4584 = vsub.f32 %v4211, %v4567
  %v4585 = vsub.f32 %v4216, %v4570
  %v4586 = vsub.f32 %v4221, %v4573
  %v4587 = vsub.f32 %v4226, %v4576
  %v4588 = vsub.f32 %v4231, %v4579
  %v4589 = vsub.f32 %v4236, %v4582
  %v4590 = vmul.f32 %v4583, 1.442695
  %v4591 = vpow.pop %v4590
  %v4592 = vmul.f32 %v4584, 1.442695
  %v4593 = vpow.pop %v4592
  %v4594 = vmul.f32 %v4585, 1.442695
  %v4595 = vpow.pop %v4594
  %v4596 = vmul.f32 %v4586, 1.442695
  %v4597 = vpow.pop %v4596
  %v4598 = vmul.f32 %v4587, 1.442695
  %v4599 = vpow.pop %v4598
  %v4600 = vmul.f32 %v4588, 1.442695
  %v4601 = vpow.pop %v4600
  %v4602 = vmul.f32 %v4589, 1.442695
  %v4603 = vpow.pop %v4602
  %4605 = vset.pattern.permute.xlu0 1
  %4606 = vperm.xlu0 %4605, %v4591
  %v4607 = vpop.permute.xlu0 %4606
  %4610 = vset.pattern.permute.xlu0 1
  %4611 = vperm.xlu0 %4610, %v4593
  %v4612 = vpop.permute.xlu0 %4611
  %4615 = vset.pattern.permute.xlu0 1
  %4616 = vperm.xlu0 %4615, %v4595
  %v4617 = vpop.permute.xlu0 %4616
  %4620 = vset.pattern.permute.xlu0 1
  %4621 = vperm.xlu0 %4620, %v4597
  %v4622 = vpop.permute.xlu0 %4621
  %4625 = vset.pattern.permute.xlu0 1
  %4626 = vperm.xlu0 %4625, %v4599
  %v4627 = vpop.permute.xlu0 %4626
  %4630 = vset.pattern.permute.xlu0 1
  %4631 = vperm.xlu0 %4630, %v4601
  %v4632 = vpop.permute.xlu0 %4631
  %4635 = vset.pattern.permute.xlu0 1
  %4636 = vperm.xlu0 %4635, %v4603
  %v4637 = vpop.permute.xlu0 %4636
  %v4639 = vmul.f32 %v485, %v4607
  %v4640 = vmul.f32 %v486, %v4612
  %v4641 = vmul.f32 %v487, %v4617
  %v4642 = vmul.f32 %v488, %v4622
  %v4643 = vmul.f32 %v489, %v4627
  %v4644 = vmul.f32 %v490, %v4632
  %v4645 = vmul.f32 %v491, %v4637
  %v4646 = vsel %vm533, %v4639, 0.0
  %v4647 = vsel %vm533, %v4640, 0.0
  %v4648 = vadd.f32 %v4646, %v4647
  %v4649 = vsel %vm533, %v4641, 0.0
  %v4650 = vadd.f32 %v4648, %v4649
  %v4651 = vsel %vm533, %v4642, 0.0
  %v4652 = vadd.f32 %v4650, %v4651
  %v4653 = vsel %vm533, %v4643, 0.0
  %v4654 = vadd.f32 %v4652, %v4653
  %v4655 = vsel %vm533, %v4644, 0.0
  %v4656 = vadd.f32 %v4654, %v4655
  %v4657 = vsel %vm545, %v4645, 0.0
  %v4658 = vadd.f32 %v4656, %v4657
  %v4659 = vrot.slane %v4658, 4
  %v4660 = vadd.f32 %v4658, %v4659
  %v4661 = vrot.slane %v4660, 2
  %v4662 = vadd.f32 %v4660, %v4661
  %v4663 = vrot.slane %v4662, 1
  %v4664 = vadd.f32 %v4662, %v4663
  %v4665 = vmul.f32 %v485, %v4664
  %v4666 = vmul.f32 %v486, %v4664
  %v4667 = vmul.f32 %v487, %v4664
  %v4668 = vmul.f32 %v488, %v4664
  %v4669 = vmul.f32 %v489, %v4664
  %v4670 = vmul.f32 %v490, %v4664
  %v4671 = vmul.f32 %v491, %v4664
  %v4672 = vsel %vm533, %v4665, 0.0
  %4673 = vadd.xlane.f32.xlu0 %v4672
  %v4674 = vpop.xlane.xlu0 %4673
  %v4675 = vsel %vm533, %v4666, 0.0
  %4676 = vadd.xlane.f32.xlu0 %v4675
  %v4677 = vpop.xlane.xlu0 %4676
  %v4678 = vsel %vm533, %v4667, 0.0
  %4679 = vadd.xlane.f32.xlu0 %v4678
  %v4680 = vpop.xlane.xlu0 %4679
  %v4681 = vsel %vm533, %v4668, 0.0
  %4682 = vadd.xlane.f32.xlu0 %v4681
  %v4683 = vpop.xlane.xlu0 %4682
  %v4684 = vsel %vm533, %v4669, 0.0
  %4685 = vadd.xlane.f32.xlu0 %v4684
  %v4686 = vpop.xlane.xlu0 %4685
  %v4687 = vsel %vm533, %v4670, 0.0
  %4688 = vadd.xlane.f32.xlu0 %v4687
  %v4689 = vpop.xlane.xlu0 %4688
  %v4690 = vsel %vm545, %v4671, 0.0
  %4691 = vadd.xlane.f32.xlu0 %v4690
  %v4692 = vpop.xlane.xlu0 %4691
  %v4693 = vrcp.pop %v4674
  %v4694 = vmul.f32 %v4591, %v4693
  %v4695 = vrcp.pop %v4677
  %v4696 = vmul.f32 %v4593, %v4695
  %v4697 = vrcp.pop %v4680
  %v4698 = vmul.f32 %v4595, %v4697
  %v4699 = vrcp.pop %v4683
  %v4700 = vmul.f32 %v4597, %v4699
  %v4701 = vrcp.pop %v4686
  %v4702 = vmul.f32 %v4599, %v4701
  %v4703 = vrcp.pop %v4689
  %v4704 = vmul.f32 %v4601, %v4703
  %v4705 = vrcp.pop %v4692
  %v4706 = vmul.f32 %v4603, %v4705
  %v4707 = vmul.f32 %v4694, %v563
  %v4708 = vmul.f32 %v4696, %v566
  %v4709 = vmul.f32 %v4698, %v569
  %v4710 = vmul.f32 %v4700, %v572
  %v4711 = vmul.f32 %v4702, %v575
  %v4712 = vmul.f32 %v4704, %v578
  %v4713 = vmul.f32 %v4706, %v581
  %4715 = vset.pattern.permute.xlu0 1
  %4716 = vperm.xlu0 %4715, %v4707
  %v4717 = vpop.permute.xlu0 %4716
  %4720 = vset.pattern.permute.xlu0 1
  %4721 = vperm.xlu0 %4720, %v4708
  %v4722 = vpop.permute.xlu0 %4721
  %4725 = vset.pattern.permute.xlu0 1
  %4726 = vperm.xlu0 %4725, %v4709
  %v4727 = vpop.permute.xlu0 %4726
  %4730 = vset.pattern.permute.xlu0 1
  %4731 = vperm.xlu0 %4730, %v4710
  %v4732 = vpop.permute.xlu0 %4731
  %4735 = vset.pattern.permute.xlu0 1
  %4736 = vperm.xlu0 %4735, %v4711
  %v4737 = vpop.permute.xlu0 %4736
  %4740 = vset.pattern.permute.xlu0 1
  %4741 = vperm.xlu0 %4740, %v4712
  %v4742 = vpop.permute.xlu0 %4741
  %4745 = vset.pattern.permute.xlu0 1
  %4746 = vperm.xlu0 %4745, %v4713
  %v4747 = vpop.permute.xlu0 %4746
  %v4749 = vmul.f32 %v4717, %v2099
  %v4750 = vmul.f32 %v4722, %v2099
  %v4751 = vmul.f32 %v4727, %v2099
  %v4752 = vmul.f32 %v4732, %v2099
  %v4753 = vmul.f32 %v4737, %v2099
  %v4754 = vmul.f32 %v4742, %v2099
  %v4755 = vmul.f32 %v4747, %v2099
  %v4756 = vadd.f32 %v4494, %v4749
  %v4757 = vadd.f32 %v4495, %v4750
  %v4758 = vadd.f32 %v4496, %v4751
  %v4759 = vadd.f32 %v4497, %v4752
  %v4760 = vadd.f32 %v4498, %v4753
  %v4761 = vadd.f32 %v4499, %v4754
  %v4762 = vadd.f32 %v4500, %v4755
  %4763 = vset.pattern.permute.xlu0 2
  %4764 = vperm.xlu0 %4763, %v4206
  %v4765 = vpop.permute.xlu0 %4764
  %4767 = vset.pattern.permute.xlu0 2
  %4768 = vperm.xlu0 %4767, %v4211
  %v4769 = vpop.permute.xlu0 %4768
  %4771 = vset.pattern.permute.xlu0 2
  %4772 = vperm.xlu0 %4771, %v4216
  %v4773 = vpop.permute.xlu0 %4772
  %4775 = vset.pattern.permute.xlu0 2
  %4776 = vperm.xlu0 %4775, %v4221
  %v4777 = vpop.permute.xlu0 %4776
  %4779 = vset.pattern.permute.xlu0 2
  %4780 = vperm.xlu0 %4779, %v4226
  %v4781 = vpop.permute.xlu0 %4780
  %4783 = vset.pattern.permute.xlu0 2
  %4784 = vperm.xlu0 %4783, %v4231
  %v4785 = vpop.permute.xlu0 %4784
  %4787 = vset.pattern.permute.xlu0 2
  %4788 = vperm.xlu0 %4787, %v4236
  %v4789 = vpop.permute.xlu0 %4788
  %v4791 = vsel %vm478, %v4765, -1e+30
  %v4792 = vsel %vm479, %v4769, -1e+30
  %v4793 = vsel %vm480, %v4773, -1e+30
  %v4794 = vsel %vm481, %v4777, -1e+30
  %v4795 = vsel %vm482, %v4781, -1e+30
  %v4796 = vsel %vm483, %v4785, -1e+30
  %v4797 = vsel %vm484, %v4789, -1e+30
  %v4798 = vsel %vm533, %v4791, -inf
  %v4799 = vsel %vm533, %v4792, -inf
  %v4800 = vsel %vm533, %v4793, -inf
  %v4801 = vsel %vm533, %v4794, -inf
  %v4802 = vsel %vm533, %v4795, -inf
  %v4803 = vmax.f32 %v4798, %v4802
  %v4804 = vsel %vm533, %v4796, -inf
  %v4805 = vmax.f32 %v4799, %v4804
  %v4806 = vsel %vm545, %v4797, -inf
  %v4807 = vmax.f32 %v4800, %v4806
  %v4808 = vmax.f32 %v4803, %v4805
  %v4809 = vmax.f32 %v4807, %v4801
  %v4810 = vmax.f32 %v4808, %v4809
  %v4811 = vrot.slane %v4810, 4
  %v4812 = vmax.f32 %v4810, %v4811
  %v4813 = vrot.slane %v4812, 2
  %v4814 = vmax.f32 %v4812, %v4813
  %v4815 = vrot.slane %v4814, 1
  %v4816 = vmax.f32 %v4814, %v4815
  %v4817 = vmul.f32 %v485, %v4816
  %v4818 = vmul.f32 %v486, %v4816
  %v4819 = vmul.f32 %v487, %v4816
  %v4820 = vmul.f32 %v488, %v4816
  %v4821 = vmul.f32 %v489, %v4816
  %v4822 = vmul.f32 %v490, %v4816
  %v4823 = vmul.f32 %v491, %v4816
  %v4824 = vsel %vm533, %v4817, 0.0
  %4825 = vadd.xlane.f32.xlu0 %v4824
  %v4826 = vpop.xlane.xlu0 %4825
  %v4827 = vsel %vm533, %v4818, 0.0
  %4828 = vadd.xlane.f32.xlu0 %v4827
  %v4829 = vpop.xlane.xlu0 %4828
  %v4830 = vsel %vm533, %v4819, 0.0
  %4831 = vadd.xlane.f32.xlu0 %v4830
  %v4832 = vpop.xlane.xlu0 %4831
  %v4833 = vsel %vm533, %v4820, 0.0
  %4834 = vadd.xlane.f32.xlu0 %v4833
  %v4835 = vpop.xlane.xlu0 %4834
  %v4836 = vsel %vm533, %v4821, 0.0
  %4837 = vadd.xlane.f32.xlu0 %v4836
  %v4838 = vpop.xlane.xlu0 %4837
  %v4839 = vsel %vm533, %v4822, 0.0
  %4840 = vadd.xlane.f32.xlu0 %v4839
  %v4841 = vpop.xlane.xlu0 %4840
  %v4842 = vsel %vm545, %v4823, 0.0
  %4843 = vadd.xlane.f32.xlu0 %v4842
  %v4844 = vpop.xlane.xlu0 %4843
  %v4845 = vsub.f32 %v4206, %v4826
  %v4846 = vsub.f32 %v4211, %v4829
  %v4847 = vsub.f32 %v4216, %v4832
  %v4848 = vsub.f32 %v4221, %v4835
  %v4849 = vsub.f32 %v4226, %v4838
  %v4850 = vsub.f32 %v4231, %v4841
  %v4851 = vsub.f32 %v4236, %v4844
  %v4852 = vmul.f32 %v4845, 1.442695
  %v4853 = vpow.pop %v4852
  %v4854 = vmul.f32 %v4846, 1.442695
  %v4855 = vpow.pop %v4854
  %v4856 = vmul.f32 %v4847, 1.442695
  %v4857 = vpow.pop %v4856
  %v4858 = vmul.f32 %v4848, 1.442695
  %v4859 = vpow.pop %v4858
  %v4860 = vmul.f32 %v4849, 1.442695
  %v4861 = vpow.pop %v4860
  %v4862 = vmul.f32 %v4850, 1.442695
  %v4863 = vpow.pop %v4862
  %v4864 = vmul.f32 %v4851, 1.442695
  %v4865 = vpow.pop %v4864
  %4867 = vset.pattern.permute.xlu0 2
  %4868 = vperm.xlu0 %4867, %v4853
  %v4869 = vpop.permute.xlu0 %4868
  %4872 = vset.pattern.permute.xlu0 2
  %4873 = vperm.xlu0 %4872, %v4855
  %v4874 = vpop.permute.xlu0 %4873
  %4877 = vset.pattern.permute.xlu0 2
  %4878 = vperm.xlu0 %4877, %v4857
  %v4879 = vpop.permute.xlu0 %4878
  %4882 = vset.pattern.permute.xlu0 2
  %4883 = vperm.xlu0 %4882, %v4859
  %v4884 = vpop.permute.xlu0 %4883
  %4887 = vset.pattern.permute.xlu0 2
  %4888 = vperm.xlu0 %4887, %v4861
  %v4889 = vpop.permute.xlu0 %4888
  %4892 = vset.pattern.permute.xlu0 2
  %4893 = vperm.xlu0 %4892, %v4863
  %v4894 = vpop.permute.xlu0 %4893
  %4897 = vset.pattern.permute.xlu0 2
  %4898 = vperm.xlu0 %4897, %v4865
  %v4899 = vpop.permute.xlu0 %4898
  %v4901 = vmul.f32 %v485, %v4869
  %v4902 = vmul.f32 %v486, %v4874
  %v4903 = vmul.f32 %v487, %v4879
  %v4904 = vmul.f32 %v488, %v4884
  %v4905 = vmul.f32 %v489, %v4889
  %v4906 = vmul.f32 %v490, %v4894
  %v4907 = vmul.f32 %v491, %v4899
  %v4908 = vsel %vm533, %v4901, 0.0
  %v4909 = vsel %vm533, %v4902, 0.0
  %v4910 = vadd.f32 %v4908, %v4909
  %v4911 = vsel %vm533, %v4903, 0.0
  %v4912 = vadd.f32 %v4910, %v4911
  %v4913 = vsel %vm533, %v4904, 0.0
  %v4914 = vadd.f32 %v4912, %v4913
  %v4915 = vsel %vm533, %v4905, 0.0
  %v4916 = vadd.f32 %v4914, %v4915
  %v4917 = vsel %vm533, %v4906, 0.0
  %v4918 = vadd.f32 %v4916, %v4917
  %v4919 = vsel %vm545, %v4907, 0.0
  %v4920 = vadd.f32 %v4918, %v4919
  %v4921 = vrot.slane %v4920, 4
  %v4922 = vadd.f32 %v4920, %v4921
  %v4923 = vrot.slane %v4922, 2
  %v4924 = vadd.f32 %v4922, %v4923
  %v4925 = vrot.slane %v4924, 1
  %v4926 = vadd.f32 %v4924, %v4925
  %v4927 = vmul.f32 %v485, %v4926
  %v4928 = vmul.f32 %v486, %v4926
  %v4929 = vmul.f32 %v487, %v4926
  %v4930 = vmul.f32 %v488, %v4926
  %v4931 = vmul.f32 %v489, %v4926
  %v4932 = vmul.f32 %v490, %v4926
  %v4933 = vmul.f32 %v491, %v4926
  %v4934 = vsel %vm533, %v4927, 0.0
  %4935 = vadd.xlane.f32.xlu0 %v4934
  %v4936 = vpop.xlane.xlu0 %4935
  %v4937 = vsel %vm533, %v4928, 0.0
  %4938 = vadd.xlane.f32.xlu0 %v4937
  %v4939 = vpop.xlane.xlu0 %4938
  %v4940 = vsel %vm533, %v4929, 0.0
  %4941 = vadd.xlane.f32.xlu0 %v4940
  %v4942 = vpop.xlane.xlu0 %4941
  %v4943 = vsel %vm533, %v4930, 0.0
  %4944 = vadd.xlane.f32.xlu0 %v4943
  %v4945 = vpop.xlane.xlu0 %4944
  %v4946 = vsel %vm533, %v4931, 0.0
  %4947 = vadd.xlane.f32.xlu0 %v4946
  %v4948 = vpop.xlane.xlu0 %4947
  %v4949 = vsel %vm533, %v4932, 0.0
  %4950 = vadd.xlane.f32.xlu0 %v4949
  %v4951 = vpop.xlane.xlu0 %4950
  %v4952 = vsel %vm545, %v4933, 0.0
  %4953 = vadd.xlane.f32.xlu0 %v4952
  %v4954 = vpop.xlane.xlu0 %4953
  %v4955 = vrcp.pop %v4936
  %v4956 = vmul.f32 %v4853, %v4955
  %v4957 = vrcp.pop %v4939
  %v4958 = vmul.f32 %v4855, %v4957
  %v4959 = vrcp.pop %v4942
  %v4960 = vmul.f32 %v4857, %v4959
  %v4961 = vrcp.pop %v4945
  %v4962 = vmul.f32 %v4859, %v4961
  %v4963 = vrcp.pop %v4948
  %v4964 = vmul.f32 %v4861, %v4963
  %v4965 = vrcp.pop %v4951
  %v4966 = vmul.f32 %v4863, %v4965
  %v4967 = vrcp.pop %v4954
  %v4968 = vmul.f32 %v4865, %v4967
  %v4969 = vmul.f32 %v4956, %v563
  %v4970 = vmul.f32 %v4958, %v566
  %v4971 = vmul.f32 %v4960, %v569
  %v4972 = vmul.f32 %v4962, %v572
  %v4973 = vmul.f32 %v4964, %v575
  %v4974 = vmul.f32 %v4966, %v578
  %v4975 = vmul.f32 %v4968, %v581
  %4977 = vset.pattern.permute.xlu0 2
  %4978 = vperm.xlu0 %4977, %v4969
  %v4979 = vpop.permute.xlu0 %4978
  %4982 = vset.pattern.permute.xlu0 2
  %4983 = vperm.xlu0 %4982, %v4970
  %v4984 = vpop.permute.xlu0 %4983
  %4987 = vset.pattern.permute.xlu0 2
  %4988 = vperm.xlu0 %4987, %v4971
  %v4989 = vpop.permute.xlu0 %4988
  %4992 = vset.pattern.permute.xlu0 2
  %4993 = vperm.xlu0 %4992, %v4972
  %v4994 = vpop.permute.xlu0 %4993
  %4997 = vset.pattern.permute.xlu0 2
  %4998 = vperm.xlu0 %4997, %v4973
  %v4999 = vpop.permute.xlu0 %4998
  %5002 = vset.pattern.permute.xlu0 2
  %5003 = vperm.xlu0 %5002, %v4974
  %v5004 = vpop.permute.xlu0 %5003
  %5007 = vset.pattern.permute.xlu0 2
  %5008 = vperm.xlu0 %5007, %v4975
  %v5009 = vpop.permute.xlu0 %5008
  %v5011 = vmul.f32 %v4979, %v2365
  %v5012 = vmul.f32 %v4984, %v2365
  %v5013 = vmul.f32 %v4989, %v2365
  %v5014 = vmul.f32 %v4994, %v2365
  %v5015 = vmul.f32 %v4999, %v2365
  %v5016 = vmul.f32 %v5004, %v2365
  %v5017 = vmul.f32 %v5009, %v2365
  %v5018 = vadd.f32 %v4756, %v5011
  %v5019 = vadd.f32 %v4757, %v5012
  %v5020 = vadd.f32 %v4758, %v5013
  %v5021 = vadd.f32 %v4759, %v5014
  %v5022 = vadd.f32 %v4760, %v5015
  %v5023 = vadd.f32 %v4761, %v5016
  %v5024 = vadd.f32 %v4762, %v5017
  %5025 = vset.pattern.permute.xlu0 3
  %5026 = vperm.xlu0 %5025, %v4206
  %v5027 = vpop.permute.xlu0 %5026
  %5029 = vset.pattern.permute.xlu0 3
  %5030 = vperm.xlu0 %5029, %v4211
  %v5031 = vpop.permute.xlu0 %5030
  %5033 = vset.pattern.permute.xlu0 3
  %5034 = vperm.xlu0 %5033, %v4216
  %v5035 = vpop.permute.xlu0 %5034
  %5037 = vset.pattern.permute.xlu0 3
  %5038 = vperm.xlu0 %5037, %v4221
  %v5039 = vpop.permute.xlu0 %5038
  %5041 = vset.pattern.permute.xlu0 3
  %5042 = vperm.xlu0 %5041, %v4226
  %v5043 = vpop.permute.xlu0 %5042
  %5045 = vset.pattern.permute.xlu0 3
  %5046 = vperm.xlu0 %5045, %v4231
  %v5047 = vpop.permute.xlu0 %5046
  %5049 = vset.pattern.permute.xlu0 3
  %5050 = vperm.xlu0 %5049, %v4236
  %v5051 = vpop.permute.xlu0 %5050
  %v5053 = vsel %vm478, %v5027, -1e+30
  %v5054 = vsel %vm479, %v5031, -1e+30
  %v5055 = vsel %vm480, %v5035, -1e+30
  %v5056 = vsel %vm481, %v5039, -1e+30
  %v5057 = vsel %vm482, %v5043, -1e+30
  %v5058 = vsel %vm483, %v5047, -1e+30
  %v5059 = vsel %vm484, %v5051, -1e+30
  %v5060 = vsel %vm533, %v5053, -inf
  %v5061 = vsel %vm533, %v5054, -inf
  %v5062 = vsel %vm533, %v5055, -inf
  %v5063 = vsel %vm533, %v5056, -inf
  %v5064 = vsel %vm533, %v5057, -inf
  %v5065 = vmax.f32 %v5060, %v5064
  %v5066 = vsel %vm533, %v5058, -inf
  %v5067 = vmax.f32 %v5061, %v5066
  %v5068 = vsel %vm545, %v5059, -inf
  %v5069 = vmax.f32 %v5062, %v5068
  %v5070 = vmax.f32 %v5065, %v5067
  %v5071 = vmax.f32 %v5069, %v5063
  %v5072 = vmax.f32 %v5070, %v5071
  %v5073 = vrot.slane %v5072, 4
  %v5074 = vmax.f32 %v5072, %v5073
  %v5075 = vrot.slane %v5074, 2
  %v5076 = vmax.f32 %v5074, %v5075
  %v5077 = vrot.slane %v5076, 1
  %v5078 = vmax.f32 %v5076, %v5077
  %v5079 = vmul.f32 %v485, %v5078
  %v5080 = vmul.f32 %v486, %v5078
  %v5081 = vmul.f32 %v487, %v5078
  %v5082 = vmul.f32 %v488, %v5078
  %v5083 = vmul.f32 %v489, %v5078
  %v5084 = vmul.f32 %v490, %v5078
  %v5085 = vmul.f32 %v491, %v5078
  %v5086 = vsel %vm533, %v5079, 0.0
  %5087 = vadd.xlane.f32.xlu0 %v5086
  %v5088 = vpop.xlane.xlu0 %5087
  %v5089 = vsel %vm533, %v5080, 0.0
  %5090 = vadd.xlane.f32.xlu0 %v5089
  %v5091 = vpop.xlane.xlu0 %5090
  %v5092 = vsel %vm533, %v5081, 0.0
  %5093 = vadd.xlane.f32.xlu0 %v5092
  %v5094 = vpop.xlane.xlu0 %5093
  %v5095 = vsel %vm533, %v5082, 0.0
  %5096 = vadd.xlane.f32.xlu0 %v5095
  %v5097 = vpop.xlane.xlu0 %5096
  %v5098 = vsel %vm533, %v5083, 0.0
  %5099 = vadd.xlane.f32.xlu0 %v5098
  %v5100 = vpop.xlane.xlu0 %5099
  %v5101 = vsel %vm533, %v5084, 0.0
  %5102 = vadd.xlane.f32.xlu0 %v5101
  %v5103 = vpop.xlane.xlu0 %5102
  %v5104 = vsel %vm545, %v5085, 0.0
  %5105 = vadd.xlane.f32.xlu0 %v5104
  %v5106 = vpop.xlane.xlu0 %5105
  %v5107 = vsub.f32 %v4206, %v5088
  %v5108 = vsub.f32 %v4211, %v5091
  %v5109 = vsub.f32 %v4216, %v5094
  %v5110 = vsub.f32 %v4221, %v5097
  %v5111 = vsub.f32 %v4226, %v5100
  %v5112 = vsub.f32 %v4231, %v5103
  %v5113 = vsub.f32 %v4236, %v5106
  %v5114 = vmul.f32 %v5107, 1.442695
  %v5115 = vpow.pop %v5114
  %v5116 = vmul.f32 %v5108, 1.442695
  %v5117 = vpow.pop %v5116
  %v5118 = vmul.f32 %v5109, 1.442695
  %v5119 = vpow.pop %v5118
  %v5120 = vmul.f32 %v5110, 1.442695
  %v5121 = vpow.pop %v5120
  %v5122 = vmul.f32 %v5111, 1.442695
  %v5123 = vpow.pop %v5122
  %v5124 = vmul.f32 %v5112, 1.442695
  %v5125 = vpow.pop %v5124
  %v5126 = vmul.f32 %v5113, 1.442695
  %v5127 = vpow.pop %v5126
  %5129 = vset.pattern.permute.xlu0 3
  %5130 = vperm.xlu0 %5129, %v5115
  %v5131 = vpop.permute.xlu0 %5130
  %5134 = vset.pattern.permute.xlu0 3
  %5135 = vperm.xlu0 %5134, %v5117
  %v5136 = vpop.permute.xlu0 %5135
  %5139 = vset.pattern.permute.xlu0 3
  %5140 = vperm.xlu0 %5139, %v5119
  %v5141 = vpop.permute.xlu0 %5140
  %5144 = vset.pattern.permute.xlu0 3
  %5145 = vperm.xlu0 %5144, %v5121
  %v5146 = vpop.permute.xlu0 %5145
  %5149 = vset.pattern.permute.xlu0 3
  %5150 = vperm.xlu0 %5149, %v5123
  %v5151 = vpop.permute.xlu0 %5150
  %5154 = vset.pattern.permute.xlu0 3
  %5155 = vperm.xlu0 %5154, %v5125
  %v5156 = vpop.permute.xlu0 %5155
  %5159 = vset.pattern.permute.xlu0 3
  %5160 = vperm.xlu0 %5159, %v5127
  %v5161 = vpop.permute.xlu0 %5160
  %v5163 = vmul.f32 %v485, %v5131
  %v5164 = vmul.f32 %v486, %v5136
  %v5165 = vmul.f32 %v487, %v5141
  %v5166 = vmul.f32 %v488, %v5146
  %v5167 = vmul.f32 %v489, %v5151
  %v5168 = vmul.f32 %v490, %v5156
  %v5169 = vmul.f32 %v491, %v5161
  %v5170 = vsel %vm533, %v5163, 0.0
  %v5171 = vsel %vm533, %v5164, 0.0
  %v5172 = vadd.f32 %v5170, %v5171
  %v5173 = vsel %vm533, %v5165, 0.0
  %v5174 = vadd.f32 %v5172, %v5173
  %v5175 = vsel %vm533, %v5166, 0.0
  %v5176 = vadd.f32 %v5174, %v5175
  %v5177 = vsel %vm533, %v5167, 0.0
  %v5178 = vadd.f32 %v5176, %v5177
  %v5179 = vsel %vm533, %v5168, 0.0
  %v5180 = vadd.f32 %v5178, %v5179
  %v5181 = vsel %vm545, %v5169, 0.0
  %v5182 = vadd.f32 %v5180, %v5181
  %v5183 = vrot.slane %v5182, 4
  %v5184 = vadd.f32 %v5182, %v5183
  %v5185 = vrot.slane %v5184, 2
  %v5186 = vadd.f32 %v5184, %v5185
  %v5187 = vrot.slane %v5186, 1
  %v5188 = vadd.f32 %v5186, %v5187
  %v5189 = vmul.f32 %v485, %v5188
  %v5190 = vmul.f32 %v486, %v5188
  %v5191 = vmul.f32 %v487, %v5188
  %v5192 = vmul.f32 %v488, %v5188
  %v5193 = vmul.f32 %v489, %v5188
  %v5194 = vmul.f32 %v490, %v5188
  %v5195 = vmul.f32 %v491, %v5188
  %v5196 = vsel %vm533, %v5189, 0.0
  %5197 = vadd.xlane.f32.xlu0 %v5196
  %v5198 = vpop.xlane.xlu0 %5197
  %v5199 = vsel %vm533, %v5190, 0.0
  %5200 = vadd.xlane.f32.xlu0 %v5199
  %v5201 = vpop.xlane.xlu0 %5200
  %v5202 = vsel %vm533, %v5191, 0.0
  %5203 = vadd.xlane.f32.xlu0 %v5202
  %v5204 = vpop.xlane.xlu0 %5203
  %v5205 = vsel %vm533, %v5192, 0.0
  %5206 = vadd.xlane.f32.xlu0 %v5205
  %v5207 = vpop.xlane.xlu0 %5206
  %v5208 = vsel %vm533, %v5193, 0.0
  %5209 = vadd.xlane.f32.xlu0 %v5208
  %v5210 = vpop.xlane.xlu0 %5209
  %v5211 = vsel %vm533, %v5194, 0.0
  %5212 = vadd.xlane.f32.xlu0 %v5211
  %v5213 = vpop.xlane.xlu0 %5212
  %v5214 = vsel %vm545, %v5195, 0.0
  %5215 = vadd.xlane.f32.xlu0 %v5214
  %v5216 = vpop.xlane.xlu0 %5215
  %v5217 = vrcp.pop %v5198
  %v5218 = vmul.f32 %v5115, %v5217
  %v5219 = vrcp.pop %v5201
  %v5220 = vmul.f32 %v5117, %v5219
  %v5221 = vrcp.pop %v5204
  %v5222 = vmul.f32 %v5119, %v5221
  %v5223 = vrcp.pop %v5207
  %v5224 = vmul.f32 %v5121, %v5223
  %v5225 = vrcp.pop %v5210
  %v5226 = vmul.f32 %v5123, %v5225
  %v5227 = vrcp.pop %v5213
  %v5228 = vmul.f32 %v5125, %v5227
  %v5229 = vrcp.pop %v5216
  %v5230 = vmul.f32 %v5127, %v5229
  %v5231 = vmul.f32 %v5218, %v563
  %v5232 = vmul.f32 %v5220, %v566
  %v5233 = vmul.f32 %v5222, %v569
  %v5234 = vmul.f32 %v5224, %v572
  %v5235 = vmul.f32 %v5226, %v575
  %v5236 = vmul.f32 %v5228, %v578
  %v5237 = vmul.f32 %v5230, %v581
  %5239 = vset.pattern.permute.xlu0 3
  %5240 = vperm.xlu0 %5239, %v5231
  %v5241 = vpop.permute.xlu0 %5240
  %5244 = vset.pattern.permute.xlu0 3
  %5245 = vperm.xlu0 %5244, %v5232
  %v5246 = vpop.permute.xlu0 %5245
  %5249 = vset.pattern.permute.xlu0 3
  %5250 = vperm.xlu0 %5249, %v5233
  %v5251 = vpop.permute.xlu0 %5250
  %5254 = vset.pattern.permute.xlu0 3
  %5255 = vperm.xlu0 %5254, %v5234
  %v5256 = vpop.permute.xlu0 %5255
  %5259 = vset.pattern.permute.xlu0 3
  %5260 = vperm.xlu0 %5259, %v5235
  %v5261 = vpop.permute.xlu0 %5260
  %5264 = vset.pattern.permute.xlu0 3
  %5265 = vperm.xlu0 %5264, %v5236
  %v5266 = vpop.permute.xlu0 %5265
  %5269 = vset.pattern.permute.xlu0 3
  %5270 = vperm.xlu0 %5269, %v5237
  %v5271 = vpop.permute.xlu0 %5270
  %v5273 = vmul.f32 %v5241, %v2631
  %v5274 = vmul.f32 %v5246, %v2631
  %v5275 = vmul.f32 %v5251, %v2631
  %v5276 = vmul.f32 %v5256, %v2631
  %v5277 = vmul.f32 %v5261, %v2631
  %v5278 = vmul.f32 %v5266, %v2631
  %v5279 = vmul.f32 %v5271, %v2631
  %v5280 = vadd.f32 %v5018, %v5273
  %v5281 = vadd.f32 %v5019, %v5274
  %v5282 = vadd.f32 %v5020, %v5275
  %v5283 = vadd.f32 %v5021, %v5276
  %v5284 = vadd.f32 %v5022, %v5277
  %v5285 = vadd.f32 %v5023, %v5278
  %v5286 = vadd.f32 %v5024, %v5279
  %5294 = vrot.lane.b32.xlu0 %v5280, 32
  %v5295 = vpop.permute.xlu0 %5294
  %5296 = vrot.lane.b32.xlu0 %v5281, 32
  %v5297 = vpop.permute.xlu0 %5296
  %5298 = vrot.lane.b32.xlu0 %v5282, 32
  %v5299 = vpop.permute.xlu0 %5298
  %5300 = vrot.lane.b32.xlu0 %v5283, 32
  %v5301 = vpop.permute.xlu0 %5300
  %5302 = vrot.lane.b32.xlu0 %v5284, 32
  %v5303 = vpop.permute.xlu0 %5302
  %5304 = vrot.lane.b32.xlu0 %v5285, 32
  %v5305 = vpop.permute.xlu0 %5304
  %5306 = vrot.lane.b32.xlu0 %v5286, 32
  %v5307 = vpop.permute.xlu0 %5306
  %v5315 = vmul.f32 %v4055, %v5295
  %v5316 = vmul.f32 %v4056, %v5297
  %v5317 = vmul.f32 %v4057, %v5299
  %v5318 = vmul.f32 %v4058, %v5301
  %v5319 = vmul.f32 %v4059, %v5303
  %v5320 = vmul.f32 %v4060, %v5305
  %v5321 = vmul.f32 %v4061, %v5307
  %5329 = vrot.lane.b32.xlu0 %v5315, 96
  %v5330 = vpop.permute.xlu0 %5329
  %5331 = vrot.lane.b32.xlu0 %v5316, 96
  %v5332 = vpop.permute.xlu0 %5331
  %5333 = vrot.lane.b32.xlu0 %v5317, 96
  %v5334 = vpop.permute.xlu0 %5333
  %5335 = vrot.lane.b32.xlu0 %v5318, 96
  %v5336 = vpop.permute.xlu0 %5335
  %5337 = vrot.lane.b32.xlu0 %v5319, 96
  %v5338 = vpop.permute.xlu0 %5337
  %5339 = vrot.lane.b32.xlu0 %v5320, 96
  %v5340 = vpop.permute.xlu0 %5339
  %5341 = vrot.lane.b32.xlu0 %v5321, 96
  %v5342 = vpop.permute.xlu0 %5341
  %v5349 = vsel %vm243, %v5342, 0
  %5351 = vmatprep.subr.mxu0 0.0
  %5352 = vmatpush1.msra.mxu0 %v5330
  %5353 = vmatprep.subr.mxu0 0.0
  %5354 = vmatpush1.msra.mxu0 %v5332
  %5355 = vmatprep.subr.mxu0 0.0
  %5356 = vmatpush1.msra.mxu0 %v5334
  %5357 = vmatprep.subr.mxu0 0.0
  %5358 = vmatpush1.msra.mxu0 %v5336
  %5359 = vmatprep.subr.mxu0 0.0
  %5360 = vmatpush1.msra.mxu0 %v5338
  %5361 = vmatprep.subr.mxu0 0.0
  %5362 = vmatpush1.msra.mxu0 %v5340
  %5363 = vmatprep.subr.mxu0 0.0
  %5364 = vmatpush1.msra.mxu0 %v5349
  %5365 = vmatprep.subr.mxu0 0.0
  %5366 = vmatpush1.msra.mxu0 0.0
  %5367 = vmatprep.subr.mxu0 0.0
  %5368 = vmatpush1.msra.mxu0 0.0
  %5369 = vmatprep.subr.mxu0 0.0
  %5370 = vmatpush1.msra.mxu0 0.0
  %5371 = vmatprep.subr.mxu0 0.0
  %5372 = vmatpush1.msra.mxu0 0.0
  %5373 = vmatprep.subr.mxu0 0.0
  %5374 = vmatpush1.msra.mxu0 0.0
  %5375 = vmatprep.subr.mxu0 0.0
  %5376 = vmatpush1.msra.mxu0 0.0
  %5377 = vmatprep.subr.mxu0 0.0
  %5378 = vmatpush1.msra.mxu0 0.0
  %5379 = vmatprep.subr.mxu0 0.0
  %5380 = vmatpush1.msra.mxu0 0.0
  %5381 = vmatprep.subr.mxu0 0.0
  %5382 = vmatpush1.msra.mxu0 0.0
  %5383 = vmatprep.subr.mxu0 0.0
  %5384 = vmatpush1.msra.mxu0 0.0
  %5385 = vmatprep.subr.mxu0 0.0
  %5386 = vmatpush1.msra.mxu0 0.0
  %5387 = vmatprep.subr.mxu0 0.0
  %5388 = vmatpush1.msra.mxu0 0.0
  %5389 = vmatprep.subr.mxu0 0.0
  %5390 = vmatpush1.msra.mxu0 0.0
  %5391 = vmatprep.subr.mxu0 0.0
  %5392 = vmatpush1.msra.mxu0 0.0
  %5393 = vmatprep.subr.mxu0 0.0
  %5394 = vmatpush1.msra.mxu0 0.0
  %5395 = vmatprep.subr.mxu0 0.0
  %5396 = vmatpush1.msra.mxu0 0.0
  %5397 = vmatprep.subr.mxu0 0.0
  %5398 = vmatpush1.msra.mxu0 0.0
  %5399 = vmatprep.subr.mxu0 0.0
  %5400 = vmatpush1.msra.mxu0 0.0
  %5401 = vmatprep.subr.mxu0 0.0
  %5402 = vmatpush1.msra.mxu0 0.0
  %5403 = vmatprep.subr.mxu0 0.0
  %5404 = vmatpush1.msra.mxu0 0.0
  %5405 = vmatprep.subr.mxu0 0.0
  %5406 = vmatpush1.msra.mxu0 0.0
  %5407 = vmatprep.subr.mxu0 0.0
  %5408 = vmatpush1.msra.mxu0 0.0
  %5409 = vmatprep.subr.mxu0 0.0
  %5410 = vmatpush1.msra.mxu0 0.0
  %5411 = vmatprep.subr.mxu0 0.0
  %5412 = vmatpush1.msra.mxu0 0.0
  %5413 = vmatprep.subr.mxu0 0.0
  %5414 = vmatpush1.msra.mxu0 0.0
  %5415 = vmatprep.mubr.f32.mxu0 0.0
  %5416 = vmatmul.mubr.f32.gmra.mrb[0].mxu0 %v2958
  %v5417 = vpop.f32.mrb[0].mxu0
  %v5418 = vadd.f32 0.0, %v5417
  %v5419 = vpop.f32.mrb[0].mxu0
  %5420 = vmatprep.mubr.f32.mxu0 0.0
  %5421 = vmatmul.mubr.f32.gmra.mrb[0].mxu0 %v2958
  %v5422 = vpop.f32.mrb[0].mxu0
  %v5423 = vadd.f32 0.0, %v5422
  %v5424 = vpop.f32.mrb[0].mxu0
  %5425 = vmatprep.mubr.f32.mxu0 0.0
  %5426 = vmatmul.mubr.f32.gmra.mrb[0].mxu0 %v2958
  %v5427 = vpop.f32.mrb[0].mxu0
  %v5428 = vadd.f32 0.0, %v5427
  %v5429 = vpop.f32.mrb[0].mxu0
  %5430 = vmatprep.mubr.f32.mxu0 0.0
  %5431 = vmatmul.mubr.f32.gmra.mrb[0].mxu0 %v2958
  %v5432 = vpop.f32.mrb[0].mxu0
  %v5433 = vadd.f32 0.0, %v5432
  %v5434 = vpop.f32.mrb[0].mxu0
  %5435 = vdwg.mxu0
  %v5436 = vld [vmem:[%s17 + $0x20] sm:$0xff]
  %v5437 = vld [vmem:[%s17 + $0x28] sm:$0xff]
  %v5438 = vld [vmem:[%s17 + $0x30] sm:$0xff]
  %v5439 = vld [vmem:[%s17 + $0x38] sm:$0xff]
  %v5440 = vld [vmem:[%s19 + $0x20] sm:$0xff]
  %v5441 = vld [vmem:[%s19 + $0x28] sm:$0xff]
  %v5442 = vld [vmem:[%s19 + $0x30] sm:$0xff]
  %v5443 = vld [vmem:[%s19 + $0x38] sm:$0xff]
  %v5444 = vld [vmem:[%s18 + $0x1] sm:$0x1]
  %v5445 = vlaneseq
  %v5446 = vshrl.u32 %v5445, 7
  %v5447 = vsub.s32 0, %v5446
  %v5448 = vrot.slane %v5444, %v5447
  %v5450 = vsel %vm533, %v5418, 0
  %v5453 = vsel %vm533, %v5423, 0
  %v5456 = vsel %vm533, %v5428, 0
  %v5459 = vsel %vm533, %v5433, 0
  %5461 = vmatprep.subr.mxu0 0.0
  %5462 = vmatpush1.msra.mxu0 %v5436
  %5463 = vmatprep.subr.mxu0 0.0
  %5464 = vmatpush1.msra.mxu0 %v5437
  %5465 = vmatprep.subr.mxu0 0.0
  %5466 = vmatpush1.msra.mxu0 %v5438
  %5467 = vmatprep.subr.mxu0 0.0
  %5468 = vmatpush1.msra.mxu0 %v5439
  %5469 = vmatprep.subr.mxu0 0.0
  %5470 = vmatpush1.msra.mxu0 0.0
  %5471 = vmatprep.subr.mxu0 0.0
  %5472 = vmatpush1.msra.mxu0 0.0
  %5473 = vmatprep.subr.mxu0 0.0
  %5474 = vmatpush1.msra.mxu0 0.0
  %5475 = vmatprep.subr.mxu0 0.0
  %5476 = vmatpush1.msra.mxu0 0.0
  %5477 = vmatprep.subr.mxu0 0.0
  %5478 = vmatpush1.msra.mxu0 0.0
  %5479 = vmatprep.subr.mxu0 0.0
  %5480 = vmatpush1.msra.mxu0 0.0
  %5481 = vmatprep.subr.mxu0 0.0
  %5482 = vmatpush1.msra.mxu0 0.0
  %5483 = vmatprep.subr.mxu0 0.0
  %5484 = vmatpush1.msra.mxu0 0.0
  %5485 = vmatprep.subr.mxu0 0.0
  %5486 = vmatpush1.msra.mxu0 0.0
  %5487 = vmatprep.subr.mxu0 0.0
  %5488 = vmatpush1.msra.mxu0 0.0
  %5489 = vmatprep.subr.mxu0 0.0
  %5490 = vmatpush1.msra.mxu0 0.0
  %5491 = vmatprep.subr.mxu0 0.0
  %5492 = vmatpush1.msra.mxu0 0.0
  %5493 = vmatprep.subr.mxu0 0.0
  %5494 = vmatpush1.msra.mxu0 0.0
  %5495 = vmatprep.subr.mxu0 0.0
  %5496 = vmatpush1.msra.mxu0 0.0
  %5497 = vmatprep.subr.mxu0 0.0
  %5498 = vmatpush1.msra.mxu0 0.0
  %5499 = vmatprep.subr.mxu0 0.0
  %5500 = vmatpush1.msra.mxu0 0.0
  %5501 = vmatprep.subr.mxu0 0.0
  %5502 = vmatpush1.msra.mxu0 0.0
  %5503 = vmatprep.subr.mxu0 0.0
  %5504 = vmatpush1.msra.mxu0 0.0
  %5505 = vmatprep.subr.mxu0 0.0
  %5506 = vmatpush1.msra.mxu0 0.0
  %5507 = vmatprep.subr.mxu0 0.0
  %5508 = vmatpush1.msra.mxu0 0.0
  %5509 = vmatprep.subr.mxu0 0.0
  %5510 = vmatpush1.msra.mxu0 0.0
  %5511 = vmatprep.subr.mxu0 0.0
  %5512 = vmatpush1.msra.mxu0 0.0
  %5513 = vmatprep.subr.mxu0 0.0
  %5514 = vmatpush1.msra.mxu0 0.0
  %5515 = vmatprep.subr.mxu0 0.0
  %5516 = vmatpush1.msra.mxu0 0.0
  %5517 = vmatprep.subr.mxu0 0.0
  %5518 = vmatpush1.msra.mxu0 0.0
  %5519 = vmatprep.subr.mxu0 0.0
  %5520 = vmatpush1.msra.mxu0 0.0
  %5521 = vmatprep.subr.mxu0 0.0
  %5522 = vmatpush1.msra.mxu0 0.0
  %5523 = vmatprep.subr.mxu0 0.0
  %5524 = vmatpush1.msra.mxu0 0.0
  %5525 = vmatprep.mubr.f32.mxu0 0.0
  %5526 = vmatmul.mubr.f32.gmra.mrb[0].mxu0 %v5450
  %v5527 = vpop.f32.mrb[0].mxu0
  %v5528 = vadd.f32 %v5448, %v5527
  %v5529 = vpop.f32.mrb[0].mxu0
  %5530 = vmatprep.mubr.f32.mxu0 0.0
  %5531 = vmatmul.mubr.f32.gmra.mrb[0].mxu0 %v5453
  %v5532 = vpop.f32.mrb[0].mxu0
  %v5533 = vadd.f32 %v5448, %v5532
  %v5534 = vpop.f32.mrb[0].mxu0
  %5535 = vmatprep.mubr.f32.mxu0 0.0
  %5536 = vmatmul.mubr.f32.gmra.mrb[0].mxu0 %v5456
  %v5537 = vpop.f32.mrb[0].mxu0
  %v5538 = vadd.f32 %v5448, %v5537
  %v5539 = vpop.f32.mrb[0].mxu0
  %5540 = vmatprep.mubr.f32.mxu0 0.0
  %5541 = vmatmul.mubr.f32.gmra.mrb[0].mxu0 %v5459
  %v5542 = vpop.f32.mrb[0].mxu0
  %v5543 = vadd.f32 %v5448, %v5542
  %v5544 = vpop.f32.mrb[0].mxu0
  %5545 = vdwg.mxu0
  %v5546 = vmax.f32 %v5528, 0.0
  %v5547 = vmax.f32 %v5533, 0.0
  %v5548 = vmax.f32 %v5538, 0.0
  %v5549 = vmax.f32 %v5543, 0.0
  %v5550 = vld [vmem:[%s20 + $0x1] sm:$0x1]
  %v5551 = vlaneseq
  %v5552 = vshrl.u32 %v5551, 7
  %v5553 = vsub.s32 0, %v5552
  %v5554 = vrot.slane %v5550, %v5553
  %v5556 = vsel %vm533, %v5546, 0
  %v5559 = vsel %vm533, %v5547, 0
  %v5562 = vsel %vm533, %v5548, 0
  %v5565 = vsel %vm533, %v5549, 0
  %5567 = vmatprep.subr.mxu0 0.0
  %5568 = vmatpush1.msra.mxu0 %v5440
  %5569 = vmatprep.subr.mxu0 0.0
  %5570 = vmatpush1.msra.mxu0 %v5441
  %5571 = vmatprep.subr.mxu0 0.0
  %5572 = vmatpush1.msra.mxu0 %v5442
  %5573 = vmatprep.subr.mxu0 0.0
  %5574 = vmatpush1.msra.mxu0 %v5443
  %5575 = vmatprep.subr.mxu0 0.0
  %5576 = vmatpush1.msra.mxu0 0.0
  %5577 = vmatprep.subr.mxu0 0.0
  %5578 = vmatpush1.msra.mxu0 0.0
  %5579 = vmatprep.subr.mxu0 0.0
  %5580 = vmatpush1.msra.mxu0 0.0
  %5581 = vmatprep.subr.mxu0 0.0
  %5582 = vmatpush1.msra.mxu0 0.0
  %5583 = vmatprep.subr.mxu0 0.0
  %5584 = vmatpush1.msra.mxu0 0.0
  %5585 = vmatprep.subr.mxu0 0.0
  %5586 = vmatpush1.msra.mxu0 0.0
  %5587 = vmatprep.subr.mxu0 0.0
  %5588 = vmatpush1.msra.mxu0 0.0
  %5589 = vmatprep.subr.mxu0 0.0
  %5590 = vmatpush1.msra.mxu0 0.0
  %5591 = vmatprep.subr.mxu0 0.0
  %5592 = vmatpush1.msra.mxu0 0.0
  %5593 = vmatprep.subr.mxu0 0.0
  %5594 = vmatpush1.msra.mxu0 0.0
  %5595 = vmatprep.subr.mxu0 0.0
  %5596 = vmatpush1.msra.mxu0 0.0
  %5597 = vmatprep.subr.mxu0 0.0
  %5598 = vmatpush1.msra.mxu0 0.0
  %5599 = vmatprep.subr.mxu0 0.0
  %5600 = vmatpush1.msra.mxu0 0.0
  %5601 = vmatprep.subr.mxu0 0.0
  %5602 = vmatpush1.msra.mxu0 0.0
  %5603 = vmatprep.subr.mxu0 0.0
  %5604 = vmatpush1.msra.mxu0 0.0
  %5605 = vmatprep.subr.mxu0 0.0
  %5606 = vmatpush1.msra.mxu0 0.0
  %5607 = vmatprep.subr.mxu0 0.0
  %5608 = vmatpush1.msra.mxu0 0.0
  %5609 = vmatprep.subr.mxu0 0.0
  %5610 = vmatpush1.msra.mxu0 0.0
  %5611 = vmatprep.subr.mxu0 0.0
  %5612 = vmatpush1.msra.mxu0 0.0
  %5613 = vmatprep.subr.mxu0 0.0
  %5614 = vmatpush1.msra.mxu0 0.0
  %5615 = vmatprep.subr.mxu0 0.0
  %5616 = vmatpush1.msra.mxu0 0.0
  %5617 = vmatprep.subr.mxu0 0.0
  %5618 = vmatpush1.msra.mxu0 0.0
  %5619 = vmatprep.subr.mxu0 0.0
  %5620 = vmatpush1.msra.mxu0 0.0
  %5621 = vmatprep.subr.mxu0 0.0
  %5622 = vmatpush1.msra.mxu0 0.0
  %5623 = vmatprep.subr.mxu0 0.0
  %5624 = vmatpush1.msra.mxu0 0.0
  %5625 = vmatprep.subr.mxu0 0.0
  %5626 = vmatpush1.msra.mxu0 0.0
  %5627 = vmatprep.subr.mxu0 0.0
  %5628 = vmatpush1.msra.mxu0 0.0
  %5629 = vmatprep.subr.mxu0 0.0
  %5630 = vmatpush1.msra.mxu0 0.0
  %5631 = vmatprep.mubr.f32.mxu0 0.0
  %5632 = vmatmul.mubr.f32.gmra.mrb[0].mxu0 %v5556
  %v5633 = vpop.f32.mrb[0].mxu0
  %v5634 = vadd.f32 %v5554, %v5633
  %v5635 = vpop.f32.mrb[0].mxu0
  %5636 = vmatprep.mubr.f32.mxu0 0.0
  %5637 = vmatmul.mubr.f32.gmra.mrb[0].mxu0 %v5559
  %v5638 = vpop.f32.mrb[0].mxu0
  %v5639 = vadd.f32 %v5554, %v5638
  %v5640 = vpop.f32.mrb[0].mxu0
  %5641 = vmatprep.mubr.f32.mxu0 0.0
  %5642 = vmatmul.mubr.f32.gmra.mrb[0].mxu0 %v5562
  %v5643 = vpop.f32.mrb[0].mxu0
  %v5644 = vadd.f32 %v5554, %v5643
  %v5645 = vpop.f32.mrb[0].mxu0
  %5646 = vmatprep.mubr.f32.mxu0 0.0
  %5647 = vmatmul.mubr.f32.gmra.mrb[0].mxu0 %v5565
  %v5648 = vpop.f32.mrb[0].mxu0
  %v5649 = vadd.f32 %v5554, %v5648
  %v5650 = vpop.f32.mrb[0].mxu0
  %5651 = vdwg.mxu0
  %v5652 = vmul.f32 %v5634, 0.5
  %v5653 = vmul.f32 %v5639, 0.5
  %v5654 = vmul.f32 %v5644, 0.5
  %v5655 = vmul.f32 %v5649, 0.5
  %v5656 = vmul.f32 %v5634, 0.70710677
  %v5657 = vmul.f32 %v5639, 0.70710677
  %v5658 = vmul.f32 %v5644, 0.70710677
  %v5659 = vmul.f32 %v5649, 0.70710677
  %v5660 = vand.u32 2147483647, %v5656
  %v5661 = vand.u32 2147483647, %v5657
  %v5662 = vand.u32 2147483647, %v5658
  %v5663 = vand.u32 2147483647, %v5659
  %v5664 = vmul.f32 %v5660, 0.3275911
  %v5665 = vmul.f32 %v5661, 0.3275911
  %v5666 = vmul.f32 %v5662, 0.3275911
  %v5667 = vmul.f32 %v5663, 0.3275911
  %v5668 = vadd.f32 %v5664, 1.0
  %v5669 = vadd.f32 %v5665, 1.0
  %v5670 = vadd.f32 %v5666, 1.0
  %v5671 = vadd.f32 %v5667, 1.0
  %v5672 = vrcp.pop %v5668
  %v5673 = vmul.f32 1.0, %v5672
  %v5674 = vrcp.pop %v5669
  %v5675 = vmul.f32 1.0, %v5674
  %v5676 = vrcp.pop %v5670
  %v5677 = vmul.f32 1.0, %v5676
  %v5678 = vrcp.pop %v5671
  %v5679 = vmul.f32 1.0, %v5678
  %v5680 = vmul.f32 %v5673, 1.0614054
  %v5681 = vmul.f32 %v5675, 1.0614054
  %v5682 = vmul.f32 %v5677, 1.0614054
  %v5683 = vmul.f32 %v5679, 1.0614054
  %v5684 = vadd.f32 %v5680, -1.4531521
  %v5685 = vadd.f32 %v5681, -1.4531521
  %v5686 = vadd.f32 %v5682, -1.4531521
  %v5687 = vadd.f32 %v5683, -1.4531521
  %v5688 = vmul.f32 %v5684, %v5673
  %v5689 = vmul.f32 %v5685, %v5675
  %v5690 = vmul.f32 %v5686, %v5677
  %v5691 = vmul.f32 %v5687, %v5679
  %v5692 = vadd.f32 %v5688, 1.4214138
  %v5693 = vadd.f32 %v5689, 1.4214138
  %v5694 = vadd.f32 %v5690, 1.4214138
  %v5695 = vadd.f32 %v5691, 1.4214138
  %v5696 = vmul.f32 %v5692, %v5673
  %v5697 = vmul.f32 %v5693, %v5675
  %v5698 = vmul.f32 %v5694, %v5677
  %v5699 = vmul.f32 %v5695, %v5679
  %v5700 = vadd.f32 %v5696, -0.28449672
  %v5701 = vadd.f32 %v5697, -0.28449672
  %v5702 = vadd.f32 %v5698, -0.28449672
  %v5703 = vadd.f32 %v5699, -0.28449672
  %v5704 = vmul.f32 %v5700, %v5673
  %v5705 = vmul.f32 %v5701, %v5675
  %v5706 = vmul.f32 %v5702, %v5677
  %v5707 = vmul.f32 %v5703, %v5679
  %v5708 = vadd.f32 %v5704, 0.2548296
  %v5709 = vadd.f32 %v5705, 0.2548296
  %v5710 = vadd.f32 %v5706, 0.2548296
  %v5711 = vadd.f32 %v5707, 0.2548296
  %v5712 = vmul.f32 %v5708, %v5673
  %v5713 = vmul.f32 %v5709, %v5675
  %v5714 = vmul.f32 %v5710, %v5677
  %v5715 = vmul.f32 %v5711, %v5679
  %v5716 = vsub.f32 0.0, %v5660
  %v5717 = vsub.f32 0.0, %v5661
  %v5718 = vsub.f32 0.0, %v5662
  %v5719 = vsub.f32 0.0, %v5663
  %v5720 = vmul.f32 %v5716, %v5660
  %v5721 = vmul.f32 %v5717, %v5661
  %v5722 = vmul.f32 %v5718, %v5662
  %v5723 = vmul.f32 %v5719, %v5663
  %v5724 = vmul.f32 %v5720, 1.442695
  %v5725 = vpow.pop %v5724
  %v5726 = vmul.f32 %v5721, 1.442695
  %v5727 = vpow.pop %v5726
  %v5728 = vmul.f32 %v5722, 1.442695
  %v5729 = vpow.pop %v5728
  %v5730 = vmul.f32 %v5723, 1.442695
  %v5731 = vpow.pop %v5730
  %v5732 = vmul.f32 %v5712, %v5725
  %v5733 = vmul.f32 %v5713, %v5727
  %v5734 = vmul.f32 %v5714, %v5729
  %v5735 = vmul.f32 %v5715, %v5731
  %v5736 = vsub.f32 1.0, %v5732
  %v5737 = vsub.f32 1.0, %v5733
  %v5738 = vsub.f32 1.0, %v5734
  %v5739 = vsub.f32 1.0, %v5735
  %vm5740 = vcmp.ge.f32.partialorder %v5656, 0.0
  %vm5741 = vcmp.ge.f32.partialorder %v5657, 0.0
  %vm5742 = vcmp.ge.f32.partialorder %v5658, 0.0
  %vm5743 = vcmp.ge.f32.partialorder %v5659, 0.0
  %v5744 = vsub.f32 0.0, %v5736
  %v5745 = vsub.f32 0.0, %v5737
  %v5746 = vsub.f32 0.0, %v5738
  %v5747 = vsub.f32 0.0, %v5739
  %v5748 = vsel %vm5740, %v5736, %v5744
  %v5749 = vsel %vm5741, %v5737, %v5745
  %v5750 = vsel %vm5742, %v5738, %v5746
  %v5751 = vsel %vm5743, %v5739, %v5747
  %v5752 = vadd.f32 %v5748, 1.0
  %v5753 = vadd.f32 %v5749, 1.0
  %v5754 = vadd.f32 %v5750, 1.0
  %v5755 = vadd.f32 %v5751, 1.0
  %v5756 = vmul.f32 %v5652, %v5752
  %v5757 = vmul.f32 %v5653, %v5753
  %v5758 = vmul.f32 %v5654, %v5754
  %v5759 = vmul.f32 %v5655, %v5755
  %v5760 = vld [vmem:[%s21] sm:$0xff]
  %v5761 = vld [vmem:[%s21 + $0x8] sm:$0xff]
  %v5762 = vld [vmem:[%s21 + $0x10] sm:$0xff]
  %v5763 = vld [vmem:[%s21 + $0x18] sm:$0xff]
  %v5764 = vld [vmem:[%s22] sm:$0x1]
  %v5766 = vlaneseq
  %v5767 = vshrl.u32 %v5766, 7
  %v5768 = vsub.s32 0, %v5767
  %v5769 = vrot.slane %v5764, %v5768
  %5771 = vmatprep.subr.mxu0 0.0
  %5772 = vmatpush1.msra.mxu0 %v5760
  %5773 = vmatprep.subr.mxu0 0.0
  %5774 = vmatpush1.msra.mxu0 %v5761
  %5775 = vmatprep.subr.mxu0 0.0
  %5776 = vmatpush1.msra.mxu0 %v5762
  %5777 = vmatprep.subr.mxu0 0.0
  %5778 = vmatpush1.msra.mxu0 %v5763
  %5779 = vmatprep.subr.mxu0 0.0
  %5780 = vmatpush1.msra.mxu0 0.0
  %5781 = vmatprep.subr.mxu0 0.0
  %5782 = vmatpush1.msra.mxu0 0.0
  %5783 = vmatprep.subr.mxu0 0.0
  %5784 = vmatpush1.msra.mxu0 0.0
  %5785 = vmatprep.subr.mxu0 0.0
  %5786 = vmatpush1.msra.mxu0 0.0
  %5787 = vmatprep.subr.mxu0 0.0
  %5788 = vmatpush1.msra.mxu0 0.0
  %5789 = vmatprep.subr.mxu0 0.0
  %5790 = vmatpush1.msra.mxu0 0.0
  %5791 = vmatprep.subr.mxu0 0.0
  %5792 = vmatpush1.msra.mxu0 0.0
  %5793 = vmatprep.subr.mxu0 0.0
  %5794 = vmatpush1.msra.mxu0 0.0
  %5795 = vmatprep.subr.mxu0 0.0
  %5796 = vmatpush1.msra.mxu0 0.0
  %5797 = vmatprep.subr.mxu0 0.0
  %5798 = vmatpush1.msra.mxu0 0.0
  %5799 = vmatprep.subr.mxu0 0.0
  %5800 = vmatpush1.msra.mxu0 0.0
  %5801 = vmatprep.subr.mxu0 0.0
  %5802 = vmatpush1.msra.mxu0 0.0
  %5803 = vmatprep.subr.mxu0 0.0
  %5804 = vmatpush1.msra.mxu0 0.0
  %5805 = vmatprep.subr.mxu0 0.0
  %5806 = vmatpush1.msra.mxu0 0.0
  %5807 = vmatprep.subr.mxu0 0.0
  %5808 = vmatpush1.msra.mxu0 0.0
  %5809 = vmatprep.subr.mxu0 0.0
  %5810 = vmatpush1.msra.mxu0 0.0
  %5811 = vmatprep.subr.mxu0 0.0
  %5812 = vmatpush1.msra.mxu0 0.0
  %5813 = vmatprep.subr.mxu0 0.0
  %5814 = vmatpush1.msra.mxu0 0.0
  %5815 = vmatprep.subr.mxu0 0.0
  %5816 = vmatpush1.msra.mxu0 0.0
  %5817 = vmatprep.subr.mxu0 0.0
  %5818 = vmatpush1.msra.mxu0 0.0
  %5819 = vmatprep.subr.mxu0 0.0
  %5820 = vmatpush1.msra.mxu0 0.0
  %5821 = vmatprep.subr.mxu0 0.0
  %5822 = vmatpush1.msra.mxu0 0.0
  %5823 = vmatprep.subr.mxu0 0.0
  %5824 = vmatpush1.msra.mxu0 0.0
  %5825 = vmatprep.subr.mxu0 0.0
  %5826 = vmatpush1.msra.mxu0 0.0
  %5827 = vmatprep.subr.mxu0 0.0
  %5828 = vmatpush1.msra.mxu0 0.0
  %5829 = vmatprep.subr.mxu0 0.0
  %5830 = vmatpush1.msra.mxu0 0.0
  %5831 = vmatprep.subr.mxu0 0.0
  %5832 = vmatpush1.msra.mxu0 0.0
  %5833 = vmatprep.subr.mxu0 0.0
  %5834 = vmatpush1.msra.mxu0 0.0
  %5835 = vmatprep.mubr.f32.mxu0 0.0
  %5836 = vmatmul.mubr.f32.gmra.mrb[0].mxu0 %v1006
  %v5837 = vpop.f32.mrb[0].mxu0
  %v5838 = vadd.f32 %v5769, %v5837
  %v5839 = vpop.f32.mrb[0].mxu0
  %5840 = vmatprep.mubr.f32.mxu0 0.0
  %5841 = vmatmul.mubr.f32.gmra.mrb[0].mxu0 %v1009
  %v5842 = vpop.f32.mrb[0].mxu0
  %v5843 = vadd.f32 %v5769, %v5842
  %v5844 = vpop.f32.mrb[0].mxu0
  %5845 = vmatprep.mubr.f32.mxu0 0.0
  %5846 = vmatmul.mubr.f32.gmra.mrb[0].mxu0 %v1012
  %v5847 = vpop.f32.mrb[0].mxu0
  %v5848 = vadd.f32 %v5769, %v5847
  %v5849 = vpop.f32.mrb[0].mxu0
  %5850 = vmatprep.mubr.f32.mxu0 0.0
  %5851 = vmatmul.mubr.f32.gmra.mrb[0].mxu0 %v1015
  %v5852 = vpop.f32.mrb[0].mxu0
  %v5853 = vadd.f32 %v5769, %v5852
  %v5854 = vpop.f32.mrb[0].mxu0
  %5855 = vdwg.mxu0
  %v5856 = vld [vmem:[%s23] sm:$0xff]
  %v5857 = vld [vmem:[%s23 + $0x8] sm:$0xff]
  %v5858 = vld [vmem:[%s23 + $0x10] sm:$0xff]
  %v5859 = vld [vmem:[%s23 + $0x18] sm:$0xff]
  %v5861 = vsel %vm533, %v5756, 0
  %v5864 = vsel %vm533, %v5757, 0
  %v5867 = vsel %vm533, %v5758, 0
  %v5870 = vsel %vm533, %v5759, 0
  %5872 = vmatprep.subr.mxu0 0.0
  %5873 = vmatpush1.msra.mxu0 %v5856
  %5874 = vmatprep.subr.mxu0 0.0
  %5875 = vmatpush1.msra.mxu0 %v5857
  %5876 = vmatprep.subr.mxu0 0.0
  %5877 = vmatpush1.msra.mxu0 %v5858
  %5878 = vmatprep.subr.mxu0 0.0
  %5879 = vmatpush1.msra.mxu0 %v5859
  %5880 = vmatprep.subr.mxu0 0.0
  %5881 = vmatpush1.msra.mxu0 0.0
  %5882 = vmatprep.subr.mxu0 0.0
  %5883 = vmatpush1.msra.mxu0 0.0
  %5884 = vmatprep.subr.mxu0 0.0
  %5885 = vmatpush1.msra.mxu0 0.0
  %5886 = vmatprep.subr.mxu0 0.0
  %5887 = vmatpush1.msra.mxu0 0.0
  %5888 = vmatprep.subr.mxu0 0.0
  %5889 = vmatpush1.msra.mxu0 0.0
  %5890 = vmatprep.subr.mxu0 0.0
  %5891 = vmatpush1.msra.mxu0 0.0
  %5892 = vmatprep.subr.mxu0 0.0
  %5893 = vmatpush1.msra.mxu0 0.0
  %5894 = vmatprep.subr.mxu0 0.0
  %5895 = vmatpush1.msra.mxu0 0.0
  %5896 = vmatprep.subr.mxu0 0.0
  %5897 = vmatpush1.msra.mxu0 0.0
  %5898 = vmatprep.subr.mxu0 0.0
  %5899 = vmatpush1.msra.mxu0 0.0
  %5900 = vmatprep.subr.mxu0 0.0
  %5901 = vmatpush1.msra.mxu0 0.0
  %5902 = vmatprep.subr.mxu0 0.0
  %5903 = vmatpush1.msra.mxu0 0.0
  %5904 = vmatprep.subr.mxu0 0.0
  %5905 = vmatpush1.msra.mxu0 0.0
  %5906 = vmatprep.subr.mxu0 0.0
  %5907 = vmatpush1.msra.mxu0 0.0
  %5908 = vmatprep.subr.mxu0 0.0
  %5909 = vmatpush1.msra.mxu0 0.0
  %5910 = vmatprep.subr.mxu0 0.0
  %5911 = vmatpush1.msra.mxu0 0.0
  %5912 = vmatprep.subr.mxu0 0.0
  %5913 = vmatpush1.msra.mxu0 0.0
  %5914 = vmatprep.subr.mxu0 0.0
  %5915 = vmatpush1.msra.mxu0 0.0
  %5916 = vmatprep.subr.mxu0 0.0
  %5917 = vmatpush1.msra.mxu0 0.0
  %5918 = vmatprep.subr.mxu0 0.0
  %5919 = vmatpush1.msra.mxu0 0.0
  %5920 = vmatprep.subr.mxu0 0.0
  %5921 = vmatpush1.msra.mxu0 0.0
  %5922 = vmatprep.subr.mxu0 0.0
  %5923 = vmatpush1.msra.mxu0 0.0
  %5924 = vmatprep.subr.mxu0 0.0
  %5925 = vmatpush1.msra.mxu0 0.0
  %5926 = vmatprep.subr.mxu0 0.0
  %5927 = vmatpush1.msra.mxu0 0.0
  %5928 = vmatprep.subr.mxu0 0.0
  %5929 = vmatpush1.msra.mxu0 0.0
  %5930 = vmatprep.subr.mxu0 0.0
  %5931 = vmatpush1.msra.mxu0 0.0
  %5932 = vmatprep.subr.mxu0 0.0
  %5933 = vmatpush1.msra.mxu0 0.0
  %5934 = vmatprep.subr.mxu0 0.0
  %5935 = vmatpush1.msra.mxu0 0.0
  %5936 = vmatprep.mubr.f32.mxu0 0.0
  %5937 = vmatmul.mubr.f32.gmra.mrb[0].mxu0 %v5861
  %v5938 = vpop.f32.mrb[0].mxu0
  %v5939 = vadd.f32 0.0, %v5938
  %v5940 = vpop.f32.mrb[0].mxu0
  %5941 = vmatprep.mubr.f32.mxu0 0.0
  %5942 = vmatmul.mubr.f32.gmra.mrb[0].mxu0 %v5864
  %v5943 = vpop.f32.mrb[0].mxu0
  %v5944 = vadd.f32 0.0, %v5943
  %v5945 = vpop.f32.mrb[0].mxu0
  %5946 = vmatprep.mubr.f32.mxu0 0.0
  %5947 = vmatmul.mubr.f32.gmra.mrb[0].mxu0 %v5867
  %v5948 = vpop.f32.mrb[0].mxu0
  %v5949 = vadd.f32 0.0, %v5948
  %v5950 = vpop.f32.mrb[0].mxu0
  %5951 = vmatprep.mubr.f32.mxu0 0.0
  %5952 = vmatmul.mubr.f32.gmra.mrb[0].mxu0 %v5870
  %v5953 = vpop.f32.mrb[0].mxu0
  %v5954 = vadd.f32 0.0, %v5953
  %v5955 = vpop.f32.mrb[0].mxu0
  %5956 = vdwg.mxu0
  %v5957 = vadd.f32 %v5838, %v5939
  %v5958 = vadd.f32 %v5843, %v5944
  %v5959 = vadd.f32 %v5848, %v5949
  %v5960 = vadd.f32 %v5853, %v5954
  %v5961 = vld [vmem:[%s24] sm:$0x1]
  %v5963 = vlaneseq
  %v5964 = vshrl.u32 %v5963, 7
  %v5965 = vsub.s32 0, %v5964
  %v5966 = vrot.slane %v5961, %v5965
  %v5968 = vadd.f32 %v5957, %v5966
  %v5969 = vadd.f32 %v5958, %v5966
  %v5970 = vadd.f32 %v5959, %v5966
  %v5971 = vadd.f32 %v5960, %v5966
  %v5972 = vmul.f32 %v5968, 0.5
  %v5973 = vmul.f32 %v5969, 0.5
  %v5974 = vmul.f32 %v5970, 0.5
  %v5975 = vmul.f32 %v5971, 0.5
  %v5976 = vmul.f32 %v5968, 0.70710677
  %v5977 = vmul.f32 %v5969, 0.70710677
  %v5978 = vmul.f32 %v5970, 0.70710677
  %v5979 = vmul.f32 %v5971, 0.70710677
  %v5980 = vand.u32 2147483647, %v5976
  %v5981 = vand.u32 2147483647, %v5977
  %v5982 = vand.u32 2147483647, %v5978
  %v5983 = vand.u32 2147483647, %v5979
  %v5984 = vmul.f32 %v5980, 0.3275911
  %v5985 = vmul.f32 %v5981, 0.3275911
  %v5986 = vmul.f32 %v5982, 0.3275911
  %v5987 = vmul.f32 %v5983, 0.3275911
  %v5988 = vadd.f32 %v5984, 1.0
  %v5989 = vadd.f32 %v5985, 1.0
  %v5990 = vadd.f32 %v5986, 1.0
  %v5991 = vadd.f32 %v5987, 1.0
  %v5992 = vrcp.pop %v5988
  %v5993 = vmul.f32 1.0, %v5992
  %v5994 = vrcp.pop %v5989
  %v5995 = vmul.f32 1.0, %v5994
  %v5996 = vrcp.pop %v5990
  %v5997 = vmul.f32 1.0, %v5996
  %v5998 = vrcp.pop %v5991
  %v5999 = vmul.f32 1.0, %v5998
  %v6000 = vmul.f32 %v5993, 1.0614054
  %v6001 = vmul.f32 %v5995, 1.0614054
  %v6002 = vmul.f32 %v5997, 1.0614054
  %v6003 = vmul.f32 %v5999, 1.0614054
  %v6004 = vadd.f32 %v6000, -1.4531521
  %v6005 = vadd.f32 %v6001, -1.4531521
  %v6006 = vadd.f32 %v6002, -1.4531521
  %v6007 = vadd.f32 %v6003, -1.4531521
  %v6008 = vmul.f32 %v6004, %v5993
  %v6009 = vmul.f32 %v6005, %v5995
  %v6010 = vmul.f32 %v6006, %v5997
  %v6011 = vmul.f32 %v6007, %v5999
  %v6012 = vadd.f32 %v6008, 1.4214138
  %v6013 = vadd.f32 %v6009, 1.4214138
  %v6014 = vadd.f32 %v6010, 1.4214138
  %v6015 = vadd.f32 %v6011, 1.4214138
  %v6016 = vmul.f32 %v6012, %v5993
  %v6017 = vmul.f32 %v6013, %v5995
  %v6018 = vmul.f32 %v6014, %v5997
  %v6019 = vmul.f32 %v6015, %v5999
  %v6020 = vadd.f32 %v6016, -0.28449672
  %v6021 = vadd.f32 %v6017, -0.28449672
  %v6022 = vadd.f32 %v6018, -0.28449672
  %v6023 = vadd.f32 %v6019, -0.28449672
  %v6024 = vmul.f32 %v6020, %v5993
  %v6025 = vmul.f32 %v6021, %v5995
  %v6026 = vmul.f32 %v6022, %v5997
  %v6027 = vmul.f32 %v6023, %v5999
  %v6028 = vadd.f32 %v6024, 0.2548296
  %v6029 = vadd.f32 %v6025, 0.2548296
  %v6030 = vadd.f32 %v6026, 0.2548296
  %v6031 = vadd.f32 %v6027, 0.2548296
  %v6032 = vmul.f32 %v6028, %v5993
  %v6033 = vmul.f32 %v6029, %v5995
  %v6034 = vmul.f32 %v6030, %v5997
  %v6035 = vmul.f32 %v6031, %v5999
  %v6036 = vsub.f32 0.0, %v5980
  %v6037 = vsub.f32 0.0, %v5981
  %v6038 = vsub.f32 0.0, %v5982
  %v6039 = vsub.f32 0.0, %v5983
  %v6040 = vmul.f32 %v6036, %v5980
  %v6041 = vmul.f32 %v6037, %v5981
  %v6042 = vmul.f32 %v6038, %v5982
  %v6043 = vmul.f32 %v6039, %v5983
  %v6044 = vmul.f32 %v6040, 1.442695
  %v6045 = vpow.pop %v6044
  %v6046 = vmul.f32 %v6041, 1.442695
  %v6047 = vpow.pop %v6046
  %v6048 = vmul.f32 %v6042, 1.442695
  %v6049 = vpow.pop %v6048
  %v6050 = vmul.f32 %v6043, 1.442695
  %v6051 = vpow.pop %v6050
  %v6052 = vmul.f32 %v6032, %v6045
  %v6053 = vmul.f32 %v6033, %v6047
  %v6054 = vmul.f32 %v6034, %v6049
  %v6055 = vmul.f32 %v6035, %v6051
  %v6056 = vsub.f32 1.0, %v6052
  %v6057 = vsub.f32 1.0, %v6053
  %v6058 = vsub.f32 1.0, %v6054
  %v6059 = vsub.f32 1.0, %v6055
  %vm6060 = vcmp.ge.f32.partialorder %v5976, 0.0
  %vm6061 = vcmp.ge.f32.partialorder %v5977, 0.0
  %vm6062 = vcmp.ge.f32.partialorder %v5978, 0.0
  %vm6063 = vcmp.ge.f32.partialorder %v5979, 0.0
  %v6064 = vsub.f32 0.0, %v6056
  %v6065 = vsub.f32 0.0, %v6057
  %v6066 = vsub.f32 0.0, %v6058
  %v6067 = vsub.f32 0.0, %v6059
  %v6068 = vsel %vm6060, %v6056, %v6064
  %v6069 = vsel %vm6061, %v6057, %v6065
  %v6070 = vsel %vm6062, %v6058, %v6066
  %v6071 = vsel %vm6063, %v6059, %v6067
  %v6072 = vadd.f32 %v6068, 1.0
  %v6073 = vadd.f32 %v6069, 1.0
  %v6074 = vadd.f32 %v6070, 1.0
  %v6075 = vadd.f32 %v6071, 1.0
  %v6076 = vmul.f32 %v5972, %v6072
  %v6077 = vmul.f32 %v5973, %v6073
  %v6078 = vmul.f32 %v5974, %v6074
  %v6079 = vmul.f32 %v5975, %v6075
  %6080 = vst.msk [vmem:[%s25] sm:$0xff] %vm533, %v6076
  %6081 = vst.msk [vmem:[%s25 + $0x8] sm:$0xff] %vm533, %v6077
  %6082 = vst.msk [vmem:[%s25 + $0x10] sm:$0xff] %vm533, %v6078
  %6083 = vst.msk [vmem:[%s25 + $0x18] sm:$0xff] %vm533, %v6079
  // Predicated region
  $region102: #{lm_qagnn_forward.4} parent=0 // pred_check
    _
  $region103: #{lm_qagnn_forward.4} parent=0 // pred_check_branch
    %6085 = sbr.rel (0) target = $region105
  $region104: #{lm_qagnn_forward.4} parent=0 // pred_region
    _
  $region105: #{lm_qagnn_forward.4} parent=0 // pred_fallthru
    _
  // Predicated region
  $region106: #{lm_qagnn_forward.4} parent=0 // pred_check
    _
  $region107: #{lm_qagnn_forward.4} parent=0 // pred_check_branch
    %6087 = sbr.rel (0) target = $region109
  $region108: #{lm_qagnn_forward.4} parent=0 // pred_region
    _
  $region109: #{lm_qagnn_forward.4} parent=0 // pred_fallthru
    _

</llo_original>
